<compile_context>
chip_gen: v5e
topology: v5e:2x2
jax: 0.10.0
libtpu: 0.0.40
codegen_flags: <defaults>
</compile_context>

<pallas_src>
import numpy as np

import jax
import jax.numpy as jnp
from jax import lax
from jax.experimental import pallas as pl
from jax.experimental.pallas import tpu as pltpu


# ---------------------------------------------------------------------------
# Host-side constant builders (run once, outside the forward hot path)
# ---------------------------------------------------------------------------
def _round_up(x, m):
    return ((x + m - 1) // m) * m


def _conv_matrix(w, h, w_in, stride, pad):
    """Dense conv-as-matmul matrix.

    Input layout  : flat index q = (iy*W + ix)*C_in  + c_in   (pos-major)
    Output layout : flat index r = (oy*OW + ox)*C_out + c_out
    M[q, r] = W[c_out, c_in, ki, kj] for the unique (ki,kj) linking q->r;
    taps that fall into the zero padding simply stay zero.
    """
    c_out, c_in, kh, kw = w.shape
    oh = (h + 2 * pad - kh) // stride + 1
    ow = (w_in + 2 * pad - kw) // stride + 1
    m = np.zeros((h * w_in * c_in, oh * ow * c_out), np.float32)
    for oy in range(oh):
        for ox in range(ow):
            r0 = (oy * ow + ox) * c_out
            for ki in range(kh):
                iy = oy * stride + ki - pad
                if not (0 <= iy < h):
                    continue
                for kj in range(kw):
                    ix = ox * stride + kj - pad
                    if not (0 <= ix < w_in):
                        continue
                    q0 = (iy * w_in + ix) * c_in
                    m[q0:q0 + c_in, r0:r0 + c_out] = w[:, :, ki, kj].T
    return m, oh, ow


def _norm_matrix(p, c):
    """Q[(p*C+c), (p'*C+c')] = 1/P iff c==c'.  y @ Q gives the per-channel
    spatial mean already broadcast back over every position."""
    q = np.zeros((p * c, p * c), np.float32)
    inv_p = 1.0 / p
    for cc in range(c):
        idx = np.arange(p) * c + cc
        q[np.ix_(idx, idx)] = inv_p
    return q


# ---------------------------------------------------------------------------
# Fused discriminator kernel: one grid step == one block of B_BLK samples
# ---------------------------------------------------------------------------
def _dis_kernel(x_ref, m1_ref, m2_ref, q2_ref, m3_ref, q3_ref, w4_ref, o_ref):
    f32 = jnp.float32
    bf16 = jnp.bfloat16

    def leaky(y):
        return jnp.where(y >= 0, y, 0.2 * y)

    def inorm(y, q_ref):
        # InstanceNorm2d (affine=False, eps=1e-5) in the flat layout.
        # y @ Q = per-(sample, channel) spatial mean, broadcast over positions.
        # Single-pass biased variance (E[x^2] - mean^2), all stats in f32.
        mean = jnp.dot(y, q_ref[...], preferred_element_type=f32)
        mean_sq = jnp.dot(y * y, q_ref[...], preferred_element_type=f32)
        var = mean_sq - mean * mean
        return (y - mean) * lax.rsqrt(var + 1e-5)

    # ---- layer 1: conv(1 -> nf) + LeakyReLU ------------------------------
    a = jnp.dot(x_ref[...], m1_ref[...], preferred_element_type=f32)  # (B, P1*nf)
    a = leaky(a)

    # ---- layer 2: conv(nf -> 2nf) + InstanceNorm + LeakyReLU -------------
    a = jnp.dot(a.astype(bf16), m2_ref[...], preferred_element_type=f32)  # (B, P2*2nf)
    a = leaky(inorm(a, q2_ref))

    # ---- layer 3: conv(2nf -> 4nf) + InstanceNorm + LeakyReLU ------------
    a = jnp.dot(a.astype(bf16), m3_ref[...], preferred_element_type=f32)  # (B, P3*4nf)
    a = leaky(inorm(a, q3_ref))

    # ---- layer 4: 4x4 valid conv (C_out=1) folded to a dot + Sigmoid -----
    logit = jnp.sum(a * w4_ref[...], axis=1, keepdims=True)              # (B, 1)
    o_ref[...] = jax.nn.sigmoid(logit)


# ---------------------------------------------------------------------------
# Parameter construction / one-time preparation
# ---------------------------------------------------------------------------
def init_params(key, n_filters):
    ks = jax.random.split(key, 4)

    def w(k, shape):
        # deterministic synthetic init (DCGAN-style N(0, 0.02))
        return 0.02 * jax.random.normal(k, shape, dtype=jnp.float32)

    return {
        "w1": w(ks[0], (n_filters, 1, 4, 4)),
        "w2": w(ks[1], (n_filters * 2, n_filters, 4, 4)),
        "w3": w(ks[2], (n_filters * 4, n_filters * 2, 3, 3)),
        "w4": w(ks[3], (1, n_filters * 4, 4, 4)),
    }


def prepare_params(params, image_size=32):
    """Fold conv weights into dense conv-as-matmul matrices and build the
    InstanceNorm averaging matrices, once."""
    nf = params["w1"].shape[0]
    w1 = np.asarray(params["w1"], np.float32)
    w2 = np.asarray(params["w2"], np.float32)
    w3 = np.asarray(params["w3"], np.float32)
    w4 = np.asarray(params["w4"], np.float32)

    m1, s1, _ = _conv_matrix(w1, image_size, image_size, 2, 1)  # 32 -> 16
    m2, s2, _ = _conv_matrix(w2, s1, s1, 2, 1)                  # 16 -> 8
    m3, s3, _ = _conv_matrix(w3, s2, s2, 2, 1)                  # 8  -> 4
    assert s3 == 4, "folded final 4x4 valid conv requires a 4x4 layer-3 output"

    # layer-4 vector: w4v[0, p*C3 + c] = W4[0, c, p//4, p%4]
    c3 = 4 * nf
    w4v = np.zeros((1, s3 * s3 * c3), np.float32)
    for p in range(s3 * s3):
        oy, ox = divmod(p, s3)
        w4v[0, p * c3:(p + 1) * c3] = w4[0, :, oy, ox]

    q2 = _norm_matrix(s2 * s2, 2 * nf)   # (512, 512) with nf=4
    q3 = _norm_matrix(s3 * s3, 4 * nf)   # (256, 256) with nf=4

    return {
        "m1": jnp.asarray(m1, jnp.bfloat16),
        "m2": jnp.asarray(m2, jnp.bfloat16),
        "m3": jnp.asarray(m3, jnp.bfloat16),
        "q2": jnp.asarray(q2, jnp.float32),
        "q3": jnp.asarray(q3, jnp.float32),
        "w4": jnp.asarray(w4v, jnp.float32),
    }


# ---------------------------------------------------------------------------
# Forward
# ---------------------------------------------------------------------------
@jax.jit
def make_dis_forward(prep, x):
    n, c, h, w = x.shape
    hw = c * h * w                                   # C_in == 1 for this model
    xf = x.reshape(n, hw).astype(jnp.bfloat16)       # flat (y*W + x) layout

    b_blk = min(128, _round_up(n, 8))                # samples per grid step
    n_pad = _round_up(n, b_blk)
    if n_pad != n:
        xf = jnp.pad(xf, ((0, n_pad - n), (0, 0)))   # zero rows -> finite outputs

    m1, m2, m3 = prep["m1"], prep["m2"], prep["m3"]
    q2, q3, w4 = prep["q2"], prep["q3"], prep["w4"]

    out = pl.pallas_call(
        _dis_kernel,
        out_shape=jax.ShapeDtypeStruct((n_pad, 1), jnp.float32),
        grid=(n_pad // b_blk,),
        in_specs=[
            pl.BlockSpec((b_blk, hw), lambda b: (b, 0)),
            pl.BlockSpec(m1.shape, lambda b: (0, 0)),
            pl.BlockSpec(m2.shape, lambda b: (0, 0)),
            pl.BlockSpec(q2.shape, lambda b: (0, 0)),
            pl.BlockSpec(m3.shape, lambda b: (0, 0)),
            pl.BlockSpec(q3.shape, lambda b: (0, 0)),
            pl.BlockSpec(w4.shape, lambda b: (0, 0)),
        ],
        out_specs=pl.BlockSpec((b_blk, 1), lambda b: (b, 0)),
        compiler_params=pltpu.CompilerParams(
            dimension_semantics=("parallel",),
            vmem_limit_bytes=32 * 1024 * 1024),
    )(xf, m1, m2, q2, m3, q3, w4)

    out = out[:n].reshape(-1, 1)        # .view(-1, 1)
    if out.shape[0] == 1:               # .squeeze(0): only squeezes if size 1
        out = jnp.squeeze(out, axis=0)
    return out


# ---------------------------------------------------------------------------
# Pure-JAX f32 reference (matches the PyTorch module) for a sanity check
# ---------------------------------------------------------------------------
def _reference_forward(params, x):
    def conv(a, w, stride, pad):
        return lax.conv_general_dilated(
            a, w, window_strides=(stride, stride),
            padding=((pad, pad), (pad, pad)),
            dimension_numbers=("NCHW", "OIHW", "NCHW"))

    def leaky(y):
        return jnp.where(y >= 0, y, 0.2 * y)

    def inorm(y):
        m = jnp.mean(y, axis=(2, 3), keepdims=True)
        v = jnp.mean((y - m) ** 2, axis=(2, 3), keepdims=True)
        return (y - m) * lax.rsqrt(v + 1e-5)

    a = leaky(conv(x, params["w1"], 2, 1))
    a = leaky(inorm(conv(a, params["w2"], 2, 1)))
    a = leaky(inorm(conv(a, params["w3"], 2, 1)))
    a = jax.nn.sigmoid(conv(a, params["w4"], 1, 0))
    out = a.reshape(-1, 1)
    if out.shape[0] == 1:
        out = jnp.squeeze(out, axis=0)
    return out


if __name__ == "__main__":
    n_filters = 4
    key = jax.random.PRNGKey(0)
    x_key, p_key = jax.random.split(key)

    # 32x32 single-channel images, batch=2 -> spatial path 32->16->8->4->1
    x = jax.random.normal(x_key, (2, 1, 32, 32), dtype=jnp.float32)
    params = init_params(p_key, n_filters)
    prep = prepare_params(params, image_size=32)

    y = make_dis_forward(prep, x)
    jax.block_until_ready(y)

    assert y.shape == (2, 1), y.shape
    assert bool(jnp.all(jnp.isfinite(y)))
    assert bool(jnp.all((y >= 0.0) & (y <= 1.0)))   # sigmoid output range

    y_ref = _reference_forward(params, x)
    assert bool(jnp.allclose(y, y_ref, atol=3e-2)), (y, y_ref)

    print("KERNEL_OK")
</pallas_src>

<mosaic_0001>
module attributes {stable_mosaic.version = 11 : i64} {
  func.func @_dis_kernel(%arg0: i32, %arg1: memref<8x1024xbf16, #tpu.memory_space<vmem>>, %arg2: memref<1024x1024xbf16, #tpu.memory_space<vmem>>, %arg3: memref<1024x512xbf16, #tpu.memory_space<vmem>>, %arg4: memref<512x512xf32, #tpu.memory_space<vmem>>, %arg5: memref<512x256xbf16, #tpu.memory_space<vmem>>, %arg6: memref<256x256xf32, #tpu.memory_space<vmem>>, %arg7: memref<1x256xf32, #tpu.memory_space<vmem>>, %arg8: memref<8x1xf32, #tpu.memory_space<vmem>>) attributes {dimension_semantics = [#tpu.dimension_semantics<parallel>], iteration_bounds = array<i64: 1>, scalar_prefetch = 0 : i64, scratch_operands = 0 : i64, tpu.core_type = #tpu.core_type<tc>, window_params = [{transform_indices = @transform_0, window_bounds = array<i64: 8, 1024>}, {pipeline_mode = #tpu.pipeline_mode<synchronous>, transform_indices = @transform_1, window_bounds = array<i64: 1024, 1024>}, {pipeline_mode = #tpu.pipeline_mode<synchronous>, transform_indices = @transform_2, window_bounds = array<i64: 1024, 512>}, {pipeline_mode = #tpu.pipeline_mode<synchronous>, transform_indices = @transform_3, window_bounds = array<i64: 512, 512>}, {pipeline_mode = #tpu.pipeline_mode<synchronous>, transform_indices = @transform_4, window_bounds = array<i64: 512, 256>}, {pipeline_mode = #tpu.pipeline_mode<synchronous>, transform_indices = @transform_5, window_bounds = array<i64: 256, 256>}, {pipeline_mode = #tpu.pipeline_mode<synchronous>, transform_indices = @transform_6, window_bounds = array<i64: 1, 256>}, {transform_indices = @transform_7, window_bounds = array<i64: 8, 1>}]} {
    %c0 = arith.constant 0 : index
    %c0_0 = arith.constant 0 : index
    %0 = vector.load %arg1[%c0, %c0_0] : memref<8x1024xbf16, #tpu.memory_space<vmem>>, vector<8x1024xbf16>
    %c0_1 = arith.constant 0 : index
    %c0_2 = arith.constant 0 : index
    %1 = vector.load %arg2[%c0_1, %c0_2] : memref<1024x1024xbf16, #tpu.memory_space<vmem>>, vector<1024x1024xbf16>
    %cst = arith.constant dense<0.000000e+00> : vector<8x1024xf32>
    %2 = tpu.matmul %0, %1, %cst {dimension_numbers = #tpu.dot_dimension_numbers<[1], [0], [0], [1], [0, 0, 1, 1], [], []>} : vector<8x1024xbf16>, vector<1024x1024xbf16>, vector<8x1024xf32> -> vector<8x1024xf32>
    %cst_3 = arith.constant 0.000000e+00 : f32
    %3 = vector.broadcast %cst_3 : f32 to vector<8x1024xf32>
    %4 = arith.cmpf oge, %2, %3 : vector<8x1024xf32>
    %cst_4 = arith.constant 2.000000e-01 : f32
    %5 = vector.broadcast %cst_4 : f32 to vector<8x1024xf32>
    %6 = arith.mulf %5, %2 : vector<8x1024xf32>
    %7 = arith.select %4, %2, %6 : vector<8x1024xi1>, vector<8x1024xf32>
    %8 = arith.truncf %7 : vector<8x1024xf32> to vector<8x1024xbf16>
    %c0_5 = arith.constant 0 : index
    %c0_6 = arith.constant 0 : index
    %9 = vector.load %arg3[%c0_5, %c0_6] : memref<1024x512xbf16, #tpu.memory_space<vmem>>, vector<1024x512xbf16>
    %cst_7 = arith.constant dense<0.000000e+00> : vector<8x512xf32>
    %10 = tpu.matmul %8, %9, %cst_7 {dimension_numbers = #tpu.dot_dimension_numbers<[1], [0], [0], [1], [0, 0, 1, 1], [], []>} : vector<8x1024xbf16>, vector<1024x512xbf16>, vector<8x512xf32> -> vector<8x512xf32>
    %c0_8 = arith.constant 0 : index
    %c0_9 = arith.constant 0 : index
    %11 = vector.load %arg4[%c0_8, %c0_9] : memref<512x512xf32, #tpu.memory_space<vmem>>, vector<512x512xf32>
    %cst_10 = arith.constant dense<0.000000e+00> : vector<8x512xf32>
    %12 = tpu.matmul %10, %11, %cst_10 {dimension_numbers = #tpu.dot_dimension_numbers<[1], [0], [0], [1], [0, 0, 1, 1], [], []>} : vector<8x512xf32>, vector<512x512xf32>, vector<8x512xf32> -> vector<8x512xf32>
    %13 = arith.mulf %10, %10 : vector<8x512xf32>
    %c0_11 = arith.constant 0 : index
    %c0_12 = arith.constant 0 : index
    %14 = vector.load %arg4[%c0_11, %c0_12] : memref<512x512xf32, #tpu.memory_space<vmem>>, vector<512x512xf32>
    %cst_13 = arith.constant dense<0.000000e+00> : vector<8x512xf32>
    %15 = tpu.matmul %13, %14, %cst_13 {dimension_numbers = #tpu.dot_dimension_numbers<[1], [0], [0], [1], [0, 0, 1, 1], [], []>} : vector<8x512xf32>, vector<512x512xf32>, vector<8x512xf32> -> vector<8x512xf32>
    %16 = arith.mulf %12, %12 : vector<8x512xf32>
    %17 = arith.subf %15, %16 : vector<8x512xf32>
    %18 = arith.subf %10, %12 : vector<8x512xf32>
    %cst_14 = arith.constant 9.99999974E-6 : f32
    %19 = vector.broadcast %cst_14 : f32 to vector<8x512xf32>
    %20 = arith.addf %17, %19 : vector<8x512xf32>
    %21 = math.rsqrt %20 : vector<8x512xf32>
    %22 = arith.mulf %18, %21 : vector<8x512xf32>
    %cst_15 = arith.constant 0.000000e+00 : f32
    %23 = vector.broadcast %cst_15 : f32 to vector<8x512xf32>
    %24 = arith.cmpf oge, %22, %23 : vector<8x512xf32>
    %cst_16 = arith.constant 2.000000e-01 : f32
    %25 = vector.broadcast %cst_16 : f32 to vector<8x512xf32>
    %26 = arith.mulf %25, %22 : vector<8x512xf32>
    %27 = arith.select %24, %22, %26 : vector<8x512xi1>, vector<8x512xf32>
    %28 = arith.truncf %27 : vector<8x512xf32> to vector<8x512xbf16>
    %c0_17 = arith.constant 0 : index
    %c0_18 = arith.constant 0 : index
    %29 = vector.load %arg5[%c0_17, %c0_18] : memref<512x256xbf16, #tpu.memory_space<vmem>>, vector<512x256xbf16>
    %cst_19 = arith.constant dense<0.000000e+00> : vector<8x256xf32>
    %30 = tpu.matmul %28, %29, %cst_19 {dimension_numbers = #tpu.dot_dimension_numbers<[1], [0], [0], [1], [0, 0, 1, 1], [], []>} : vector<8x512xbf16>, vector<512x256xbf16>, vector<8x256xf32> -> vector<8x256xf32>
    %c0_20 = arith.constant 0 : index
    %c0_21 = arith.constant 0 : index
    %31 = vector.load %arg6[%c0_20, %c0_21] : memref<256x256xf32, #tpu.memory_space<vmem>>, vector<256x256xf32>
    %cst_22 = arith.constant dense<0.000000e+00> : vector<8x256xf32>
    %32 = tpu.matmul %30, %31, %cst_22 {dimension_numbers = #tpu.dot_dimension_numbers<[1], [0], [0], [1], [0, 0, 1, 1], [], []>} : vector<8x256xf32>, vector<256x256xf32>, vector<8x256xf32> -> vector<8x256xf32>
    %33 = arith.mulf %30, %30 : vector<8x256xf32>
    %c0_23 = arith.constant 0 : index
    %c0_24 = arith.constant 0 : index
    %34 = vector.load %arg6[%c0_23, %c0_24] : memref<256x256xf32, #tpu.memory_space<vmem>>, vector<256x256xf32>
    %cst_25 = arith.constant dense<0.000000e+00> : vector<8x256xf32>
    %35 = tpu.matmul %33, %34, %cst_25 {dimension_numbers = #tpu.dot_dimension_numbers<[1], [0], [0], [1], [0, 0, 1, 1], [], []>} : vector<8x256xf32>, vector<256x256xf32>, vector<8x256xf32> -> vector<8x256xf32>
    %36 = arith.mulf %32, %32 : vector<8x256xf32>
    %37 = arith.subf %35, %36 : vector<8x256xf32>
    %38 = arith.subf %30, %32 : vector<8x256xf32>
    %cst_26 = arith.constant 9.99999974E-6 : f32
    %39 = vector.broadcast %cst_26 : f32 to vector<8x256xf32>
    %40 = arith.addf %37, %39 : vector<8x256xf32>
    %41 = math.rsqrt %40 : vector<8x256xf32>
    %42 = arith.mulf %38, %41 : vector<8x256xf32>
    %cst_27 = arith.constant 0.000000e+00 : f32
    %43 = vector.broadcast %cst_27 : f32 to vector<8x256xf32>
    %44 = arith.cmpf oge, %42, %43 : vector<8x256xf32>
    %cst_28 = arith.constant 2.000000e-01 : f32
    %45 = vector.broadcast %cst_28 : f32 to vector<8x256xf32>
    %46 = arith.mulf %45, %42 : vector<8x256xf32>
    %47 = arith.select %44, %42, %46 : vector<8x256xi1>, vector<8x256xf32>
    %c0_29 = arith.constant 0 : index
    %c0_30 = arith.constant 0 : index
    %48 = vector.load %arg7[%c0_29, %c0_30] : memref<1x256xf32, #tpu.memory_space<vmem>>, vector<1x256xf32>
    %49 = vector.broadcast %48 : vector<1x256xf32> to vector<8x256xf32>
    %50 = arith.mulf %47, %49 : vector<8x256xf32>
    %cst_31 = arith.constant dense<0.000000e+00> : vector<8xf32>
    %51 = vector.multi_reduction <add>, %50, %cst_31 [1] : vector<8x256xf32> to vector<8xf32>
    %52 = vector.shape_cast %51 : vector<8xf32> to vector<8x1xf32>
    %53 = arith.negf %52 : vector<8x1xf32>
    %54 = math.exp %53 : vector<8x1xf32>
    %cst_32 = arith.constant 1.000000e+00 : f32
    %55 = vector.broadcast %cst_32 : f32 to vector<8x1xf32>
    %56 = arith.addf %55, %54 : vector<8x1xf32>
    %57 = arith.divf %55, %56 : vector<8x1xf32>
    %c0_33 = arith.constant 0 : index
    %c0_34 = arith.constant 0 : index
    %58 = vector.load %arg8[%c0_33, %c0_34] : memref<8x1xf32, #tpu.memory_space<vmem>>, vector<8x1xf32>
    tpu.vector_store %arg8[%c0_33, %c0_34], %57 {strides = array<i32>} : memref<8x1xf32, #tpu.memory_space<vmem>>, vector<8x1xf32>,
    return
  }
  func.func @transform_0(%arg0: i32) -> (i32, i32) {
    %c0_i32 = arith.constant 0 : i32
    %c0_i32_0 = arith.constant 0 : i32
    return %arg0, %c0_i32 : i32, i32
  }
  func.func @transform_1(%arg0: i32) -> (i32, i32) {
    %c0_i32 = arith.constant 0 : i32
    %c0_i32_0 = arith.constant 0 : i32
    %c0_i32_1 = arith.constant 0 : i32
    return %c0_i32, %c0_i32_0 : i32, i32
  }
  func.func @transform_2(%arg0: i32) -> (i32, i32) {
    %c0_i32 = arith.constant 0 : i32
    %c0_i32_0 = arith.constant 0 : i32
    %c0_i32_1 = arith.constant 0 : i32
    return %c0_i32, %c0_i32_0 : i32, i32
  }
  func.func @transform_3(%arg0: i32) -> (i32, i32) {
    %c0_i32 = arith.constant 0 : i32
    %c0_i32_0 = arith.constant 0 : i32
    %c0_i32_1 = arith.constant 0 : i32
    return %c0_i32, %c0_i32_0 : i32, i32
  }
  func.func @transform_4(%arg0: i32) -> (i32, i32) {
    %c0_i32 = arith.constant 0 : i32
    %c0_i32_0 = arith.constant 0 : i32
    %c0_i32_1 = arith.constant 0 : i32
    return %c0_i32, %c0_i32_0 : i32, i32
  }
  func.func @transform_5(%arg0: i32) -> (i32, i32) {
    %c0_i32 = arith.constant 0 : i32
    %c0_i32_0 = arith.constant 0 : i32
    %c0_i32_1 = arith.constant 0 : i32
    return %c0_i32, %c0_i32_0 : i32, i32
  }
  func.func @transform_6(%arg0: i32) -> (i32, i32) {
    %c0_i32 = arith.constant 0 : i32
    %c0_i32_0 = arith.constant 0 : i32
    %c0_i32_1 = arith.constant 0 : i32
    return %c0_i32, %c0_i32_0 : i32, i32
  }
  func.func @transform_7(%arg0: i32) -> (i32, i32) {
    %c0_i32 = arith.constant 0 : i32
    %c0_i32_0 = arith.constant 0 : i32
    return %arg0, %c0_i32 : i32, i32
  }
}

</mosaic_0001>

<llo_original>
// kernel: make_dis_forward.1
$region0: #{make_dis_forward.1}
  #allocation0 [shape = 'u32[]', space=smem, size = 0x4, offset = 0x4, fixed_abs, tag = 'smem constant byte address 0x4 - core index']
  #allocation1 [shape = 'u32[72,128]{1,0:T(1,128)}', space=vmem, size = 0x9000, scoped, tag = 'internal scratch']
  %s0 = inlined_call_operand.vmem [shape: bf16[8,1024], index: 0, kind: input, shape index: {}]
  %s1 = inlined_call_operand.hbm [shape: bf16[1024,1024], index: 1, kind: input, shape index: {}]
  %s2 = inlined_call_operand.hbm [shape: bf16[1024,512], index: 2, kind: input, shape index: {}]
  %s3 = inlined_call_operand.hbm [shape: f32[512,512], index: 3, kind: input, shape index: {}]
  %s4 = inlined_call_operand.hbm [shape: bf16[512,256], index: 4, kind: input, shape index: {}]
  %s5 = inlined_call_operand.hbm [shape: f32[256,256], index: 5, kind: input, shape index: {}]
  %s6 = inlined_call_operand.hbm [shape: f32[1,256], index: 6, kind: input, shape index: {}]
  %s7 = inlined_call_operand.vmem [shape: f32[8,1], index: 7, kind: output, shape index: {}]
  %s8 = sld [smem:[#allocation0]]
  $region62: #{make_dis_forward.1} parent=0
    _
  %s10 = ssub.s32 1, %s8
  %s11 = scalar_select 0, %s10, %s8
  $region1: #{make_dis_forward.1} parent=0
    #allocation2 [shape = 'u8[2097152]{0}', space=vmem, size = 0x200000, scoped, tag = 'input window, operand 1, single buffered']
    #allocation3 [shape = 's32[1]{0}', space=sflag, size = 0x4, scoped, tag = 'scoped memory for make_dis_forward.1']
    #allocation4 [shape = 'u8[1048576]{0}', space=vmem, size = 0x100000, scoped, tag = 'input window, operand 2, single buffered']
    #allocation5 [shape = 's32[1]{0}', space=sflag, size = 0x4, scoped, tag = 'scoped memory for make_dis_forward.1']
    #allocation6 [shape = 'u8[1048576]{0}', space=vmem, size = 0x100000, scoped, tag = 'input window, operand 3, single buffered']
    #allocation7 [shape = 'u8[262144]{0}', space=vmem, size = 0x40000, scoped, tag = 'input window, operand 4, single buffered']
    #allocation8 [shape = 's32[1]{0}', space=sflag, size = 0x4, scoped, tag = 'scoped memory for make_dis_forward.1']
    #allocation9 [shape = 'u8[262144]{0}', space=vmem, size = 0x40000, scoped, tag = 'input window, operand 5, single buffered']
    #allocation10 [shape = 'u8[1024]{0}', space=vmem, size = 0x400, scoped, tag = 'input window, operand 6, single buffered']
    #allocation11 [shape = 's32[1]{0}', space=sflag, size = 0x4, scoped, tag = 'scoped memory for make_dis_forward.1']
    %12 = vsyncpa [#allocation3], 0
    %13 = vsyncpa [#allocation5], 0
    %14 = vsyncpa [#allocation8], 0
    %15 = vsyncpa [#allocation11], 0
    // Predicated region
    $region2: #{make_dis_forward.1} parent=1 // pred_check
      _
    $region3: #{make_dis_forward.1} parent=1 // pred_check_branch
      %17 = sbr.rel (0) target = $region5
    $region4: #{make_dis_forward.1} parent=1 // pred_region
      _
    $region5: #{make_dis_forward.1} parent=1 // pred_fallthru
      _
    // Predicated region
    $region6: #{make_dis_forward.1} parent=1 // pred_check
      _
    $region7: #{make_dis_forward.1} parent=1 // pred_check_branch
      %19 = sbr.rel (0) target = $region9
    $region8: #{make_dis_forward.1} parent=1 // pred_region
      %21 = vsyncadd [#allocation3], 0
      %s22 = sshll.u32 %s1, 4
      %s23 = int_to_ptr.hbm [resolvable:$true] %s22
      %s24 = sshll.u32 [#allocation2], 4
      %s25 = int_to_ptr.vmem [resolvable:$true] %s24
      %30 = dma.hbm_to_vmem [thread:$0]  %s23, 65536, %s25, [#allocation3], 512, 512, 32
    $region9: #{make_dis_forward.1} parent=1 // pred_fallthru
      _
    // Predicated region
    $region10: #{make_dis_forward.1} parent=1 // pred_check
      _
    $region11: #{make_dis_forward.1} parent=1 // pred_check_branch
      %32 = sbr.rel (0) target = $region13
    $region12: #{make_dis_forward.1} parent=1 // pred_region
      %34 = vsyncadd [#allocation5], 0
      %s35 = sshll.u32 %s2, 4
      %s36 = int_to_ptr.hbm [resolvable:$true] %s35
      %s37 = sshll.u32 [#allocation4], 4
      %s38 = int_to_ptr.vmem [resolvable:$true] %s37
      %43 = dma.hbm_to_vmem [thread:$0]  %s36, 32768, %s38, [#allocation5], 256, 256, 16
    $region13: #{make_dis_forward.1} parent=1 // pred_fallthru
      _
    // Predicated region
    $region14: #{make_dis_forward.1} parent=1 // pred_check
      _
    $region15: #{make_dis_forward.1} parent=1 // pred_check_branch
      %45 = sbr.rel (0) target = $region17
    $region16: #{make_dis_forward.1} parent=1 // pred_region
      %47 = vsyncadd [#allocation5], 0
      %s48 = sshll.u32 %s3, 4
      %s49 = int_to_ptr.hbm [resolvable:$true] %s48
      %s50 = sshll.u32 [#allocation6], 4
      %s51 = int_to_ptr.vmem [resolvable:$true] %s50
      %56 = dma.hbm_to_vmem [thread:$0]  %s49, 32768, %s51, [#allocation5], 512, 512, 32
    $region17: #{make_dis_forward.1} parent=1 // pred_fallthru
      _
    // Predicated region
    $region18: #{make_dis_forward.1} parent=1 // pred_check
      _
    $region19: #{make_dis_forward.1} parent=1 // pred_check_branch
      %58 = sbr.rel (0) target = $region21
    $region20: #{make_dis_forward.1} parent=1 // pred_region
      %60 = vsyncadd [#allocation8], 0
      %s61 = sshll.u32 %s4, 4
      %s62 = int_to_ptr.hbm [resolvable:$true] %s61
      %s63 = sshll.u32 [#allocation7], 4
      %s64 = int_to_ptr.vmem [resolvable:$true] %s63
      %69 = dma.hbm_to_vmem [thread:$0]  %s62, 8192, %s64, [#allocation8], 128, 128, 8
    $region21: #{make_dis_forward.1} parent=1 // pred_fallthru
      _
    // Predicated region
    $region22: #{make_dis_forward.1} parent=1 // pred_check
      _
    $region23: #{make_dis_forward.1} parent=1 // pred_check_branch
      %71 = sbr.rel (0) target = $region25
    $region24: #{make_dis_forward.1} parent=1 // pred_region
      %73 = vsyncadd [#allocation8], 0
      %s74 = sshll.u32 %s5, 4
      %s75 = int_to_ptr.hbm [resolvable:$true] %s74
      %s76 = sshll.u32 [#allocation9], 4
      %s77 = int_to_ptr.vmem [resolvable:$true] %s76
      %82 = dma.hbm_to_vmem [thread:$0]  %s75, 8192, %s77, [#allocation8], 256, 256, 16
    $region25: #{make_dis_forward.1} parent=1 // pred_fallthru
      _
    // Predicated region
    $region26: #{make_dis_forward.1} parent=1 // pred_check
      _
    $region27: #{make_dis_forward.1} parent=1 // pred_check_branch
      %84 = sbr.rel (0) target = $region29
    $region28: #{make_dis_forward.1} parent=1 // pred_region
      %86 = vsyncadd [#allocation11], 0
      %s88 = sshll.u32 %s6, 4
      %s89 = int_to_ptr.hbm [resolvable:$true] %s88
      %s90 = sshll.u32 [#allocation10], 4
      %s91 = int_to_ptr.vmem [resolvable:$true] %s90
      %93 = dma.hbm_to_vmem [thread:$0]  %s89, 32, %s91, [#allocation11]
    $region29: #{make_dis_forward.1} parent=1 // pred_fallthru
      _
    // Predicated region
    $region30: #{make_dis_forward.1} parent=1 // pred_check
      _
    $region31: #{make_dis_forward.1} parent=1 // pred_check_branch
      %95 = sbr.rel (0) target = $region33
    $region32: #{make_dis_forward.1} parent=1 // pred_region
      %97 = dma.done [#allocation3], 65536
    $region33: #{make_dis_forward.1} parent=1 // pred_fallthru
      _
    // Predicated region
    $region34: #{make_dis_forward.1} parent=1 // pred_check
      _
    $region35: #{make_dis_forward.1} parent=1 // pred_check_branch
      %99 = sbr.rel (0) target = $region37
    $region36: #{make_dis_forward.1} parent=1 // pred_region
      %101 = dma.done [#allocation5], 32768
    $region37: #{make_dis_forward.1} parent=1 // pred_fallthru
      _
    // Predicated region
    $region38: #{make_dis_forward.1} parent=1 // pred_check
      _
    $region39: #{make_dis_forward.1} parent=1 // pred_check_branch
      %103 = sbr.rel (0) target = $region41
    $region40: #{make_dis_forward.1} parent=1 // pred_region
      %105 = dma.done [#allocation5], 32768
    $region41: #{make_dis_forward.1} parent=1 // pred_fallthru
      _
    // Predicated region
    $region42: #{make_dis_forward.1} parent=1 // pred_check
      _
    $region43: #{make_dis_forward.1} parent=1 // pred_check_branch
      %107 = sbr.rel (0) target = $region45
    $region44: #{make_dis_forward.1} parent=1 // pred_region
      %109 = dma.done [#allocation8], 8192
    $region45: #{make_dis_forward.1} parent=1 // pred_fallthru
      _
    // Predicated region
    $region46: #{make_dis_forward.1} parent=1 // pred_check
      _
    $region47: #{make_dis_forward.1} parent=1 // pred_check_branch
      %111 = sbr.rel (0) target = $region49
    $region48: #{make_dis_forward.1} parent=1 // pred_region
      %113 = dma.done [#allocation8], 8192
    $region49: #{make_dis_forward.1} parent=1 // pred_fallthru
      _
    // Predicated region
    $region50: #{make_dis_forward.1} parent=1 // pred_check
      _
    $region51: #{make_dis_forward.1} parent=1 // pred_check_branch
      %115 = sbr.rel (0) target = $region53
    $region52: #{make_dis_forward.1} parent=1 // pred_region
      %117 = dma.done [#allocation11], 32
    $region53: #{make_dis_forward.1} parent=1 // pred_fallthru
      _
    %v118 = vld [vmem:[%s0] sm:$0xff]
    %v119 = vld [vmem:[%s0 + $0x8] sm:$0xff]
    %v120 = vld [vmem:[%s0 + $0x10] sm:$0xff]
    %v121 = vld [vmem:[%s0 + $0x18] sm:$0xff]
    %v122 = vld [vmem:[#allocation2] sm:$0xff]
    %v123 = vld [vmem:[#allocation2 + $0x8] sm:$0xff]
    %v124 = vld [vmem:[#allocation2 + $0x10] sm:$0xff]
    %v125 = vld [vmem:[#allocation2 + $0x18] sm:$0xff]
    %v126 = vld [vmem:[#allocation2 + $0x20] sm:$0xff]
    %v127 = vld [vmem:[#allocation2 + $0x28] sm:$0xff]
    %v128 = vld [vmem:[#allocation2 + $0x30] sm:$0xff]
    %v129 = vld [vmem:[#allocation2 + $0x38] sm:$0xff]
    %v130 = vld [vmem:[#allocation2 + $0x40] sm:$0xff]
    %v131 = vld [vmem:[#allocation2 + $0x48] sm:$0xff]
    %v132 = vld [vmem:[#allocation2 + $0x50] sm:$0xff]
    %v133 = vld [vmem:[#allocation2 + $0x58] sm:$0xff]
    %v134 = vld [vmem:[#allocation2 + $0x60] sm:$0xff]
    %v135 = vld [vmem:[#allocation2 + $0x68] sm:$0xff]
    %v136 = vld [vmem:[#allocation2 + $0x70] sm:$0xff]
    %v137 = vld [vmem:[#allocation2 + $0x78] sm:$0xff]
    %v138 = vld [vmem:[#allocation2 + $0x80] sm:$0xff]
    %v139 = vld [vmem:[#allocation2 + $0x88] sm:$0xff]
    %v140 = vld [vmem:[#allocation2 + $0x90] sm:$0xff]
    %v141 = vld [vmem:[#allocation2 + $0x98] sm:$0xff]
    %v142 = vld [vmem:[#allocation2 + $0xa0] sm:$0xff]
    %v143 = vld [vmem:[#allocation2 + $0xa8] sm:$0xff]
    %v144 = vld [vmem:[#allocation2 + $0xb0] sm:$0xff]
    %v145 = vld [vmem:[#allocation2 + $0xb8] sm:$0xff]
    %v146 = vld [vmem:[#allocation2 + $0xc0] sm:$0xff]
    %v147 = vld [vmem:[#allocation2 + $0xc8] sm:$0xff]
    %v148 = vld [vmem:[#allocation2 + $0xd0] sm:$0xff]
    %v149 = vld [vmem:[#allocation2 + $0xd8] sm:$0xff]
    %v150 = vld [vmem:[#allocation2 + $0xe0] sm:$0xff]
    %v151 = vld [vmem:[#allocation2 + $0xe8] sm:$0xff]
    %v152 = vld [vmem:[#allocation2 + $0xf0] sm:$0xff]
    %v153 = vld [vmem:[#allocation2 + $0xf8] sm:$0xff]
    %v154 = vld [vmem:[#allocation2 + $0x100] sm:$0xff]
    %v155 = vld [vmem:[#allocation2 + $0x108] sm:$0xff]
    %v156 = vld [vmem:[#allocation2 + $0x110] sm:$0xff]
    %v157 = vld [vmem:[#allocation2 + $0x118] sm:$0xff]
    %v158 = vld [vmem:[#allocation2 + $0x120] sm:$0xff]
    %v159 = vld [vmem:[#allocation2 + $0x128] sm:$0xff]
    %v160 = vld [vmem:[#allocation2 + $0x130] sm:$0xff]
    %v161 = vld [vmem:[#allocation2 + $0x138] sm:$0xff]
    %v162 = vld [vmem:[#allocation2 + $0x140] sm:$0xff]
    %v163 = vld [vmem:[#allocation2 + $0x148] sm:$0xff]
    %v164 = vld [vmem:[#allocation2 + $0x150] sm:$0xff]
    %v165 = vld [vmem:[#allocation2 + $0x158] sm:$0xff]
    %v166 = vld [vmem:[#allocation2 + $0x160] sm:$0xff]
    %v167 = vld [vmem:[#allocation2 + $0x168] sm:$0xff]
    %v168 = vld [vmem:[#allocation2 + $0x170] sm:$0xff]
    %v169 = vld [vmem:[#allocation2 + $0x178] sm:$0xff]
    %v170 = vld [vmem:[#allocation2 + $0x180] sm:$0xff]
    %v171 = vld [vmem:[#allocation2 + $0x188] sm:$0xff]
    %v172 = vld [vmem:[#allocation2 + $0x190] sm:$0xff]
    %v173 = vld [vmem:[#allocation2 + $0x198] sm:$0xff]
    %v174 = vld [vmem:[#allocation2 + $0x1a0] sm:$0xff]
    %v175 = vld [vmem:[#allocation2 + $0x1a8] sm:$0xff]
    %v176 = vld [vmem:[#allocation2 + $0x1b0] sm:$0xff]
    %v177 = vld [vmem:[#allocation2 + $0x1b8] sm:$0xff]
    %v178 = vld [vmem:[#allocation2 + $0x1c0] sm:$0xff]
    %v179 = vld [vmem:[#allocation2 + $0x1c8] sm:$0xff]
    %v180 = vld [vmem:[#allocation2 + $0x1d0] sm:$0xff]
    %v181 = vld [vmem:[#allocation2 + $0x1d8] sm:$0xff]
    %v182 = vld [vmem:[#allocation2 + $0x1e0] sm:$0xff]
    %v183 = vld [vmem:[#allocation2 + $0x1e8] sm:$0xff]
    %v184 = vld [vmem:[#allocation2 + $0x1f0] sm:$0xff]
    %v185 = vld [vmem:[#allocation2 + $0x1f8] sm:$0xff]
    %v186 = vld [vmem:[#allocation2 + $0x200] sm:$0xff]
    %v187 = vld [vmem:[#allocation2 + $0x208] sm:$0xff]
    %v188 = vld [vmem:[#allocation2 + $0x210] sm:$0xff]
    %v189 = vld [vmem:[#allocation2 + $0x218] sm:$0xff]
    %v190 = vld [vmem:[#allocation2 + $0x220] sm:$0xff]
    %v191 = vld [vmem:[#allocation2 + $0x228] sm:$0xff]
    %v192 = vld [vmem:[#allocation2 + $0x230] sm:$0xff]
    %v193 = vld [vmem:[#allocation2 + $0x238] sm:$0xff]
    %v194 = vld [vmem:[#allocation2 + $0x240] sm:$0xff]
    %v195 = vld [vmem:[#allocation2 + $0x248] sm:$0xff]
    %v196 = vld [vmem:[#allocation2 + $0x250] sm:$0xff]
    %v197 = vld [vmem:[#allocation2 + $0x258] sm:$0xff]
    %v198 = vld [vmem:[#allocation2 + $0x260] sm:$0xff]
    %v199 = vld [vmem:[#allocation2 + $0x268] sm:$0xff]
    %v200 = vld [vmem:[#allocation2 + $0x270] sm:$0xff]
    %v201 = vld [vmem:[#allocation2 + $0x278] sm:$0xff]
    %v202 = vld [vmem:[#allocation2 + $0x280] sm:$0xff]
    %v203 = vld [vmem:[#allocation2 + $0x288] sm:$0xff]
    %v204 = vld [vmem:[#allocation2 + $0x290] sm:$0xff]
    %v205 = vld [vmem:[#allocation2 + $0x298] sm:$0xff]
    %v206 = vld [vmem:[#allocation2 + $0x2a0] sm:$0xff]
    %v207 = vld [vmem:[#allocation2 + $0x2a8] sm:$0xff]
    %v208 = vld [vmem:[#allocation2 + $0x2b0] sm:$0xff]
    %v209 = vld [vmem:[#allocation2 + $0x2b8] sm:$0xff]
    %v210 = vld [vmem:[#allocation2 + $0x2c0] sm:$0xff]
    %v211 = vld [vmem:[#allocation2 + $0x2c8] sm:$0xff]
    %v212 = vld [vmem:[#allocation2 + $0x2d0] sm:$0xff]
    %v213 = vld [vmem:[#allocation2 + $0x2d8] sm:$0xff]
    %v214 = vld [vmem:[#allocation2 + $0x2e0] sm:$0xff]
    %v215 = vld [vmem:[#allocation2 + $0x2e8] sm:$0xff]
    %v216 = vld [vmem:[#allocation2 + $0x2f0] sm:$0xff]
    %v217 = vld [vmem:[#allocation2 + $0x2f8] sm:$0xff]
    %v218 = vld [vmem:[#allocation2 + $0x300] sm:$0xff]
    %v219 = vld [vmem:[#allocation2 + $0x308] sm:$0xff]
    %v220 = vld [vmem:[#allocation2 + $0x310] sm:$0xff]
    %v221 = vld [vmem:[#allocation2 + $0x318] sm:$0xff]
    %v222 = vld [vmem:[#allocation2 + $0x320] sm:$0xff]
    %v223 = vld [vmem:[#allocation2 + $0x328] sm:$0xff]
    %v224 = vld [vmem:[#allocation2 + $0x330] sm:$0xff]
    %v225 = vld [vmem:[#allocation2 + $0x338] sm:$0xff]
    %v226 = vld [vmem:[#allocation2 + $0x340] sm:$0xff]
    %v227 = vld [vmem:[#allocation2 + $0x348] sm:$0xff]
    %v228 = vld [vmem:[#allocation2 + $0x350] sm:$0xff]
    %v229 = vld [vmem:[#allocation2 + $0x358] sm:$0xff]
    %v230 = vld [vmem:[#allocation2 + $0x360] sm:$0xff]
    %v231 = vld [vmem:[#allocation2 + $0x368] sm:$0xff]
    %v232 = vld [vmem:[#allocation2 + $0x370] sm:$0xff]
    %v233 = vld [vmem:[#allocation2 + $0x378] sm:$0xff]
    %v234 = vld [vmem:[#allocation2 + $0x380] sm:$0xff]
    %v235 = vld [vmem:[#allocation2 + $0x388] sm:$0xff]
    %v236 = vld [vmem:[#allocation2 + $0x390] sm:$0xff]
    %v237 = vld [vmem:[#allocation2 + $0x398] sm:$0xff]
    %v238 = vld [vmem:[#allocation2 + $0x3a0] sm:$0xff]
    %v239 = vld [vmem:[#allocation2 + $0x3a8] sm:$0xff]
    %v240 = vld [vmem:[#allocation2 + $0x3b0] sm:$0xff]
    %v241 = vld [vmem:[#allocation2 + $0x3b8] sm:$0xff]
    %v242 = vld [vmem:[#allocation2 + $0x3c0] sm:$0xff]
    %v243 = vld [vmem:[#allocation2 + $0x3c8] sm:$0xff]
    %v244 = vld [vmem:[#allocation2 + $0x3d0] sm:$0xff]
    %v245 = vld [vmem:[#allocation2 + $0x3d8] sm:$0xff]
    %v246 = vld [vmem:[#allocation2 + $0x3e0] sm:$0xff]
    %v247 = vld [vmem:[#allocation2 + $0x3e8] sm:$0xff]
    %v248 = vld [vmem:[#allocation2 + $0x3f0] sm:$0xff]
    %v249 = vld [vmem:[#allocation2 + $0x3f8] sm:$0xff]
    %v250 = vld [vmem:[#allocation2 + $0x400] sm:$0xff]
    %v251 = vld [vmem:[#allocation2 + $0x408] sm:$0xff]
    %v252 = vld [vmem:[#allocation2 + $0x410] sm:$0xff]
    %v253 = vld [vmem:[#allocation2 + $0x418] sm:$0xff]
    %v254 = vld [vmem:[#allocation2 + $0x420] sm:$0xff]
    %v255 = vld [vmem:[#allocation2 + $0x428] sm:$0xff]
    %v256 = vld [vmem:[#allocation2 + $0x430] sm:$0xff]
    %v257 = vld [vmem:[#allocation2 + $0x438] sm:$0xff]
    %v258 = vld [vmem:[#allocation2 + $0x440] sm:$0xff]
    %v259 = vld [vmem:[#allocation2 + $0x448] sm:$0xff]
    %v260 = vld [vmem:[#allocation2 + $0x450] sm:$0xff]
    %v261 = vld [vmem:[#allocation2 + $0x458] sm:$0xff]
    %v262 = vld [vmem:[#allocation2 + $0x460] sm:$0xff]
    %v263 = vld [vmem:[#allocation2 + $0x468] sm:$0xff]
    %v264 = vld [vmem:[#allocation2 + $0x470] sm:$0xff]
    %v265 = vld [vmem:[#allocation2 + $0x478] sm:$0xff]
    %v266 = vld [vmem:[#allocation2 + $0x480] sm:$0xff]
    %v267 = vld [vmem:[#allocation2 + $0x488] sm:$0xff]
    %v268 = vld [vmem:[#allocation2 + $0x490] sm:$0xff]
    %v269 = vld [vmem:[#allocation2 + $0x498] sm:$0xff]
    %v270 = vld [vmem:[#allocation2 + $0x4a0] sm:$0xff]
    %v271 = vld [vmem:[#allocation2 + $0x4a8] sm:$0xff]
    %v272 = vld [vmem:[#allocation2 + $0x4b0] sm:$0xff]
    %v273 = vld [vmem:[#allocation2 + $0x4b8] sm:$0xff]
    %v274 = vld [vmem:[#allocation2 + $0x4c0] sm:$0xff]
    %v275 = vld [vmem:[#allocation2 + $0x4c8] sm:$0xff]
    %v276 = vld [vmem:[#allocation2 + $0x4d0] sm:$0xff]
    %v277 = vld [vmem:[#allocation2 + $0x4d8] sm:$0xff]
    %v278 = vld [vmem:[#allocation2 + $0x4e0] sm:$0xff]
    %v279 = vld [vmem:[#allocation2 + $0x4e8] sm:$0xff]
    %v280 = vld [vmem:[#allocation2 + $0x4f0] sm:$0xff]
    %v281 = vld [vmem:[#allocation2 + $0x4f8] sm:$0xff]
    %v282 = vld [vmem:[#allocation2 + $0x500] sm:$0xff]
    %v283 = vld [vmem:[#allocation2 + $0x508] sm:$0xff]
    %v284 = vld [vmem:[#allocation2 + $0x510] sm:$0xff]
    %v285 = vld [vmem:[#allocation2 + $0x518] sm:$0xff]
    %v286 = vld [vmem:[#allocation2 + $0x520] sm:$0xff]
    %v287 = vld [vmem:[#allocation2 + $0x528] sm:$0xff]
    %v288 = vld [vmem:[#allocation2 + $0x530] sm:$0xff]
    %v289 = vld [vmem:[#allocation2 + $0x538] sm:$0xff]
    %v290 = vld [vmem:[#allocation2 + $0x540] sm:$0xff]
    %v291 = vld [vmem:[#allocation2 + $0x548] sm:$0xff]
    %v292 = vld [vmem:[#allocation2 + $0x550] sm:$0xff]
    %v293 = vld [vmem:[#allocation2 + $0x558] sm:$0xff]
    %v294 = vld [vmem:[#allocation2 + $0x560] sm:$0xff]
    %v295 = vld [vmem:[#allocation2 + $0x568] sm:$0xff]
    %v296 = vld [vmem:[#allocation2 + $0x570] sm:$0xff]
    %v297 = vld [vmem:[#allocation2 + $0x578] sm:$0xff]
    %v298 = vld [vmem:[#allocation2 + $0x580] sm:$0xff]
    %v299 = vld [vmem:[#allocation2 + $0x588] sm:$0xff]
    %v300 = vld [vmem:[#allocation2 + $0x590] sm:$0xff]
    %v301 = vld [vmem:[#allocation2 + $0x598] sm:$0xff]
    %v302 = vld [vmem:[#allocation2 + $0x5a0] sm:$0xff]
    %v303 = vld [vmem:[#allocation2 + $0x5a8] sm:$0xff]
    %v304 = vld [vmem:[#allocation2 + $0x5b0] sm:$0xff]
    %v305 = vld [vmem:[#allocation2 + $0x5b8] sm:$0xff]
    %v306 = vld [vmem:[#allocation2 + $0x5c0] sm:$0xff]
    %v307 = vld [vmem:[#allocation2 + $0x5c8] sm:$0xff]
    %v308 = vld [vmem:[#allocation2 + $0x5d0] sm:$0xff]
    %v309 = vld [vmem:[#allocation2 + $0x5d8] sm:$0xff]
    %v310 = vld [vmem:[#allocation2 + $0x5e0] sm:$0xff]
    %v311 = vld [vmem:[#allocation2 + $0x5e8] sm:$0xff]
    %v312 = vld [vmem:[#allocation2 + $0x5f0] sm:$0xff]
    %v313 = vld [vmem:[#allocation2 + $0x5f8] sm:$0xff]
    %v314 = vld [vmem:[#allocation2 + $0x600] sm:$0xff]
    %v315 = vld [vmem:[#allocation2 + $0x608] sm:$0xff]
    %v316 = vld [vmem:[#allocation2 + $0x610] sm:$0xff]
    %v317 = vld [vmem:[#allocation2 + $0x618] sm:$0xff]
    %v318 = vld [vmem:[#allocation2 + $0x620] sm:$0xff]
    %v319 = vld [vmem:[#allocation2 + $0x628] sm:$0xff]
    %v320 = vld [vmem:[#allocation2 + $0x630] sm:$0xff]
    %v321 = vld [vmem:[#allocation2 + $0x638] sm:$0xff]
    %v322 = vld [vmem:[#allocation2 + $0x640] sm:$0xff]
    %v323 = vld [vmem:[#allocation2 + $0x648] sm:$0xff]
    %v324 = vld [vmem:[#allocation2 + $0x650] sm:$0xff]
    %v325 = vld [vmem:[#allocation2 + $0x658] sm:$0xff]
    %v326 = vld [vmem:[#allocation2 + $0x660] sm:$0xff]
    %v327 = vld [vmem:[#allocation2 + $0x668] sm:$0xff]
    %v328 = vld [vmem:[#allocation2 + $0x670] sm:$0xff]
    %v329 = vld [vmem:[#allocation2 + $0x678] sm:$0xff]
    %v330 = vld [vmem:[#allocation2 + $0x680] sm:$0xff]
    %v331 = vld [vmem:[#allocation2 + $0x688] sm:$0xff]
    %v332 = vld [vmem:[#allocation2 + $0x690] sm:$0xff]
    %v333 = vld [vmem:[#allocation2 + $0x698] sm:$0xff]
    %v334 = vld [vmem:[#allocation2 + $0x6a0] sm:$0xff]
    %v335 = vld [vmem:[#allocation2 + $0x6a8] sm:$0xff]
    %v336 = vld [vmem:[#allocation2 + $0x6b0] sm:$0xff]
    %v337 = vld [vmem:[#allocation2 + $0x6b8] sm:$0xff]
    %v338 = vld [vmem:[#allocation2 + $0x6c0] sm:$0xff]
    %v339 = vld [vmem:[#allocation2 + $0x6c8] sm:$0xff]
    %v340 = vld [vmem:[#allocation2 + $0x6d0] sm:$0xff]
    %v341 = vld [vmem:[#allocation2 + $0x6d8] sm:$0xff]
    %v342 = vld [vmem:[#allocation2 + $0x6e0] sm:$0xff]
    %v343 = vld [vmem:[#allocation2 + $0x6e8] sm:$0xff]
    %v344 = vld [vmem:[#allocation2 + $0x6f0] sm:$0xff]
    %v345 = vld [vmem:[#allocation2 + $0x6f8] sm:$0xff]
    %v346 = vld [vmem:[#allocation2 + $0x700] sm:$0xff]
    %v347 = vld [vmem:[#allocation2 + $0x708] sm:$0xff]
    %v348 = vld [vmem:[#allocation2 + $0x710] sm:$0xff]
    %v349 = vld [vmem:[#allocation2 + $0x718] sm:$0xff]
    %v350 = vld [vmem:[#allocation2 + $0x720] sm:$0xff]
    %v351 = vld [vmem:[#allocation2 + $0x728] sm:$0xff]
    %v352 = vld [vmem:[#allocation2 + $0x730] sm:$0xff]
    %v353 = vld [vmem:[#allocation2 + $0x738] sm:$0xff]
    %v354 = vld [vmem:[#allocation2 + $0x740] sm:$0xff]
    %v355 = vld [vmem:[#allocation2 + $0x748] sm:$0xff]
    %v356 = vld [vmem:[#allocation2 + $0x750] sm:$0xff]
    %v357 = vld [vmem:[#allocation2 + $0x758] sm:$0xff]
    %v358 = vld [vmem:[#allocation2 + $0x760] sm:$0xff]
    %v359 = vld [vmem:[#allocation2 + $0x768] sm:$0xff]
    %v360 = vld [vmem:[#allocation2 + $0x770] sm:$0xff]
    %v361 = vld [vmem:[#allocation2 + $0x778] sm:$0xff]
    %v362 = vld [vmem:[#allocation2 + $0x780] sm:$0xff]
    %v363 = vld [vmem:[#allocation2 + $0x788] sm:$0xff]
    %v364 = vld [vmem:[#allocation2 + $0x790] sm:$0xff]
    %v365 = vld [vmem:[#allocation2 + $0x798] sm:$0xff]
    %v366 = vld [vmem:[#allocation2 + $0x7a0] sm:$0xff]
    %v367 = vld [vmem:[#allocation2 + $0x7a8] sm:$0xff]
    %v368 = vld [vmem:[#allocation2 + $0x7b0] sm:$0xff]
    %v369 = vld [vmem:[#allocation2 + $0x7b8] sm:$0xff]
    %v370 = vld [vmem:[#allocation2 + $0x7c0] sm:$0xff]
    %v371 = vld [vmem:[#allocation2 + $0x7c8] sm:$0xff]
    %v372 = vld [vmem:[#allocation2 + $0x7d0] sm:$0xff]
    %v373 = vld [vmem:[#allocation2 + $0x7d8] sm:$0xff]
    %v374 = vld [vmem:[#allocation2 + $0x7e0] sm:$0xff]
    %v375 = vld [vmem:[#allocation2 + $0x7e8] sm:$0xff]
    %v376 = vld [vmem:[#allocation2 + $0x7f0] sm:$0xff]
    %v377 = vld [vmem:[#allocation2 + $0x7f8] sm:$0xff]
    %v378 = vld [vmem:[#allocation2 + $0x800] sm:$0xff]
    %v379 = vld [vmem:[#allocation2 + $0x808] sm:$0xff]
    %v380 = vld [vmem:[#allocation2 + $0x810] sm:$0xff]
    %v381 = vld [vmem:[#allocation2 + $0x818] sm:$0xff]
    %v382 = vld [vmem:[#allocation2 + $0x820] sm:$0xff]
    %v383 = vld [vmem:[#allocation2 + $0x828] sm:$0xff]
    %v384 = vld [vmem:[#allocation2 + $0x830] sm:$0xff]
    %v385 = vld [vmem:[#allocation2 + $0x838] sm:$0xff]
    %v386 = vld [vmem:[#allocation2 + $0x840] sm:$0xff]
    %v387 = vld [vmem:[#allocation2 + $0x848] sm:$0xff]
    %v388 = vld [vmem:[#allocation2 + $0x850] sm:$0xff]
    %v389 = vld [vmem:[#allocation2 + $0x858] sm:$0xff]
    %v390 = vld [vmem:[#allocation2 + $0x860] sm:$0xff]
    %v391 = vld [vmem:[#allocation2 + $0x868] sm:$0xff]
    %v392 = vld [vmem:[#allocation2 + $0x870] sm:$0xff]
    %v393 = vld [vmem:[#allocation2 + $0x878] sm:$0xff]
    %v394 = vld [vmem:[#allocation2 + $0x880] sm:$0xff]
    %v395 = vld [vmem:[#allocation2 + $0x888] sm:$0xff]
    %v396 = vld [vmem:[#allocation2 + $0x890] sm:$0xff]
    %v397 = vld [vmem:[#allocation2 + $0x898] sm:$0xff]
    %v398 = vld [vmem:[#allocation2 + $0x8a0] sm:$0xff]
    %v399 = vld [vmem:[#allocation2 + $0x8a8] sm:$0xff]
    %v400 = vld [vmem:[#allocation2 + $0x8b0] sm:$0xff]
    %v401 = vld [vmem:[#allocation2 + $0x8b8] sm:$0xff]
    %v402 = vld [vmem:[#allocation2 + $0x8c0] sm:$0xff]
    %v403 = vld [vmem:[#allocation2 + $0x8c8] sm:$0xff]
    %v404 = vld [vmem:[#allocation2 + $0x8d0] sm:$0xff]
    %v405 = vld [vmem:[#allocation2 + $0x8d8] sm:$0xff]
    %v406 = vld [vmem:[#allocation2 + $0x8e0] sm:$0xff]
    %v407 = vld [vmem:[#allocation2 + $0x8e8] sm:$0xff]
    %v408 = vld [vmem:[#allocation2 + $0x8f0] sm:$0xff]
    %v409 = vld [vmem:[#allocation2 + $0x8f8] sm:$0xff]
    %v410 = vld [vmem:[#allocation2 + $0x900] sm:$0xff]
    %v411 = vld [vmem:[#allocation2 + $0x908] sm:$0xff]
    %v412 = vld [vmem:[#allocation2 + $0x910] sm:$0xff]
    %v413 = vld [vmem:[#allocation2 + $0x918] sm:$0xff]
    %v414 = vld [vmem:[#allocation2 + $0x920] sm:$0xff]
    %v415 = vld [vmem:[#allocation2 + $0x928] sm:$0xff]
    %v416 = vld [vmem:[#allocation2 + $0x930] sm:$0xff]
    %v417 = vld [vmem:[#allocation2 + $0x938] sm:$0xff]
    %v418 = vld [vmem:[#allocation2 + $0x940] sm:$0xff]
    %v419 = vld [vmem:[#allocation2 + $0x948] sm:$0xff]
    %v420 = vld [vmem:[#allocation2 + $0x950] sm:$0xff]
    %v421 = vld [vmem:[#allocation2 + $0x958] sm:$0xff]
    %v422 = vld [vmem:[#allocation2 + $0x960] sm:$0xff]
    %v423 = vld [vmem:[#allocation2 + $0x968] sm:$0xff]
    %v424 = vld [vmem:[#allocation2 + $0x970] sm:$0xff]
    %v425 = vld [vmem:[#allocation2 + $0x978] sm:$0xff]
    %v426 = vld [vmem:[#allocation2 + $0x980] sm:$0xff]
    %v427 = vld [vmem:[#allocation2 + $0x988] sm:$0xff]
    %v428 = vld [vmem:[#allocation2 + $0x990] sm:$0xff]
    %v429 = vld [vmem:[#allocation2 + $0x998] sm:$0xff]
    %v430 = vld [vmem:[#allocation2 + $0x9a0] sm:$0xff]
    %v431 = vld [vmem:[#allocation2 + $0x9a8] sm:$0xff]
    %v432 = vld [vmem:[#allocation2 + $0x9b0] sm:$0xff]
    %v433 = vld [vmem:[#allocation2 + $0x9b8] sm:$0xff]
    %v434 = vld [vmem:[#allocation2 + $0x9c0] sm:$0xff]
    %v435 = vld [vmem:[#allocation2 + $0x9c8] sm:$0xff]
    %v436 = vld [vmem:[#allocation2 + $0x9d0] sm:$0xff]
    %v437 = vld [vmem:[#allocation2 + $0x9d8] sm:$0xff]
    %v438 = vld [vmem:[#allocation2 + $0x9e0] sm:$0xff]
    %v439 = vld [vmem:[#allocation2 + $0x9e8] sm:$0xff]
    %v440 = vld [vmem:[#allocation2 + $0x9f0] sm:$0xff]
    %v441 = vld [vmem:[#allocation2 + $0x9f8] sm:$0xff]
    %v442 = vld [vmem:[#allocation2 + $0xa00] sm:$0xff]
    %v443 = vld [vmem:[#allocation2 + $0xa08] sm:$0xff]
    %v444 = vld [vmem:[#allocation2 + $0xa10] sm:$0xff]
    %v445 = vld [vmem:[#allocation2 + $0xa18] sm:$0xff]
    %v446 = vld [vmem:[#allocation2 + $0xa20] sm:$0xff]
    %v447 = vld [vmem:[#allocation2 + $0xa28] sm:$0xff]
    %v448 = vld [vmem:[#allocation2 + $0xa30] sm:$0xff]
    %v449 = vld [vmem:[#allocation2 + $0xa38] sm:$0xff]
    %v450 = vld [vmem:[#allocation2 + $0xa40] sm:$0xff]
    %v451 = vld [vmem:[#allocation2 + $0xa48] sm:$0xff]
    %v452 = vld [vmem:[#allocation2 + $0xa50] sm:$0xff]
    %v453 = vld [vmem:[#allocation2 + $0xa58] sm:$0xff]
    %v454 = vld [vmem:[#allocation2 + $0xa60] sm:$0xff]
    %v455 = vld [vmem:[#allocation2 + $0xa68] sm:$0xff]
    %v456 = vld [vmem:[#allocation2 + $0xa70] sm:$0xff]
    %v457 = vld [vmem:[#allocation2 + $0xa78] sm:$0xff]
    %v458 = vld [vmem:[#allocation2 + $0xa80] sm:$0xff]
    %v459 = vld [vmem:[#allocation2 + $0xa88] sm:$0xff]
    %v460 = vld [vmem:[#allocation2 + $0xa90] sm:$0xff]
    %v461 = vld [vmem:[#allocation2 + $0xa98] sm:$0xff]
    %v462 = vld [vmem:[#allocation2 + $0xaa0] sm:$0xff]
    %v463 = vld [vmem:[#allocation2 + $0xaa8] sm:$0xff]
    %v464 = vld [vmem:[#allocation2 + $0xab0] sm:$0xff]
    %v465 = vld [vmem:[#allocation2 + $0xab8] sm:$0xff]
    %v466 = vld [vmem:[#allocation2 + $0xac0] sm:$0xff]
    %v467 = vld [vmem:[#allocation2 + $0xac8] sm:$0xff]
    %v468 = vld [vmem:[#allocation2 + $0xad0] sm:$0xff]
    %v469 = vld [vmem:[#allocation2 + $0xad8] sm:$0xff]
    %v470 = vld [vmem:[#allocation2 + $0xae0] sm:$0xff]
    %v471 = vld [vmem:[#allocation2 + $0xae8] sm:$0xff]
    %v472 = vld [vmem:[#allocation2 + $0xaf0] sm:$0xff]
    %v473 = vld [vmem:[#allocation2 + $0xaf8] sm:$0xff]
    %v474 = vld [vmem:[#allocation2 + $0xb00] sm:$0xff]
    %v475 = vld [vmem:[#allocation2 + $0xb08] sm:$0xff]
    %v476 = vld [vmem:[#allocation2 + $0xb10] sm:$0xff]
    %v477 = vld [vmem:[#allocation2 + $0xb18] sm:$0xff]
    %v478 = vld [vmem:[#allocation2 + $0xb20] sm:$0xff]
    %v479 = vld [vmem:[#allocation2 + $0xb28] sm:$0xff]
    %v480 = vld [vmem:[#allocation2 + $0xb30] sm:$0xff]
    %v481 = vld [vmem:[#allocation2 + $0xb38] sm:$0xff]
    %v482 = vld [vmem:[#allocation2 + $0xb40] sm:$0xff]
    %v483 = vld [vmem:[#allocation2 + $0xb48] sm:$0xff]
    %v484 = vld [vmem:[#allocation2 + $0xb50] sm:$0xff]
    %v485 = vld [vmem:[#allocation2 + $0xb58] sm:$0xff]
    %v486 = vld [vmem:[#allocation2 + $0xb60] sm:$0xff]
    %v487 = vld [vmem:[#allocation2 + $0xb68] sm:$0xff]
    %v488 = vld [vmem:[#allocation2 + $0xb70] sm:$0xff]
    %v489 = vld [vmem:[#allocation2 + $0xb78] sm:$0xff]
    %v490 = vld [vmem:[#allocation2 + $0xb80] sm:$0xff]
    %v491 = vld [vmem:[#allocation2 + $0xb88] sm:$0xff]
    %v492 = vld [vmem:[#allocation2 + $0xb90] sm:$0xff]
    %v493 = vld [vmem:[#allocation2 + $0xb98] sm:$0xff]
    %v494 = vld [vmem:[#allocation2 + $0xba0] sm:$0xff]
    %v495 = vld [vmem:[#allocation2 + $0xba8] sm:$0xff]
    %v496 = vld [vmem:[#allocation2 + $0xbb0] sm:$0xff]
    %v497 = vld [vmem:[#allocation2 + $0xbb8] sm:$0xff]
    %v498 = vld [vmem:[#allocation2 + $0xbc0] sm:$0xff]
    %v499 = vld [vmem:[#allocation2 + $0xbc8] sm:$0xff]
    %v500 = vld [vmem:[#allocation2 + $0xbd0] sm:$0xff]
    %v501 = vld [vmem:[#allocation2 + $0xbd8] sm:$0xff]
    %v502 = vld [vmem:[#allocation2 + $0xbe0] sm:$0xff]
    %v503 = vld [vmem:[#allocation2 + $0xbe8] sm:$0xff]
    %v504 = vld [vmem:[#allocation2 + $0xbf0] sm:$0xff]
    %v505 = vld [vmem:[#allocation2 + $0xbf8] sm:$0xff]
    %v506 = vld [vmem:[#allocation2 + $0xc00] sm:$0xff]
    %v507 = vld [vmem:[#allocation2 + $0xc08] sm:$0xff]
    %v508 = vld [vmem:[#allocation2 + $0xc10] sm:$0xff]
    %v509 = vld [vmem:[#allocation2 + $0xc18] sm:$0xff]
    %v510 = vld [vmem:[#allocation2 + $0xc20] sm:$0xff]
    %v511 = vld [vmem:[#allocation2 + $0xc28] sm:$0xff]
    %v512 = vld [vmem:[#allocation2 + $0xc30] sm:$0xff]
    %v513 = vld [vmem:[#allocation2 + $0xc38] sm:$0xff]
    %v514 = vld [vmem:[#allocation2 + $0xc40] sm:$0xff]
    %v515 = vld [vmem:[#allocation2 + $0xc48] sm:$0xff]
    %v516 = vld [vmem:[#allocation2 + $0xc50] sm:$0xff]
    %v517 = vld [vmem:[#allocation2 + $0xc58] sm:$0xff]
    %v518 = vld [vmem:[#allocation2 + $0xc60] sm:$0xff]
    %v519 = vld [vmem:[#allocation2 + $0xc68] sm:$0xff]
    %v520 = vld [vmem:[#allocation2 + $0xc70] sm:$0xff]
    %v521 = vld [vmem:[#allocation2 + $0xc78] sm:$0xff]
    %v522 = vld [vmem:[#allocation2 + $0xc80] sm:$0xff]
    %v523 = vld [vmem:[#allocation2 + $0xc88] sm:$0xff]
    %v524 = vld [vmem:[#allocation2 + $0xc90] sm:$0xff]
    %v525 = vld [vmem:[#allocation2 + $0xc98] sm:$0xff]
    %v526 = vld [vmem:[#allocation2 + $0xca0] sm:$0xff]
    %v527 = vld [vmem:[#allocation2 + $0xca8] sm:$0xff]
    %v528 = vld [vmem:[#allocation2 + $0xcb0] sm:$0xff]
    %v529 = vld [vmem:[#allocation2 + $0xcb8] sm:$0xff]
    %v530 = vld [vmem:[#allocation2 + $0xcc0] sm:$0xff]
    %v531 = vld [vmem:[#allocation2 + $0xcc8] sm:$0xff]
    %v532 = vld [vmem:[#allocation2 + $0xcd0] sm:$0xff]
    %v533 = vld [vmem:[#allocation2 + $0xcd8] sm:$0xff]
    %v534 = vld [vmem:[#allocation2 + $0xce0] sm:$0xff]
    %v535 = vld [vmem:[#allocation2 + $0xce8] sm:$0xff]
    %v536 = vld [vmem:[#allocation2 + $0xcf0] sm:$0xff]
    %v537 = vld [vmem:[#allocation2 + $0xcf8] sm:$0xff]
    %v538 = vld [vmem:[#allocation2 + $0xd00] sm:$0xff]
    %v539 = vld [vmem:[#allocation2 + $0xd08] sm:$0xff]
    %v540 = vld [vmem:[#allocation2 + $0xd10] sm:$0xff]
    %v541 = vld [vmem:[#allocation2 + $0xd18] sm:$0xff]
    %v542 = vld [vmem:[#allocation2 + $0xd20] sm:$0xff]
    %v543 = vld [vmem:[#allocation2 + $0xd28] sm:$0xff]
    %v544 = vld [vmem:[#allocation2 + $0xd30] sm:$0xff]
    %v545 = vld [vmem:[#allocation2 + $0xd38] sm:$0xff]
    %v546 = vld [vmem:[#allocation2 + $0xd40] sm:$0xff]
    %v547 = vld [vmem:[#allocation2 + $0xd48] sm:$0xff]
    %v548 = vld [vmem:[#allocation2 + $0xd50] sm:$0xff]
    %v549 = vld [vmem:[#allocation2 + $0xd58] sm:$0xff]
    %v550 = vld [vmem:[#allocation2 + $0xd60] sm:$0xff]
    %v551 = vld [vmem:[#allocation2 + $0xd68] sm:$0xff]
    %v552 = vld [vmem:[#allocation2 + $0xd70] sm:$0xff]
    %v553 = vld [vmem:[#allocation2 + $0xd78] sm:$0xff]
    %v554 = vld [vmem:[#allocation2 + $0xd80] sm:$0xff]
    %v555 = vld [vmem:[#allocation2 + $0xd88] sm:$0xff]
    %v556 = vld [vmem:[#allocation2 + $0xd90] sm:$0xff]
    %v557 = vld [vmem:[#allocation2 + $0xd98] sm:$0xff]
    %v558 = vld [vmem:[#allocation2 + $0xda0] sm:$0xff]
    %v559 = vld [vmem:[#allocation2 + $0xda8] sm:$0xff]
    %v560 = vld [vmem:[#allocation2 + $0xdb0] sm:$0xff]
    %v561 = vld [vmem:[#allocation2 + $0xdb8] sm:$0xff]
    %v562 = vld [vmem:[#allocation2 + $0xdc0] sm:$0xff]
    %v563 = vld [vmem:[#allocation2 + $0xdc8] sm:$0xff]
    %v564 = vld [vmem:[#allocation2 + $0xdd0] sm:$0xff]
    %v565 = vld [vmem:[#allocation2 + $0xdd8] sm:$0xff]
    %v566 = vld [vmem:[#allocation2 + $0xde0] sm:$0xff]
    %v567 = vld [vmem:[#allocation2 + $0xde8] sm:$0xff]
    %v568 = vld [vmem:[#allocation2 + $0xdf0] sm:$0xff]
    %v569 = vld [vmem:[#allocation2 + $0xdf8] sm:$0xff]
    %v570 = vld [vmem:[#allocation2 + $0xe00] sm:$0xff]
    %v571 = vld [vmem:[#allocation2 + $0xe08] sm:$0xff]
    %v572 = vld [vmem:[#allocation2 + $0xe10] sm:$0xff]
    %v573 = vld [vmem:[#allocation2 + $0xe18] sm:$0xff]
    %v574 = vld [vmem:[#allocation2 + $0xe20] sm:$0xff]
    %v575 = vld [vmem:[#allocation2 + $0xe28] sm:$0xff]
    %v576 = vld [vmem:[#allocation2 + $0xe30] sm:$0xff]
    %v577 = vld [vmem:[#allocation2 + $0xe38] sm:$0xff]
    %v578 = vld [vmem:[#allocation2 + $0xe40] sm:$0xff]
    %v579 = vld [vmem:[#allocation2 + $0xe48] sm:$0xff]
    %v580 = vld [vmem:[#allocation2 + $0xe50] sm:$0xff]
    %v581 = vld [vmem:[#allocation2 + $0xe58] sm:$0xff]
    %v582 = vld [vmem:[#allocation2 + $0xe60] sm:$0xff]
    %v583 = vld [vmem:[#allocation2 + $0xe68] sm:$0xff]
    %v584 = vld [vmem:[#allocation2 + $0xe70] sm:$0xff]
    %v585 = vld [vmem:[#allocation2 + $0xe78] sm:$0xff]
    %v586 = vld [vmem:[#allocation2 + $0xe80] sm:$0xff]
    %v587 = vld [vmem:[#allocation2 + $0xe88] sm:$0xff]
    %v588 = vld [vmem:[#allocation2 + $0xe90] sm:$0xff]
    %v589 = vld [vmem:[#allocation2 + $0xe98] sm:$0xff]
    %v590 = vld [vmem:[#allocation2 + $0xea0] sm:$0xff]
    %v591 = vld [vmem:[#allocation2 + $0xea8] sm:$0xff]
    %v592 = vld [vmem:[#allocation2 + $0xeb0] sm:$0xff]
    %v593 = vld [vmem:[#allocation2 + $0xeb8] sm:$0xff]
    %v594 = vld [vmem:[#allocation2 + $0xec0] sm:$0xff]
    %v595 = vld [vmem:[#allocation2 + $0xec8] sm:$0xff]
    %v596 = vld [vmem:[#allocation2 + $0xed0] sm:$0xff]
    %v597 = vld [vmem:[#allocation2 + $0xed8] sm:$0xff]
    %v598 = vld [vmem:[#allocation2 + $0xee0] sm:$0xff]
    %v599 = vld [vmem:[#allocation2 + $0xee8] sm:$0xff]
    %v600 = vld [vmem:[#allocation2 + $0xef0] sm:$0xff]
    %v601 = vld [vmem:[#allocation2 + $0xef8] sm:$0xff]
    %v602 = vld [vmem:[#allocation2 + $0xf00] sm:$0xff]
    %v603 = vld [vmem:[#allocation2 + $0xf08] sm:$0xff]
    %v604 = vld [vmem:[#allocation2 + $0xf10] sm:$0xff]
    %v605 = vld [vmem:[#allocation2 + $0xf18] sm:$0xff]
    %v606 = vld [vmem:[#allocation2 + $0xf20] sm:$0xff]
    %v607 = vld [vmem:[#allocation2 + $0xf28] sm:$0xff]
    %v608 = vld [vmem:[#allocation2 + $0xf30] sm:$0xff]
    %v609 = vld [vmem:[#allocation2 + $0xf38] sm:$0xff]
    %v610 = vld [vmem:[#allocation2 + $0xf40] sm:$0xff]
    %v611 = vld [vmem:[#allocation2 + $0xf48] sm:$0xff]
    %v612 = vld [vmem:[#allocation2 + $0xf50] sm:$0xff]
    %v613 = vld [vmem:[#allocation2 + $0xf58] sm:$0xff]
    %v614 = vld [vmem:[#allocation2 + $0xf60] sm:$0xff]
    %v615 = vld [vmem:[#allocation2 + $0xf68] sm:$0xff]
    %v616 = vld [vmem:[#allocation2 + $0xf70] sm:$0xff]
    %v617 = vld [vmem:[#allocation2 + $0xf78] sm:$0xff]
    %v618 = vld [vmem:[#allocation2 + $0xf80] sm:$0xff]
    %v619 = vld [vmem:[#allocation2 + $0xf88] sm:$0xff]
    %v620 = vld [vmem:[#allocation2 + $0xf90] sm:$0xff]
    %v621 = vld [vmem:[#allocation2 + $0xf98] sm:$0xff]
    %v622 = vld [vmem:[#allocation2 + $0xfa0] sm:$0xff]
    %v623 = vld [vmem:[#allocation2 + $0xfa8] sm:$0xff]
    %v624 = vld [vmem:[#allocation2 + $0xfb0] sm:$0xff]
    %v625 = vld [vmem:[#allocation2 + $0xfb8] sm:$0xff]
    %v626 = vld [vmem:[#allocation2 + $0xfc0] sm:$0xff]
    %v627 = vld [vmem:[#allocation2 + $0xfc8] sm:$0xff]
    %v628 = vld [vmem:[#allocation2 + $0xfd0] sm:$0xff]
    %v629 = vld [vmem:[#allocation2 + $0xfd8] sm:$0xff]
    %v630 = vld [vmem:[#allocation2 + $0xfe0] sm:$0xff]
    %v631 = vld [vmem:[#allocation2 + $0xfe8] sm:$0xff]
    %v632 = vld [vmem:[#allocation2 + $0xff0] sm:$0xff]
    %v633 = vld [vmem:[#allocation2 + $0xff8] sm:$0xff]
    %v638 = vunpack.c.l.b16 %v118
    %v639 = vunpack.c.h.b16 %v118
    %v640 = vunpack.c.l.b16 %v119
    %v641 = vunpack.c.h.b16 %v119
    %v642 = vunpack.c.l.b16 %v120
    %v643 = vunpack.c.h.b16 %v120
    %v644 = vunpack.c.l.b16 %v121
    %v645 = vunpack.c.h.b16 %v121
    %v646 = vpack.c.b16 %v638, %v638
    %v647 = vpack.c.b16 %v639, %v639
    %v648 = vpack.c.b16 %v640, %v640
    %v649 = vpack.c.b16 %v641, %v641
    %v650 = vpack.c.b16 %v642, %v642
    %v651 = vpack.c.b16 %v643, %v643
    %v652 = vpack.c.b16 %v644, %v644
    %v653 = vpack.c.b16 %v645, %v645
    %v1174 = vunpack.c.l.b16 %v122
    %v1175 = vunpack.c.h.b16 %v122
    %v1176 = vunpack.c.l.b16 %v123
    %v1177 = vunpack.c.h.b16 %v123
    %v1178 = vunpack.c.l.b16 %v124
    %v1179 = vunpack.c.h.b16 %v124
    %v1180 = vunpack.c.l.b16 %v125
    %v1181 = vunpack.c.h.b16 %v125
    %v1182 = vunpack.c.l.b16 %v126
    %v1183 = vunpack.c.h.b16 %v126
    %v1184 = vunpack.c.l.b16 %v127
    %v1185 = vunpack.c.h.b16 %v127
    %v1186 = vunpack.c.l.b16 %v128
    %v1187 = vunpack.c.h.b16 %v128
    %v1188 = vunpack.c.l.b16 %v129
    %v1189 = vunpack.c.h.b16 %v129
    %v1190 = vunpack.c.l.b16 %v130
    %v1191 = vunpack.c.h.b16 %v130
    %v1192 = vunpack.c.l.b16 %v131
    %v1193 = vunpack.c.h.b16 %v131
    %v1194 = vunpack.c.l.b16 %v132
    %v1195 = vunpack.c.h.b16 %v132
    %v1196 = vunpack.c.l.b16 %v133
    %v1197 = vunpack.c.h.b16 %v133
    %v1198 = vunpack.c.l.b16 %v134
    %v1199 = vunpack.c.h.b16 %v134
    %v1200 = vunpack.c.l.b16 %v135
    %v1201 = vunpack.c.h.b16 %v135
    %v1202 = vunpack.c.l.b16 %v136
    %v1203 = vunpack.c.h.b16 %v136
    %v1204 = vunpack.c.l.b16 %v137
    %v1205 = vunpack.c.h.b16 %v137
    %v1206 = vunpack.c.l.b16 %v138
    %v1207 = vunpack.c.h.b16 %v138
    %v1208 = vunpack.c.l.b16 %v139
    %v1209 = vunpack.c.h.b16 %v139
    %v1210 = vunpack.c.l.b16 %v140
    %v1211 = vunpack.c.h.b16 %v140
    %v1212 = vunpack.c.l.b16 %v141
    %v1213 = vunpack.c.h.b16 %v141
    %v1214 = vunpack.c.l.b16 %v142
    %v1215 = vunpack.c.h.b16 %v142
    %v1216 = vunpack.c.l.b16 %v143
    %v1217 = vunpack.c.h.b16 %v143
    %v1218 = vunpack.c.l.b16 %v144
    %v1219 = vunpack.c.h.b16 %v144
    %v1220 = vunpack.c.l.b16 %v145
    %v1221 = vunpack.c.h.b16 %v145
    %v1222 = vunpack.c.l.b16 %v146
    %v1223 = vunpack.c.h.b16 %v146
    %v1224 = vunpack.c.l.b16 %v147
    %v1225 = vunpack.c.h.b16 %v147
    %v1226 = vunpack.c.l.b16 %v148
    %v1227 = vunpack.c.h.b16 %v148
    %v1228 = vunpack.c.l.b16 %v149
    %v1229 = vunpack.c.h.b16 %v149
    %v1230 = vunpack.c.l.b16 %v150
    %v1231 = vunpack.c.h.b16 %v150
    %v1232 = vunpack.c.l.b16 %v151
    %v1233 = vunpack.c.h.b16 %v151
    %v1234 = vunpack.c.l.b16 %v152
    %v1235 = vunpack.c.h.b16 %v152
    %v1236 = vunpack.c.l.b16 %v153
    %v1237 = vunpack.c.h.b16 %v153
    %v1238 = vunpack.c.l.b16 %v154
    %v1239 = vunpack.c.h.b16 %v154
    %v1240 = vunpack.c.l.b16 %v155
    %v1241 = vunpack.c.h.b16 %v155
    %v1242 = vunpack.c.l.b16 %v156
    %v1243 = vunpack.c.h.b16 %v156
    %v1244 = vunpack.c.l.b16 %v157
    %v1245 = vunpack.c.h.b16 %v157
    %v1246 = vunpack.c.l.b16 %v158
    %v1247 = vunpack.c.h.b16 %v158
    %v1248 = vunpack.c.l.b16 %v159
    %v1249 = vunpack.c.h.b16 %v159
    %v1250 = vunpack.c.l.b16 %v160
    %v1251 = vunpack.c.h.b16 %v160
    %v1252 = vunpack.c.l.b16 %v161
    %v1253 = vunpack.c.h.b16 %v161
    %v1254 = vunpack.c.l.b16 %v162
    %v1255 = vunpack.c.h.b16 %v162
    %v1256 = vunpack.c.l.b16 %v163
    %v1257 = vunpack.c.h.b16 %v163
    %v1258 = vunpack.c.l.b16 %v164
    %v1259 = vunpack.c.h.b16 %v164
    %v1260 = vunpack.c.l.b16 %v165
    %v1261 = vunpack.c.h.b16 %v165
    %v1262 = vunpack.c.l.b16 %v166
    %v1263 = vunpack.c.h.b16 %v166
    %v1264 = vunpack.c.l.b16 %v167
    %v1265 = vunpack.c.h.b16 %v167
    %v1266 = vunpack.c.l.b16 %v168
    %v1267 = vunpack.c.h.b16 %v168
    %v1268 = vunpack.c.l.b16 %v169
    %v1269 = vunpack.c.h.b16 %v169
    %v1270 = vunpack.c.l.b16 %v170
    %v1271 = vunpack.c.h.b16 %v170
    %v1272 = vunpack.c.l.b16 %v171
    %v1273 = vunpack.c.h.b16 %v171
    %v1274 = vunpack.c.l.b16 %v172
    %v1275 = vunpack.c.h.b16 %v172
    %v1276 = vunpack.c.l.b16 %v173
    %v1277 = vunpack.c.h.b16 %v173
    %v1278 = vunpack.c.l.b16 %v174
    %v1279 = vunpack.c.h.b16 %v174
    %v1280 = vunpack.c.l.b16 %v175
    %v1281 = vunpack.c.h.b16 %v175
    %v1282 = vunpack.c.l.b16 %v176
    %v1283 = vunpack.c.h.b16 %v176
    %v1284 = vunpack.c.l.b16 %v177
    %v1285 = vunpack.c.h.b16 %v177
    %v1286 = vunpack.c.l.b16 %v178
    %v1287 = vunpack.c.h.b16 %v178
    %v1288 = vunpack.c.l.b16 %v179
    %v1289 = vunpack.c.h.b16 %v179
    %v1290 = vunpack.c.l.b16 %v180
    %v1291 = vunpack.c.h.b16 %v180
    %v1292 = vunpack.c.l.b16 %v181
    %v1293 = vunpack.c.h.b16 %v181
    %v1294 = vunpack.c.l.b16 %v182
    %v1295 = vunpack.c.h.b16 %v182
    %v1296 = vunpack.c.l.b16 %v183
    %v1297 = vunpack.c.h.b16 %v183
    %v1298 = vunpack.c.l.b16 %v184
    %v1299 = vunpack.c.h.b16 %v184
    %v1300 = vunpack.c.l.b16 %v185
    %v1301 = vunpack.c.h.b16 %v185
    %v1302 = vunpack.c.l.b16 %v186
    %v1303 = vunpack.c.h.b16 %v186
    %v1304 = vunpack.c.l.b16 %v187
    %v1305 = vunpack.c.h.b16 %v187
    %v1306 = vunpack.c.l.b16 %v188
    %v1307 = vunpack.c.h.b16 %v188
    %v1308 = vunpack.c.l.b16 %v189
    %v1309 = vunpack.c.h.b16 %v189
    %v1310 = vunpack.c.l.b16 %v190
    %v1311 = vunpack.c.h.b16 %v190
    %v1312 = vunpack.c.l.b16 %v191
    %v1313 = vunpack.c.h.b16 %v191
    %v1314 = vunpack.c.l.b16 %v192
    %v1315 = vunpack.c.h.b16 %v192
    %v1316 = vunpack.c.l.b16 %v193
    %v1317 = vunpack.c.h.b16 %v193
    %v1318 = vunpack.c.l.b16 %v194
    %v1319 = vunpack.c.h.b16 %v194
    %v1320 = vunpack.c.l.b16 %v195
    %v1321 = vunpack.c.h.b16 %v195
    %v1322 = vunpack.c.l.b16 %v196
    %v1323 = vunpack.c.h.b16 %v196
    %v1324 = vunpack.c.l.b16 %v197
    %v1325 = vunpack.c.h.b16 %v197
    %v1326 = vunpack.c.l.b16 %v198
    %v1327 = vunpack.c.h.b16 %v198
    %v1328 = vunpack.c.l.b16 %v199
    %v1329 = vunpack.c.h.b16 %v199
    %v1330 = vunpack.c.l.b16 %v200
    %v1331 = vunpack.c.h.b16 %v200
    %v1332 = vunpack.c.l.b16 %v201
    %v1333 = vunpack.c.h.b16 %v201
    %v1334 = vunpack.c.l.b16 %v202
    %v1335 = vunpack.c.h.b16 %v202
    %v1336 = vunpack.c.l.b16 %v203
    %v1337 = vunpack.c.h.b16 %v203
    %v1338 = vunpack.c.l.b16 %v204
    %v1339 = vunpack.c.h.b16 %v204
    %v1340 = vunpack.c.l.b16 %v205
    %v1341 = vunpack.c.h.b16 %v205
    %v1342 = vunpack.c.l.b16 %v206
    %v1343 = vunpack.c.h.b16 %v206
    %v1344 = vunpack.c.l.b16 %v207
    %v1345 = vunpack.c.h.b16 %v207
    %v1346 = vunpack.c.l.b16 %v208
    %v1347 = vunpack.c.h.b16 %v208
    %v1348 = vunpack.c.l.b16 %v209
    %v1349 = vunpack.c.h.b16 %v209
    %v1350 = vunpack.c.l.b16 %v210
    %v1351 = vunpack.c.h.b16 %v210
    %v1352 = vunpack.c.l.b16 %v211
    %v1353 = vunpack.c.h.b16 %v211
    %v1354 = vunpack.c.l.b16 %v212
    %v1355 = vunpack.c.h.b16 %v212
    %v1356 = vunpack.c.l.b16 %v213
    %v1357 = vunpack.c.h.b16 %v213
    %v1358 = vunpack.c.l.b16 %v214
    %v1359 = vunpack.c.h.b16 %v214
    %v1360 = vunpack.c.l.b16 %v215
    %v1361 = vunpack.c.h.b16 %v215
    %v1362 = vunpack.c.l.b16 %v216
    %v1363 = vunpack.c.h.b16 %v216
    %v1364 = vunpack.c.l.b16 %v217
    %v1365 = vunpack.c.h.b16 %v217
    %v1366 = vunpack.c.l.b16 %v218
    %v1367 = vunpack.c.h.b16 %v218
    %v1368 = vunpack.c.l.b16 %v219
    %v1369 = vunpack.c.h.b16 %v219
    %v1370 = vunpack.c.l.b16 %v220
    %v1371 = vunpack.c.h.b16 %v220
    %v1372 = vunpack.c.l.b16 %v221
    %v1373 = vunpack.c.h.b16 %v221
    %v1374 = vunpack.c.l.b16 %v222
    %v1375 = vunpack.c.h.b16 %v222
    %v1376 = vunpack.c.l.b16 %v223
    %v1377 = vunpack.c.h.b16 %v223
    %v1378 = vunpack.c.l.b16 %v224
    %v1379 = vunpack.c.h.b16 %v224
    %v1380 = vunpack.c.l.b16 %v225
    %v1381 = vunpack.c.h.b16 %v225
    %v1382 = vunpack.c.l.b16 %v226
    %v1383 = vunpack.c.h.b16 %v226
    %v1384 = vunpack.c.l.b16 %v227
    %v1385 = vunpack.c.h.b16 %v227
    %v1386 = vunpack.c.l.b16 %v228
    %v1387 = vunpack.c.h.b16 %v228
    %v1388 = vunpack.c.l.b16 %v229
    %v1389 = vunpack.c.h.b16 %v229
    %v1390 = vunpack.c.l.b16 %v230
    %v1391 = vunpack.c.h.b16 %v230
    %v1392 = vunpack.c.l.b16 %v231
    %v1393 = vunpack.c.h.b16 %v231
    %v1394 = vunpack.c.l.b16 %v232
    %v1395 = vunpack.c.h.b16 %v232
    %v1396 = vunpack.c.l.b16 %v233
    %v1397 = vunpack.c.h.b16 %v233
    %v1398 = vunpack.c.l.b16 %v234
    %v1399 = vunpack.c.h.b16 %v234
    %v1400 = vunpack.c.l.b16 %v235
    %v1401 = vunpack.c.h.b16 %v235
    %v1402 = vunpack.c.l.b16 %v236
    %v1403 = vunpack.c.h.b16 %v236
    %v1404 = vunpack.c.l.b16 %v237
    %v1405 = vunpack.c.h.b16 %v237
    %v1406 = vunpack.c.l.b16 %v238
    %v1407 = vunpack.c.h.b16 %v238
    %v1408 = vunpack.c.l.b16 %v239
    %v1409 = vunpack.c.h.b16 %v239
    %v1410 = vunpack.c.l.b16 %v240
    %v1411 = vunpack.c.h.b16 %v240
    %v1412 = vunpack.c.l.b16 %v241
    %v1413 = vunpack.c.h.b16 %v241
    %v1414 = vunpack.c.l.b16 %v242
    %v1415 = vunpack.c.h.b16 %v242
    %v1416 = vunpack.c.l.b16 %v243
    %v1417 = vunpack.c.h.b16 %v243
    %v1418 = vunpack.c.l.b16 %v244
    %v1419 = vunpack.c.h.b16 %v244
    %v1420 = vunpack.c.l.b16 %v245
    %v1421 = vunpack.c.h.b16 %v245
    %v1422 = vunpack.c.l.b16 %v246
    %v1423 = vunpack.c.h.b16 %v246
    %v1424 = vunpack.c.l.b16 %v247
    %v1425 = vunpack.c.h.b16 %v247
    %v1426 = vunpack.c.l.b16 %v248
    %v1427 = vunpack.c.h.b16 %v248
    %v1428 = vunpack.c.l.b16 %v249
    %v1429 = vunpack.c.h.b16 %v249
    %v1430 = vunpack.c.l.b16 %v250
    %v1431 = vunpack.c.h.b16 %v250
    %v1432 = vunpack.c.l.b16 %v251
    %v1433 = vunpack.c.h.b16 %v251
    %v1434 = vunpack.c.l.b16 %v252
    %v1435 = vunpack.c.h.b16 %v252
    %v1436 = vunpack.c.l.b16 %v253
    %v1437 = vunpack.c.h.b16 %v253
    %v1438 = vunpack.c.l.b16 %v254
    %v1439 = vunpack.c.h.b16 %v254
    %v1440 = vunpack.c.l.b16 %v255
    %v1441 = vunpack.c.h.b16 %v255
    %v1442 = vunpack.c.l.b16 %v256
    %v1443 = vunpack.c.h.b16 %v256
    %v1444 = vunpack.c.l.b16 %v257
    %v1445 = vunpack.c.h.b16 %v257
    %v1446 = vunpack.c.l.b16 %v258
    %v1447 = vunpack.c.h.b16 %v258
    %v1448 = vunpack.c.l.b16 %v259
    %v1449 = vunpack.c.h.b16 %v259
    %v1450 = vunpack.c.l.b16 %v260
    %v1451 = vunpack.c.h.b16 %v260
    %v1452 = vunpack.c.l.b16 %v261
    %v1453 = vunpack.c.h.b16 %v261
    %v1454 = vunpack.c.l.b16 %v262
    %v1455 = vunpack.c.h.b16 %v262
    %v1456 = vunpack.c.l.b16 %v263
    %v1457 = vunpack.c.h.b16 %v263
    %v1458 = vunpack.c.l.b16 %v264
    %v1459 = vunpack.c.h.b16 %v264
    %v1460 = vunpack.c.l.b16 %v265
    %v1461 = vunpack.c.h.b16 %v265
    %v1462 = vunpack.c.l.b16 %v266
    %v1463 = vunpack.c.h.b16 %v266
    %v1464 = vunpack.c.l.b16 %v267
    %v1465 = vunpack.c.h.b16 %v267
    %v1466 = vunpack.c.l.b16 %v268
    %v1467 = vunpack.c.h.b16 %v268
    %v1468 = vunpack.c.l.b16 %v269
    %v1469 = vunpack.c.h.b16 %v269
    %v1470 = vunpack.c.l.b16 %v270
    %v1471 = vunpack.c.h.b16 %v270
    %v1472 = vunpack.c.l.b16 %v271
    %v1473 = vunpack.c.h.b16 %v271
    %v1474 = vunpack.c.l.b16 %v272
    %v1475 = vunpack.c.h.b16 %v272
    %v1476 = vunpack.c.l.b16 %v273
    %v1477 = vunpack.c.h.b16 %v273
    %v1478 = vunpack.c.l.b16 %v274
    %v1479 = vunpack.c.h.b16 %v274
    %v1480 = vunpack.c.l.b16 %v275
    %v1481 = vunpack.c.h.b16 %v275
    %v1482 = vunpack.c.l.b16 %v276
    %v1483 = vunpack.c.h.b16 %v276
    %v1484 = vunpack.c.l.b16 %v277
    %v1485 = vunpack.c.h.b16 %v277
    %v1486 = vunpack.c.l.b16 %v278
    %v1487 = vunpack.c.h.b16 %v278
    %v1488 = vunpack.c.l.b16 %v279
    %v1489 = vunpack.c.h.b16 %v279
    %v1490 = vunpack.c.l.b16 %v280
    %v1491 = vunpack.c.h.b16 %v280
    %v1492 = vunpack.c.l.b16 %v281
    %v1493 = vunpack.c.h.b16 %v281
    %v1494 = vunpack.c.l.b16 %v282
    %v1495 = vunpack.c.h.b16 %v282
    %v1496 = vunpack.c.l.b16 %v283
    %v1497 = vunpack.c.h.b16 %v283
    %v1498 = vunpack.c.l.b16 %v284
    %v1499 = vunpack.c.h.b16 %v284
    %v1500 = vunpack.c.l.b16 %v285
    %v1501 = vunpack.c.h.b16 %v285
    %v1502 = vunpack.c.l.b16 %v286
    %v1503 = vunpack.c.h.b16 %v286
    %v1504 = vunpack.c.l.b16 %v287
    %v1505 = vunpack.c.h.b16 %v287
    %v1506 = vunpack.c.l.b16 %v288
    %v1507 = vunpack.c.h.b16 %v288
    %v1508 = vunpack.c.l.b16 %v289
    %v1509 = vunpack.c.h.b16 %v289
    %v1510 = vunpack.c.l.b16 %v290
    %v1511 = vunpack.c.h.b16 %v290
    %v1512 = vunpack.c.l.b16 %v291
    %v1513 = vunpack.c.h.b16 %v291
    %v1514 = vunpack.c.l.b16 %v292
    %v1515 = vunpack.c.h.b16 %v292
    %v1516 = vunpack.c.l.b16 %v293
    %v1517 = vunpack.c.h.b16 %v293
    %v1518 = vunpack.c.l.b16 %v294
    %v1519 = vunpack.c.h.b16 %v294
    %v1520 = vunpack.c.l.b16 %v295
    %v1521 = vunpack.c.h.b16 %v295
    %v1522 = vunpack.c.l.b16 %v296
    %v1523 = vunpack.c.h.b16 %v296
    %v1524 = vunpack.c.l.b16 %v297
    %v1525 = vunpack.c.h.b16 %v297
    %v1526 = vunpack.c.l.b16 %v298
    %v1527 = vunpack.c.h.b16 %v298
    %v1528 = vunpack.c.l.b16 %v299
    %v1529 = vunpack.c.h.b16 %v299
    %v1530 = vunpack.c.l.b16 %v300
    %v1531 = vunpack.c.h.b16 %v300
    %v1532 = vunpack.c.l.b16 %v301
    %v1533 = vunpack.c.h.b16 %v301
    %v1534 = vunpack.c.l.b16 %v302
    %v1535 = vunpack.c.h.b16 %v302
    %v1536 = vunpack.c.l.b16 %v303
    %v1537 = vunpack.c.h.b16 %v303
    %v1538 = vunpack.c.l.b16 %v304
    %v1539 = vunpack.c.h.b16 %v304
    %v1540 = vunpack.c.l.b16 %v305
    %v1541 = vunpack.c.h.b16 %v305
    %v1542 = vunpack.c.l.b16 %v306
    %v1543 = vunpack.c.h.b16 %v306
    %v1544 = vunpack.c.l.b16 %v307
    %v1545 = vunpack.c.h.b16 %v307
    %v1546 = vunpack.c.l.b16 %v308
    %v1547 = vunpack.c.h.b16 %v308
    %v1548 = vunpack.c.l.b16 %v309
    %v1549 = vunpack.c.h.b16 %v309
    %v1550 = vunpack.c.l.b16 %v310
    %v1551 = vunpack.c.h.b16 %v310
    %v1552 = vunpack.c.l.b16 %v311
    %v1553 = vunpack.c.h.b16 %v311
    %v1554 = vunpack.c.l.b16 %v312
    %v1555 = vunpack.c.h.b16 %v312
    %v1556 = vunpack.c.l.b16 %v313
    %v1557 = vunpack.c.h.b16 %v313
    %v1558 = vunpack.c.l.b16 %v314
    %v1559 = vunpack.c.h.b16 %v314
    %v1560 = vunpack.c.l.b16 %v315
    %v1561 = vunpack.c.h.b16 %v315
    %v1562 = vunpack.c.l.b16 %v316
    %v1563 = vunpack.c.h.b16 %v316
    %v1564 = vunpack.c.l.b16 %v317
    %v1565 = vunpack.c.h.b16 %v317
    %v1566 = vunpack.c.l.b16 %v318
    %v1567 = vunpack.c.h.b16 %v318
    %v1568 = vunpack.c.l.b16 %v319
    %v1569 = vunpack.c.h.b16 %v319
    %v1570 = vunpack.c.l.b16 %v320
    %v1571 = vunpack.c.h.b16 %v320
    %v1572 = vunpack.c.l.b16 %v321
    %v1573 = vunpack.c.h.b16 %v321
    %v1574 = vunpack.c.l.b16 %v322
    %v1575 = vunpack.c.h.b16 %v322
    %v1576 = vunpack.c.l.b16 %v323
    %v1577 = vunpack.c.h.b16 %v323
    %v1578 = vunpack.c.l.b16 %v324
    %v1579 = vunpack.c.h.b16 %v324
    %v1580 = vunpack.c.l.b16 %v325
    %v1581 = vunpack.c.h.b16 %v325
    %v1582 = vunpack.c.l.b16 %v326
    %v1583 = vunpack.c.h.b16 %v326
    %v1584 = vunpack.c.l.b16 %v327
    %v1585 = vunpack.c.h.b16 %v327
    %v1586 = vunpack.c.l.b16 %v328
    %v1587 = vunpack.c.h.b16 %v328
    %v1588 = vunpack.c.l.b16 %v329
    %v1589 = vunpack.c.h.b16 %v329
    %v1590 = vunpack.c.l.b16 %v330
    %v1591 = vunpack.c.h.b16 %v330
    %v1592 = vunpack.c.l.b16 %v331
    %v1593 = vunpack.c.h.b16 %v331
    %v1594 = vunpack.c.l.b16 %v332
    %v1595 = vunpack.c.h.b16 %v332
    %v1596 = vunpack.c.l.b16 %v333
    %v1597 = vunpack.c.h.b16 %v333
    %v1598 = vunpack.c.l.b16 %v334
    %v1599 = vunpack.c.h.b16 %v334
    %v1600 = vunpack.c.l.b16 %v335
    %v1601 = vunpack.c.h.b16 %v335
    %v1602 = vunpack.c.l.b16 %v336
    %v1603 = vunpack.c.h.b16 %v336
    %v1604 = vunpack.c.l.b16 %v337
    %v1605 = vunpack.c.h.b16 %v337
    %v1606 = vunpack.c.l.b16 %v338
    %v1607 = vunpack.c.h.b16 %v338
    %v1608 = vunpack.c.l.b16 %v339
    %v1609 = vunpack.c.h.b16 %v339
    %v1610 = vunpack.c.l.b16 %v340
    %v1611 = vunpack.c.h.b16 %v340
    %v1612 = vunpack.c.l.b16 %v341
    %v1613 = vunpack.c.h.b16 %v341
    %v1614 = vunpack.c.l.b16 %v342
    %v1615 = vunpack.c.h.b16 %v342
    %v1616 = vunpack.c.l.b16 %v343
    %v1617 = vunpack.c.h.b16 %v343
    %v1618 = vunpack.c.l.b16 %v344
    %v1619 = vunpack.c.h.b16 %v344
    %v1620 = vunpack.c.l.b16 %v345
    %v1621 = vunpack.c.h.b16 %v345
    %v1622 = vunpack.c.l.b16 %v346
    %v1623 = vunpack.c.h.b16 %v346
    %v1624 = vunpack.c.l.b16 %v347
    %v1625 = vunpack.c.h.b16 %v347
    %v1626 = vunpack.c.l.b16 %v348
    %v1627 = vunpack.c.h.b16 %v348
    %v1628 = vunpack.c.l.b16 %v349
    %v1629 = vunpack.c.h.b16 %v349
    %v1630 = vunpack.c.l.b16 %v350
    %v1631 = vunpack.c.h.b16 %v350
    %v1632 = vunpack.c.l.b16 %v351
    %v1633 = vunpack.c.h.b16 %v351
    %v1634 = vunpack.c.l.b16 %v352
    %v1635 = vunpack.c.h.b16 %v352
    %v1636 = vunpack.c.l.b16 %v353
    %v1637 = vunpack.c.h.b16 %v353
    %v1638 = vunpack.c.l.b16 %v354
    %v1639 = vunpack.c.h.b16 %v354
    %v1640 = vunpack.c.l.b16 %v355
    %v1641 = vunpack.c.h.b16 %v355
    %v1642 = vunpack.c.l.b16 %v356
    %v1643 = vunpack.c.h.b16 %v356
    %v1644 = vunpack.c.l.b16 %v357
    %v1645 = vunpack.c.h.b16 %v357
    %v1646 = vunpack.c.l.b16 %v358
    %v1647 = vunpack.c.h.b16 %v358
    %v1648 = vunpack.c.l.b16 %v359
    %v1649 = vunpack.c.h.b16 %v359
    %v1650 = vunpack.c.l.b16 %v360
    %v1651 = vunpack.c.h.b16 %v360
    %v1652 = vunpack.c.l.b16 %v361
    %v1653 = vunpack.c.h.b16 %v361
    %v1654 = vunpack.c.l.b16 %v362
    %v1655 = vunpack.c.h.b16 %v362
    %v1656 = vunpack.c.l.b16 %v363
    %v1657 = vunpack.c.h.b16 %v363
    %v1658 = vunpack.c.l.b16 %v364
    %v1659 = vunpack.c.h.b16 %v364
    %v1660 = vunpack.c.l.b16 %v365
    %v1661 = vunpack.c.h.b16 %v365
    %v1662 = vunpack.c.l.b16 %v366
    %v1663 = vunpack.c.h.b16 %v366
    %v1664 = vunpack.c.l.b16 %v367
    %v1665 = vunpack.c.h.b16 %v367
    %v1666 = vunpack.c.l.b16 %v368
    %v1667 = vunpack.c.h.b16 %v368
    %v1668 = vunpack.c.l.b16 %v369
    %v1669 = vunpack.c.h.b16 %v369
    %v1670 = vunpack.c.l.b16 %v370
    %v1671 = vunpack.c.h.b16 %v370
    %v1672 = vunpack.c.l.b16 %v371
    %v1673 = vunpack.c.h.b16 %v371
    %v1674 = vunpack.c.l.b16 %v372
    %v1675 = vunpack.c.h.b16 %v372
    %v1676 = vunpack.c.l.b16 %v373
    %v1677 = vunpack.c.h.b16 %v373
    %v1678 = vunpack.c.l.b16 %v374
    %v1679 = vunpack.c.h.b16 %v374
    %v1680 = vunpack.c.l.b16 %v375
    %v1681 = vunpack.c.h.b16 %v375
    %v1682 = vunpack.c.l.b16 %v376
    %v1683 = vunpack.c.h.b16 %v376
    %v1684 = vunpack.c.l.b16 %v377
    %v1685 = vunpack.c.h.b16 %v377
    %v1686 = vunpack.c.l.b16 %v378
    %v1687 = vunpack.c.h.b16 %v378
    %v1688 = vunpack.c.l.b16 %v379
    %v1689 = vunpack.c.h.b16 %v379
    %v1690 = vunpack.c.l.b16 %v380
    %v1691 = vunpack.c.h.b16 %v380
    %v1692 = vunpack.c.l.b16 %v381
    %v1693 = vunpack.c.h.b16 %v381
    %v1694 = vunpack.c.l.b16 %v382
    %v1695 = vunpack.c.h.b16 %v382
    %v1696 = vunpack.c.l.b16 %v383
    %v1697 = vunpack.c.h.b16 %v383
    %v1698 = vunpack.c.l.b16 %v384
    %v1699 = vunpack.c.h.b16 %v384
    %v1700 = vunpack.c.l.b16 %v385
    %v1701 = vunpack.c.h.b16 %v385
    %v1702 = vunpack.c.l.b16 %v386
    %v1703 = vunpack.c.h.b16 %v386
    %v1704 = vunpack.c.l.b16 %v387
    %v1705 = vunpack.c.h.b16 %v387
    %v1706 = vunpack.c.l.b16 %v388
    %v1707 = vunpack.c.h.b16 %v388
    %v1708 = vunpack.c.l.b16 %v389
    %v1709 = vunpack.c.h.b16 %v389
    %v1710 = vunpack.c.l.b16 %v390
    %v1711 = vunpack.c.h.b16 %v390
    %v1712 = vunpack.c.l.b16 %v391
    %v1713 = vunpack.c.h.b16 %v391
    %v1714 = vunpack.c.l.b16 %v392
    %v1715 = vunpack.c.h.b16 %v392
    %v1716 = vunpack.c.l.b16 %v393
    %v1717 = vunpack.c.h.b16 %v393
    %v1718 = vunpack.c.l.b16 %v394
    %v1719 = vunpack.c.h.b16 %v394
    %v1720 = vunpack.c.l.b16 %v395
    %v1721 = vunpack.c.h.b16 %v395
    %v1722 = vunpack.c.l.b16 %v396
    %v1723 = vunpack.c.h.b16 %v396
    %v1724 = vunpack.c.l.b16 %v397
    %v1725 = vunpack.c.h.b16 %v397
    %v1726 = vunpack.c.l.b16 %v398
    %v1727 = vunpack.c.h.b16 %v398
    %v1728 = vunpack.c.l.b16 %v399
    %v1729 = vunpack.c.h.b16 %v399
    %v1730 = vunpack.c.l.b16 %v400
    %v1731 = vunpack.c.h.b16 %v400
    %v1732 = vunpack.c.l.b16 %v401
    %v1733 = vunpack.c.h.b16 %v401
    %v1734 = vunpack.c.l.b16 %v402
    %v1735 = vunpack.c.h.b16 %v402
    %v1736 = vunpack.c.l.b16 %v403
    %v1737 = vunpack.c.h.b16 %v403
    %v1738 = vunpack.c.l.b16 %v404
    %v1739 = vunpack.c.h.b16 %v404
    %v1740 = vunpack.c.l.b16 %v405
    %v1741 = vunpack.c.h.b16 %v405
    %v1742 = vunpack.c.l.b16 %v406
    %v1743 = vunpack.c.h.b16 %v406
    %v1744 = vunpack.c.l.b16 %v407
    %v1745 = vunpack.c.h.b16 %v407
    %v1746 = vunpack.c.l.b16 %v408
    %v1747 = vunpack.c.h.b16 %v408
    %v1748 = vunpack.c.l.b16 %v409
    %v1749 = vunpack.c.h.b16 %v409
    %v1750 = vunpack.c.l.b16 %v410
    %v1751 = vunpack.c.h.b16 %v410
    %v1752 = vunpack.c.l.b16 %v411
    %v1753 = vunpack.c.h.b16 %v411
    %v1754 = vunpack.c.l.b16 %v412
    %v1755 = vunpack.c.h.b16 %v412
    %v1756 = vunpack.c.l.b16 %v413
    %v1757 = vunpack.c.h.b16 %v413
    %v1758 = vunpack.c.l.b16 %v414
    %v1759 = vunpack.c.h.b16 %v414
    %v1760 = vunpack.c.l.b16 %v415
    %v1761 = vunpack.c.h.b16 %v415
    %v1762 = vunpack.c.l.b16 %v416
    %v1763 = vunpack.c.h.b16 %v416
    %v1764 = vunpack.c.l.b16 %v417
    %v1765 = vunpack.c.h.b16 %v417
    %v1766 = vunpack.c.l.b16 %v418
    %v1767 = vunpack.c.h.b16 %v418
    %v1768 = vunpack.c.l.b16 %v419
    %v1769 = vunpack.c.h.b16 %v419
    %v1770 = vunpack.c.l.b16 %v420
    %v1771 = vunpack.c.h.b16 %v420
    %v1772 = vunpack.c.l.b16 %v421
    %v1773 = vunpack.c.h.b16 %v421
    %v1774 = vunpack.c.l.b16 %v422
    %v1775 = vunpack.c.h.b16 %v422
    %v1776 = vunpack.c.l.b16 %v423
    %v1777 = vunpack.c.h.b16 %v423
    %v1778 = vunpack.c.l.b16 %v424
    %v1779 = vunpack.c.h.b16 %v424
    %v1780 = vunpack.c.l.b16 %v425
    %v1781 = vunpack.c.h.b16 %v425
    %v1782 = vunpack.c.l.b16 %v426
    %v1783 = vunpack.c.h.b16 %v426
    %v1784 = vunpack.c.l.b16 %v427
    %v1785 = vunpack.c.h.b16 %v427
    %v1786 = vunpack.c.l.b16 %v428
    %v1787 = vunpack.c.h.b16 %v428
    %v1788 = vunpack.c.l.b16 %v429
    %v1789 = vunpack.c.h.b16 %v429
    %v1790 = vunpack.c.l.b16 %v430
    %v1791 = vunpack.c.h.b16 %v430
    %v1792 = vunpack.c.l.b16 %v431
    %v1793 = vunpack.c.h.b16 %v431
    %v1794 = vunpack.c.l.b16 %v432
    %v1795 = vunpack.c.h.b16 %v432
    %v1796 = vunpack.c.l.b16 %v433
    %v1797 = vunpack.c.h.b16 %v433
    %v1798 = vunpack.c.l.b16 %v434
    %v1799 = vunpack.c.h.b16 %v434
    %v1800 = vunpack.c.l.b16 %v435
    %v1801 = vunpack.c.h.b16 %v435
    %v1802 = vunpack.c.l.b16 %v436
    %v1803 = vunpack.c.h.b16 %v436
    %v1804 = vunpack.c.l.b16 %v437
    %v1805 = vunpack.c.h.b16 %v437
    %v1806 = vunpack.c.l.b16 %v438
    %v1807 = vunpack.c.h.b16 %v438
    %v1808 = vunpack.c.l.b16 %v439
    %v1809 = vunpack.c.h.b16 %v439
    %v1810 = vunpack.c.l.b16 %v440
    %v1811 = vunpack.c.h.b16 %v440
    %v1812 = vunpack.c.l.b16 %v441
    %v1813 = vunpack.c.h.b16 %v441
    %v1814 = vunpack.c.l.b16 %v442
    %v1815 = vunpack.c.h.b16 %v442
    %v1816 = vunpack.c.l.b16 %v443
    %v1817 = vunpack.c.h.b16 %v443
    %v1818 = vunpack.c.l.b16 %v444
    %v1819 = vunpack.c.h.b16 %v444
    %v1820 = vunpack.c.l.b16 %v445
    %v1821 = vunpack.c.h.b16 %v445
    %v1822 = vunpack.c.l.b16 %v446
    %v1823 = vunpack.c.h.b16 %v446
    %v1824 = vunpack.c.l.b16 %v447
    %v1825 = vunpack.c.h.b16 %v447
    %v1826 = vunpack.c.l.b16 %v448
    %v1827 = vunpack.c.h.b16 %v448
    %v1828 = vunpack.c.l.b16 %v449
    %v1829 = vunpack.c.h.b16 %v449
    %v1830 = vunpack.c.l.b16 %v450
    %v1831 = vunpack.c.h.b16 %v450
    %v1832 = vunpack.c.l.b16 %v451
    %v1833 = vunpack.c.h.b16 %v451
    %v1834 = vunpack.c.l.b16 %v452
    %v1835 = vunpack.c.h.b16 %v452
    %v1836 = vunpack.c.l.b16 %v453
    %v1837 = vunpack.c.h.b16 %v453
    %v1838 = vunpack.c.l.b16 %v454
    %v1839 = vunpack.c.h.b16 %v454
    %v1840 = vunpack.c.l.b16 %v455
    %v1841 = vunpack.c.h.b16 %v455
    %v1842 = vunpack.c.l.b16 %v456
    %v1843 = vunpack.c.h.b16 %v456
    %v1844 = vunpack.c.l.b16 %v457
    %v1845 = vunpack.c.h.b16 %v457
    %v1846 = vunpack.c.l.b16 %v458
    %v1847 = vunpack.c.h.b16 %v458
    %v1848 = vunpack.c.l.b16 %v459
    %v1849 = vunpack.c.h.b16 %v459
    %v1850 = vunpack.c.l.b16 %v460
    %v1851 = vunpack.c.h.b16 %v460
    %v1852 = vunpack.c.l.b16 %v461
    %v1853 = vunpack.c.h.b16 %v461
    %v1854 = vunpack.c.l.b16 %v462
    %v1855 = vunpack.c.h.b16 %v462
    %v1856 = vunpack.c.l.b16 %v463
    %v1857 = vunpack.c.h.b16 %v463
    %v1858 = vunpack.c.l.b16 %v464
    %v1859 = vunpack.c.h.b16 %v464
    %v1860 = vunpack.c.l.b16 %v465
    %v1861 = vunpack.c.h.b16 %v465
    %v1862 = vunpack.c.l.b16 %v466
    %v1863 = vunpack.c.h.b16 %v466
    %v1864 = vunpack.c.l.b16 %v467
    %v1865 = vunpack.c.h.b16 %v467
    %v1866 = vunpack.c.l.b16 %v468
    %v1867 = vunpack.c.h.b16 %v468
    %v1868 = vunpack.c.l.b16 %v469
    %v1869 = vunpack.c.h.b16 %v469
    %v1870 = vunpack.c.l.b16 %v470
    %v1871 = vunpack.c.h.b16 %v470
    %v1872 = vunpack.c.l.b16 %v471
    %v1873 = vunpack.c.h.b16 %v471
    %v1874 = vunpack.c.l.b16 %v472
    %v1875 = vunpack.c.h.b16 %v472
    %v1876 = vunpack.c.l.b16 %v473
    %v1877 = vunpack.c.h.b16 %v473
    %v1878 = vunpack.c.l.b16 %v474
    %v1879 = vunpack.c.h.b16 %v474
    %v1880 = vunpack.c.l.b16 %v475
    %v1881 = vunpack.c.h.b16 %v475
    %v1882 = vunpack.c.l.b16 %v476
    %v1883 = vunpack.c.h.b16 %v476
    %v1884 = vunpack.c.l.b16 %v477
    %v1885 = vunpack.c.h.b16 %v477
    %v1886 = vunpack.c.l.b16 %v478
    %v1887 = vunpack.c.h.b16 %v478
    %v1888 = vunpack.c.l.b16 %v479
    %v1889 = vunpack.c.h.b16 %v479
    %v1890 = vunpack.c.l.b16 %v480
    %v1891 = vunpack.c.h.b16 %v480
    %v1892 = vunpack.c.l.b16 %v481
    %v1893 = vunpack.c.h.b16 %v481
    %v1894 = vunpack.c.l.b16 %v482
    %v1895 = vunpack.c.h.b16 %v482
    %v1896 = vunpack.c.l.b16 %v483
    %v1897 = vunpack.c.h.b16 %v483
    %v1898 = vunpack.c.l.b16 %v484
    %v1899 = vunpack.c.h.b16 %v484
    %v1900 = vunpack.c.l.b16 %v485
    %v1901 = vunpack.c.h.b16 %v485
    %v1902 = vunpack.c.l.b16 %v486
    %v1903 = vunpack.c.h.b16 %v486
    %v1904 = vunpack.c.l.b16 %v487
    %v1905 = vunpack.c.h.b16 %v487
    %v1906 = vunpack.c.l.b16 %v488
    %v1907 = vunpack.c.h.b16 %v488
    %v1908 = vunpack.c.l.b16 %v489
    %v1909 = vunpack.c.h.b16 %v489
    %v1910 = vunpack.c.l.b16 %v490
    %v1911 = vunpack.c.h.b16 %v490
    %v1912 = vunpack.c.l.b16 %v491
    %v1913 = vunpack.c.h.b16 %v491
    %v1914 = vunpack.c.l.b16 %v492
    %v1915 = vunpack.c.h.b16 %v492
    %v1916 = vunpack.c.l.b16 %v493
    %v1917 = vunpack.c.h.b16 %v493
    %v1918 = vunpack.c.l.b16 %v494
    %v1919 = vunpack.c.h.b16 %v494
    %v1920 = vunpack.c.l.b16 %v495
    %v1921 = vunpack.c.h.b16 %v495
    %v1922 = vunpack.c.l.b16 %v496
    %v1923 = vunpack.c.h.b16 %v496
    %v1924 = vunpack.c.l.b16 %v497
    %v1925 = vunpack.c.h.b16 %v497
    %v1926 = vunpack.c.l.b16 %v498
    %v1927 = vunpack.c.h.b16 %v498
    %v1928 = vunpack.c.l.b16 %v499
    %v1929 = vunpack.c.h.b16 %v499
    %v1930 = vunpack.c.l.b16 %v500
    %v1931 = vunpack.c.h.b16 %v500
    %v1932 = vunpack.c.l.b16 %v501
    %v1933 = vunpack.c.h.b16 %v501
    %v1934 = vunpack.c.l.b16 %v502
    %v1935 = vunpack.c.h.b16 %v502
    %v1936 = vunpack.c.l.b16 %v503
    %v1937 = vunpack.c.h.b16 %v503
    %v1938 = vunpack.c.l.b16 %v504
    %v1939 = vunpack.c.h.b16 %v504
    %v1940 = vunpack.c.l.b16 %v505
    %v1941 = vunpack.c.h.b16 %v505
    %v1942 = vunpack.c.l.b16 %v506
    %v1943 = vunpack.c.h.b16 %v506
    %v1944 = vunpack.c.l.b16 %v507
    %v1945 = vunpack.c.h.b16 %v507
    %v1946 = vunpack.c.l.b16 %v508
    %v1947 = vunpack.c.h.b16 %v508
    %v1948 = vunpack.c.l.b16 %v509
    %v1949 = vunpack.c.h.b16 %v509
    %v1950 = vunpack.c.l.b16 %v510
    %v1951 = vunpack.c.h.b16 %v510
    %v1952 = vunpack.c.l.b16 %v511
    %v1953 = vunpack.c.h.b16 %v511
    %v1954 = vunpack.c.l.b16 %v512
    %v1955 = vunpack.c.h.b16 %v512
    %v1956 = vunpack.c.l.b16 %v513
    %v1957 = vunpack.c.h.b16 %v513
    %v1958 = vunpack.c.l.b16 %v514
    %v1959 = vunpack.c.h.b16 %v514
    %v1960 = vunpack.c.l.b16 %v515
    %v1961 = vunpack.c.h.b16 %v515
    %v1962 = vunpack.c.l.b16 %v516
    %v1963 = vunpack.c.h.b16 %v516
    %v1964 = vunpack.c.l.b16 %v517
    %v1965 = vunpack.c.h.b16 %v517
    %v1966 = vunpack.c.l.b16 %v518
    %v1967 = vunpack.c.h.b16 %v518
    %v1968 = vunpack.c.l.b16 %v519
    %v1969 = vunpack.c.h.b16 %v519
    %v1970 = vunpack.c.l.b16 %v520
    %v1971 = vunpack.c.h.b16 %v520
    %v1972 = vunpack.c.l.b16 %v521
    %v1973 = vunpack.c.h.b16 %v521
    %v1974 = vunpack.c.l.b16 %v522
    %v1975 = vunpack.c.h.b16 %v522
    %v1976 = vunpack.c.l.b16 %v523
    %v1977 = vunpack.c.h.b16 %v523
    %v1978 = vunpack.c.l.b16 %v524
    %v1979 = vunpack.c.h.b16 %v524
    %v1980 = vunpack.c.l.b16 %v525
    %v1981 = vunpack.c.h.b16 %v525
    %v1982 = vunpack.c.l.b16 %v526
    %v1983 = vunpack.c.h.b16 %v526
    %v1984 = vunpack.c.l.b16 %v527
    %v1985 = vunpack.c.h.b16 %v527
    %v1986 = vunpack.c.l.b16 %v528
    %v1987 = vunpack.c.h.b16 %v528
    %v1988 = vunpack.c.l.b16 %v529
    %v1989 = vunpack.c.h.b16 %v529
    %v1990 = vunpack.c.l.b16 %v530
    %v1991 = vunpack.c.h.b16 %v530
    %v1992 = vunpack.c.l.b16 %v531
    %v1993 = vunpack.c.h.b16 %v531
    %v1994 = vunpack.c.l.b16 %v532
    %v1995 = vunpack.c.h.b16 %v532
    %v1996 = vunpack.c.l.b16 %v533
    %v1997 = vunpack.c.h.b16 %v533
    %v1998 = vunpack.c.l.b16 %v534
    %v1999 = vunpack.c.h.b16 %v534
    %v2000 = vunpack.c.l.b16 %v535
    %v2001 = vunpack.c.h.b16 %v535
    %v2002 = vunpack.c.l.b16 %v536
    %v2003 = vunpack.c.h.b16 %v536
    %v2004 = vunpack.c.l.b16 %v537
    %v2005 = vunpack.c.h.b16 %v537
    %v2006 = vunpack.c.l.b16 %v538
    %v2007 = vunpack.c.h.b16 %v538
    %v2008 = vunpack.c.l.b16 %v539
    %v2009 = vunpack.c.h.b16 %v539
    %v2010 = vunpack.c.l.b16 %v540
    %v2011 = vunpack.c.h.b16 %v540
    %v2012 = vunpack.c.l.b16 %v541
    %v2013 = vunpack.c.h.b16 %v541
    %v2014 = vunpack.c.l.b16 %v542
    %v2015 = vunpack.c.h.b16 %v542
    %v2016 = vunpack.c.l.b16 %v543
    %v2017 = vunpack.c.h.b16 %v543
    %v2018 = vunpack.c.l.b16 %v544
    %v2019 = vunpack.c.h.b16 %v544
    %v2020 = vunpack.c.l.b16 %v545
    %v2021 = vunpack.c.h.b16 %v545
    %v2022 = vunpack.c.l.b16 %v546
    %v2023 = vunpack.c.h.b16 %v546
    %v2024 = vunpack.c.l.b16 %v547
    %v2025 = vunpack.c.h.b16 %v547
    %v2026 = vunpack.c.l.b16 %v548
    %v2027 = vunpack.c.h.b16 %v548
    %v2028 = vunpack.c.l.b16 %v549
    %v2029 = vunpack.c.h.b16 %v549
    %v2030 = vunpack.c.l.b16 %v550
    %v2031 = vunpack.c.h.b16 %v550
    %v2032 = vunpack.c.l.b16 %v551
    %v2033 = vunpack.c.h.b16 %v551
    %v2034 = vunpack.c.l.b16 %v552
    %v2035 = vunpack.c.h.b16 %v552
    %v2036 = vunpack.c.l.b16 %v553
    %v2037 = vunpack.c.h.b16 %v553
    %v2038 = vunpack.c.l.b16 %v554
    %v2039 = vunpack.c.h.b16 %v554
    %v2040 = vunpack.c.l.b16 %v555
    %v2041 = vunpack.c.h.b16 %v555
    %v2042 = vunpack.c.l.b16 %v556
    %v2043 = vunpack.c.h.b16 %v556
    %v2044 = vunpack.c.l.b16 %v557
    %v2045 = vunpack.c.h.b16 %v557
    %v2046 = vunpack.c.l.b16 %v558
    %v2047 = vunpack.c.h.b16 %v558
    %v2048 = vunpack.c.l.b16 %v559
    %v2049 = vunpack.c.h.b16 %v559
    %v2050 = vunpack.c.l.b16 %v560
    %v2051 = vunpack.c.h.b16 %v560
    %v2052 = vunpack.c.l.b16 %v561
    %v2053 = vunpack.c.h.b16 %v561
    %v2054 = vunpack.c.l.b16 %v562
    %v2055 = vunpack.c.h.b16 %v562
    %v2056 = vunpack.c.l.b16 %v563
    %v2057 = vunpack.c.h.b16 %v563
    %v2058 = vunpack.c.l.b16 %v564
    %v2059 = vunpack.c.h.b16 %v564
    %v2060 = vunpack.c.l.b16 %v565
    %v2061 = vunpack.c.h.b16 %v565
    %v2062 = vunpack.c.l.b16 %v566
    %v2063 = vunpack.c.h.b16 %v566
    %v2064 = vunpack.c.l.b16 %v567
    %v2065 = vunpack.c.h.b16 %v567
    %v2066 = vunpack.c.l.b16 %v568
    %v2067 = vunpack.c.h.b16 %v568
    %v2068 = vunpack.c.l.b16 %v569
    %v2069 = vunpack.c.h.b16 %v569
    %v2070 = vunpack.c.l.b16 %v570
    %v2071 = vunpack.c.h.b16 %v570
    %v2072 = vunpack.c.l.b16 %v571
    %v2073 = vunpack.c.h.b16 %v571
    %v2074 = vunpack.c.l.b16 %v572
    %v2075 = vunpack.c.h.b16 %v572
    %v2076 = vunpack.c.l.b16 %v573
    %v2077 = vunpack.c.h.b16 %v573
    %v2078 = vunpack.c.l.b16 %v574
    %v2079 = vunpack.c.h.b16 %v574
    %v2080 = vunpack.c.l.b16 %v575
    %v2081 = vunpack.c.h.b16 %v575
    %v2082 = vunpack.c.l.b16 %v576
    %v2083 = vunpack.c.h.b16 %v576
    %v2084 = vunpack.c.l.b16 %v577
    %v2085 = vunpack.c.h.b16 %v577
    %v2086 = vunpack.c.l.b16 %v578
    %v2087 = vunpack.c.h.b16 %v578
    %v2088 = vunpack.c.l.b16 %v579
    %v2089 = vunpack.c.h.b16 %v579
    %v2090 = vunpack.c.l.b16 %v580
    %v2091 = vunpack.c.h.b16 %v580
    %v2092 = vunpack.c.l.b16 %v581
    %v2093 = vunpack.c.h.b16 %v581
    %v2094 = vunpack.c.l.b16 %v582
    %v2095 = vunpack.c.h.b16 %v582
    %v2096 = vunpack.c.l.b16 %v583
    %v2097 = vunpack.c.h.b16 %v583
    %v2098 = vunpack.c.l.b16 %v584
    %v2099 = vunpack.c.h.b16 %v584
    %v2100 = vunpack.c.l.b16 %v585
    %v2101 = vunpack.c.h.b16 %v585
    %v2102 = vunpack.c.l.b16 %v586
    %v2103 = vunpack.c.h.b16 %v586
    %v2104 = vunpack.c.l.b16 %v587
    %v2105 = vunpack.c.h.b16 %v587
    %v2106 = vunpack.c.l.b16 %v588
    %v2107 = vunpack.c.h.b16 %v588
    %v2108 = vunpack.c.l.b16 %v589
    %v2109 = vunpack.c.h.b16 %v589
    %v2110 = vunpack.c.l.b16 %v590
    %v2111 = vunpack.c.h.b16 %v590
    %v2112 = vunpack.c.l.b16 %v591
    %v2113 = vunpack.c.h.b16 %v591
    %v2114 = vunpack.c.l.b16 %v592
    %v2115 = vunpack.c.h.b16 %v592
    %v2116 = vunpack.c.l.b16 %v593
    %v2117 = vunpack.c.h.b16 %v593
    %v2118 = vunpack.c.l.b16 %v594
    %v2119 = vunpack.c.h.b16 %v594
    %v2120 = vunpack.c.l.b16 %v595
    %v2121 = vunpack.c.h.b16 %v595
    %v2122 = vunpack.c.l.b16 %v596
    %v2123 = vunpack.c.h.b16 %v596
    %v2124 = vunpack.c.l.b16 %v597
    %v2125 = vunpack.c.h.b16 %v597
    %v2126 = vunpack.c.l.b16 %v598
    %v2127 = vunpack.c.h.b16 %v598
    %v2128 = vunpack.c.l.b16 %v599
    %v2129 = vunpack.c.h.b16 %v599
    %v2130 = vunpack.c.l.b16 %v600
    %v2131 = vunpack.c.h.b16 %v600
    %v2132 = vunpack.c.l.b16 %v601
    %v2133 = vunpack.c.h.b16 %v601
    %v2134 = vunpack.c.l.b16 %v602
    %v2135 = vunpack.c.h.b16 %v602
    %v2136 = vunpack.c.l.b16 %v603
    %v2137 = vunpack.c.h.b16 %v603
    %v2138 = vunpack.c.l.b16 %v604
    %v2139 = vunpack.c.h.b16 %v604
    %v2140 = vunpack.c.l.b16 %v605
    %v2141 = vunpack.c.h.b16 %v605
    %v2142 = vunpack.c.l.b16 %v606
    %v2143 = vunpack.c.h.b16 %v606
    %v2144 = vunpack.c.l.b16 %v607
    %v2145 = vunpack.c.h.b16 %v607
    %v2146 = vunpack.c.l.b16 %v608
    %v2147 = vunpack.c.h.b16 %v608
    %v2148 = vunpack.c.l.b16 %v609
    %v2149 = vunpack.c.h.b16 %v609
    %v2150 = vunpack.c.l.b16 %v610
    %v2151 = vunpack.c.h.b16 %v610
    %v2152 = vunpack.c.l.b16 %v611
    %v2153 = vunpack.c.h.b16 %v611
    %v2154 = vunpack.c.l.b16 %v612
    %v2155 = vunpack.c.h.b16 %v612
    %v2156 = vunpack.c.l.b16 %v613
    %v2157 = vunpack.c.h.b16 %v613
    %v2158 = vunpack.c.l.b16 %v614
    %v2159 = vunpack.c.h.b16 %v614
    %v2160 = vunpack.c.l.b16 %v615
    %v2161 = vunpack.c.h.b16 %v615
    %v2162 = vunpack.c.l.b16 %v616
    %v2163 = vunpack.c.h.b16 %v616
    %v2164 = vunpack.c.l.b16 %v617
    %v2165 = vunpack.c.h.b16 %v617
    %v2166 = vunpack.c.l.b16 %v618
    %v2167 = vunpack.c.h.b16 %v618
    %v2168 = vunpack.c.l.b16 %v619
    %v2169 = vunpack.c.h.b16 %v619
    %v2170 = vunpack.c.l.b16 %v620
    %v2171 = vunpack.c.h.b16 %v620
    %v2172 = vunpack.c.l.b16 %v621
    %v2173 = vunpack.c.h.b16 %v621
    %v2174 = vunpack.c.l.b16 %v622
    %v2175 = vunpack.c.h.b16 %v622
    %v2176 = vunpack.c.l.b16 %v623
    %v2177 = vunpack.c.h.b16 %v623
    %v2178 = vunpack.c.l.b16 %v624
    %v2179 = vunpack.c.h.b16 %v624
    %v2180 = vunpack.c.l.b16 %v625
    %v2181 = vunpack.c.h.b16 %v625
    %v2182 = vunpack.c.l.b16 %v626
    %v2183 = vunpack.c.h.b16 %v626
    %v2184 = vunpack.c.l.b16 %v627
    %v2185 = vunpack.c.h.b16 %v627
    %v2186 = vunpack.c.l.b16 %v628
    %v2187 = vunpack.c.h.b16 %v628
    %v2188 = vunpack.c.l.b16 %v629
    %v2189 = vunpack.c.h.b16 %v629
    %v2190 = vunpack.c.l.b16 %v630
    %v2191 = vunpack.c.h.b16 %v630
    %v2192 = vunpack.c.l.b16 %v631
    %v2193 = vunpack.c.h.b16 %v631
    %v2194 = vunpack.c.l.b16 %v632
    %v2195 = vunpack.c.h.b16 %v632
    %v2196 = vunpack.c.l.b16 %v633
    %v2197 = vunpack.c.h.b16 %v633
    %v2198 = vpack.c.b16 %v1182, %v1174
    %v2199 = vpack.c.b16 %v1183, %v1175
    %v2200 = vpack.c.b16 %v1184, %v1176
    %v2201 = vpack.c.b16 %v1185, %v1177
    %v2202 = vpack.c.b16 %v1186, %v1178
    %v2203 = vpack.c.b16 %v1187, %v1179
    %v2204 = vpack.c.b16 %v1188, %v1180
    %v2205 = vpack.c.b16 %v1189, %v1181
    %v2206 = vpack.c.b16 %v1198, %v1190
    %v2207 = vpack.c.b16 %v1199, %v1191
    %v2208 = vpack.c.b16 %v1200, %v1192
    %v2209 = vpack.c.b16 %v1201, %v1193
    %v2210 = vpack.c.b16 %v1202, %v1194
    %v2211 = vpack.c.b16 %v1203, %v1195
    %v2212 = vpack.c.b16 %v1204, %v1196
    %v2213 = vpack.c.b16 %v1205, %v1197
    %v2214 = vpack.c.b16 %v1214, %v1206
    %v2215 = vpack.c.b16 %v1215, %v1207
    %v2216 = vpack.c.b16 %v1216, %v1208
    %v2217 = vpack.c.b16 %v1217, %v1209
    %v2218 = vpack.c.b16 %v1218, %v1210
    %v2219 = vpack.c.b16 %v1219, %v1211
    %v2220 = vpack.c.b16 %v1220, %v1212
    %v2221 = vpack.c.b16 %v1221, %v1213
    %v2222 = vpack.c.b16 %v1230, %v1222
    %v2223 = vpack.c.b16 %v1231, %v1223
    %v2224 = vpack.c.b16 %v1232, %v1224
    %v2225 = vpack.c.b16 %v1233, %v1225
    %v2226 = vpack.c.b16 %v1234, %v1226
    %v2227 = vpack.c.b16 %v1235, %v1227
    %v2228 = vpack.c.b16 %v1236, %v1228
    %v2229 = vpack.c.b16 %v1237, %v1229
    %v2230 = vpack.c.b16 %v1246, %v1238
    %v2231 = vpack.c.b16 %v1247, %v1239
    %v2232 = vpack.c.b16 %v1248, %v1240
    %v2233 = vpack.c.b16 %v1249, %v1241
    %v2234 = vpack.c.b16 %v1250, %v1242
    %v2235 = vpack.c.b16 %v1251, %v1243
    %v2236 = vpack.c.b16 %v1252, %v1244
    %v2237 = vpack.c.b16 %v1253, %v1245
    %v2238 = vpack.c.b16 %v1262, %v1254
    %v2239 = vpack.c.b16 %v1263, %v1255
    %v2240 = vpack.c.b16 %v1264, %v1256
    %v2241 = vpack.c.b16 %v1265, %v1257
    %v2242 = vpack.c.b16 %v1266, %v1258
    %v2243 = vpack.c.b16 %v1267, %v1259
    %v2244 = vpack.c.b16 %v1268, %v1260
    %v2245 = vpack.c.b16 %v1269, %v1261
    %v2246 = vpack.c.b16 %v1278, %v1270
    %v2247 = vpack.c.b16 %v1279, %v1271
    %v2248 = vpack.c.b16 %v1280, %v1272
    %v2249 = vpack.c.b16 %v1281, %v1273
    %v2250 = vpack.c.b16 %v1282, %v1274
    %v2251 = vpack.c.b16 %v1283, %v1275
    %v2252 = vpack.c.b16 %v1284, %v1276
    %v2253 = vpack.c.b16 %v1285, %v1277
    %v2254 = vpack.c.b16 %v1294, %v1286
    %v2255 = vpack.c.b16 %v1295, %v1287
    %v2256 = vpack.c.b16 %v1296, %v1288
    %v2257 = vpack.c.b16 %v1297, %v1289
    %v2258 = vpack.c.b16 %v1298, %v1290
    %v2259 = vpack.c.b16 %v1299, %v1291
    %v2260 = vpack.c.b16 %v1300, %v1292
    %v2261 = vpack.c.b16 %v1301, %v1293
    %v2262 = vpack.c.b16 %v1310, %v1302
    %v2263 = vpack.c.b16 %v1311, %v1303
    %v2264 = vpack.c.b16 %v1312, %v1304
    %v2265 = vpack.c.b16 %v1313, %v1305
    %v2266 = vpack.c.b16 %v1314, %v1306
    %v2267 = vpack.c.b16 %v1315, %v1307
    %v2268 = vpack.c.b16 %v1316, %v1308
    %v2269 = vpack.c.b16 %v1317, %v1309
    %v2270 = vpack.c.b16 %v1326, %v1318
    %v2271 = vpack.c.b16 %v1327, %v1319
    %v2272 = vpack.c.b16 %v1328, %v1320
    %v2273 = vpack.c.b16 %v1329, %v1321
    %v2274 = vpack.c.b16 %v1330, %v1322
    %v2275 = vpack.c.b16 %v1331, %v1323
    %v2276 = vpack.c.b16 %v1332, %v1324
    %v2277 = vpack.c.b16 %v1333, %v1325
    %v2278 = vpack.c.b16 %v1342, %v1334
    %v2279 = vpack.c.b16 %v1343, %v1335
    %v2280 = vpack.c.b16 %v1344, %v1336
    %v2281 = vpack.c.b16 %v1345, %v1337
    %v2282 = vpack.c.b16 %v1346, %v1338
    %v2283 = vpack.c.b16 %v1347, %v1339
    %v2284 = vpack.c.b16 %v1348, %v1340
    %v2285 = vpack.c.b16 %v1349, %v1341
    %v2286 = vpack.c.b16 %v1358, %v1350
    %v2287 = vpack.c.b16 %v1359, %v1351
    %v2288 = vpack.c.b16 %v1360, %v1352
    %v2289 = vpack.c.b16 %v1361, %v1353
    %v2290 = vpack.c.b16 %v1362, %v1354
    %v2291 = vpack.c.b16 %v1363, %v1355
    %v2292 = vpack.c.b16 %v1364, %v1356
    %v2293 = vpack.c.b16 %v1365, %v1357
    %v2294 = vpack.c.b16 %v1374, %v1366
    %v2295 = vpack.c.b16 %v1375, %v1367
    %v2296 = vpack.c.b16 %v1376, %v1368
    %v2297 = vpack.c.b16 %v1377, %v1369
    %v2298 = vpack.c.b16 %v1378, %v1370
    %v2299 = vpack.c.b16 %v1379, %v1371
    %v2300 = vpack.c.b16 %v1380, %v1372
    %v2301 = vpack.c.b16 %v1381, %v1373
    %v2302 = vpack.c.b16 %v1390, %v1382
    %v2303 = vpack.c.b16 %v1391, %v1383
    %v2304 = vpack.c.b16 %v1392, %v1384
    %v2305 = vpack.c.b16 %v1393, %v1385
    %v2306 = vpack.c.b16 %v1394, %v1386
    %v2307 = vpack.c.b16 %v1395, %v1387
    %v2308 = vpack.c.b16 %v1396, %v1388
    %v2309 = vpack.c.b16 %v1397, %v1389
    %v2310 = vpack.c.b16 %v1406, %v1398
    %v2311 = vpack.c.b16 %v1407, %v1399
    %v2312 = vpack.c.b16 %v1408, %v1400
    %v2313 = vpack.c.b16 %v1409, %v1401
    %v2314 = vpack.c.b16 %v1410, %v1402
    %v2315 = vpack.c.b16 %v1411, %v1403
    %v2316 = vpack.c.b16 %v1412, %v1404
    %v2317 = vpack.c.b16 %v1413, %v1405
    %v2318 = vpack.c.b16 %v1422, %v1414
    %v2319 = vpack.c.b16 %v1423, %v1415
    %v2320 = vpack.c.b16 %v1424, %v1416
    %v2321 = vpack.c.b16 %v1425, %v1417
    %v2322 = vpack.c.b16 %v1426, %v1418
    %v2323 = vpack.c.b16 %v1427, %v1419
    %v2324 = vpack.c.b16 %v1428, %v1420
    %v2325 = vpack.c.b16 %v1429, %v1421
    %v2326 = vpack.c.b16 %v1438, %v1430
    %v2327 = vpack.c.b16 %v1439, %v1431
    %v2328 = vpack.c.b16 %v1440, %v1432
    %v2329 = vpack.c.b16 %v1441, %v1433
    %v2330 = vpack.c.b16 %v1442, %v1434
    %v2331 = vpack.c.b16 %v1443, %v1435
    %v2332 = vpack.c.b16 %v1444, %v1436
    %v2333 = vpack.c.b16 %v1445, %v1437
    %v2334 = vpack.c.b16 %v1454, %v1446
    %v2335 = vpack.c.b16 %v1455, %v1447
    %v2336 = vpack.c.b16 %v1456, %v1448
    %v2337 = vpack.c.b16 %v1457, %v1449
    %v2338 = vpack.c.b16 %v1458, %v1450
    %v2339 = vpack.c.b16 %v1459, %v1451
    %v2340 = vpack.c.b16 %v1460, %v1452
    %v2341 = vpack.c.b16 %v1461, %v1453
    %v2342 = vpack.c.b16 %v1470, %v1462
    %v2343 = vpack.c.b16 %v1471, %v1463
    %v2344 = vpack.c.b16 %v1472, %v1464
    %v2345 = vpack.c.b16 %v1473, %v1465
    %v2346 = vpack.c.b16 %v1474, %v1466
    %v2347 = vpack.c.b16 %v1475, %v1467
    %v2348 = vpack.c.b16 %v1476, %v1468
    %v2349 = vpack.c.b16 %v1477, %v1469
    %v2350 = vpack.c.b16 %v1486, %v1478
    %v2351 = vpack.c.b16 %v1487, %v1479
    %v2352 = vpack.c.b16 %v1488, %v1480
    %v2353 = vpack.c.b16 %v1489, %v1481
    %v2354 = vpack.c.b16 %v1490, %v1482
    %v2355 = vpack.c.b16 %v1491, %v1483
    %v2356 = vpack.c.b16 %v1492, %v1484
    %v2357 = vpack.c.b16 %v1493, %v1485
    %v2358 = vpack.c.b16 %v1502, %v1494
    %v2359 = vpack.c.b16 %v1503, %v1495
    %v2360 = vpack.c.b16 %v1504, %v1496
    %v2361 = vpack.c.b16 %v1505, %v1497
    %v2362 = vpack.c.b16 %v1506, %v1498
    %v2363 = vpack.c.b16 %v1507, %v1499
    %v2364 = vpack.c.b16 %v1508, %v1500
    %v2365 = vpack.c.b16 %v1509, %v1501
    %v2366 = vpack.c.b16 %v1518, %v1510
    %v2367 = vpack.c.b16 %v1519, %v1511
    %v2368 = vpack.c.b16 %v1520, %v1512
    %v2369 = vpack.c.b16 %v1521, %v1513
    %v2370 = vpack.c.b16 %v1522, %v1514
    %v2371 = vpack.c.b16 %v1523, %v1515
    %v2372 = vpack.c.b16 %v1524, %v1516
    %v2373 = vpack.c.b16 %v1525, %v1517
    %v2374 = vpack.c.b16 %v1534, %v1526
    %v2375 = vpack.c.b16 %v1535, %v1527
    %v2376 = vpack.c.b16 %v1536, %v1528
    %v2377 = vpack.c.b16 %v1537, %v1529
    %v2378 = vpack.c.b16 %v1538, %v1530
    %v2379 = vpack.c.b16 %v1539, %v1531
    %v2380 = vpack.c.b16 %v1540, %v1532
    %v2381 = vpack.c.b16 %v1541, %v1533
    %v2382 = vpack.c.b16 %v1550, %v1542
    %v2383 = vpack.c.b16 %v1551, %v1543
    %v2384 = vpack.c.b16 %v1552, %v1544
    %v2385 = vpack.c.b16 %v1553, %v1545
    %v2386 = vpack.c.b16 %v1554, %v1546
    %v2387 = vpack.c.b16 %v1555, %v1547
    %v2388 = vpack.c.b16 %v1556, %v1548
    %v2389 = vpack.c.b16 %v1557, %v1549
    %v2390 = vpack.c.b16 %v1566, %v1558
    %v2391 = vpack.c.b16 %v1567, %v1559
    %v2392 = vpack.c.b16 %v1568, %v1560
    %v2393 = vpack.c.b16 %v1569, %v1561
    %v2394 = vpack.c.b16 %v1570, %v1562
    %v2395 = vpack.c.b16 %v1571, %v1563
    %v2396 = vpack.c.b16 %v1572, %v1564
    %v2397 = vpack.c.b16 %v1573, %v1565
    %v2398 = vpack.c.b16 %v1582, %v1574
    %v2399 = vpack.c.b16 %v1583, %v1575
    %v2400 = vpack.c.b16 %v1584, %v1576
    %v2401 = vpack.c.b16 %v1585, %v1577
    %v2402 = vpack.c.b16 %v1586, %v1578
    %v2403 = vpack.c.b16 %v1587, %v1579
    %v2404 = vpack.c.b16 %v1588, %v1580
    %v2405 = vpack.c.b16 %v1589, %v1581
    %v2406 = vpack.c.b16 %v1598, %v1590
    %v2407 = vpack.c.b16 %v1599, %v1591
    %v2408 = vpack.c.b16 %v1600, %v1592
    %v2409 = vpack.c.b16 %v1601, %v1593
    %v2410 = vpack.c.b16 %v1602, %v1594
    %v2411 = vpack.c.b16 %v1603, %v1595
    %v2412 = vpack.c.b16 %v1604, %v1596
    %v2413 = vpack.c.b16 %v1605, %v1597
    %v2414 = vpack.c.b16 %v1614, %v1606
    %v2415 = vpack.c.b16 %v1615, %v1607
    %v2416 = vpack.c.b16 %v1616, %v1608
    %v2417 = vpack.c.b16 %v1617, %v1609
    %v2418 = vpack.c.b16 %v1618, %v1610
    %v2419 = vpack.c.b16 %v1619, %v1611
    %v2420 = vpack.c.b16 %v1620, %v1612
    %v2421 = vpack.c.b16 %v1621, %v1613
    %v2422 = vpack.c.b16 %v1630, %v1622
    %v2423 = vpack.c.b16 %v1631, %v1623
    %v2424 = vpack.c.b16 %v1632, %v1624
    %v2425 = vpack.c.b16 %v1633, %v1625
    %v2426 = vpack.c.b16 %v1634, %v1626
    %v2427 = vpack.c.b16 %v1635, %v1627
    %v2428 = vpack.c.b16 %v1636, %v1628
    %v2429 = vpack.c.b16 %v1637, %v1629
    %v2430 = vpack.c.b16 %v1646, %v1638
    %v2431 = vpack.c.b16 %v1647, %v1639
    %v2432 = vpack.c.b16 %v1648, %v1640
    %v2433 = vpack.c.b16 %v1649, %v1641
    %v2434 = vpack.c.b16 %v1650, %v1642
    %v2435 = vpack.c.b16 %v1651, %v1643
    %v2436 = vpack.c.b16 %v1652, %v1644
    %v2437 = vpack.c.b16 %v1653, %v1645
    %v2438 = vpack.c.b16 %v1662, %v1654
    %v2439 = vpack.c.b16 %v1663, %v1655
    %v2440 = vpack.c.b16 %v1664, %v1656
    %v2441 = vpack.c.b16 %v1665, %v1657
    %v2442 = vpack.c.b16 %v1666, %v1658
    %v2443 = vpack.c.b16 %v1667, %v1659
    %v2444 = vpack.c.b16 %v1668, %v1660
    %v2445 = vpack.c.b16 %v1669, %v1661
    %v2446 = vpack.c.b16 %v1678, %v1670
    %v2447 = vpack.c.b16 %v1679, %v1671
    %v2448 = vpack.c.b16 %v1680, %v1672
    %v2449 = vpack.c.b16 %v1681, %v1673
    %v2450 = vpack.c.b16 %v1682, %v1674
    %v2451 = vpack.c.b16 %v1683, %v1675
    %v2452 = vpack.c.b16 %v1684, %v1676
    %v2453 = vpack.c.b16 %v1685, %v1677
    %v2454 = vpack.c.b16 %v1694, %v1686
    %v2455 = vpack.c.b16 %v1695, %v1687
    %v2456 = vpack.c.b16 %v1696, %v1688
    %v2457 = vpack.c.b16 %v1697, %v1689
    %v2458 = vpack.c.b16 %v1698, %v1690
    %v2459 = vpack.c.b16 %v1699, %v1691
    %v2460 = vpack.c.b16 %v1700, %v1692
    %v2461 = vpack.c.b16 %v1701, %v1693
    %v2462 = vpack.c.b16 %v1710, %v1702
    %v2463 = vpack.c.b16 %v1711, %v1703
    %v2464 = vpack.c.b16 %v1712, %v1704
    %v2465 = vpack.c.b16 %v1713, %v1705
    %v2466 = vpack.c.b16 %v1714, %v1706
    %v2467 = vpack.c.b16 %v1715, %v1707
    %v2468 = vpack.c.b16 %v1716, %v1708
    %v2469 = vpack.c.b16 %v1717, %v1709
    %v2470 = vpack.c.b16 %v1726, %v1718
    %v2471 = vpack.c.b16 %v1727, %v1719
    %v2472 = vpack.c.b16 %v1728, %v1720
    %v2473 = vpack.c.b16 %v1729, %v1721
    %v2474 = vpack.c.b16 %v1730, %v1722
    %v2475 = vpack.c.b16 %v1731, %v1723
    %v2476 = vpack.c.b16 %v1732, %v1724
    %v2477 = vpack.c.b16 %v1733, %v1725
    %v2478 = vpack.c.b16 %v1742, %v1734
    %v2479 = vpack.c.b16 %v1743, %v1735
    %v2480 = vpack.c.b16 %v1744, %v1736
    %v2481 = vpack.c.b16 %v1745, %v1737
    %v2482 = vpack.c.b16 %v1746, %v1738
    %v2483 = vpack.c.b16 %v1747, %v1739
    %v2484 = vpack.c.b16 %v1748, %v1740
    %v2485 = vpack.c.b16 %v1749, %v1741
    %v2486 = vpack.c.b16 %v1758, %v1750
    %v2487 = vpack.c.b16 %v1759, %v1751
    %v2488 = vpack.c.b16 %v1760, %v1752
    %v2489 = vpack.c.b16 %v1761, %v1753
    %v2490 = vpack.c.b16 %v1762, %v1754
    %v2491 = vpack.c.b16 %v1763, %v1755
    %v2492 = vpack.c.b16 %v1764, %v1756
    %v2493 = vpack.c.b16 %v1765, %v1757
    %v2494 = vpack.c.b16 %v1774, %v1766
    %v2495 = vpack.c.b16 %v1775, %v1767
    %v2496 = vpack.c.b16 %v1776, %v1768
    %v2497 = vpack.c.b16 %v1777, %v1769
    %v2498 = vpack.c.b16 %v1778, %v1770
    %v2499 = vpack.c.b16 %v1779, %v1771
    %v2500 = vpack.c.b16 %v1780, %v1772
    %v2501 = vpack.c.b16 %v1781, %v1773
    %v2502 = vpack.c.b16 %v1790, %v1782
    %v2503 = vpack.c.b16 %v1791, %v1783
    %v2504 = vpack.c.b16 %v1792, %v1784
    %v2505 = vpack.c.b16 %v1793, %v1785
    %v2506 = vpack.c.b16 %v1794, %v1786
    %v2507 = vpack.c.b16 %v1795, %v1787
    %v2508 = vpack.c.b16 %v1796, %v1788
    %v2509 = vpack.c.b16 %v1797, %v1789
    %v2510 = vpack.c.b16 %v1806, %v1798
    %v2511 = vpack.c.b16 %v1807, %v1799
    %v2512 = vpack.c.b16 %v1808, %v1800
    %v2513 = vpack.c.b16 %v1809, %v1801
    %v2514 = vpack.c.b16 %v1810, %v1802
    %v2515 = vpack.c.b16 %v1811, %v1803
    %v2516 = vpack.c.b16 %v1812, %v1804
    %v2517 = vpack.c.b16 %v1813, %v1805
    %v2518 = vpack.c.b16 %v1822, %v1814
    %v2519 = vpack.c.b16 %v1823, %v1815
    %v2520 = vpack.c.b16 %v1824, %v1816
    %v2521 = vpack.c.b16 %v1825, %v1817
    %v2522 = vpack.c.b16 %v1826, %v1818
    %v2523 = vpack.c.b16 %v1827, %v1819
    %v2524 = vpack.c.b16 %v1828, %v1820
    %v2525 = vpack.c.b16 %v1829, %v1821
    %v2526 = vpack.c.b16 %v1838, %v1830
    %v2527 = vpack.c.b16 %v1839, %v1831
    %v2528 = vpack.c.b16 %v1840, %v1832
    %v2529 = vpack.c.b16 %v1841, %v1833
    %v2530 = vpack.c.b16 %v1842, %v1834
    %v2531 = vpack.c.b16 %v1843, %v1835
    %v2532 = vpack.c.b16 %v1844, %v1836
    %v2533 = vpack.c.b16 %v1845, %v1837
    %v2534 = vpack.c.b16 %v1854, %v1846
    %v2535 = vpack.c.b16 %v1855, %v1847
    %v2536 = vpack.c.b16 %v1856, %v1848
    %v2537 = vpack.c.b16 %v1857, %v1849
    %v2538 = vpack.c.b16 %v1858, %v1850
    %v2539 = vpack.c.b16 %v1859, %v1851
    %v2540 = vpack.c.b16 %v1860, %v1852
    %v2541 = vpack.c.b16 %v1861, %v1853
    %v2542 = vpack.c.b16 %v1870, %v1862
    %v2543 = vpack.c.b16 %v1871, %v1863
    %v2544 = vpack.c.b16 %v1872, %v1864
    %v2545 = vpack.c.b16 %v1873, %v1865
    %v2546 = vpack.c.b16 %v1874, %v1866
    %v2547 = vpack.c.b16 %v1875, %v1867
    %v2548 = vpack.c.b16 %v1876, %v1868
    %v2549 = vpack.c.b16 %v1877, %v1869
    %v2550 = vpack.c.b16 %v1886, %v1878
    %v2551 = vpack.c.b16 %v1887, %v1879
    %v2552 = vpack.c.b16 %v1888, %v1880
    %v2553 = vpack.c.b16 %v1889, %v1881
    %v2554 = vpack.c.b16 %v1890, %v1882
    %v2555 = vpack.c.b16 %v1891, %v1883
    %v2556 = vpack.c.b16 %v1892, %v1884
    %v2557 = vpack.c.b16 %v1893, %v1885
    %v2558 = vpack.c.b16 %v1902, %v1894
    %v2559 = vpack.c.b16 %v1903, %v1895
    %v2560 = vpack.c.b16 %v1904, %v1896
    %v2561 = vpack.c.b16 %v1905, %v1897
    %v2562 = vpack.c.b16 %v1906, %v1898
    %v2563 = vpack.c.b16 %v1907, %v1899
    %v2564 = vpack.c.b16 %v1908, %v1900
    %v2565 = vpack.c.b16 %v1909, %v1901
    %v2566 = vpack.c.b16 %v1918, %v1910
    %v2567 = vpack.c.b16 %v1919, %v1911
    %v2568 = vpack.c.b16 %v1920, %v1912
    %v2569 = vpack.c.b16 %v1921, %v1913
    %v2570 = vpack.c.b16 %v1922, %v1914
    %v2571 = vpack.c.b16 %v1923, %v1915
    %v2572 = vpack.c.b16 %v1924, %v1916
    %v2573 = vpack.c.b16 %v1925, %v1917
    %v2574 = vpack.c.b16 %v1934, %v1926
    %v2575 = vpack.c.b16 %v1935, %v1927
    %v2576 = vpack.c.b16 %v1936, %v1928
    %v2577 = vpack.c.b16 %v1937, %v1929
    %v2578 = vpack.c.b16 %v1938, %v1930
    %v2579 = vpack.c.b16 %v1939, %v1931
    %v2580 = vpack.c.b16 %v1940, %v1932
    %v2581 = vpack.c.b16 %v1941, %v1933
    %v2582 = vpack.c.b16 %v1950, %v1942
    %v2583 = vpack.c.b16 %v1951, %v1943
    %v2584 = vpack.c.b16 %v1952, %v1944
    %v2585 = vpack.c.b16 %v1953, %v1945
    %v2586 = vpack.c.b16 %v1954, %v1946
    %v2587 = vpack.c.b16 %v1955, %v1947
    %v2588 = vpack.c.b16 %v1956, %v1948
    %v2589 = vpack.c.b16 %v1957, %v1949
    %v2590 = vpack.c.b16 %v1966, %v1958
    %v2591 = vpack.c.b16 %v1967, %v1959
    %v2592 = vpack.c.b16 %v1968, %v1960
    %v2593 = vpack.c.b16 %v1969, %v1961
    %v2594 = vpack.c.b16 %v1970, %v1962
    %v2595 = vpack.c.b16 %v1971, %v1963
    %v2596 = vpack.c.b16 %v1972, %v1964
    %v2597 = vpack.c.b16 %v1973, %v1965
    %v2598 = vpack.c.b16 %v1982, %v1974
    %v2599 = vpack.c.b16 %v1983, %v1975
    %v2600 = vpack.c.b16 %v1984, %v1976
    %v2601 = vpack.c.b16 %v1985, %v1977
    %v2602 = vpack.c.b16 %v1986, %v1978
    %v2603 = vpack.c.b16 %v1987, %v1979
    %v2604 = vpack.c.b16 %v1988, %v1980
    %v2605 = vpack.c.b16 %v1989, %v1981
    %v2606 = vpack.c.b16 %v1998, %v1990
    %v2607 = vpack.c.b16 %v1999, %v1991
    %v2608 = vpack.c.b16 %v2000, %v1992
    %v2609 = vpack.c.b16 %v2001, %v1993
    %v2610 = vpack.c.b16 %v2002, %v1994
    %v2611 = vpack.c.b16 %v2003, %v1995
    %v2612 = vpack.c.b16 %v2004, %v1996
    %v2613 = vpack.c.b16 %v2005, %v1997
    %v2614 = vpack.c.b16 %v2014, %v2006
    %v2615 = vpack.c.b16 %v2015, %v2007
    %v2616 = vpack.c.b16 %v2016, %v2008
    %v2617 = vpack.c.b16 %v2017, %v2009
    %v2618 = vpack.c.b16 %v2018, %v2010
    %v2619 = vpack.c.b16 %v2019, %v2011
    %v2620 = vpack.c.b16 %v2020, %v2012
    %v2621 = vpack.c.b16 %v2021, %v2013
    %v2622 = vpack.c.b16 %v2030, %v2022
    %v2623 = vpack.c.b16 %v2031, %v2023
    %v2624 = vpack.c.b16 %v2032, %v2024
    %v2625 = vpack.c.b16 %v2033, %v2025
    %v2626 = vpack.c.b16 %v2034, %v2026
    %v2627 = vpack.c.b16 %v2035, %v2027
    %v2628 = vpack.c.b16 %v2036, %v2028
    %v2629 = vpack.c.b16 %v2037, %v2029
    %v2630 = vpack.c.b16 %v2046, %v2038
    %v2631 = vpack.c.b16 %v2047, %v2039
    %v2632 = vpack.c.b16 %v2048, %v2040
    %v2633 = vpack.c.b16 %v2049, %v2041
    %v2634 = vpack.c.b16 %v2050, %v2042
    %v2635 = vpack.c.b16 %v2051, %v2043
    %v2636 = vpack.c.b16 %v2052, %v2044
    %v2637 = vpack.c.b16 %v2053, %v2045
    %v2638 = vpack.c.b16 %v2062, %v2054
    %v2639 = vpack.c.b16 %v2063, %v2055
    %v2640 = vpack.c.b16 %v2064, %v2056
    %v2641 = vpack.c.b16 %v2065, %v2057
    %v2642 = vpack.c.b16 %v2066, %v2058
    %v2643 = vpack.c.b16 %v2067, %v2059
    %v2644 = vpack.c.b16 %v2068, %v2060
    %v2645 = vpack.c.b16 %v2069, %v2061
    %v2646 = vpack.c.b16 %v2078, %v2070
    %v2647 = vpack.c.b16 %v2079, %v2071
    %v2648 = vpack.c.b16 %v2080, %v2072
    %v2649 = vpack.c.b16 %v2081, %v2073
    %v2650 = vpack.c.b16 %v2082, %v2074
    %v2651 = vpack.c.b16 %v2083, %v2075
    %v2652 = vpack.c.b16 %v2084, %v2076
    %v2653 = vpack.c.b16 %v2085, %v2077
    %v2654 = vpack.c.b16 %v2094, %v2086
    %v2655 = vpack.c.b16 %v2095, %v2087
    %v2656 = vpack.c.b16 %v2096, %v2088
    %v2657 = vpack.c.b16 %v2097, %v2089
    %v2658 = vpack.c.b16 %v2098, %v2090
    %v2659 = vpack.c.b16 %v2099, %v2091
    %v2660 = vpack.c.b16 %v2100, %v2092
    %v2661 = vpack.c.b16 %v2101, %v2093
    %v2662 = vpack.c.b16 %v2110, %v2102
    %v2663 = vpack.c.b16 %v2111, %v2103
    %v2664 = vpack.c.b16 %v2112, %v2104
    %v2665 = vpack.c.b16 %v2113, %v2105
    %v2666 = vpack.c.b16 %v2114, %v2106
    %v2667 = vpack.c.b16 %v2115, %v2107
    %v2668 = vpack.c.b16 %v2116, %v2108
    %v2669 = vpack.c.b16 %v2117, %v2109
    %v2670 = vpack.c.b16 %v2126, %v2118
    %v2671 = vpack.c.b16 %v2127, %v2119
    %v2672 = vpack.c.b16 %v2128, %v2120
    %v2673 = vpack.c.b16 %v2129, %v2121
    %v2674 = vpack.c.b16 %v2130, %v2122
    %v2675 = vpack.c.b16 %v2131, %v2123
    %v2676 = vpack.c.b16 %v2132, %v2124
    %v2677 = vpack.c.b16 %v2133, %v2125
    %v2678 = vpack.c.b16 %v2142, %v2134
    %v2679 = vpack.c.b16 %v2143, %v2135
    %v2680 = vpack.c.b16 %v2144, %v2136
    %v2681 = vpack.c.b16 %v2145, %v2137
    %v2682 = vpack.c.b16 %v2146, %v2138
    %v2683 = vpack.c.b16 %v2147, %v2139
    %v2684 = vpack.c.b16 %v2148, %v2140
    %v2685 = vpack.c.b16 %v2149, %v2141
    %v2686 = vpack.c.b16 %v2158, %v2150
    %v2687 = vpack.c.b16 %v2159, %v2151
    %v2688 = vpack.c.b16 %v2160, %v2152
    %v2689 = vpack.c.b16 %v2161, %v2153
    %v2690 = vpack.c.b16 %v2162, %v2154
    %v2691 = vpack.c.b16 %v2163, %v2155
    %v2692 = vpack.c.b16 %v2164, %v2156
    %v2693 = vpack.c.b16 %v2165, %v2157
    %v2694 = vpack.c.b16 %v2174, %v2166
    %v2695 = vpack.c.b16 %v2175, %v2167
    %v2696 = vpack.c.b16 %v2176, %v2168
    %v2697 = vpack.c.b16 %v2177, %v2169
    %v2698 = vpack.c.b16 %v2178, %v2170
    %v2699 = vpack.c.b16 %v2179, %v2171
    %v2700 = vpack.c.b16 %v2180, %v2172
    %v2701 = vpack.c.b16 %v2181, %v2173
    %v2702 = vpack.c.b16 %v2190, %v2182
    %v2703 = vpack.c.b16 %v2191, %v2183
    %v2704 = vpack.c.b16 %v2192, %v2184
    %v2705 = vpack.c.b16 %v2193, %v2185
    %v2706 = vpack.c.b16 %v2194, %v2186
    %v2707 = vpack.c.b16 %v2195, %v2187
    %v2708 = vpack.c.b16 %v2196, %v2188
    %v2709 = vpack.c.b16 %v2197, %v2189
    %3222 = vmatpush.bf16.msra.mxu0 %v2254
    %3223 = vmatpush.bf16.msra.mxu0 %v2246
    %3224 = vmatpush.bf16.msra.mxu0 %v2238
    %3225 = vmatpush.bf16.msra.mxu0 %v2230
    %3226 = vmatpush.bf16.msra.mxu0 %v2222
    %3227 = vmatpush.bf16.msra.mxu0 %v2214
    %3228 = vmatpush.bf16.msra.mxu0 %v2206
    %3229 = vmatpush.bf16.msra.mxu0 %v2198
    %3230 = vmatmul.bf16.gmra.mxu0 %v646
    %v3231 = vpop.f32.mrf.mxu0
    %v3232 = vadd.f32 0.0, %v3231
    %v3233 = vpop.f32.mrf.mxu0
    %3234 = vdwg.mxu0
    %3235 = vmatpush.bf16.msra.mxu0 %v2318
    %3236 = vmatpush.bf16.msra.mxu0 %v2310
    %3237 = vmatpush.bf16.msra.mxu0 %v2302
    %3238 = vmatpush.bf16.msra.mxu0 %v2294
    %3239 = vmatpush.bf16.msra.mxu0 %v2286
    %3240 = vmatpush.bf16.msra.mxu0 %v2278
    %3241 = vmatpush.bf16.msra.mxu0 %v2270
    %3242 = vmatpush.bf16.msra.mxu0 %v2262
    %3243 = vmatmul.bf16.gmra.mxu0 %v647
    %v3244 = vpop.f32.mrf.mxu0
    %v3245 = vadd.f32 %v3232, %v3244
    %v3246 = vpop.f32.mrf.mxu0
    %3247 = vdwg.mxu0
    %3248 = vmatpush.bf16.msra.mxu0 %v2382
    %3249 = vmatpush.bf16.msra.mxu0 %v2374
    %3250 = vmatpush.bf16.msra.mxu0 %v2366
    %3251 = vmatpush.bf16.msra.mxu0 %v2358
    %3252 = vmatpush.bf16.msra.mxu0 %v2350
    %3253 = vmatpush.bf16.msra.mxu0 %v2342
    %3254 = vmatpush.bf16.msra.mxu0 %v2334
    %3255 = vmatpush.bf16.msra.mxu0 %v2326
    %3256 = vmatmul.bf16.gmra.mxu0 %v648
    %v3257 = vpop.f32.mrf.mxu0
    %v3258 = vadd.f32 %v3245, %v3257
    %v3259 = vpop.f32.mrf.mxu0
    %3260 = vdwg.mxu0
    %3261 = vmatpush.bf16.msra.mxu0 %v2446
    %3262 = vmatpush.bf16.msra.mxu0 %v2438
    %3263 = vmatpush.bf16.msra.mxu0 %v2430
    %3264 = vmatpush.bf16.msra.mxu0 %v2422
    %3265 = vmatpush.bf16.msra.mxu0 %v2414
    %3266 = vmatpush.bf16.msra.mxu0 %v2406
    %3267 = vmatpush.bf16.msra.mxu0 %v2398
    %3268 = vmatpush.bf16.msra.mxu0 %v2390
    %3269 = vmatmul.bf16.gmra.mxu0 %v649
    %v3270 = vpop.f32.mrf.mxu0
    %v3271 = vadd.f32 %v3258, %v3270
    %v3272 = vpop.f32.mrf.mxu0
    %3273 = vdwg.mxu0
    %3274 = vmatpush.bf16.msra.mxu0 %v2510
    %3275 = vmatpush.bf16.msra.mxu0 %v2502
    %3276 = vmatpush.bf16.msra.mxu0 %v2494
    %3277 = vmatpush.bf16.msra.mxu0 %v2486
    %3278 = vmatpush.bf16.msra.mxu0 %v2478
    %3279 = vmatpush.bf16.msra.mxu0 %v2470
    %3280 = vmatpush.bf16.msra.mxu0 %v2462
    %3281 = vmatpush.bf16.msra.mxu0 %v2454
    %3282 = vmatmul.bf16.gmra.mxu0 %v650
    %v3283 = vpop.f32.mrf.mxu0
    %v3284 = vadd.f32 %v3271, %v3283
    %v3285 = vpop.f32.mrf.mxu0
    %3286 = vdwg.mxu0
    %3287 = vmatpush.bf16.msra.mxu0 %v2574
    %3288 = vmatpush.bf16.msra.mxu0 %v2566
    %3289 = vmatpush.bf16.msra.mxu0 %v2558
    %3290 = vmatpush.bf16.msra.mxu0 %v2550
    %3291 = vmatpush.bf16.msra.mxu0 %v2542
    %3292 = vmatpush.bf16.msra.mxu0 %v2534
    %3293 = vmatpush.bf16.msra.mxu0 %v2526
    %3294 = vmatpush.bf16.msra.mxu0 %v2518
    %3295 = vmatmul.bf16.gmra.mxu0 %v651
    %v3296 = vpop.f32.mrf.mxu0
    %v3297 = vadd.f32 %v3284, %v3296
    %v3298 = vpop.f32.mrf.mxu0
    %3299 = vdwg.mxu0
    %3300 = vmatpush.bf16.msra.mxu0 %v2638
    %3301 = vmatpush.bf16.msra.mxu0 %v2630
    %3302 = vmatpush.bf16.msra.mxu0 %v2622
    %3303 = vmatpush.bf16.msra.mxu0 %v2614
    %3304 = vmatpush.bf16.msra.mxu0 %v2606
    %3305 = vmatpush.bf16.msra.mxu0 %v2598
    %3306 = vmatpush.bf16.msra.mxu0 %v2590
    %3307 = vmatpush.bf16.msra.mxu0 %v2582
    %3308 = vmatmul.bf16.gmra.mxu0 %v652
    %v3309 = vpop.f32.mrf.mxu0
    %v3310 = vadd.f32 %v3297, %v3309
    %v3311 = vpop.f32.mrf.mxu0
    %3312 = vdwg.mxu0
    %3313 = vmatpush.bf16.msra.mxu0 %v2702
    %3314 = vmatpush.bf16.msra.mxu0 %v2694
    %3315 = vmatpush.bf16.msra.mxu0 %v2686
    %3316 = vmatpush.bf16.msra.mxu0 %v2678
    %3317 = vmatpush.bf16.msra.mxu0 %v2670
    %3318 = vmatpush.bf16.msra.mxu0 %v2662
    %3319 = vmatpush.bf16.msra.mxu0 %v2654
    %3320 = vmatpush.bf16.msra.mxu0 %v2646
    %3321 = vmatmul.bf16.gmra.mxu0 %v653
    %v3322 = vpop.f32.mrf.mxu0
    %v3323 = vadd.f32 %v3310, %v3322
    %v3324 = vpop.f32.mrf.mxu0
    %3325 = vdwg.mxu0
    %3326 = vmatpush.bf16.msra.mxu0 %v2255
    %3327 = vmatpush.bf16.msra.mxu0 %v2247
    %3328 = vmatpush.bf16.msra.mxu0 %v2239
    %3329 = vmatpush.bf16.msra.mxu0 %v2231
    %3330 = vmatpush.bf16.msra.mxu0 %v2223
    %3331 = vmatpush.bf16.msra.mxu0 %v2215
    %3332 = vmatpush.bf16.msra.mxu0 %v2207
    %3333 = vmatpush.bf16.msra.mxu0 %v2199
    %3334 = vmatmul.bf16.gmra.mxu0 %v646
    %v3335 = vpop.f32.mrf.mxu0
    %v3336 = vadd.f32 0.0, %v3335
    %v3337 = vpop.f32.mrf.mxu0
    %3338 = vdwg.mxu0
    %3339 = vmatpush.bf16.msra.mxu0 %v2319
    %3340 = vmatpush.bf16.msra.mxu0 %v2311
    %3341 = vmatpush.bf16.msra.mxu0 %v2303
    %3342 = vmatpush.bf16.msra.mxu0 %v2295
    %3343 = vmatpush.bf16.msra.mxu0 %v2287
    %3344 = vmatpush.bf16.msra.mxu0 %v2279
    %3345 = vmatpush.bf16.msra.mxu0 %v2271
    %3346 = vmatpush.bf16.msra.mxu0 %v2263
    %3347 = vmatmul.bf16.gmra.mxu0 %v647
    %v3348 = vpop.f32.mrf.mxu0
    %v3349 = vadd.f32 %v3336, %v3348
    %v3350 = vpop.f32.mrf.mxu0
    %3351 = vdwg.mxu0
    %3352 = vmatpush.bf16.msra.mxu0 %v2383
    %3353 = vmatpush.bf16.msra.mxu0 %v2375
    %3354 = vmatpush.bf16.msra.mxu0 %v2367
    %3355 = vmatpush.bf16.msra.mxu0 %v2359
    %3356 = vmatpush.bf16.msra.mxu0 %v2351
    %3357 = vmatpush.bf16.msra.mxu0 %v2343
    %3358 = vmatpush.bf16.msra.mxu0 %v2335
    %3359 = vmatpush.bf16.msra.mxu0 %v2327
    %3360 = vmatmul.bf16.gmra.mxu0 %v648
    %v3361 = vpop.f32.mrf.mxu0
    %v3362 = vadd.f32 %v3349, %v3361
    %v3363 = vpop.f32.mrf.mxu0
    %3364 = vdwg.mxu0
    %3365 = vmatpush.bf16.msra.mxu0 %v2447
    %3366 = vmatpush.bf16.msra.mxu0 %v2439
    %3367 = vmatpush.bf16.msra.mxu0 %v2431
    %3368 = vmatpush.bf16.msra.mxu0 %v2423
    %3369 = vmatpush.bf16.msra.mxu0 %v2415
    %3370 = vmatpush.bf16.msra.mxu0 %v2407
    %3371 = vmatpush.bf16.msra.mxu0 %v2399
    %3372 = vmatpush.bf16.msra.mxu0 %v2391
    %3373 = vmatmul.bf16.gmra.mxu0 %v649
    %v3374 = vpop.f32.mrf.mxu0
    %v3375 = vadd.f32 %v3362, %v3374
    %v3376 = vpop.f32.mrf.mxu0
    %3377 = vdwg.mxu0
    %3378 = vmatpush.bf16.msra.mxu0 %v2511
    %3379 = vmatpush.bf16.msra.mxu0 %v2503
    %3380 = vmatpush.bf16.msra.mxu0 %v2495
    %3381 = vmatpush.bf16.msra.mxu0 %v2487
    %3382 = vmatpush.bf16.msra.mxu0 %v2479
    %3383 = vmatpush.bf16.msra.mxu0 %v2471
    %3384 = vmatpush.bf16.msra.mxu0 %v2463
    %3385 = vmatpush.bf16.msra.mxu0 %v2455
    %3386 = vmatmul.bf16.gmra.mxu0 %v650
    %v3387 = vpop.f32.mrf.mxu0
    %v3388 = vadd.f32 %v3375, %v3387
    %v3389 = vpop.f32.mrf.mxu0
    %3390 = vdwg.mxu0
    %3391 = vmatpush.bf16.msra.mxu0 %v2575
    %3392 = vmatpush.bf16.msra.mxu0 %v2567
    %3393 = vmatpush.bf16.msra.mxu0 %v2559
    %3394 = vmatpush.bf16.msra.mxu0 %v2551
    %3395 = vmatpush.bf16.msra.mxu0 %v2543
    %3396 = vmatpush.bf16.msra.mxu0 %v2535
    %3397 = vmatpush.bf16.msra.mxu0 %v2527
    %3398 = vmatpush.bf16.msra.mxu0 %v2519
    %3399 = vmatmul.bf16.gmra.mxu0 %v651
    %v3400 = vpop.f32.mrf.mxu0
    %v3401 = vadd.f32 %v3388, %v3400
    %v3402 = vpop.f32.mrf.mxu0
    %3403 = vdwg.mxu0
    %3404 = vmatpush.bf16.msra.mxu0 %v2639
    %3405 = vmatpush.bf16.msra.mxu0 %v2631
    %3406 = vmatpush.bf16.msra.mxu0 %v2623
    %3407 = vmatpush.bf16.msra.mxu0 %v2615
    %3408 = vmatpush.bf16.msra.mxu0 %v2607
    %3409 = vmatpush.bf16.msra.mxu0 %v2599
    %3410 = vmatpush.bf16.msra.mxu0 %v2591
    %3411 = vmatpush.bf16.msra.mxu0 %v2583
    %3412 = vmatmul.bf16.gmra.mxu0 %v652
    %v3413 = vpop.f32.mrf.mxu0
    %v3414 = vadd.f32 %v3401, %v3413
    %v3415 = vpop.f32.mrf.mxu0
    %3416 = vdwg.mxu0
    %3417 = vmatpush.bf16.msra.mxu0 %v2703
    %3418 = vmatpush.bf16.msra.mxu0 %v2695
    %3419 = vmatpush.bf16.msra.mxu0 %v2687
    %3420 = vmatpush.bf16.msra.mxu0 %v2679
    %3421 = vmatpush.bf16.msra.mxu0 %v2671
    %3422 = vmatpush.bf16.msra.mxu0 %v2663
    %3423 = vmatpush.bf16.msra.mxu0 %v2655
    %3424 = vmatpush.bf16.msra.mxu0 %v2647
    %3425 = vmatmul.bf16.gmra.mxu0 %v653
    %v3426 = vpop.f32.mrf.mxu0
    %v3427 = vadd.f32 %v3414, %v3426
    %v3428 = vpop.f32.mrf.mxu0
    %3429 = vdwg.mxu0
    %3430 = vmatpush.bf16.msra.mxu0 %v2256
    %3431 = vmatpush.bf16.msra.mxu0 %v2248
    %3432 = vmatpush.bf16.msra.mxu0 %v2240
    %3433 = vmatpush.bf16.msra.mxu0 %v2232
    %3434 = vmatpush.bf16.msra.mxu0 %v2224
    %3435 = vmatpush.bf16.msra.mxu0 %v2216
    %3436 = vmatpush.bf16.msra.mxu0 %v2208
    %3437 = vmatpush.bf16.msra.mxu0 %v2200
    %3438 = vmatmul.bf16.gmra.mxu0 %v646
    %v3439 = vpop.f32.mrf.mxu0
    %v3440 = vadd.f32 0.0, %v3439
    %v3441 = vpop.f32.mrf.mxu0
    %3442 = vdwg.mxu0
    %3443 = vmatpush.bf16.msra.mxu0 %v2320
    %3444 = vmatpush.bf16.msra.mxu0 %v2312
    %3445 = vmatpush.bf16.msra.mxu0 %v2304
    %3446 = vmatpush.bf16.msra.mxu0 %v2296
    %3447 = vmatpush.bf16.msra.mxu0 %v2288
    %3448 = vmatpush.bf16.msra.mxu0 %v2280
    %3449 = vmatpush.bf16.msra.mxu0 %v2272
    %3450 = vmatpush.bf16.msra.mxu0 %v2264
    %3451 = vmatmul.bf16.gmra.mxu0 %v647
    %v3452 = vpop.f32.mrf.mxu0
    %v3453 = vadd.f32 %v3440, %v3452
    %v3454 = vpop.f32.mrf.mxu0
    %3455 = vdwg.mxu0
    %3456 = vmatpush.bf16.msra.mxu0 %v2384
    %3457 = vmatpush.bf16.msra.mxu0 %v2376
    %3458 = vmatpush.bf16.msra.mxu0 %v2368
    %3459 = vmatpush.bf16.msra.mxu0 %v2360
    %3460 = vmatpush.bf16.msra.mxu0 %v2352
    %3461 = vmatpush.bf16.msra.mxu0 %v2344
    %3462 = vmatpush.bf16.msra.mxu0 %v2336
    %3463 = vmatpush.bf16.msra.mxu0 %v2328
    %3464 = vmatmul.bf16.gmra.mxu0 %v648
    %v3465 = vpop.f32.mrf.mxu0
    %v3466 = vadd.f32 %v3453, %v3465
    %v3467 = vpop.f32.mrf.mxu0
    %3468 = vdwg.mxu0
    %3469 = vmatpush.bf16.msra.mxu0 %v2448
    %3470 = vmatpush.bf16.msra.mxu0 %v2440
    %3471 = vmatpush.bf16.msra.mxu0 %v2432
    %3472 = vmatpush.bf16.msra.mxu0 %v2424
    %3473 = vmatpush.bf16.msra.mxu0 %v2416
    %3474 = vmatpush.bf16.msra.mxu0 %v2408
    %3475 = vmatpush.bf16.msra.mxu0 %v2400
    %3476 = vmatpush.bf16.msra.mxu0 %v2392
    %3477 = vmatmul.bf16.gmra.mxu0 %v649
    %v3478 = vpop.f32.mrf.mxu0
    %v3479 = vadd.f32 %v3466, %v3478
    %v3480 = vpop.f32.mrf.mxu0
    %3481 = vdwg.mxu0
    %3482 = vmatpush.bf16.msra.mxu0 %v2512
    %3483 = vmatpush.bf16.msra.mxu0 %v2504
    %3484 = vmatpush.bf16.msra.mxu0 %v2496
    %3485 = vmatpush.bf16.msra.mxu0 %v2488
    %3486 = vmatpush.bf16.msra.mxu0 %v2480
    %3487 = vmatpush.bf16.msra.mxu0 %v2472
    %3488 = vmatpush.bf16.msra.mxu0 %v2464
    %3489 = vmatpush.bf16.msra.mxu0 %v2456
    %3490 = vmatmul.bf16.gmra.mxu0 %v650
    %v3491 = vpop.f32.mrf.mxu0
    %v3492 = vadd.f32 %v3479, %v3491
    %v3493 = vpop.f32.mrf.mxu0
    %3494 = vdwg.mxu0
    %3495 = vmatpush.bf16.msra.mxu0 %v2576
    %3496 = vmatpush.bf16.msra.mxu0 %v2568
    %3497 = vmatpush.bf16.msra.mxu0 %v2560
    %3498 = vmatpush.bf16.msra.mxu0 %v2552
    %3499 = vmatpush.bf16.msra.mxu0 %v2544
    %3500 = vmatpush.bf16.msra.mxu0 %v2536
    %3501 = vmatpush.bf16.msra.mxu0 %v2528
    %3502 = vmatpush.bf16.msra.mxu0 %v2520
    %3503 = vmatmul.bf16.gmra.mxu0 %v651
    %v3504 = vpop.f32.mrf.mxu0
    %v3505 = vadd.f32 %v3492, %v3504
    %v3506 = vpop.f32.mrf.mxu0
    %3507 = vdwg.mxu0
    %3508 = vmatpush.bf16.msra.mxu0 %v2640
    %3509 = vmatpush.bf16.msra.mxu0 %v2632
    %3510 = vmatpush.bf16.msra.mxu0 %v2624
    %3511 = vmatpush.bf16.msra.mxu0 %v2616
    %3512 = vmatpush.bf16.msra.mxu0 %v2608
    %3513 = vmatpush.bf16.msra.mxu0 %v2600
    %3514 = vmatpush.bf16.msra.mxu0 %v2592
    %3515 = vmatpush.bf16.msra.mxu0 %v2584
    %3516 = vmatmul.bf16.gmra.mxu0 %v652
    %v3517 = vpop.f32.mrf.mxu0
    %v3518 = vadd.f32 %v3505, %v3517
    %v3519 = vpop.f32.mrf.mxu0
    %3520 = vdwg.mxu0
    %3521 = vmatpush.bf16.msra.mxu0 %v2704
    %3522 = vmatpush.bf16.msra.mxu0 %v2696
    %3523 = vmatpush.bf16.msra.mxu0 %v2688
    %3524 = vmatpush.bf16.msra.mxu0 %v2680
    %3525 = vmatpush.bf16.msra.mxu0 %v2672
    %3526 = vmatpush.bf16.msra.mxu0 %v2664
    %3527 = vmatpush.bf16.msra.mxu0 %v2656
    %3528 = vmatpush.bf16.msra.mxu0 %v2648
    %3529 = vmatmul.bf16.gmra.mxu0 %v653
    %v3530 = vpop.f32.mrf.mxu0
    %v3531 = vadd.f32 %v3518, %v3530
    %v3532 = vpop.f32.mrf.mxu0
    %3533 = vdwg.mxu0
    %3534 = vmatpush.bf16.msra.mxu0 %v2257
    %3535 = vmatpush.bf16.msra.mxu0 %v2249
    %3536 = vmatpush.bf16.msra.mxu0 %v2241
    %3537 = vmatpush.bf16.msra.mxu0 %v2233
    %3538 = vmatpush.bf16.msra.mxu0 %v2225
    %3539 = vmatpush.bf16.msra.mxu0 %v2217
    %3540 = vmatpush.bf16.msra.mxu0 %v2209
    %3541 = vmatpush.bf16.msra.mxu0 %v2201
    %3542 = vmatmul.bf16.gmra.mxu0 %v646
    %v3543 = vpop.f32.mrf.mxu0
    %v3544 = vadd.f32 0.0, %v3543
    %v3545 = vpop.f32.mrf.mxu0
    %3546 = vdwg.mxu0
    %3547 = vmatpush.bf16.msra.mxu0 %v2321
    %3548 = vmatpush.bf16.msra.mxu0 %v2313
    %3549 = vmatpush.bf16.msra.mxu0 %v2305
    %3550 = vmatpush.bf16.msra.mxu0 %v2297
    %3551 = vmatpush.bf16.msra.mxu0 %v2289
    %3552 = vmatpush.bf16.msra.mxu0 %v2281
    %3553 = vmatpush.bf16.msra.mxu0 %v2273
    %3554 = vmatpush.bf16.msra.mxu0 %v2265
    %3555 = vmatmul.bf16.gmra.mxu0 %v647
    %v3556 = vpop.f32.mrf.mxu0
    %v3557 = vadd.f32 %v3544, %v3556
    %v3558 = vpop.f32.mrf.mxu0
    %3559 = vdwg.mxu0
    %3560 = vmatpush.bf16.msra.mxu0 %v2385
    %3561 = vmatpush.bf16.msra.mxu0 %v2377
    %3562 = vmatpush.bf16.msra.mxu0 %v2369
    %3563 = vmatpush.bf16.msra.mxu0 %v2361
    %3564 = vmatpush.bf16.msra.mxu0 %v2353
    %3565 = vmatpush.bf16.msra.mxu0 %v2345
    %3566 = vmatpush.bf16.msra.mxu0 %v2337
    %3567 = vmatpush.bf16.msra.mxu0 %v2329
    %3568 = vmatmul.bf16.gmra.mxu0 %v648
    %v3569 = vpop.f32.mrf.mxu0
    %v3570 = vadd.f32 %v3557, %v3569
    %v3571 = vpop.f32.mrf.mxu0
    %3572 = vdwg.mxu0
    %3573 = vmatpush.bf16.msra.mxu0 %v2449
    %3574 = vmatpush.bf16.msra.mxu0 %v2441
    %3575 = vmatpush.bf16.msra.mxu0 %v2433
    %3576 = vmatpush.bf16.msra.mxu0 %v2425
    %3577 = vmatpush.bf16.msra.mxu0 %v2417
    %3578 = vmatpush.bf16.msra.mxu0 %v2409
    %3579 = vmatpush.bf16.msra.mxu0 %v2401
    %3580 = vmatpush.bf16.msra.mxu0 %v2393
    %3581 = vmatmul.bf16.gmra.mxu0 %v649
    %v3582 = vpop.f32.mrf.mxu0
    %v3583 = vadd.f32 %v3570, %v3582
    %v3584 = vpop.f32.mrf.mxu0
    %3585 = vdwg.mxu0
    %3586 = vmatpush.bf16.msra.mxu0 %v2513
    %3587 = vmatpush.bf16.msra.mxu0 %v2505
    %3588 = vmatpush.bf16.msra.mxu0 %v2497
    %3589 = vmatpush.bf16.msra.mxu0 %v2489
    %3590 = vmatpush.bf16.msra.mxu0 %v2481
    %3591 = vmatpush.bf16.msra.mxu0 %v2473
    %3592 = vmatpush.bf16.msra.mxu0 %v2465
    %3593 = vmatpush.bf16.msra.mxu0 %v2457
    %3594 = vmatmul.bf16.gmra.mxu0 %v650
    %v3595 = vpop.f32.mrf.mxu0
    %v3596 = vadd.f32 %v3583, %v3595
    %v3597 = vpop.f32.mrf.mxu0
    %3598 = vdwg.mxu0
    %3599 = vmatpush.bf16.msra.mxu0 %v2577
    %3600 = vmatpush.bf16.msra.mxu0 %v2569
    %3601 = vmatpush.bf16.msra.mxu0 %v2561
    %3602 = vmatpush.bf16.msra.mxu0 %v2553
    %3603 = vmatpush.bf16.msra.mxu0 %v2545
    %3604 = vmatpush.bf16.msra.mxu0 %v2537
    %3605 = vmatpush.bf16.msra.mxu0 %v2529
    %3606 = vmatpush.bf16.msra.mxu0 %v2521
    %3607 = vmatmul.bf16.gmra.mxu0 %v651
    %v3608 = vpop.f32.mrf.mxu0
    %v3609 = vadd.f32 %v3596, %v3608
    %v3610 = vpop.f32.mrf.mxu0
    %3611 = vdwg.mxu0
    %3612 = vmatpush.bf16.msra.mxu0 %v2641
    %3613 = vmatpush.bf16.msra.mxu0 %v2633
    %3614 = vmatpush.bf16.msra.mxu0 %v2625
    %3615 = vmatpush.bf16.msra.mxu0 %v2617
    %3616 = vmatpush.bf16.msra.mxu0 %v2609
    %3617 = vmatpush.bf16.msra.mxu0 %v2601
    %3618 = vmatpush.bf16.msra.mxu0 %v2593
    %3619 = vmatpush.bf16.msra.mxu0 %v2585
    %3620 = vmatmul.bf16.gmra.mxu0 %v652
    %v3621 = vpop.f32.mrf.mxu0
    %v3622 = vadd.f32 %v3609, %v3621
    %v3623 = vpop.f32.mrf.mxu0
    %3624 = vdwg.mxu0
    %3625 = vmatpush.bf16.msra.mxu0 %v2705
    %3626 = vmatpush.bf16.msra.mxu0 %v2697
    %3627 = vmatpush.bf16.msra.mxu0 %v2689
    %3628 = vmatpush.bf16.msra.mxu0 %v2681
    %3629 = vmatpush.bf16.msra.mxu0 %v2673
    %3630 = vmatpush.bf16.msra.mxu0 %v2665
    %3631 = vmatpush.bf16.msra.mxu0 %v2657
    %3632 = vmatpush.bf16.msra.mxu0 %v2649
    %3633 = vmatmul.bf16.gmra.mxu0 %v653
    %v3634 = vpop.f32.mrf.mxu0
    %v3635 = vadd.f32 %v3622, %v3634
    %v3636 = vpop.f32.mrf.mxu0
    %3637 = vdwg.mxu0
    %3638 = vmatpush.bf16.msra.mxu0 %v2258
    %3639 = vmatpush.bf16.msra.mxu0 %v2250
    %3640 = vmatpush.bf16.msra.mxu0 %v2242
    %3641 = vmatpush.bf16.msra.mxu0 %v2234
    %3642 = vmatpush.bf16.msra.mxu0 %v2226
    %3643 = vmatpush.bf16.msra.mxu0 %v2218
    %3644 = vmatpush.bf16.msra.mxu0 %v2210
    %3645 = vmatpush.bf16.msra.mxu0 %v2202
    %3646 = vmatmul.bf16.gmra.mxu0 %v646
    %v3647 = vpop.f32.mrf.mxu0
    %v3648 = vadd.f32 0.0, %v3647
    %v3649 = vpop.f32.mrf.mxu0
    %3650 = vdwg.mxu0
    %3651 = vmatpush.bf16.msra.mxu0 %v2322
    %3652 = vmatpush.bf16.msra.mxu0 %v2314
    %3653 = vmatpush.bf16.msra.mxu0 %v2306
    %3654 = vmatpush.bf16.msra.mxu0 %v2298
    %3655 = vmatpush.bf16.msra.mxu0 %v2290
    %3656 = vmatpush.bf16.msra.mxu0 %v2282
    %3657 = vmatpush.bf16.msra.mxu0 %v2274
    %3658 = vmatpush.bf16.msra.mxu0 %v2266
    %3659 = vmatmul.bf16.gmra.mxu0 %v647
    %v3660 = vpop.f32.mrf.mxu0
    %v3661 = vadd.f32 %v3648, %v3660
    %v3662 = vpop.f32.mrf.mxu0
    %3663 = vdwg.mxu0
    %3664 = vmatpush.bf16.msra.mxu0 %v2386
    %3665 = vmatpush.bf16.msra.mxu0 %v2378
    %3666 = vmatpush.bf16.msra.mxu0 %v2370
    %3667 = vmatpush.bf16.msra.mxu0 %v2362
    %3668 = vmatpush.bf16.msra.mxu0 %v2354
    %3669 = vmatpush.bf16.msra.mxu0 %v2346
    %3670 = vmatpush.bf16.msra.mxu0 %v2338
    %3671 = vmatpush.bf16.msra.mxu0 %v2330
    %3672 = vmatmul.bf16.gmra.mxu0 %v648
    %v3673 = vpop.f32.mrf.mxu0
    %v3674 = vadd.f32 %v3661, %v3673
    %v3675 = vpop.f32.mrf.mxu0
    %3676 = vdwg.mxu0
    %3677 = vmatpush.bf16.msra.mxu0 %v2450
    %3678 = vmatpush.bf16.msra.mxu0 %v2442
    %3679 = vmatpush.bf16.msra.mxu0 %v2434
    %3680 = vmatpush.bf16.msra.mxu0 %v2426
    %3681 = vmatpush.bf16.msra.mxu0 %v2418
    %3682 = vmatpush.bf16.msra.mxu0 %v2410
    %3683 = vmatpush.bf16.msra.mxu0 %v2402
    %3684 = vmatpush.bf16.msra.mxu0 %v2394
    %3685 = vmatmul.bf16.gmra.mxu0 %v649
    %v3686 = vpop.f32.mrf.mxu0
    %v3687 = vadd.f32 %v3674, %v3686
    %v3688 = vpop.f32.mrf.mxu0
    %3689 = vdwg.mxu0
    %3690 = vmatpush.bf16.msra.mxu0 %v2514
    %3691 = vmatpush.bf16.msra.mxu0 %v2506
    %3692 = vmatpush.bf16.msra.mxu0 %v2498
    %3693 = vmatpush.bf16.msra.mxu0 %v2490
    %3694 = vmatpush.bf16.msra.mxu0 %v2482
    %3695 = vmatpush.bf16.msra.mxu0 %v2474
    %3696 = vmatpush.bf16.msra.mxu0 %v2466
    %3697 = vmatpush.bf16.msra.mxu0 %v2458
    %3698 = vmatmul.bf16.gmra.mxu0 %v650
    %v3699 = vpop.f32.mrf.mxu0
    %v3700 = vadd.f32 %v3687, %v3699
    %v3701 = vpop.f32.mrf.mxu0
    %3702 = vdwg.mxu0
    %3703 = vmatpush.bf16.msra.mxu0 %v2578
    %3704 = vmatpush.bf16.msra.mxu0 %v2570
    %3705 = vmatpush.bf16.msra.mxu0 %v2562
    %3706 = vmatpush.bf16.msra.mxu0 %v2554
    %3707 = vmatpush.bf16.msra.mxu0 %v2546
    %3708 = vmatpush.bf16.msra.mxu0 %v2538
    %3709 = vmatpush.bf16.msra.mxu0 %v2530
    %3710 = vmatpush.bf16.msra.mxu0 %v2522
    %3711 = vmatmul.bf16.gmra.mxu0 %v651
    %v3712 = vpop.f32.mrf.mxu0
    %v3713 = vadd.f32 %v3700, %v3712
    %v3714 = vpop.f32.mrf.mxu0
    %3715 = vdwg.mxu0
    %3716 = vmatpush.bf16.msra.mxu0 %v2642
    %3717 = vmatpush.bf16.msra.mxu0 %v2634
    %3718 = vmatpush.bf16.msra.mxu0 %v2626
    %3719 = vmatpush.bf16.msra.mxu0 %v2618
    %3720 = vmatpush.bf16.msra.mxu0 %v2610
    %3721 = vmatpush.bf16.msra.mxu0 %v2602
    %3722 = vmatpush.bf16.msra.mxu0 %v2594
    %3723 = vmatpush.bf16.msra.mxu0 %v2586
    %3724 = vmatmul.bf16.gmra.mxu0 %v652
    %v3725 = vpop.f32.mrf.mxu0
    %v3726 = vadd.f32 %v3713, %v3725
    %v3727 = vpop.f32.mrf.mxu0
    %3728 = vdwg.mxu0
    %3729 = vmatpush.bf16.msra.mxu0 %v2706
    %3730 = vmatpush.bf16.msra.mxu0 %v2698
    %3731 = vmatpush.bf16.msra.mxu0 %v2690
    %3732 = vmatpush.bf16.msra.mxu0 %v2682
    %3733 = vmatpush.bf16.msra.mxu0 %v2674
    %3734 = vmatpush.bf16.msra.mxu0 %v2666
    %3735 = vmatpush.bf16.msra.mxu0 %v2658
    %3736 = vmatpush.bf16.msra.mxu0 %v2650
    %3737 = vmatmul.bf16.gmra.mxu0 %v653
    %v3738 = vpop.f32.mrf.mxu0
    %v3739 = vadd.f32 %v3726, %v3738
    %v3740 = vpop.f32.mrf.mxu0
    %3741 = vdwg.mxu0
    %3742 = vmatpush.bf16.msra.mxu0 %v2259
    %3743 = vmatpush.bf16.msra.mxu0 %v2251
    %3744 = vmatpush.bf16.msra.mxu0 %v2243
    %3745 = vmatpush.bf16.msra.mxu0 %v2235
    %3746 = vmatpush.bf16.msra.mxu0 %v2227
    %3747 = vmatpush.bf16.msra.mxu0 %v2219
    %3748 = vmatpush.bf16.msra.mxu0 %v2211
    %3749 = vmatpush.bf16.msra.mxu0 %v2203
    %3750 = vmatmul.bf16.gmra.mxu0 %v646
    %v3751 = vpop.f32.mrf.mxu0
    %v3752 = vadd.f32 0.0, %v3751
    %v3753 = vpop.f32.mrf.mxu0
    %3754 = vdwg.mxu0
    %3755 = vmatpush.bf16.msra.mxu0 %v2323
    %3756 = vmatpush.bf16.msra.mxu0 %v2315
    %3757 = vmatpush.bf16.msra.mxu0 %v2307
    %3758 = vmatpush.bf16.msra.mxu0 %v2299
    %3759 = vmatpush.bf16.msra.mxu0 %v2291
    %3760 = vmatpush.bf16.msra.mxu0 %v2283
    %3761 = vmatpush.bf16.msra.mxu0 %v2275
    %3762 = vmatpush.bf16.msra.mxu0 %v2267
    %3763 = vmatmul.bf16.gmra.mxu0 %v647
    %v3764 = vpop.f32.mrf.mxu0
    %v3765 = vadd.f32 %v3752, %v3764
    %v3766 = vpop.f32.mrf.mxu0
    %3767 = vdwg.mxu0
    %3768 = vmatpush.bf16.msra.mxu0 %v2387
    %3769 = vmatpush.bf16.msra.mxu0 %v2379
    %3770 = vmatpush.bf16.msra.mxu0 %v2371
    %3771 = vmatpush.bf16.msra.mxu0 %v2363
    %3772 = vmatpush.bf16.msra.mxu0 %v2355
    %3773 = vmatpush.bf16.msra.mxu0 %v2347
    %3774 = vmatpush.bf16.msra.mxu0 %v2339
    %3775 = vmatpush.bf16.msra.mxu0 %v2331
    %3776 = vmatmul.bf16.gmra.mxu0 %v648
    %v3777 = vpop.f32.mrf.mxu0
    %v3778 = vadd.f32 %v3765, %v3777
    %v3779 = vpop.f32.mrf.mxu0
    %3780 = vdwg.mxu0
    %3781 = vmatpush.bf16.msra.mxu0 %v2451
    %3782 = vmatpush.bf16.msra.mxu0 %v2443
    %3783 = vmatpush.bf16.msra.mxu0 %v2435
    %3784 = vmatpush.bf16.msra.mxu0 %v2427
    %3785 = vmatpush.bf16.msra.mxu0 %v2419
    %3786 = vmatpush.bf16.msra.mxu0 %v2411
    %3787 = vmatpush.bf16.msra.mxu0 %v2403
    %3788 = vmatpush.bf16.msra.mxu0 %v2395
    %3789 = vmatmul.bf16.gmra.mxu0 %v649
    %v3790 = vpop.f32.mrf.mxu0
    %v3791 = vadd.f32 %v3778, %v3790
    %v3792 = vpop.f32.mrf.mxu0
    %3793 = vdwg.mxu0
    %3794 = vmatpush.bf16.msra.mxu0 %v2515
    %3795 = vmatpush.bf16.msra.mxu0 %v2507
    %3796 = vmatpush.bf16.msra.mxu0 %v2499
    %3797 = vmatpush.bf16.msra.mxu0 %v2491
    %3798 = vmatpush.bf16.msra.mxu0 %v2483
    %3799 = vmatpush.bf16.msra.mxu0 %v2475
    %3800 = vmatpush.bf16.msra.mxu0 %v2467
    %3801 = vmatpush.bf16.msra.mxu0 %v2459
    %3802 = vmatmul.bf16.gmra.mxu0 %v650
    %v3803 = vpop.f32.mrf.mxu0
    %v3804 = vadd.f32 %v3791, %v3803
    %v3805 = vpop.f32.mrf.mxu0
    %3806 = vdwg.mxu0
    %3807 = vmatpush.bf16.msra.mxu0 %v2579
    %3808 = vmatpush.bf16.msra.mxu0 %v2571
    %3809 = vmatpush.bf16.msra.mxu0 %v2563
    %3810 = vmatpush.bf16.msra.mxu0 %v2555
    %3811 = vmatpush.bf16.msra.mxu0 %v2547
    %3812 = vmatpush.bf16.msra.mxu0 %v2539
    %3813 = vmatpush.bf16.msra.mxu0 %v2531
    %3814 = vmatpush.bf16.msra.mxu0 %v2523
    %3815 = vmatmul.bf16.gmra.mxu0 %v651
    %v3816 = vpop.f32.mrf.mxu0
    %v3817 = vadd.f32 %v3804, %v3816
    %v3818 = vpop.f32.mrf.mxu0
    %3819 = vdwg.mxu0
    %3820 = vmatpush.bf16.msra.mxu0 %v2643
    %3821 = vmatpush.bf16.msra.mxu0 %v2635
    %3822 = vmatpush.bf16.msra.mxu0 %v2627
    %3823 = vmatpush.bf16.msra.mxu0 %v2619
    %3824 = vmatpush.bf16.msra.mxu0 %v2611
    %3825 = vmatpush.bf16.msra.mxu0 %v2603
    %3826 = vmatpush.bf16.msra.mxu0 %v2595
    %3827 = vmatpush.bf16.msra.mxu0 %v2587
    %3828 = vmatmul.bf16.gmra.mxu0 %v652
    %v3829 = vpop.f32.mrf.mxu0
    %v3830 = vadd.f32 %v3817, %v3829
    %v3831 = vpop.f32.mrf.mxu0
    %3832 = vdwg.mxu0
    %3833 = vmatpush.bf16.msra.mxu0 %v2707
    %3834 = vmatpush.bf16.msra.mxu0 %v2699
    %3835 = vmatpush.bf16.msra.mxu0 %v2691
    %3836 = vmatpush.bf16.msra.mxu0 %v2683
    %3837 = vmatpush.bf16.msra.mxu0 %v2675
    %3838 = vmatpush.bf16.msra.mxu0 %v2667
    %3839 = vmatpush.bf16.msra.mxu0 %v2659
    %3840 = vmatpush.bf16.msra.mxu0 %v2651
    %3841 = vmatmul.bf16.gmra.mxu0 %v653
    %v3842 = vpop.f32.mrf.mxu0
    %v3843 = vadd.f32 %v3830, %v3842
    %v3844 = vpop.f32.mrf.mxu0
    %3845 = vdwg.mxu0
    %3846 = vmatpush.bf16.msra.mxu0 %v2260
    %3847 = vmatpush.bf16.msra.mxu0 %v2252
    %3848 = vmatpush.bf16.msra.mxu0 %v2244
    %3849 = vmatpush.bf16.msra.mxu0 %v2236
    %3850 = vmatpush.bf16.msra.mxu0 %v2228
    %3851 = vmatpush.bf16.msra.mxu0 %v2220
    %3852 = vmatpush.bf16.msra.mxu0 %v2212
    %3853 = vmatpush.bf16.msra.mxu0 %v2204
    %3854 = vmatmul.bf16.gmra.mxu0 %v646
    %v3855 = vpop.f32.mrf.mxu0
    %v3856 = vadd.f32 0.0, %v3855
    %v3857 = vpop.f32.mrf.mxu0
    %3858 = vdwg.mxu0
    %3859 = vmatpush.bf16.msra.mxu0 %v2324
    %3860 = vmatpush.bf16.msra.mxu0 %v2316
    %3861 = vmatpush.bf16.msra.mxu0 %v2308
    %3862 = vmatpush.bf16.msra.mxu0 %v2300
    %3863 = vmatpush.bf16.msra.mxu0 %v2292
    %3864 = vmatpush.bf16.msra.mxu0 %v2284
    %3865 = vmatpush.bf16.msra.mxu0 %v2276
    %3866 = vmatpush.bf16.msra.mxu0 %v2268
    %3867 = vmatmul.bf16.gmra.mxu0 %v647
    %v3868 = vpop.f32.mrf.mxu0
    %v3869 = vadd.f32 %v3856, %v3868
    %v3870 = vpop.f32.mrf.mxu0
    %3871 = vdwg.mxu0
    %3872 = vmatpush.bf16.msra.mxu0 %v2388
    %3873 = vmatpush.bf16.msra.mxu0 %v2380
    %3874 = vmatpush.bf16.msra.mxu0 %v2372
    %3875 = vmatpush.bf16.msra.mxu0 %v2364
    %3876 = vmatpush.bf16.msra.mxu0 %v2356
    %3877 = vmatpush.bf16.msra.mxu0 %v2348
    %3878 = vmatpush.bf16.msra.mxu0 %v2340
    %3879 = vmatpush.bf16.msra.mxu0 %v2332
    %3880 = vmatmul.bf16.gmra.mxu0 %v648
    %v3881 = vpop.f32.mrf.mxu0
    %v3882 = vadd.f32 %v3869, %v3881
    %v3883 = vpop.f32.mrf.mxu0
    %3884 = vdwg.mxu0
    %3885 = vmatpush.bf16.msra.mxu0 %v2452
    %3886 = vmatpush.bf16.msra.mxu0 %v2444
    %3887 = vmatpush.bf16.msra.mxu0 %v2436
    %3888 = vmatpush.bf16.msra.mxu0 %v2428
    %3889 = vmatpush.bf16.msra.mxu0 %v2420
    %3890 = vmatpush.bf16.msra.mxu0 %v2412
    %3891 = vmatpush.bf16.msra.mxu0 %v2404
    %3892 = vmatpush.bf16.msra.mxu0 %v2396
    %3893 = vmatmul.bf16.gmra.mxu0 %v649
    %v3894 = vpop.f32.mrf.mxu0
    %v3895 = vadd.f32 %v3882, %v3894
    %v3896 = vpop.f32.mrf.mxu0
    %3897 = vdwg.mxu0
    %3898 = vmatpush.bf16.msra.mxu0 %v2516
    %3899 = vmatpush.bf16.msra.mxu0 %v2508
    %3900 = vmatpush.bf16.msra.mxu0 %v2500
    %3901 = vmatpush.bf16.msra.mxu0 %v2492
    %3902 = vmatpush.bf16.msra.mxu0 %v2484
    %3903 = vmatpush.bf16.msra.mxu0 %v2476
    %3904 = vmatpush.bf16.msra.mxu0 %v2468
    %3905 = vmatpush.bf16.msra.mxu0 %v2460
    %3906 = vmatmul.bf16.gmra.mxu0 %v650
    %v3907 = vpop.f32.mrf.mxu0
    %v3908 = vadd.f32 %v3895, %v3907
    %v3909 = vpop.f32.mrf.mxu0
    %3910 = vdwg.mxu0
    %3911 = vmatpush.bf16.msra.mxu0 %v2580
    %3912 = vmatpush.bf16.msra.mxu0 %v2572
    %3913 = vmatpush.bf16.msra.mxu0 %v2564
    %3914 = vmatpush.bf16.msra.mxu0 %v2556
    %3915 = vmatpush.bf16.msra.mxu0 %v2548
    %3916 = vmatpush.bf16.msra.mxu0 %v2540
    %3917 = vmatpush.bf16.msra.mxu0 %v2532
    %3918 = vmatpush.bf16.msra.mxu0 %v2524
    %3919 = vmatmul.bf16.gmra.mxu0 %v651
    %v3920 = vpop.f32.mrf.mxu0
    %v3921 = vadd.f32 %v3908, %v3920
    %v3922 = vpop.f32.mrf.mxu0
    %3923 = vdwg.mxu0
    %3924 = vmatpush.bf16.msra.mxu0 %v2644
    %3925 = vmatpush.bf16.msra.mxu0 %v2636
    %3926 = vmatpush.bf16.msra.mxu0 %v2628
    %3927 = vmatpush.bf16.msra.mxu0 %v2620
    %3928 = vmatpush.bf16.msra.mxu0 %v2612
    %3929 = vmatpush.bf16.msra.mxu0 %v2604
    %3930 = vmatpush.bf16.msra.mxu0 %v2596
    %3931 = vmatpush.bf16.msra.mxu0 %v2588
    %3932 = vmatmul.bf16.gmra.mxu0 %v652
    %v3933 = vpop.f32.mrf.mxu0
    %v3934 = vadd.f32 %v3921, %v3933
    %v3935 = vpop.f32.mrf.mxu0
    %3936 = vdwg.mxu0
    %3937 = vmatpush.bf16.msra.mxu0 %v2708
    %3938 = vmatpush.bf16.msra.mxu0 %v2700
    %3939 = vmatpush.bf16.msra.mxu0 %v2692
    %3940 = vmatpush.bf16.msra.mxu0 %v2684
    %3941 = vmatpush.bf16.msra.mxu0 %v2676
    %3942 = vmatpush.bf16.msra.mxu0 %v2668
    %3943 = vmatpush.bf16.msra.mxu0 %v2660
    %3944 = vmatpush.bf16.msra.mxu0 %v2652
    %3945 = vmatmul.bf16.gmra.mxu0 %v653
    %v3946 = vpop.f32.mrf.mxu0
    %v3947 = vadd.f32 %v3934, %v3946
    %v3948 = vpop.f32.mrf.mxu0
    %3949 = vdwg.mxu0
    %3950 = vmatpush.bf16.msra.mxu0 %v2261
    %3951 = vmatpush.bf16.msra.mxu0 %v2253
    %3952 = vmatpush.bf16.msra.mxu0 %v2245
    %3953 = vmatpush.bf16.msra.mxu0 %v2237
    %3954 = vmatpush.bf16.msra.mxu0 %v2229
    %3955 = vmatpush.bf16.msra.mxu0 %v2221
    %3956 = vmatpush.bf16.msra.mxu0 %v2213
    %3957 = vmatpush.bf16.msra.mxu0 %v2205
    %3958 = vmatmul.bf16.gmra.mxu0 %v646
    %v3959 = vpop.f32.mrf.mxu0
    %v3960 = vadd.f32 0.0, %v3959
    %v3961 = vpop.f32.mrf.mxu0
    %3962 = vdwg.mxu0
    %3963 = vmatpush.bf16.msra.mxu0 %v2325
    %3964 = vmatpush.bf16.msra.mxu0 %v2317
    %3965 = vmatpush.bf16.msra.mxu0 %v2309
    %3966 = vmatpush.bf16.msra.mxu0 %v2301
    %3967 = vmatpush.bf16.msra.mxu0 %v2293
    %3968 = vmatpush.bf16.msra.mxu0 %v2285
    %3969 = vmatpush.bf16.msra.mxu0 %v2277
    %3970 = vmatpush.bf16.msra.mxu0 %v2269
    %3971 = vmatmul.bf16.gmra.mxu0 %v647
    %v3972 = vpop.f32.mrf.mxu0
    %v3973 = vadd.f32 %v3960, %v3972
    %v3974 = vpop.f32.mrf.mxu0
    %3975 = vdwg.mxu0
    %3976 = vmatpush.bf16.msra.mxu0 %v2389
    %3977 = vmatpush.bf16.msra.mxu0 %v2381
    %3978 = vmatpush.bf16.msra.mxu0 %v2373
    %3979 = vmatpush.bf16.msra.mxu0 %v2365
    %3980 = vmatpush.bf16.msra.mxu0 %v2357
    %3981 = vmatpush.bf16.msra.mxu0 %v2349
    %3982 = vmatpush.bf16.msra.mxu0 %v2341
    %3983 = vmatpush.bf16.msra.mxu0 %v2333
    %3984 = vmatmul.bf16.gmra.mxu0 %v648
    %v3985 = vpop.f32.mrf.mxu0
    %v3986 = vadd.f32 %v3973, %v3985
    %v3987 = vpop.f32.mrf.mxu0
    %3988 = vdwg.mxu0
    %3989 = vmatpush.bf16.msra.mxu0 %v2453
    %3990 = vmatpush.bf16.msra.mxu0 %v2445
    %3991 = vmatpush.bf16.msra.mxu0 %v2437
    %3992 = vmatpush.bf16.msra.mxu0 %v2429
    %3993 = vmatpush.bf16.msra.mxu0 %v2421
    %3994 = vmatpush.bf16.msra.mxu0 %v2413
    %3995 = vmatpush.bf16.msra.mxu0 %v2405
    %3996 = vmatpush.bf16.msra.mxu0 %v2397
    %3997 = vmatmul.bf16.gmra.mxu0 %v649
    %v3998 = vpop.f32.mrf.mxu0
    %v3999 = vadd.f32 %v3986, %v3998
    %v4000 = vpop.f32.mrf.mxu0
    %4001 = vdwg.mxu0
    %4002 = vmatpush.bf16.msra.mxu0 %v2517
    %4003 = vmatpush.bf16.msra.mxu0 %v2509
    %4004 = vmatpush.bf16.msra.mxu0 %v2501
    %4005 = vmatpush.bf16.msra.mxu0 %v2493
    %4006 = vmatpush.bf16.msra.mxu0 %v2485
    %4007 = vmatpush.bf16.msra.mxu0 %v2477
    %4008 = vmatpush.bf16.msra.mxu0 %v2469
    %4009 = vmatpush.bf16.msra.mxu0 %v2461
    %4010 = vmatmul.bf16.gmra.mxu0 %v650
    %v4011 = vpop.f32.mrf.mxu0
    %v4012 = vadd.f32 %v3999, %v4011
    %v4013 = vpop.f32.mrf.mxu0
    %4014 = vdwg.mxu0
    %4015 = vmatpush.bf16.msra.mxu0 %v2581
    %4016 = vmatpush.bf16.msra.mxu0 %v2573
    %4017 = vmatpush.bf16.msra.mxu0 %v2565
    %4018 = vmatpush.bf16.msra.mxu0 %v2557
    %4019 = vmatpush.bf16.msra.mxu0 %v2549
    %4020 = vmatpush.bf16.msra.mxu0 %v2541
    %4021 = vmatpush.bf16.msra.mxu0 %v2533
    %4022 = vmatpush.bf16.msra.mxu0 %v2525
    %4023 = vmatmul.bf16.gmra.mxu0 %v651
    %v4024 = vpop.f32.mrf.mxu0
    %v4025 = vadd.f32 %v4012, %v4024
    %v4026 = vpop.f32.mrf.mxu0
    %4027 = vdwg.mxu0
    %4028 = vmatpush.bf16.msra.mxu0 %v2645
    %4029 = vmatpush.bf16.msra.mxu0 %v2637
    %4030 = vmatpush.bf16.msra.mxu0 %v2629
    %4031 = vmatpush.bf16.msra.mxu0 %v2621
    %4032 = vmatpush.bf16.msra.mxu0 %v2613
    %4033 = vmatpush.bf16.msra.mxu0 %v2605
    %4034 = vmatpush.bf16.msra.mxu0 %v2597
    %4035 = vmatpush.bf16.msra.mxu0 %v2589
    %4036 = vmatmul.bf16.gmra.mxu0 %v652
    %v4037 = vpop.f32.mrf.mxu0
    %v4038 = vadd.f32 %v4025, %v4037
    %v4039 = vpop.f32.mrf.mxu0
    %4040 = vdwg.mxu0
    %4041 = vmatpush.bf16.msra.mxu0 %v2709
    %4042 = vmatpush.bf16.msra.mxu0 %v2701
    %4043 = vmatpush.bf16.msra.mxu0 %v2693
    %4044 = vmatpush.bf16.msra.mxu0 %v2685
    %4045 = vmatpush.bf16.msra.mxu0 %v2677
    %4046 = vmatpush.bf16.msra.mxu0 %v2669
    %4047 = vmatpush.bf16.msra.mxu0 %v2661
    %4048 = vmatpush.bf16.msra.mxu0 %v2653
    %4049 = vmatmul.bf16.gmra.mxu0 %v653
    %v4050 = vpop.f32.mrf.mxu0
    %v4051 = vadd.f32 %v4038, %v4050
    %v4052 = vpop.f32.mrf.mxu0
    %4053 = vdwg.mxu0
    %vm4054 = vcmp.ge.f32.partialorder %v3323, 0.0
    %vm4055 = vcmp.ge.f32.partialorder %v3427, 0.0
    %vm4056 = vcmp.ge.f32.partialorder %v3531, 0.0
    %vm4057 = vcmp.ge.f32.partialorder %v3635, 0.0
    %vm4058 = vcmp.ge.f32.partialorder %v3739, 0.0
    %vm4059 = vcmp.ge.f32.partialorder %v3843, 0.0
    %vm4060 = vcmp.ge.f32.partialorder %v3947, 0.0
    %vm4061 = vcmp.ge.f32.partialorder %v4051, 0.0
    %v4062 = vmul.f32 %v3323, 0.2
    %v4063 = vmul.f32 %v3427, 0.2
    %v4064 = vmul.f32 %v3531, 0.2
    %v4065 = vmul.f32 %v3635, 0.2
    %v4066 = vmul.f32 %v3739, 0.2
    %v4067 = vmul.f32 %v3843, 0.2
    %v4068 = vmul.f32 %v3947, 0.2
    %v4069 = vmul.f32 %v4051, 0.2
    %v4070 = vsel %vm4054, %v3323, %v4062
    %v4071 = vsel %vm4055, %v3427, %v4063
    %v4072 = vsel %vm4056, %v3531, %v4064
    %v4073 = vsel %vm4057, %v3635, %v4065
    %v4074 = vsel %vm4058, %v3739, %v4066
    %v4075 = vsel %vm4059, %v3843, %v4067
    %v4076 = vsel %vm4060, %v3947, %v4068
    %v4077 = vsel %vm4061, %v4051, %v4069
    %v4078 = vpack.c.bf16 %v4070, %v4070
    %v4079 = vpack.c.bf16 %v4071, %v4071
    %v4080 = vpack.c.bf16 %v4072, %v4072
    %v4081 = vpack.c.bf16 %v4073, %v4073
    %v4082 = vpack.c.bf16 %v4074, %v4074
    %v4083 = vpack.c.bf16 %v4075, %v4075
    %v4084 = vpack.c.bf16 %v4076, %v4076
    %v4085 = vpack.c.bf16 %v4077, %v4077
    %v4086 = vld [vmem:[#allocation4] sm:$0xff]
    %v4087 = vld [vmem:[#allocation4 + $0x8] sm:$0xff]
    %v4088 = vld [vmem:[#allocation4 + $0x10] sm:$0xff]
    %v4089 = vld [vmem:[#allocation4 + $0x18] sm:$0xff]
    %v4090 = vld [vmem:[#allocation4 + $0x20] sm:$0xff]
    %v4091 = vld [vmem:[#allocation4 + $0x28] sm:$0xff]
    %v4092 = vld [vmem:[#allocation4 + $0x30] sm:$0xff]
    %v4093 = vld [vmem:[#allocation4 + $0x38] sm:$0xff]
    %v4094 = vld [vmem:[#allocation4 + $0x40] sm:$0xff]
    %v4095 = vld [vmem:[#allocation4 + $0x48] sm:$0xff]
    %v4096 = vld [vmem:[#allocation4 + $0x50] sm:$0xff]
    %v4097 = vld [vmem:[#allocation4 + $0x58] sm:$0xff]
    %v4098 = vld [vmem:[#allocation4 + $0x60] sm:$0xff]
    %v4099 = vld [vmem:[#allocation4 + $0x68] sm:$0xff]
    %v4100 = vld [vmem:[#allocation4 + $0x70] sm:$0xff]
    %v4101 = vld [vmem:[#allocation4 + $0x78] sm:$0xff]
    %v4102 = vld [vmem:[#allocation4 + $0x80] sm:$0xff]
    %v4103 = vld [vmem:[#allocation4 + $0x88] sm:$0xff]
    %v4104 = vld [vmem:[#allocation4 + $0x90] sm:$0xff]
    %v4105 = vld [vmem:[#allocation4 + $0x98] sm:$0xff]
    %v4106 = vld [vmem:[#allocation4 + $0xa0] sm:$0xff]
    %v4107 = vld [vmem:[#allocation4 + $0xa8] sm:$0xff]
    %v4108 = vld [vmem:[#allocation4 + $0xb0] sm:$0xff]
    %v4109 = vld [vmem:[#allocation4 + $0xb8] sm:$0xff]
    %v4110 = vld [vmem:[#allocation4 + $0xc0] sm:$0xff]
    %v4111 = vld [vmem:[#allocation4 + $0xc8] sm:$0xff]
    %v4112 = vld [vmem:[#allocation4 + $0xd0] sm:$0xff]
    %v4113 = vld [vmem:[#allocation4 + $0xd8] sm:$0xff]
    %v4114 = vld [vmem:[#allocation4 + $0xe0] sm:$0xff]
    %v4115 = vld [vmem:[#allocation4 + $0xe8] sm:$0xff]
    %v4116 = vld [vmem:[#allocation4 + $0xf0] sm:$0xff]
    %v4117 = vld [vmem:[#allocation4 + $0xf8] sm:$0xff]
    %v4118 = vld [vmem:[#allocation4 + $0x100] sm:$0xff]
    %v4119 = vld [vmem:[#allocation4 + $0x108] sm:$0xff]
    %v4120 = vld [vmem:[#allocation4 + $0x110] sm:$0xff]
    %v4121 = vld [vmem:[#allocation4 + $0x118] sm:$0xff]
    %v4122 = vld [vmem:[#allocation4 + $0x120] sm:$0xff]
    %v4123 = vld [vmem:[#allocation4 + $0x128] sm:$0xff]
    %v4124 = vld [vmem:[#allocation4 + $0x130] sm:$0xff]
    %v4125 = vld [vmem:[#allocation4 + $0x138] sm:$0xff]
    %v4126 = vld [vmem:[#allocation4 + $0x140] sm:$0xff]
    %v4127 = vld [vmem:[#allocation4 + $0x148] sm:$0xff]
    %v4128 = vld [vmem:[#allocation4 + $0x150] sm:$0xff]
    %v4129 = vld [vmem:[#allocation4 + $0x158] sm:$0xff]
    %v4130 = vld [vmem:[#allocation4 + $0x160] sm:$0xff]
    %v4131 = vld [vmem:[#allocation4 + $0x168] sm:$0xff]
    %v4132 = vld [vmem:[#allocation4 + $0x170] sm:$0xff]
    %v4133 = vld [vmem:[#allocation4 + $0x178] sm:$0xff]
    %v4134 = vld [vmem:[#allocation4 + $0x180] sm:$0xff]
    %v4135 = vld [vmem:[#allocation4 + $0x188] sm:$0xff]
    %v4136 = vld [vmem:[#allocation4 + $0x190] sm:$0xff]
    %v4137 = vld [vmem:[#allocation4 + $0x198] sm:$0xff]
    %v4138 = vld [vmem:[#allocation4 + $0x1a0] sm:$0xff]
    %v4139 = vld [vmem:[#allocation4 + $0x1a8] sm:$0xff]
    %v4140 = vld [vmem:[#allocation4 + $0x1b0] sm:$0xff]
    %v4141 = vld [vmem:[#allocation4 + $0x1b8] sm:$0xff]
    %v4142 = vld [vmem:[#allocation4 + $0x1c0] sm:$0xff]
    %v4143 = vld [vmem:[#allocation4 + $0x1c8] sm:$0xff]
    %v4144 = vld [vmem:[#allocation4 + $0x1d0] sm:$0xff]
    %v4145 = vld [vmem:[#allocation4 + $0x1d8] sm:$0xff]
    %v4146 = vld [vmem:[#allocation4 + $0x1e0] sm:$0xff]
    %v4147 = vld [vmem:[#allocation4 + $0x1e8] sm:$0xff]
    %v4148 = vld [vmem:[#allocation4 + $0x1f0] sm:$0xff]
    %v4149 = vld [vmem:[#allocation4 + $0x1f8] sm:$0xff]
    %v4150 = vld [vmem:[#allocation4 + $0x200] sm:$0xff]
    %v4151 = vld [vmem:[#allocation4 + $0x208] sm:$0xff]
    %v4152 = vld [vmem:[#allocation4 + $0x210] sm:$0xff]
    %v4153 = vld [vmem:[#allocation4 + $0x218] sm:$0xff]
    %v4154 = vld [vmem:[#allocation4 + $0x220] sm:$0xff]
    %v4155 = vld [vmem:[#allocation4 + $0x228] sm:$0xff]
    %v4156 = vld [vmem:[#allocation4 + $0x230] sm:$0xff]
    %v4157 = vld [vmem:[#allocation4 + $0x238] sm:$0xff]
    %v4158 = vld [vmem:[#allocation4 + $0x240] sm:$0xff]
    %v4159 = vld [vmem:[#allocation4 + $0x248] sm:$0xff]
    %v4160 = vld [vmem:[#allocation4 + $0x250] sm:$0xff]
    %v4161 = vld [vmem:[#allocation4 + $0x258] sm:$0xff]
    %v4162 = vld [vmem:[#allocation4 + $0x260] sm:$0xff]
    %v4163 = vld [vmem:[#allocation4 + $0x268] sm:$0xff]
    %v4164 = vld [vmem:[#allocation4 + $0x270] sm:$0xff]
    %v4165 = vld [vmem:[#allocation4 + $0x278] sm:$0xff]
    %v4166 = vld [vmem:[#allocation4 + $0x280] sm:$0xff]
    %v4167 = vld [vmem:[#allocation4 + $0x288] sm:$0xff]
    %v4168 = vld [vmem:[#allocation4 + $0x290] sm:$0xff]
    %v4169 = vld [vmem:[#allocation4 + $0x298] sm:$0xff]
    %v4170 = vld [vmem:[#allocation4 + $0x2a0] sm:$0xff]
    %v4171 = vld [vmem:[#allocation4 + $0x2a8] sm:$0xff]
    %v4172 = vld [vmem:[#allocation4 + $0x2b0] sm:$0xff]
    %v4173 = vld [vmem:[#allocation4 + $0x2b8] sm:$0xff]
    %v4174 = vld [vmem:[#allocation4 + $0x2c0] sm:$0xff]
    %v4175 = vld [vmem:[#allocation4 + $0x2c8] sm:$0xff]
    %v4176 = vld [vmem:[#allocation4 + $0x2d0] sm:$0xff]
    %v4177 = vld [vmem:[#allocation4 + $0x2d8] sm:$0xff]
    %v4178 = vld [vmem:[#allocation4 + $0x2e0] sm:$0xff]
    %v4179 = vld [vmem:[#allocation4 + $0x2e8] sm:$0xff]
    %v4180 = vld [vmem:[#allocation4 + $0x2f0] sm:$0xff]
    %v4181 = vld [vmem:[#allocation4 + $0x2f8] sm:$0xff]
    %v4182 = vld [vmem:[#allocation4 + $0x300] sm:$0xff]
    %v4183 = vld [vmem:[#allocation4 + $0x308] sm:$0xff]
    %v4184 = vld [vmem:[#allocation4 + $0x310] sm:$0xff]
    %v4185 = vld [vmem:[#allocation4 + $0x318] sm:$0xff]
    %v4186 = vld [vmem:[#allocation4 + $0x320] sm:$0xff]
    %v4187 = vld [vmem:[#allocation4 + $0x328] sm:$0xff]
    %v4188 = vld [vmem:[#allocation4 + $0x330] sm:$0xff]
    %v4189 = vld [vmem:[#allocation4 + $0x338] sm:$0xff]
    %v4190 = vld [vmem:[#allocation4 + $0x340] sm:$0xff]
    %v4191 = vld [vmem:[#allocation4 + $0x348] sm:$0xff]
    %v4192 = vld [vmem:[#allocation4 + $0x350] sm:$0xff]
    %v4193 = vld [vmem:[#allocation4 + $0x358] sm:$0xff]
    %v4194 = vld [vmem:[#allocation4 + $0x360] sm:$0xff]
    %v4195 = vld [vmem:[#allocation4 + $0x368] sm:$0xff]
    %v4196 = vld [vmem:[#allocation4 + $0x370] sm:$0xff]
    %v4197 = vld [vmem:[#allocation4 + $0x378] sm:$0xff]
    %v4198 = vld [vmem:[#allocation4 + $0x380] sm:$0xff]
    %v4199 = vld [vmem:[#allocation4 + $0x388] sm:$0xff]
    %v4200 = vld [vmem:[#allocation4 + $0x390] sm:$0xff]
    %v4201 = vld [vmem:[#allocation4 + $0x398] sm:$0xff]
    %v4202 = vld [vmem:[#allocation4 + $0x3a0] sm:$0xff]
    %v4203 = vld [vmem:[#allocation4 + $0x3a8] sm:$0xff]
    %v4204 = vld [vmem:[#allocation4 + $0x3b0] sm:$0xff]
    %v4205 = vld [vmem:[#allocation4 + $0x3b8] sm:$0xff]
    %v4206 = vld [vmem:[#allocation4 + $0x3c0] sm:$0xff]
    %v4207 = vld [vmem:[#allocation4 + $0x3c8] sm:$0xff]
    %v4208 = vld [vmem:[#allocation4 + $0x3d0] sm:$0xff]
    %v4209 = vld [vmem:[#allocation4 + $0x3d8] sm:$0xff]
    %v4210 = vld [vmem:[#allocation4 + $0x3e0] sm:$0xff]
    %v4211 = vld [vmem:[#allocation4 + $0x3e8] sm:$0xff]
    %v4212 = vld [vmem:[#allocation4 + $0x3f0] sm:$0xff]
    %v4213 = vld [vmem:[#allocation4 + $0x3f8] sm:$0xff]
    %v4214 = vld [vmem:[#allocation4 + $0x400] sm:$0xff]
    %v4215 = vld [vmem:[#allocation4 + $0x408] sm:$0xff]
    %v4216 = vld [vmem:[#allocation4 + $0x410] sm:$0xff]
    %v4217 = vld [vmem:[#allocation4 + $0x418] sm:$0xff]
    %v4218 = vld [vmem:[#allocation4 + $0x420] sm:$0xff]
    %v4219 = vld [vmem:[#allocation4 + $0x428] sm:$0xff]
    %v4220 = vld [vmem:[#allocation4 + $0x430] sm:$0xff]
    %v4221 = vld [vmem:[#allocation4 + $0x438] sm:$0xff]
    %v4222 = vld [vmem:[#allocation4 + $0x440] sm:$0xff]
    %v4223 = vld [vmem:[#allocation4 + $0x448] sm:$0xff]
    %v4224 = vld [vmem:[#allocation4 + $0x450] sm:$0xff]
    %v4225 = vld [vmem:[#allocation4 + $0x458] sm:$0xff]
    %v4226 = vld [vmem:[#allocation4 + $0x460] sm:$0xff]
    %v4227 = vld [vmem:[#allocation4 + $0x468] sm:$0xff]
    %v4228 = vld [vmem:[#allocation4 + $0x470] sm:$0xff]
    %v4229 = vld [vmem:[#allocation4 + $0x478] sm:$0xff]
    %v4230 = vld [vmem:[#allocation4 + $0x480] sm:$0xff]
    %v4231 = vld [vmem:[#allocation4 + $0x488] sm:$0xff]
    %v4232 = vld [vmem:[#allocation4 + $0x490] sm:$0xff]
    %v4233 = vld [vmem:[#allocation4 + $0x498] sm:$0xff]
    %v4234 = vld [vmem:[#allocation4 + $0x4a0] sm:$0xff]
    %v4235 = vld [vmem:[#allocation4 + $0x4a8] sm:$0xff]
    %v4236 = vld [vmem:[#allocation4 + $0x4b0] sm:$0xff]
    %v4237 = vld [vmem:[#allocation4 + $0x4b8] sm:$0xff]
    %v4238 = vld [vmem:[#allocation4 + $0x4c0] sm:$0xff]
    %v4239 = vld [vmem:[#allocation4 + $0x4c8] sm:$0xff]
    %v4240 = vld [vmem:[#allocation4 + $0x4d0] sm:$0xff]
    %v4241 = vld [vmem:[#allocation4 + $0x4d8] sm:$0xff]
    %v4242 = vld [vmem:[#allocation4 + $0x4e0] sm:$0xff]
    %v4243 = vld [vmem:[#allocation4 + $0x4e8] sm:$0xff]
    %v4244 = vld [vmem:[#allocation4 + $0x4f0] sm:$0xff]
    %v4245 = vld [vmem:[#allocation4 + $0x4f8] sm:$0xff]
    %v4246 = vld [vmem:[#allocation4 + $0x500] sm:$0xff]
    %v4247 = vld [vmem:[#allocation4 + $0x508] sm:$0xff]
    %v4248 = vld [vmem:[#allocation4 + $0x510] sm:$0xff]
    %v4249 = vld [vmem:[#allocation4 + $0x518] sm:$0xff]
    %v4250 = vld [vmem:[#allocation4 + $0x520] sm:$0xff]
    %v4251 = vld [vmem:[#allocation4 + $0x528] sm:$0xff]
    %v4252 = vld [vmem:[#allocation4 + $0x530] sm:$0xff]
    %v4253 = vld [vmem:[#allocation4 + $0x538] sm:$0xff]
    %v4254 = vld [vmem:[#allocation4 + $0x540] sm:$0xff]
    %v4255 = vld [vmem:[#allocation4 + $0x548] sm:$0xff]
    %v4256 = vld [vmem:[#allocation4 + $0x550] sm:$0xff]
    %v4257 = vld [vmem:[#allocation4 + $0x558] sm:$0xff]
    %v4258 = vld [vmem:[#allocation4 + $0x560] sm:$0xff]
    %v4259 = vld [vmem:[#allocation4 + $0x568] sm:$0xff]
    %v4260 = vld [vmem:[#allocation4 + $0x570] sm:$0xff]
    %v4261 = vld [vmem:[#allocation4 + $0x578] sm:$0xff]
    %v4262 = vld [vmem:[#allocation4 + $0x580] sm:$0xff]
    %v4263 = vld [vmem:[#allocation4 + $0x588] sm:$0xff]
    %v4264 = vld [vmem:[#allocation4 + $0x590] sm:$0xff]
    %v4265 = vld [vmem:[#allocation4 + $0x598] sm:$0xff]
    %v4266 = vld [vmem:[#allocation4 + $0x5a0] sm:$0xff]
    %v4267 = vld [vmem:[#allocation4 + $0x5a8] sm:$0xff]
    %v4268 = vld [vmem:[#allocation4 + $0x5b0] sm:$0xff]
    %v4269 = vld [vmem:[#allocation4 + $0x5b8] sm:$0xff]
    %v4270 = vld [vmem:[#allocation4 + $0x5c0] sm:$0xff]
    %v4271 = vld [vmem:[#allocation4 + $0x5c8] sm:$0xff]
    %v4272 = vld [vmem:[#allocation4 + $0x5d0] sm:$0xff]
    %v4273 = vld [vmem:[#allocation4 + $0x5d8] sm:$0xff]
    %v4274 = vld [vmem:[#allocation4 + $0x5e0] sm:$0xff]
    %v4275 = vld [vmem:[#allocation4 + $0x5e8] sm:$0xff]
    %v4276 = vld [vmem:[#allocation4 + $0x5f0] sm:$0xff]
    %v4277 = vld [vmem:[#allocation4 + $0x5f8] sm:$0xff]
    %v4278 = vld [vmem:[#allocation4 + $0x600] sm:$0xff]
    %v4279 = vld [vmem:[#allocation4 + $0x608] sm:$0xff]
    %v4280 = vld [vmem:[#allocation4 + $0x610] sm:$0xff]
    %v4281 = vld [vmem:[#allocation4 + $0x618] sm:$0xff]
    %v4282 = vld [vmem:[#allocation4 + $0x620] sm:$0xff]
    %v4283 = vld [vmem:[#allocation4 + $0x628] sm:$0xff]
    %v4284 = vld [vmem:[#allocation4 + $0x630] sm:$0xff]
    %v4285 = vld [vmem:[#allocation4 + $0x638] sm:$0xff]
    %v4286 = vld [vmem:[#allocation4 + $0x640] sm:$0xff]
    %v4287 = vld [vmem:[#allocation4 + $0x648] sm:$0xff]
    %v4288 = vld [vmem:[#allocation4 + $0x650] sm:$0xff]
    %v4289 = vld [vmem:[#allocation4 + $0x658] sm:$0xff]
    %v4290 = vld [vmem:[#allocation4 + $0x660] sm:$0xff]
    %v4291 = vld [vmem:[#allocation4 + $0x668] sm:$0xff]
    %v4292 = vld [vmem:[#allocation4 + $0x670] sm:$0xff]
    %v4293 = vld [vmem:[#allocation4 + $0x678] sm:$0xff]
    %v4294 = vld [vmem:[#allocation4 + $0x680] sm:$0xff]
    %v4295 = vld [vmem:[#allocation4 + $0x688] sm:$0xff]
    %v4296 = vld [vmem:[#allocation4 + $0x690] sm:$0xff]
    %v4297 = vld [vmem:[#allocation4 + $0x698] sm:$0xff]
    %v4298 = vld [vmem:[#allocation4 + $0x6a0] sm:$0xff]
    %v4299 = vld [vmem:[#allocation4 + $0x6a8] sm:$0xff]
    %v4300 = vld [vmem:[#allocation4 + $0x6b0] sm:$0xff]
    %v4301 = vld [vmem:[#allocation4 + $0x6b8] sm:$0xff]
    %v4302 = vld [vmem:[#allocation4 + $0x6c0] sm:$0xff]
    %v4303 = vld [vmem:[#allocation4 + $0x6c8] sm:$0xff]
    %v4304 = vld [vmem:[#allocation4 + $0x6d0] sm:$0xff]
    %v4305 = vld [vmem:[#allocation4 + $0x6d8] sm:$0xff]
    %v4306 = vld [vmem:[#allocation4 + $0x6e0] sm:$0xff]
    %v4307 = vld [vmem:[#allocation4 + $0x6e8] sm:$0xff]
    %v4308 = vld [vmem:[#allocation4 + $0x6f0] sm:$0xff]
    %v4309 = vld [vmem:[#allocation4 + $0x6f8] sm:$0xff]
    %v4310 = vld [vmem:[#allocation4 + $0x700] sm:$0xff]
    %v4311 = vld [vmem:[#allocation4 + $0x708] sm:$0xff]
    %v4312 = vld [vmem:[#allocation4 + $0x710] sm:$0xff]
    %v4313 = vld [vmem:[#allocation4 + $0x718] sm:$0xff]
    %v4314 = vld [vmem:[#allocation4 + $0x720] sm:$0xff]
    %v4315 = vld [vmem:[#allocation4 + $0x728] sm:$0xff]
    %v4316 = vld [vmem:[#allocation4 + $0x730] sm:$0xff]
    %v4317 = vld [vmem:[#allocation4 + $0x738] sm:$0xff]
    %v4318 = vld [vmem:[#allocation4 + $0x740] sm:$0xff]
    %v4319 = vld [vmem:[#allocation4 + $0x748] sm:$0xff]
    %v4320 = vld [vmem:[#allocation4 + $0x750] sm:$0xff]
    %v4321 = vld [vmem:[#allocation4 + $0x758] sm:$0xff]
    %v4322 = vld [vmem:[#allocation4 + $0x760] sm:$0xff]
    %v4323 = vld [vmem:[#allocation4 + $0x768] sm:$0xff]
    %v4324 = vld [vmem:[#allocation4 + $0x770] sm:$0xff]
    %v4325 = vld [vmem:[#allocation4 + $0x778] sm:$0xff]
    %v4326 = vld [vmem:[#allocation4 + $0x780] sm:$0xff]
    %v4327 = vld [vmem:[#allocation4 + $0x788] sm:$0xff]
    %v4328 = vld [vmem:[#allocation4 + $0x790] sm:$0xff]
    %v4329 = vld [vmem:[#allocation4 + $0x798] sm:$0xff]
    %v4330 = vld [vmem:[#allocation4 + $0x7a0] sm:$0xff]
    %v4331 = vld [vmem:[#allocation4 + $0x7a8] sm:$0xff]
    %v4332 = vld [vmem:[#allocation4 + $0x7b0] sm:$0xff]
    %v4333 = vld [vmem:[#allocation4 + $0x7b8] sm:$0xff]
    %v4334 = vld [vmem:[#allocation4 + $0x7c0] sm:$0xff]
    %v4335 = vld [vmem:[#allocation4 + $0x7c8] sm:$0xff]
    %v4336 = vld [vmem:[#allocation4 + $0x7d0] sm:$0xff]
    %v4337 = vld [vmem:[#allocation4 + $0x7d8] sm:$0xff]
    %v4338 = vld [vmem:[#allocation4 + $0x7e0] sm:$0xff]
    %v4339 = vld [vmem:[#allocation4 + $0x7e8] sm:$0xff]
    %v4340 = vld [vmem:[#allocation4 + $0x7f0] sm:$0xff]
    %v4341 = vld [vmem:[#allocation4 + $0x7f8] sm:$0xff]
    %v4598 = vunpack.c.l.b16 %v4086
    %v4599 = vunpack.c.h.b16 %v4086
    %v4600 = vunpack.c.l.b16 %v4087
    %v4601 = vunpack.c.h.b16 %v4087
    %v4602 = vunpack.c.l.b16 %v4088
    %v4603 = vunpack.c.h.b16 %v4088
    %v4604 = vunpack.c.l.b16 %v4089
    %v4605 = vunpack.c.h.b16 %v4089
    %v4606 = vunpack.c.l.b16 %v4090
    %v4607 = vunpack.c.h.b16 %v4090
    %v4608 = vunpack.c.l.b16 %v4091
    %v4609 = vunpack.c.h.b16 %v4091
    %v4610 = vunpack.c.l.b16 %v4092
    %v4611 = vunpack.c.h.b16 %v4092
    %v4612 = vunpack.c.l.b16 %v4093
    %v4613 = vunpack.c.h.b16 %v4093
    %v4614 = vunpack.c.l.b16 %v4094
    %v4615 = vunpack.c.h.b16 %v4094
    %v4616 = vunpack.c.l.b16 %v4095
    %v4617 = vunpack.c.h.b16 %v4095
    %v4618 = vunpack.c.l.b16 %v4096
    %v4619 = vunpack.c.h.b16 %v4096
    %v4620 = vunpack.c.l.b16 %v4097
    %v4621 = vunpack.c.h.b16 %v4097
    %v4622 = vunpack.c.l.b16 %v4098
    %v4623 = vunpack.c.h.b16 %v4098
    %v4624 = vunpack.c.l.b16 %v4099
    %v4625 = vunpack.c.h.b16 %v4099
    %v4626 = vunpack.c.l.b16 %v4100
    %v4627 = vunpack.c.h.b16 %v4100
    %v4628 = vunpack.c.l.b16 %v4101
    %v4629 = vunpack.c.h.b16 %v4101
    %v4630 = vunpack.c.l.b16 %v4102
    %v4631 = vunpack.c.h.b16 %v4102
    %v4632 = vunpack.c.l.b16 %v4103
    %v4633 = vunpack.c.h.b16 %v4103
    %v4634 = vunpack.c.l.b16 %v4104
    %v4635 = vunpack.c.h.b16 %v4104
    %v4636 = vunpack.c.l.b16 %v4105
    %v4637 = vunpack.c.h.b16 %v4105
    %v4638 = vunpack.c.l.b16 %v4106
    %v4639 = vunpack.c.h.b16 %v4106
    %v4640 = vunpack.c.l.b16 %v4107
    %v4641 = vunpack.c.h.b16 %v4107
    %v4642 = vunpack.c.l.b16 %v4108
    %v4643 = vunpack.c.h.b16 %v4108
    %v4644 = vunpack.c.l.b16 %v4109
    %v4645 = vunpack.c.h.b16 %v4109
    %v4646 = vunpack.c.l.b16 %v4110
    %v4647 = vunpack.c.h.b16 %v4110
    %v4648 = vunpack.c.l.b16 %v4111
    %v4649 = vunpack.c.h.b16 %v4111
    %v4650 = vunpack.c.l.b16 %v4112
    %v4651 = vunpack.c.h.b16 %v4112
    %v4652 = vunpack.c.l.b16 %v4113
    %v4653 = vunpack.c.h.b16 %v4113
    %v4654 = vunpack.c.l.b16 %v4114
    %v4655 = vunpack.c.h.b16 %v4114
    %v4656 = vunpack.c.l.b16 %v4115
    %v4657 = vunpack.c.h.b16 %v4115
    %v4658 = vunpack.c.l.b16 %v4116
    %v4659 = vunpack.c.h.b16 %v4116
    %v4660 = vunpack.c.l.b16 %v4117
    %v4661 = vunpack.c.h.b16 %v4117
    %v4662 = vunpack.c.l.b16 %v4118
    %v4663 = vunpack.c.h.b16 %v4118
    %v4664 = vunpack.c.l.b16 %v4119
    %v4665 = vunpack.c.h.b16 %v4119
    %v4666 = vunpack.c.l.b16 %v4120
    %v4667 = vunpack.c.h.b16 %v4120
    %v4668 = vunpack.c.l.b16 %v4121
    %v4669 = vunpack.c.h.b16 %v4121
    %v4670 = vunpack.c.l.b16 %v4122
    %v4671 = vunpack.c.h.b16 %v4122
    %v4672 = vunpack.c.l.b16 %v4123
    %v4673 = vunpack.c.h.b16 %v4123
    %v4674 = vunpack.c.l.b16 %v4124
    %v4675 = vunpack.c.h.b16 %v4124
    %v4676 = vunpack.c.l.b16 %v4125
    %v4677 = vunpack.c.h.b16 %v4125
    %v4678 = vunpack.c.l.b16 %v4126
    %v4679 = vunpack.c.h.b16 %v4126
    %v4680 = vunpack.c.l.b16 %v4127
    %v4681 = vunpack.c.h.b16 %v4127
    %v4682 = vunpack.c.l.b16 %v4128
    %v4683 = vunpack.c.h.b16 %v4128
    %v4684 = vunpack.c.l.b16 %v4129
    %v4685 = vunpack.c.h.b16 %v4129
    %v4686 = vunpack.c.l.b16 %v4130
    %v4687 = vunpack.c.h.b16 %v4130
    %v4688 = vunpack.c.l.b16 %v4131
    %v4689 = vunpack.c.h.b16 %v4131
    %v4690 = vunpack.c.l.b16 %v4132
    %v4691 = vunpack.c.h.b16 %v4132
    %v4692 = vunpack.c.l.b16 %v4133
    %v4693 = vunpack.c.h.b16 %v4133
    %v4694 = vunpack.c.l.b16 %v4134
    %v4695 = vunpack.c.h.b16 %v4134
    %v4696 = vunpack.c.l.b16 %v4135
    %v4697 = vunpack.c.h.b16 %v4135
    %v4698 = vunpack.c.l.b16 %v4136
    %v4699 = vunpack.c.h.b16 %v4136
    %v4700 = vunpack.c.l.b16 %v4137
    %v4701 = vunpack.c.h.b16 %v4137
    %v4702 = vunpack.c.l.b16 %v4138
    %v4703 = vunpack.c.h.b16 %v4138
    %v4704 = vunpack.c.l.b16 %v4139
    %v4705 = vunpack.c.h.b16 %v4139
    %v4706 = vunpack.c.l.b16 %v4140
    %v4707 = vunpack.c.h.b16 %v4140
    %v4708 = vunpack.c.l.b16 %v4141
    %v4709 = vunpack.c.h.b16 %v4141
    %v4710 = vunpack.c.l.b16 %v4142
    %v4711 = vunpack.c.h.b16 %v4142
    %v4712 = vunpack.c.l.b16 %v4143
    %v4713 = vunpack.c.h.b16 %v4143
    %v4714 = vunpack.c.l.b16 %v4144
    %v4715 = vunpack.c.h.b16 %v4144
    %v4716 = vunpack.c.l.b16 %v4145
    %v4717 = vunpack.c.h.b16 %v4145
    %v4718 = vunpack.c.l.b16 %v4146
    %v4719 = vunpack.c.h.b16 %v4146
    %v4720 = vunpack.c.l.b16 %v4147
    %v4721 = vunpack.c.h.b16 %v4147
    %v4722 = vunpack.c.l.b16 %v4148
    %v4723 = vunpack.c.h.b16 %v4148
    %v4724 = vunpack.c.l.b16 %v4149
    %v4725 = vunpack.c.h.b16 %v4149
    %v4726 = vunpack.c.l.b16 %v4150
    %v4727 = vunpack.c.h.b16 %v4150
    %v4728 = vunpack.c.l.b16 %v4151
    %v4729 = vunpack.c.h.b16 %v4151
    %v4730 = vunpack.c.l.b16 %v4152
    %v4731 = vunpack.c.h.b16 %v4152
    %v4732 = vunpack.c.l.b16 %v4153
    %v4733 = vunpack.c.h.b16 %v4153
    %v4734 = vunpack.c.l.b16 %v4154
    %v4735 = vunpack.c.h.b16 %v4154
    %v4736 = vunpack.c.l.b16 %v4155
    %v4737 = vunpack.c.h.b16 %v4155
    %v4738 = vunpack.c.l.b16 %v4156
    %v4739 = vunpack.c.h.b16 %v4156
    %v4740 = vunpack.c.l.b16 %v4157
    %v4741 = vunpack.c.h.b16 %v4157
    %v4742 = vunpack.c.l.b16 %v4158
    %v4743 = vunpack.c.h.b16 %v4158
    %v4744 = vunpack.c.l.b16 %v4159
    %v4745 = vunpack.c.h.b16 %v4159
    %v4746 = vunpack.c.l.b16 %v4160
    %v4747 = vunpack.c.h.b16 %v4160
    %v4748 = vunpack.c.l.b16 %v4161
    %v4749 = vunpack.c.h.b16 %v4161
    %v4750 = vunpack.c.l.b16 %v4162
    %v4751 = vunpack.c.h.b16 %v4162
    %v4752 = vunpack.c.l.b16 %v4163
    %v4753 = vunpack.c.h.b16 %v4163
    %v4754 = vunpack.c.l.b16 %v4164
    %v4755 = vunpack.c.h.b16 %v4164
    %v4756 = vunpack.c.l.b16 %v4165
    %v4757 = vunpack.c.h.b16 %v4165
    %v4758 = vunpack.c.l.b16 %v4166
    %v4759 = vunpack.c.h.b16 %v4166
    %v4760 = vunpack.c.l.b16 %v4167
    %v4761 = vunpack.c.h.b16 %v4167
    %v4762 = vunpack.c.l.b16 %v4168
    %v4763 = vunpack.c.h.b16 %v4168
    %v4764 = vunpack.c.l.b16 %v4169
    %v4765 = vunpack.c.h.b16 %v4169
    %v4766 = vunpack.c.l.b16 %v4170
    %v4767 = vunpack.c.h.b16 %v4170
    %v4768 = vunpack.c.l.b16 %v4171
    %v4769 = vunpack.c.h.b16 %v4171
    %v4770 = vunpack.c.l.b16 %v4172
    %v4771 = vunpack.c.h.b16 %v4172
    %v4772 = vunpack.c.l.b16 %v4173
    %v4773 = vunpack.c.h.b16 %v4173
    %v4774 = vunpack.c.l.b16 %v4174
    %v4775 = vunpack.c.h.b16 %v4174
    %v4776 = vunpack.c.l.b16 %v4175
    %v4777 = vunpack.c.h.b16 %v4175
    %v4778 = vunpack.c.l.b16 %v4176
    %v4779 = vunpack.c.h.b16 %v4176
    %v4780 = vunpack.c.l.b16 %v4177
    %v4781 = vunpack.c.h.b16 %v4177
    %v4782 = vunpack.c.l.b16 %v4178
    %v4783 = vunpack.c.h.b16 %v4178
    %v4784 = vunpack.c.l.b16 %v4179
    %v4785 = vunpack.c.h.b16 %v4179
    %v4786 = vunpack.c.l.b16 %v4180
    %v4787 = vunpack.c.h.b16 %v4180
    %v4788 = vunpack.c.l.b16 %v4181
    %v4789 = vunpack.c.h.b16 %v4181
    %v4790 = vunpack.c.l.b16 %v4182
    %v4791 = vunpack.c.h.b16 %v4182
    %v4792 = vunpack.c.l.b16 %v4183
    %v4793 = vunpack.c.h.b16 %v4183
    %v4794 = vunpack.c.l.b16 %v4184
    %v4795 = vunpack.c.h.b16 %v4184
    %v4796 = vunpack.c.l.b16 %v4185
    %v4797 = vunpack.c.h.b16 %v4185
    %v4798 = vunpack.c.l.b16 %v4186
    %v4799 = vunpack.c.h.b16 %v4186
    %v4800 = vunpack.c.l.b16 %v4187
    %v4801 = vunpack.c.h.b16 %v4187
    %v4802 = vunpack.c.l.b16 %v4188
    %v4803 = vunpack.c.h.b16 %v4188
    %v4804 = vunpack.c.l.b16 %v4189
    %v4805 = vunpack.c.h.b16 %v4189
    %v4806 = vunpack.c.l.b16 %v4190
    %v4807 = vunpack.c.h.b16 %v4190
    %v4808 = vunpack.c.l.b16 %v4191
    %v4809 = vunpack.c.h.b16 %v4191
    %v4810 = vunpack.c.l.b16 %v4192
    %v4811 = vunpack.c.h.b16 %v4192
    %v4812 = vunpack.c.l.b16 %v4193
    %v4813 = vunpack.c.h.b16 %v4193
    %v4814 = vunpack.c.l.b16 %v4194
    %v4815 = vunpack.c.h.b16 %v4194
    %v4816 = vunpack.c.l.b16 %v4195
    %v4817 = vunpack.c.h.b16 %v4195
    %v4818 = vunpack.c.l.b16 %v4196
    %v4819 = vunpack.c.h.b16 %v4196
    %v4820 = vunpack.c.l.b16 %v4197
    %v4821 = vunpack.c.h.b16 %v4197
    %v4822 = vunpack.c.l.b16 %v4198
    %v4823 = vunpack.c.h.b16 %v4198
    %v4824 = vunpack.c.l.b16 %v4199
    %v4825 = vunpack.c.h.b16 %v4199
    %v4826 = vunpack.c.l.b16 %v4200
    %v4827 = vunpack.c.h.b16 %v4200
    %v4828 = vunpack.c.l.b16 %v4201
    %v4829 = vunpack.c.h.b16 %v4201
    %v4830 = vunpack.c.l.b16 %v4202
    %v4831 = vunpack.c.h.b16 %v4202
    %v4832 = vunpack.c.l.b16 %v4203
    %v4833 = vunpack.c.h.b16 %v4203
    %v4834 = vunpack.c.l.b16 %v4204
    %v4835 = vunpack.c.h.b16 %v4204
    %v4836 = vunpack.c.l.b16 %v4205
    %v4837 = vunpack.c.h.b16 %v4205
    %v4838 = vunpack.c.l.b16 %v4206
    %v4839 = vunpack.c.h.b16 %v4206
    %v4840 = vunpack.c.l.b16 %v4207
    %v4841 = vunpack.c.h.b16 %v4207
    %v4842 = vunpack.c.l.b16 %v4208
    %v4843 = vunpack.c.h.b16 %v4208
    %v4844 = vunpack.c.l.b16 %v4209
    %v4845 = vunpack.c.h.b16 %v4209
    %v4846 = vunpack.c.l.b16 %v4210
    %v4847 = vunpack.c.h.b16 %v4210
    %v4848 = vunpack.c.l.b16 %v4211
    %v4849 = vunpack.c.h.b16 %v4211
    %v4850 = vunpack.c.l.b16 %v4212
    %v4851 = vunpack.c.h.b16 %v4212
    %v4852 = vunpack.c.l.b16 %v4213
    %v4853 = vunpack.c.h.b16 %v4213
    %v4854 = vunpack.c.l.b16 %v4214
    %v4855 = vunpack.c.h.b16 %v4214
    %v4856 = vunpack.c.l.b16 %v4215
    %v4857 = vunpack.c.h.b16 %v4215
    %v4858 = vunpack.c.l.b16 %v4216
    %v4859 = vunpack.c.h.b16 %v4216
    %v4860 = vunpack.c.l.b16 %v4217
    %v4861 = vunpack.c.h.b16 %v4217
    %v4862 = vunpack.c.l.b16 %v4218
    %v4863 = vunpack.c.h.b16 %v4218
    %v4864 = vunpack.c.l.b16 %v4219
    %v4865 = vunpack.c.h.b16 %v4219
    %v4866 = vunpack.c.l.b16 %v4220
    %v4867 = vunpack.c.h.b16 %v4220
    %v4868 = vunpack.c.l.b16 %v4221
    %v4869 = vunpack.c.h.b16 %v4221
    %v4870 = vunpack.c.l.b16 %v4222
    %v4871 = vunpack.c.h.b16 %v4222
    %v4872 = vunpack.c.l.b16 %v4223
    %v4873 = vunpack.c.h.b16 %v4223
    %v4874 = vunpack.c.l.b16 %v4224
    %v4875 = vunpack.c.h.b16 %v4224
    %v4876 = vunpack.c.l.b16 %v4225
    %v4877 = vunpack.c.h.b16 %v4225
    %v4878 = vunpack.c.l.b16 %v4226
    %v4879 = vunpack.c.h.b16 %v4226
    %v4880 = vunpack.c.l.b16 %v4227
    %v4881 = vunpack.c.h.b16 %v4227
    %v4882 = vunpack.c.l.b16 %v4228
    %v4883 = vunpack.c.h.b16 %v4228
    %v4884 = vunpack.c.l.b16 %v4229
    %v4885 = vunpack.c.h.b16 %v4229
    %v4886 = vunpack.c.l.b16 %v4230
    %v4887 = vunpack.c.h.b16 %v4230
    %v4888 = vunpack.c.l.b16 %v4231
    %v4889 = vunpack.c.h.b16 %v4231
    %v4890 = vunpack.c.l.b16 %v4232
    %v4891 = vunpack.c.h.b16 %v4232
    %v4892 = vunpack.c.l.b16 %v4233
    %v4893 = vunpack.c.h.b16 %v4233
    %v4894 = vunpack.c.l.b16 %v4234
    %v4895 = vunpack.c.h.b16 %v4234
    %v4896 = vunpack.c.l.b16 %v4235
    %v4897 = vunpack.c.h.b16 %v4235
    %v4898 = vunpack.c.l.b16 %v4236
    %v4899 = vunpack.c.h.b16 %v4236
    %v4900 = vunpack.c.l.b16 %v4237
    %v4901 = vunpack.c.h.b16 %v4237
    %v4902 = vunpack.c.l.b16 %v4238
    %v4903 = vunpack.c.h.b16 %v4238
    %v4904 = vunpack.c.l.b16 %v4239
    %v4905 = vunpack.c.h.b16 %v4239
    %v4906 = vunpack.c.l.b16 %v4240
    %v4907 = vunpack.c.h.b16 %v4240
    %v4908 = vunpack.c.l.b16 %v4241
    %v4909 = vunpack.c.h.b16 %v4241
    %v4910 = vunpack.c.l.b16 %v4242
    %v4911 = vunpack.c.h.b16 %v4242
    %v4912 = vunpack.c.l.b16 %v4243
    %v4913 = vunpack.c.h.b16 %v4243
    %v4914 = vunpack.c.l.b16 %v4244
    %v4915 = vunpack.c.h.b16 %v4244
    %v4916 = vunpack.c.l.b16 %v4245
    %v4917 = vunpack.c.h.b16 %v4245
    %v4918 = vunpack.c.l.b16 %v4246
    %v4919 = vunpack.c.h.b16 %v4246
    %v4920 = vunpack.c.l.b16 %v4247
    %v4921 = vunpack.c.h.b16 %v4247
    %v4922 = vunpack.c.l.b16 %v4248
    %v4923 = vunpack.c.h.b16 %v4248
    %v4924 = vunpack.c.l.b16 %v4249
    %v4925 = vunpack.c.h.b16 %v4249
    %v4926 = vunpack.c.l.b16 %v4250
    %v4927 = vunpack.c.h.b16 %v4250
    %v4928 = vunpack.c.l.b16 %v4251
    %v4929 = vunpack.c.h.b16 %v4251
    %v4930 = vunpack.c.l.b16 %v4252
    %v4931 = vunpack.c.h.b16 %v4252
    %v4932 = vunpack.c.l.b16 %v4253
    %v4933 = vunpack.c.h.b16 %v4253
    %v4934 = vunpack.c.l.b16 %v4254
    %v4935 = vunpack.c.h.b16 %v4254
    %v4936 = vunpack.c.l.b16 %v4255
    %v4937 = vunpack.c.h.b16 %v4255
    %v4938 = vunpack.c.l.b16 %v4256
    %v4939 = vunpack.c.h.b16 %v4256
    %v4940 = vunpack.c.l.b16 %v4257
    %v4941 = vunpack.c.h.b16 %v4257
    %v4942 = vunpack.c.l.b16 %v4258
    %v4943 = vunpack.c.h.b16 %v4258
    %v4944 = vunpack.c.l.b16 %v4259
    %v4945 = vunpack.c.h.b16 %v4259
    %v4946 = vunpack.c.l.b16 %v4260
    %v4947 = vunpack.c.h.b16 %v4260
    %v4948 = vunpack.c.l.b16 %v4261
    %v4949 = vunpack.c.h.b16 %v4261
    %v4950 = vunpack.c.l.b16 %v4262
    %v4951 = vunpack.c.h.b16 %v4262
    %v4952 = vunpack.c.l.b16 %v4263
    %v4953 = vunpack.c.h.b16 %v4263
    %v4954 = vunpack.c.l.b16 %v4264
    %v4955 = vunpack.c.h.b16 %v4264
    %v4956 = vunpack.c.l.b16 %v4265
    %v4957 = vunpack.c.h.b16 %v4265
    %v4958 = vunpack.c.l.b16 %v4266
    %v4959 = vunpack.c.h.b16 %v4266
    %v4960 = vunpack.c.l.b16 %v4267
    %v4961 = vunpack.c.h.b16 %v4267
    %v4962 = vunpack.c.l.b16 %v4268
    %v4963 = vunpack.c.h.b16 %v4268
    %v4964 = vunpack.c.l.b16 %v4269
    %v4965 = vunpack.c.h.b16 %v4269
    %v4966 = vunpack.c.l.b16 %v4270
    %v4967 = vunpack.c.h.b16 %v4270
    %v4968 = vunpack.c.l.b16 %v4271
    %v4969 = vunpack.c.h.b16 %v4271
    %v4970 = vunpack.c.l.b16 %v4272
    %v4971 = vunpack.c.h.b16 %v4272
    %v4972 = vunpack.c.l.b16 %v4273
    %v4973 = vunpack.c.h.b16 %v4273
    %v4974 = vunpack.c.l.b16 %v4274
    %v4975 = vunpack.c.h.b16 %v4274
    %v4976 = vunpack.c.l.b16 %v4275
    %v4977 = vunpack.c.h.b16 %v4275
    %v4978 = vunpack.c.l.b16 %v4276
    %v4979 = vunpack.c.h.b16 %v4276
    %v4980 = vunpack.c.l.b16 %v4277
    %v4981 = vunpack.c.h.b16 %v4277
    %v4982 = vunpack.c.l.b16 %v4278
    %v4983 = vunpack.c.h.b16 %v4278
    %v4984 = vunpack.c.l.b16 %v4279
    %v4985 = vunpack.c.h.b16 %v4279
    %v4986 = vunpack.c.l.b16 %v4280
    %v4987 = vunpack.c.h.b16 %v4280
    %v4988 = vunpack.c.l.b16 %v4281
    %v4989 = vunpack.c.h.b16 %v4281
    %v4990 = vunpack.c.l.b16 %v4282
    %v4991 = vunpack.c.h.b16 %v4282
    %v4992 = vunpack.c.l.b16 %v4283
    %v4993 = vunpack.c.h.b16 %v4283
    %v4994 = vunpack.c.l.b16 %v4284
    %v4995 = vunpack.c.h.b16 %v4284
    %v4996 = vunpack.c.l.b16 %v4285
    %v4997 = vunpack.c.h.b16 %v4285
    %v4998 = vunpack.c.l.b16 %v4286
    %v4999 = vunpack.c.h.b16 %v4286
    %v5000 = vunpack.c.l.b16 %v4287
    %v5001 = vunpack.c.h.b16 %v4287
    %v5002 = vunpack.c.l.b16 %v4288
    %v5003 = vunpack.c.h.b16 %v4288
    %v5004 = vunpack.c.l.b16 %v4289
    %v5005 = vunpack.c.h.b16 %v4289
    %v5006 = vunpack.c.l.b16 %v4290
    %v5007 = vunpack.c.h.b16 %v4290
    %v5008 = vunpack.c.l.b16 %v4291
    %v5009 = vunpack.c.h.b16 %v4291
    %v5010 = vunpack.c.l.b16 %v4292
    %v5011 = vunpack.c.h.b16 %v4292
    %v5012 = vunpack.c.l.b16 %v4293
    %v5013 = vunpack.c.h.b16 %v4293
    %v5014 = vunpack.c.l.b16 %v4294
    %v5015 = vunpack.c.h.b16 %v4294
    %v5016 = vunpack.c.l.b16 %v4295
    %v5017 = vunpack.c.h.b16 %v4295
    %v5018 = vunpack.c.l.b16 %v4296
    %v5019 = vunpack.c.h.b16 %v4296
    %v5020 = vunpack.c.l.b16 %v4297
    %v5021 = vunpack.c.h.b16 %v4297
    %v5022 = vunpack.c.l.b16 %v4298
    %v5023 = vunpack.c.h.b16 %v4298
    %v5024 = vunpack.c.l.b16 %v4299
    %v5025 = vunpack.c.h.b16 %v4299
    %v5026 = vunpack.c.l.b16 %v4300
    %v5027 = vunpack.c.h.b16 %v4300
    %v5028 = vunpack.c.l.b16 %v4301
    %v5029 = vunpack.c.h.b16 %v4301
    %v5030 = vunpack.c.l.b16 %v4302
    %v5031 = vunpack.c.h.b16 %v4302
    %v5032 = vunpack.c.l.b16 %v4303
    %v5033 = vunpack.c.h.b16 %v4303
    %v5034 = vunpack.c.l.b16 %v4304
    %v5035 = vunpack.c.h.b16 %v4304
    %v5036 = vunpack.c.l.b16 %v4305
    %v5037 = vunpack.c.h.b16 %v4305
    %v5038 = vunpack.c.l.b16 %v4306
    %v5039 = vunpack.c.h.b16 %v4306
    %v5040 = vunpack.c.l.b16 %v4307
    %v5041 = vunpack.c.h.b16 %v4307
    %v5042 = vunpack.c.l.b16 %v4308
    %v5043 = vunpack.c.h.b16 %v4308
    %v5044 = vunpack.c.l.b16 %v4309
    %v5045 = vunpack.c.h.b16 %v4309
    %v5046 = vunpack.c.l.b16 %v4310
    %v5047 = vunpack.c.h.b16 %v4310
    %v5048 = vunpack.c.l.b16 %v4311
    %v5049 = vunpack.c.h.b16 %v4311
    %v5050 = vunpack.c.l.b16 %v4312
    %v5051 = vunpack.c.h.b16 %v4312
    %v5052 = vunpack.c.l.b16 %v4313
    %v5053 = vunpack.c.h.b16 %v4313
    %v5054 = vunpack.c.l.b16 %v4314
    %v5055 = vunpack.c.h.b16 %v4314
    %v5056 = vunpack.c.l.b16 %v4315
    %v5057 = vunpack.c.h.b16 %v4315
    %v5058 = vunpack.c.l.b16 %v4316
    %v5059 = vunpack.c.h.b16 %v4316
    %v5060 = vunpack.c.l.b16 %v4317
    %v5061 = vunpack.c.h.b16 %v4317
    %v5062 = vunpack.c.l.b16 %v4318
    %v5063 = vunpack.c.h.b16 %v4318
    %v5064 = vunpack.c.l.b16 %v4319
    %v5065 = vunpack.c.h.b16 %v4319
    %v5066 = vunpack.c.l.b16 %v4320
    %v5067 = vunpack.c.h.b16 %v4320
    %v5068 = vunpack.c.l.b16 %v4321
    %v5069 = vunpack.c.h.b16 %v4321
    %v5070 = vunpack.c.l.b16 %v4322
    %v5071 = vunpack.c.h.b16 %v4322
    %v5072 = vunpack.c.l.b16 %v4323
    %v5073 = vunpack.c.h.b16 %v4323
    %v5074 = vunpack.c.l.b16 %v4324
    %v5075 = vunpack.c.h.b16 %v4324
    %v5076 = vunpack.c.l.b16 %v4325
    %v5077 = vunpack.c.h.b16 %v4325
    %v5078 = vunpack.c.l.b16 %v4326
    %v5079 = vunpack.c.h.b16 %v4326
    %v5080 = vunpack.c.l.b16 %v4327
    %v5081 = vunpack.c.h.b16 %v4327
    %v5082 = vunpack.c.l.b16 %v4328
    %v5083 = vunpack.c.h.b16 %v4328
    %v5084 = vunpack.c.l.b16 %v4329
    %v5085 = vunpack.c.h.b16 %v4329
    %v5086 = vunpack.c.l.b16 %v4330
    %v5087 = vunpack.c.h.b16 %v4330
    %v5088 = vunpack.c.l.b16 %v4331
    %v5089 = vunpack.c.h.b16 %v4331
    %v5090 = vunpack.c.l.b16 %v4332
    %v5091 = vunpack.c.h.b16 %v4332
    %v5092 = vunpack.c.l.b16 %v4333
    %v5093 = vunpack.c.h.b16 %v4333
    %v5094 = vunpack.c.l.b16 %v4334
    %v5095 = vunpack.c.h.b16 %v4334
    %v5096 = vunpack.c.l.b16 %v4335
    %v5097 = vunpack.c.h.b16 %v4335
    %v5098 = vunpack.c.l.b16 %v4336
    %v5099 = vunpack.c.h.b16 %v4336
    %v5100 = vunpack.c.l.b16 %v4337
    %v5101 = vunpack.c.h.b16 %v4337
    %v5102 = vunpack.c.l.b16 %v4338
    %v5103 = vunpack.c.h.b16 %v4338
    %v5104 = vunpack.c.l.b16 %v4339
    %v5105 = vunpack.c.h.b16 %v4339
    %v5106 = vunpack.c.l.b16 %v4340
    %v5107 = vunpack.c.h.b16 %v4340
    %v5108 = vunpack.c.l.b16 %v4341
    %v5109 = vunpack.c.h.b16 %v4341
    %v5110 = vpack.c.b16 %v4602, %v4598
    %v5111 = vpack.c.b16 %v4603, %v4599
    %v5112 = vpack.c.b16 %v4604, %v4600
    %v5113 = vpack.c.b16 %v4605, %v4601
    %v5114 = vpack.c.b16 %v4610, %v4606
    %v5115 = vpack.c.b16 %v4611, %v4607
    %v5116 = vpack.c.b16 %v4612, %v4608
    %v5117 = vpack.c.b16 %v4613, %v4609
    %v5118 = vpack.c.b16 %v4618, %v4614
    %v5119 = vpack.c.b16 %v4619, %v4615
    %v5120 = vpack.c.b16 %v4620, %v4616
    %v5121 = vpack.c.b16 %v4621, %v4617
    %v5122 = vpack.c.b16 %v4626, %v4622
    %v5123 = vpack.c.b16 %v4627, %v4623
    %v5124 = vpack.c.b16 %v4628, %v4624
    %v5125 = vpack.c.b16 %v4629, %v4625
    %v5126 = vpack.c.b16 %v4634, %v4630
    %v5127 = vpack.c.b16 %v4635, %v4631
    %v5128 = vpack.c.b16 %v4636, %v4632
    %v5129 = vpack.c.b16 %v4637, %v4633
    %v5130 = vpack.c.b16 %v4642, %v4638
    %v5131 = vpack.c.b16 %v4643, %v4639
    %v5132 = vpack.c.b16 %v4644, %v4640
    %v5133 = vpack.c.b16 %v4645, %v4641
    %v5134 = vpack.c.b16 %v4650, %v4646
    %v5135 = vpack.c.b16 %v4651, %v4647
    %v5136 = vpack.c.b16 %v4652, %v4648
    %v5137 = vpack.c.b16 %v4653, %v4649
    %v5138 = vpack.c.b16 %v4658, %v4654
    %v5139 = vpack.c.b16 %v4659, %v4655
    %v5140 = vpack.c.b16 %v4660, %v4656
    %v5141 = vpack.c.b16 %v4661, %v4657
    %v5142 = vpack.c.b16 %v4666, %v4662
    %v5143 = vpack.c.b16 %v4667, %v4663
    %v5144 = vpack.c.b16 %v4668, %v4664
    %v5145 = vpack.c.b16 %v4669, %v4665
    %v5146 = vpack.c.b16 %v4674, %v4670
    %v5147 = vpack.c.b16 %v4675, %v4671
    %v5148 = vpack.c.b16 %v4676, %v4672
    %v5149 = vpack.c.b16 %v4677, %v4673
    %v5150 = vpack.c.b16 %v4682, %v4678
    %v5151 = vpack.c.b16 %v4683, %v4679
    %v5152 = vpack.c.b16 %v4684, %v4680
    %v5153 = vpack.c.b16 %v4685, %v4681
    %v5154 = vpack.c.b16 %v4690, %v4686
    %v5155 = vpack.c.b16 %v4691, %v4687
    %v5156 = vpack.c.b16 %v4692, %v4688
    %v5157 = vpack.c.b16 %v4693, %v4689
    %v5158 = vpack.c.b16 %v4698, %v4694
    %v5159 = vpack.c.b16 %v4699, %v4695
    %v5160 = vpack.c.b16 %v4700, %v4696
    %v5161 = vpack.c.b16 %v4701, %v4697
    %v5162 = vpack.c.b16 %v4706, %v4702
    %v5163 = vpack.c.b16 %v4707, %v4703
    %v5164 = vpack.c.b16 %v4708, %v4704
    %v5165 = vpack.c.b16 %v4709, %v4705
    %v5166 = vpack.c.b16 %v4714, %v4710
    %v5167 = vpack.c.b16 %v4715, %v4711
    %v5168 = vpack.c.b16 %v4716, %v4712
    %v5169 = vpack.c.b16 %v4717, %v4713
    %v5170 = vpack.c.b16 %v4722, %v4718
    %v5171 = vpack.c.b16 %v4723, %v4719
    %v5172 = vpack.c.b16 %v4724, %v4720
    %v5173 = vpack.c.b16 %v4725, %v4721
    %v5174 = vpack.c.b16 %v4730, %v4726
    %v5175 = vpack.c.b16 %v4731, %v4727
    %v5176 = vpack.c.b16 %v4732, %v4728
    %v5177 = vpack.c.b16 %v4733, %v4729
    %v5178 = vpack.c.b16 %v4738, %v4734
    %v5179 = vpack.c.b16 %v4739, %v4735
    %v5180 = vpack.c.b16 %v4740, %v4736
    %v5181 = vpack.c.b16 %v4741, %v4737
    %v5182 = vpack.c.b16 %v4746, %v4742
    %v5183 = vpack.c.b16 %v4747, %v4743
    %v5184 = vpack.c.b16 %v4748, %v4744
    %v5185 = vpack.c.b16 %v4749, %v4745
    %v5186 = vpack.c.b16 %v4754, %v4750
    %v5187 = vpack.c.b16 %v4755, %v4751
    %v5188 = vpack.c.b16 %v4756, %v4752
    %v5189 = vpack.c.b16 %v4757, %v4753
    %v5190 = vpack.c.b16 %v4762, %v4758
    %v5191 = vpack.c.b16 %v4763, %v4759
    %v5192 = vpack.c.b16 %v4764, %v4760
    %v5193 = vpack.c.b16 %v4765, %v4761
    %v5194 = vpack.c.b16 %v4770, %v4766
    %v5195 = vpack.c.b16 %v4771, %v4767
    %v5196 = vpack.c.b16 %v4772, %v4768
    %v5197 = vpack.c.b16 %v4773, %v4769
    %v5198 = vpack.c.b16 %v4778, %v4774
    %v5199 = vpack.c.b16 %v4779, %v4775
    %v5200 = vpack.c.b16 %v4780, %v4776
    %v5201 = vpack.c.b16 %v4781, %v4777
    %v5202 = vpack.c.b16 %v4786, %v4782
    %v5203 = vpack.c.b16 %v4787, %v4783
    %v5204 = vpack.c.b16 %v4788, %v4784
    %v5205 = vpack.c.b16 %v4789, %v4785
    %v5206 = vpack.c.b16 %v4794, %v4790
    %v5207 = vpack.c.b16 %v4795, %v4791
    %v5208 = vpack.c.b16 %v4796, %v4792
    %v5209 = vpack.c.b16 %v4797, %v4793
    %v5210 = vpack.c.b16 %v4802, %v4798
    %v5211 = vpack.c.b16 %v4803, %v4799
    %v5212 = vpack.c.b16 %v4804, %v4800
    %v5213 = vpack.c.b16 %v4805, %v4801
    %v5214 = vpack.c.b16 %v4810, %v4806
    %v5215 = vpack.c.b16 %v4811, %v4807
    %v5216 = vpack.c.b16 %v4812, %v4808
    %v5217 = vpack.c.b16 %v4813, %v4809
    %v5218 = vpack.c.b16 %v4818, %v4814
    %v5219 = vpack.c.b16 %v4819, %v4815
    %v5220 = vpack.c.b16 %v4820, %v4816
    %v5221 = vpack.c.b16 %v4821, %v4817
    %v5222 = vpack.c.b16 %v4826, %v4822
    %v5223 = vpack.c.b16 %v4827, %v4823
    %v5224 = vpack.c.b16 %v4828, %v4824
    %v5225 = vpack.c.b16 %v4829, %v4825
    %v5226 = vpack.c.b16 %v4834, %v4830
    %v5227 = vpack.c.b16 %v4835, %v4831
    %v5228 = vpack.c.b16 %v4836, %v4832
    %v5229 = vpack.c.b16 %v4837, %v4833
    %v5230 = vpack.c.b16 %v4842, %v4838
    %v5231 = vpack.c.b16 %v4843, %v4839
    %v5232 = vpack.c.b16 %v4844, %v4840
    %v5233 = vpack.c.b16 %v4845, %v4841
    %v5234 = vpack.c.b16 %v4850, %v4846
    %v5235 = vpack.c.b16 %v4851, %v4847
    %v5236 = vpack.c.b16 %v4852, %v4848
    %v5237 = vpack.c.b16 %v4853, %v4849
    %v5238 = vpack.c.b16 %v4858, %v4854
    %v5239 = vpack.c.b16 %v4859, %v4855
    %v5240 = vpack.c.b16 %v4860, %v4856
    %v5241 = vpack.c.b16 %v4861, %v4857
    %v5242 = vpack.c.b16 %v4866, %v4862
    %v5243 = vpack.c.b16 %v4867, %v4863
    %v5244 = vpack.c.b16 %v4868, %v4864
    %v5245 = vpack.c.b16 %v4869, %v4865
    %v5246 = vpack.c.b16 %v4874, %v4870
    %v5247 = vpack.c.b16 %v4875, %v4871
    %v5248 = vpack.c.b16 %v4876, %v4872
    %v5249 = vpack.c.b16 %v4877, %v4873
    %v5250 = vpack.c.b16 %v4882, %v4878
    %v5251 = vpack.c.b16 %v4883, %v4879
    %v5252 = vpack.c.b16 %v4884, %v4880
    %v5253 = vpack.c.b16 %v4885, %v4881
    %v5254 = vpack.c.b16 %v4890, %v4886
    %v5255 = vpack.c.b16 %v4891, %v4887
    %v5256 = vpack.c.b16 %v4892, %v4888
    %v5257 = vpack.c.b16 %v4893, %v4889
    %v5258 = vpack.c.b16 %v4898, %v4894
    %v5259 = vpack.c.b16 %v4899, %v4895
    %v5260 = vpack.c.b16 %v4900, %v4896
    %v5261 = vpack.c.b16 %v4901, %v4897
    %v5262 = vpack.c.b16 %v4906, %v4902
    %v5263 = vpack.c.b16 %v4907, %v4903
    %v5264 = vpack.c.b16 %v4908, %v4904
    %v5265 = vpack.c.b16 %v4909, %v4905
    %v5266 = vpack.c.b16 %v4914, %v4910
    %v5267 = vpack.c.b16 %v4915, %v4911
    %v5268 = vpack.c.b16 %v4916, %v4912
    %v5269 = vpack.c.b16 %v4917, %v4913
    %v5270 = vpack.c.b16 %v4922, %v4918
    %v5271 = vpack.c.b16 %v4923, %v4919
    %v5272 = vpack.c.b16 %v4924, %v4920
    %v5273 = vpack.c.b16 %v4925, %v4921
    %v5274 = vpack.c.b16 %v4930, %v4926
    %v5275 = vpack.c.b16 %v4931, %v4927
    %v5276 = vpack.c.b16 %v4932, %v4928
    %v5277 = vpack.c.b16 %v4933, %v4929
    %v5278 = vpack.c.b16 %v4938, %v4934
    %v5279 = vpack.c.b16 %v4939, %v4935
    %v5280 = vpack.c.b16 %v4940, %v4936
    %v5281 = vpack.c.b16 %v4941, %v4937
    %v5282 = vpack.c.b16 %v4946, %v4942
    %v5283 = vpack.c.b16 %v4947, %v4943
    %v5284 = vpack.c.b16 %v4948, %v4944
    %v5285 = vpack.c.b16 %v4949, %v4945
    %v5286 = vpack.c.b16 %v4954, %v4950
    %v5287 = vpack.c.b16 %v4955, %v4951
    %v5288 = vpack.c.b16 %v4956, %v4952
    %v5289 = vpack.c.b16 %v4957, %v4953
    %v5290 = vpack.c.b16 %v4962, %v4958
    %v5291 = vpack.c.b16 %v4963, %v4959
    %v5292 = vpack.c.b16 %v4964, %v4960
    %v5293 = vpack.c.b16 %v4965, %v4961
    %v5294 = vpack.c.b16 %v4970, %v4966
    %v5295 = vpack.c.b16 %v4971, %v4967
    %v5296 = vpack.c.b16 %v4972, %v4968
    %v5297 = vpack.c.b16 %v4973, %v4969
    %v5298 = vpack.c.b16 %v4978, %v4974
    %v5299 = vpack.c.b16 %v4979, %v4975
    %v5300 = vpack.c.b16 %v4980, %v4976
    %v5301 = vpack.c.b16 %v4981, %v4977
    %v5302 = vpack.c.b16 %v4986, %v4982
    %v5303 = vpack.c.b16 %v4987, %v4983
    %v5304 = vpack.c.b16 %v4988, %v4984
    %v5305 = vpack.c.b16 %v4989, %v4985
    %v5306 = vpack.c.b16 %v4994, %v4990
    %v5307 = vpack.c.b16 %v4995, %v4991
    %v5308 = vpack.c.b16 %v4996, %v4992
    %v5309 = vpack.c.b16 %v4997, %v4993
    %v5310 = vpack.c.b16 %v5002, %v4998
    %v5311 = vpack.c.b16 %v5003, %v4999
    %v5312 = vpack.c.b16 %v5004, %v5000
    %v5313 = vpack.c.b16 %v5005, %v5001
    %v5314 = vpack.c.b16 %v5010, %v5006
    %v5315 = vpack.c.b16 %v5011, %v5007
    %v5316 = vpack.c.b16 %v5012, %v5008
    %v5317 = vpack.c.b16 %v5013, %v5009
    %v5318 = vpack.c.b16 %v5018, %v5014
    %v5319 = vpack.c.b16 %v5019, %v5015
    %v5320 = vpack.c.b16 %v5020, %v5016
    %v5321 = vpack.c.b16 %v5021, %v5017
    %v5322 = vpack.c.b16 %v5026, %v5022
    %v5323 = vpack.c.b16 %v5027, %v5023
    %v5324 = vpack.c.b16 %v5028, %v5024
    %v5325 = vpack.c.b16 %v5029, %v5025
    %v5326 = vpack.c.b16 %v5034, %v5030
    %v5327 = vpack.c.b16 %v5035, %v5031
    %v5328 = vpack.c.b16 %v5036, %v5032
    %v5329 = vpack.c.b16 %v5037, %v5033
    %v5330 = vpack.c.b16 %v5042, %v5038
    %v5331 = vpack.c.b16 %v5043, %v5039
    %v5332 = vpack.c.b16 %v5044, %v5040
    %v5333 = vpack.c.b16 %v5045, %v5041
    %v5334 = vpack.c.b16 %v5050, %v5046
    %v5335 = vpack.c.b16 %v5051, %v5047
    %v5336 = vpack.c.b16 %v5052, %v5048
    %v5337 = vpack.c.b16 %v5053, %v5049
    %v5338 = vpack.c.b16 %v5058, %v5054
    %v5339 = vpack.c.b16 %v5059, %v5055
    %v5340 = vpack.c.b16 %v5060, %v5056
    %v5341 = vpack.c.b16 %v5061, %v5057
    %v5342 = vpack.c.b16 %v5066, %v5062
    %v5343 = vpack.c.b16 %v5067, %v5063
    %v5344 = vpack.c.b16 %v5068, %v5064
    %v5345 = vpack.c.b16 %v5069, %v5065
    %v5346 = vpack.c.b16 %v5074, %v5070
    %v5347 = vpack.c.b16 %v5075, %v5071
    %v5348 = vpack.c.b16 %v5076, %v5072
    %v5349 = vpack.c.b16 %v5077, %v5073
    %v5350 = vpack.c.b16 %v5082, %v5078
    %v5351 = vpack.c.b16 %v5083, %v5079
    %v5352 = vpack.c.b16 %v5084, %v5080
    %v5353 = vpack.c.b16 %v5085, %v5081
    %v5354 = vpack.c.b16 %v5090, %v5086
    %v5355 = vpack.c.b16 %v5091, %v5087
    %v5356 = vpack.c.b16 %v5092, %v5088
    %v5357 = vpack.c.b16 %v5093, %v5089
    %v5358 = vpack.c.b16 %v5098, %v5094
    %v5359 = vpack.c.b16 %v5099, %v5095
    %v5360 = vpack.c.b16 %v5100, %v5096
    %v5361 = vpack.c.b16 %v5101, %v5097
    %v5362 = vpack.c.b16 %v5106, %v5102
    %v5363 = vpack.c.b16 %v5107, %v5103
    %v5364 = vpack.c.b16 %v5108, %v5104
    %v5365 = vpack.c.b16 %v5109, %v5105
    %5622 = vmatpush.bf16.msra.mxu0 %v5138
    %5623 = vmatpush.bf16.msra.mxu0 %v5134
    %5624 = vmatpush.bf16.msra.mxu0 %v5130
    %5625 = vmatpush.bf16.msra.mxu0 %v5126
    %5626 = vmatpush.bf16.msra.mxu0 %v5122
    %5627 = vmatpush.bf16.msra.mxu0 %v5118
    %5628 = vmatpush.bf16.msra.mxu0 %v5114
    %5629 = vmatpush.bf16.msra.mxu0 %v5110
    %5630 = vmatmul.bf16.gmra.mxu0 %v4078
    %v5631 = vpop.f32.mrf.mxu0
    %v5632 = vadd.f32 0.0, %v5631
    %v5633 = vpop.f32.mrf.mxu0
    %5634 = vdwg.mxu0
    %5635 = vmatpush.bf16.msra.mxu0 %v5170
    %5636 = vmatpush.bf16.msra.mxu0 %v5166
    %5637 = vmatpush.bf16.msra.mxu0 %v5162
    %5638 = vmatpush.bf16.msra.mxu0 %v5158
    %5639 = vmatpush.bf16.msra.mxu0 %v5154
    %5640 = vmatpush.bf16.msra.mxu0 %v5150
    %5641 = vmatpush.bf16.msra.mxu0 %v5146
    %5642 = vmatpush.bf16.msra.mxu0 %v5142
    %5643 = vmatmul.bf16.gmra.mxu0 %v4079
    %v5644 = vpop.f32.mrf.mxu0
    %v5645 = vadd.f32 %v5632, %v5644
    %v5646 = vpop.f32.mrf.mxu0
    %5647 = vdwg.mxu0
    %5648 = vmatpush.bf16.msra.mxu0 %v5202
    %5649 = vmatpush.bf16.msra.mxu0 %v5198
    %5650 = vmatpush.bf16.msra.mxu0 %v5194
    %5651 = vmatpush.bf16.msra.mxu0 %v5190
    %5652 = vmatpush.bf16.msra.mxu0 %v5186
    %5653 = vmatpush.bf16.msra.mxu0 %v5182
    %5654 = vmatpush.bf16.msra.mxu0 %v5178
    %5655 = vmatpush.bf16.msra.mxu0 %v5174
    %5656 = vmatmul.bf16.gmra.mxu0 %v4080
    %v5657 = vpop.f32.mrf.mxu0
    %v5658 = vadd.f32 %v5645, %v5657
    %v5659 = vpop.f32.mrf.mxu0
    %5660 = vdwg.mxu0
    %5661 = vmatpush.bf16.msra.mxu0 %v5234
    %5662 = vmatpush.bf16.msra.mxu0 %v5230
    %5663 = vmatpush.bf16.msra.mxu0 %v5226
    %5664 = vmatpush.bf16.msra.mxu0 %v5222
    %5665 = vmatpush.bf16.msra.mxu0 %v5218
    %5666 = vmatpush.bf16.msra.mxu0 %v5214
    %5667 = vmatpush.bf16.msra.mxu0 %v5210
    %5668 = vmatpush.bf16.msra.mxu0 %v5206
    %5669 = vmatmul.bf16.gmra.mxu0 %v4081
    %v5670 = vpop.f32.mrf.mxu0
    %v5671 = vadd.f32 %v5658, %v5670
    %v5672 = vpop.f32.mrf.mxu0
    %5673 = vdwg.mxu0
    %5674 = vmatpush.bf16.msra.mxu0 %v5266
    %5675 = vmatpush.bf16.msra.mxu0 %v5262
    %5676 = vmatpush.bf16.msra.mxu0 %v5258
    %5677 = vmatpush.bf16.msra.mxu0 %v5254
    %5678 = vmatpush.bf16.msra.mxu0 %v5250
    %5679 = vmatpush.bf16.msra.mxu0 %v5246
    %5680 = vmatpush.bf16.msra.mxu0 %v5242
    %5681 = vmatpush.bf16.msra.mxu0 %v5238
    %5682 = vmatmul.bf16.gmra.mxu0 %v4082
    %v5683 = vpop.f32.mrf.mxu0
    %v5684 = vadd.f32 %v5671, %v5683
    %v5685 = vpop.f32.mrf.mxu0
    %5686 = vdwg.mxu0
    %5687 = vmatpush.bf16.msra.mxu0 %v5298
    %5688 = vmatpush.bf16.msra.mxu0 %v5294
    %5689 = vmatpush.bf16.msra.mxu0 %v5290
    %5690 = vmatpush.bf16.msra.mxu0 %v5286
    %5691 = vmatpush.bf16.msra.mxu0 %v5282
    %5692 = vmatpush.bf16.msra.mxu0 %v5278
    %5693 = vmatpush.bf16.msra.mxu0 %v5274
    %5694 = vmatpush.bf16.msra.mxu0 %v5270
    %5695 = vmatmul.bf16.gmra.mxu0 %v4083
    %v5696 = vpop.f32.mrf.mxu0
    %v5697 = vadd.f32 %v5684, %v5696
    %v5698 = vpop.f32.mrf.mxu0
    %5699 = vdwg.mxu0
    %5700 = vmatpush.bf16.msra.mxu0 %v5330
    %5701 = vmatpush.bf16.msra.mxu0 %v5326
    %5702 = vmatpush.bf16.msra.mxu0 %v5322
    %5703 = vmatpush.bf16.msra.mxu0 %v5318
    %5704 = vmatpush.bf16.msra.mxu0 %v5314
    %5705 = vmatpush.bf16.msra.mxu0 %v5310
    %5706 = vmatpush.bf16.msra.mxu0 %v5306
    %5707 = vmatpush.bf16.msra.mxu0 %v5302
    %5708 = vmatmul.bf16.gmra.mxu0 %v4084
    %v5709 = vpop.f32.mrf.mxu0
    %v5710 = vadd.f32 %v5697, %v5709
    %v5711 = vpop.f32.mrf.mxu0
    %5712 = vdwg.mxu0
    %5713 = vmatpush.bf16.msra.mxu0 %v5362
    %5714 = vmatpush.bf16.msra.mxu0 %v5358
    %5715 = vmatpush.bf16.msra.mxu0 %v5354
    %5716 = vmatpush.bf16.msra.mxu0 %v5350
    %5717 = vmatpush.bf16.msra.mxu0 %v5346
    %5718 = vmatpush.bf16.msra.mxu0 %v5342
    %5719 = vmatpush.bf16.msra.mxu0 %v5338
    %5720 = vmatpush.bf16.msra.mxu0 %v5334
    %5721 = vmatmul.bf16.gmra.mxu0 %v4085
    %v5722 = vpop.f32.mrf.mxu0
    %v5723 = vadd.f32 %v5710, %v5722
    %v5724 = vpop.f32.mrf.mxu0
    %5725 = vdwg.mxu0
    %5726 = vmatpush.bf16.msra.mxu0 %v5139
    %5727 = vmatpush.bf16.msra.mxu0 %v5135
    %5728 = vmatpush.bf16.msra.mxu0 %v5131
    %5729 = vmatpush.bf16.msra.mxu0 %v5127
    %5730 = vmatpush.bf16.msra.mxu0 %v5123
    %5731 = vmatpush.bf16.msra.mxu0 %v5119
    %5732 = vmatpush.bf16.msra.mxu0 %v5115
    %5733 = vmatpush.bf16.msra.mxu0 %v5111
    %5734 = vmatmul.bf16.gmra.mxu0 %v4078
    %v5735 = vpop.f32.mrf.mxu0
    %v5736 = vadd.f32 0.0, %v5735
    %v5737 = vpop.f32.mrf.mxu0
    %5738 = vdwg.mxu0
    %5739 = vmatpush.bf16.msra.mxu0 %v5171
    %5740 = vmatpush.bf16.msra.mxu0 %v5167
    %5741 = vmatpush.bf16.msra.mxu0 %v5163
    %5742 = vmatpush.bf16.msra.mxu0 %v5159
    %5743 = vmatpush.bf16.msra.mxu0 %v5155
    %5744 = vmatpush.bf16.msra.mxu0 %v5151
    %5745 = vmatpush.bf16.msra.mxu0 %v5147
    %5746 = vmatpush.bf16.msra.mxu0 %v5143
    %5747 = vmatmul.bf16.gmra.mxu0 %v4079
    %v5748 = vpop.f32.mrf.mxu0
    %v5749 = vadd.f32 %v5736, %v5748
    %v5750 = vpop.f32.mrf.mxu0
    %5751 = vdwg.mxu0
    %5752 = vmatpush.bf16.msra.mxu0 %v5203
    %5753 = vmatpush.bf16.msra.mxu0 %v5199
    %5754 = vmatpush.bf16.msra.mxu0 %v5195
    %5755 = vmatpush.bf16.msra.mxu0 %v5191
    %5756 = vmatpush.bf16.msra.mxu0 %v5187
    %5757 = vmatpush.bf16.msra.mxu0 %v5183
    %5758 = vmatpush.bf16.msra.mxu0 %v5179
    %5759 = vmatpush.bf16.msra.mxu0 %v5175
    %5760 = vmatmul.bf16.gmra.mxu0 %v4080
    %v5761 = vpop.f32.mrf.mxu0
    %v5762 = vadd.f32 %v5749, %v5761
    %v5763 = vpop.f32.mrf.mxu0
    %5764 = vdwg.mxu0
    %5765 = vmatpush.bf16.msra.mxu0 %v5235
    %5766 = vmatpush.bf16.msra.mxu0 %v5231
    %5767 = vmatpush.bf16.msra.mxu0 %v5227
    %5768 = vmatpush.bf16.msra.mxu0 %v5223
    %5769 = vmatpush.bf16.msra.mxu0 %v5219
    %5770 = vmatpush.bf16.msra.mxu0 %v5215
    %5771 = vmatpush.bf16.msra.mxu0 %v5211
    %5772 = vmatpush.bf16.msra.mxu0 %v5207
    %5773 = vmatmul.bf16.gmra.mxu0 %v4081
    %v5774 = vpop.f32.mrf.mxu0
    %v5775 = vadd.f32 %v5762, %v5774
    %v5776 = vpop.f32.mrf.mxu0
    %5777 = vdwg.mxu0
    %5778 = vmatpush.bf16.msra.mxu0 %v5267
    %5779 = vmatpush.bf16.msra.mxu0 %v5263
    %5780 = vmatpush.bf16.msra.mxu0 %v5259
    %5781 = vmatpush.bf16.msra.mxu0 %v5255
    %5782 = vmatpush.bf16.msra.mxu0 %v5251
    %5783 = vmatpush.bf16.msra.mxu0 %v5247
    %5784 = vmatpush.bf16.msra.mxu0 %v5243
    %5785 = vmatpush.bf16.msra.mxu0 %v5239
    %5786 = vmatmul.bf16.gmra.mxu0 %v4082
    %v5787 = vpop.f32.mrf.mxu0
    %v5788 = vadd.f32 %v5775, %v5787
    %v5789 = vpop.f32.mrf.mxu0
    %5790 = vdwg.mxu0
    %5791 = vmatpush.bf16.msra.mxu0 %v5299
    %5792 = vmatpush.bf16.msra.mxu0 %v5295
    %5793 = vmatpush.bf16.msra.mxu0 %v5291
    %5794 = vmatpush.bf16.msra.mxu0 %v5287
    %5795 = vmatpush.bf16.msra.mxu0 %v5283
    %5796 = vmatpush.bf16.msra.mxu0 %v5279
    %5797 = vmatpush.bf16.msra.mxu0 %v5275
    %5798 = vmatpush.bf16.msra.mxu0 %v5271
    %5799 = vmatmul.bf16.gmra.mxu0 %v4083
    %v5800 = vpop.f32.mrf.mxu0
    %v5801 = vadd.f32 %v5788, %v5800
    %v5802 = vpop.f32.mrf.mxu0
    %5803 = vdwg.mxu0
    %5804 = vmatpush.bf16.msra.mxu0 %v5331
    %5805 = vmatpush.bf16.msra.mxu0 %v5327
    %5806 = vmatpush.bf16.msra.mxu0 %v5323
    %5807 = vmatpush.bf16.msra.mxu0 %v5319
    %5808 = vmatpush.bf16.msra.mxu0 %v5315
    %5809 = vmatpush.bf16.msra.mxu0 %v5311
    %5810 = vmatpush.bf16.msra.mxu0 %v5307
    %5811 = vmatpush.bf16.msra.mxu0 %v5303
    %5812 = vmatmul.bf16.gmra.mxu0 %v4084
    %v5813 = vpop.f32.mrf.mxu0
    %v5814 = vadd.f32 %v5801, %v5813
    %v5815 = vpop.f32.mrf.mxu0
    %5816 = vdwg.mxu0
    %5817 = vmatpush.bf16.msra.mxu0 %v5363
    %5818 = vmatpush.bf16.msra.mxu0 %v5359
    %5819 = vmatpush.bf16.msra.mxu0 %v5355
    %5820 = vmatpush.bf16.msra.mxu0 %v5351
    %5821 = vmatpush.bf16.msra.mxu0 %v5347
    %5822 = vmatpush.bf16.msra.mxu0 %v5343
    %5823 = vmatpush.bf16.msra.mxu0 %v5339
    %5824 = vmatpush.bf16.msra.mxu0 %v5335
    %5825 = vmatmul.bf16.gmra.mxu0 %v4085
    %v5826 = vpop.f32.mrf.mxu0
    %v5827 = vadd.f32 %v5814, %v5826
    %v5828 = vpop.f32.mrf.mxu0
    %5829 = vdwg.mxu0
    %5830 = vmatpush.bf16.msra.mxu0 %v5140
    %5831 = vmatpush.bf16.msra.mxu0 %v5136
    %5832 = vmatpush.bf16.msra.mxu0 %v5132
    %5833 = vmatpush.bf16.msra.mxu0 %v5128
    %5834 = vmatpush.bf16.msra.mxu0 %v5124
    %5835 = vmatpush.bf16.msra.mxu0 %v5120
    %5836 = vmatpush.bf16.msra.mxu0 %v5116
    %5837 = vmatpush.bf16.msra.mxu0 %v5112
    %5838 = vmatmul.bf16.gmra.mxu0 %v4078
    %v5839 = vpop.f32.mrf.mxu0
    %v5840 = vadd.f32 0.0, %v5839
    %v5841 = vpop.f32.mrf.mxu0
    %5842 = vdwg.mxu0
    %5843 = vmatpush.bf16.msra.mxu0 %v5172
    %5844 = vmatpush.bf16.msra.mxu0 %v5168
    %5845 = vmatpush.bf16.msra.mxu0 %v5164
    %5846 = vmatpush.bf16.msra.mxu0 %v5160
    %5847 = vmatpush.bf16.msra.mxu0 %v5156
    %5848 = vmatpush.bf16.msra.mxu0 %v5152
    %5849 = vmatpush.bf16.msra.mxu0 %v5148
    %5850 = vmatpush.bf16.msra.mxu0 %v5144
    %5851 = vmatmul.bf16.gmra.mxu0 %v4079
    %v5852 = vpop.f32.mrf.mxu0
    %v5853 = vadd.f32 %v5840, %v5852
    %v5854 = vpop.f32.mrf.mxu0
    %5855 = vdwg.mxu0
    %5856 = vmatpush.bf16.msra.mxu0 %v5204
    %5857 = vmatpush.bf16.msra.mxu0 %v5200
    %5858 = vmatpush.bf16.msra.mxu0 %v5196
    %5859 = vmatpush.bf16.msra.mxu0 %v5192
    %5860 = vmatpush.bf16.msra.mxu0 %v5188
    %5861 = vmatpush.bf16.msra.mxu0 %v5184
    %5862 = vmatpush.bf16.msra.mxu0 %v5180
    %5863 = vmatpush.bf16.msra.mxu0 %v5176
    %5864 = vmatmul.bf16.gmra.mxu0 %v4080
    %v5865 = vpop.f32.mrf.mxu0
    %v5866 = vadd.f32 %v5853, %v5865
    %v5867 = vpop.f32.mrf.mxu0
    %5868 = vdwg.mxu0
    %5869 = vmatpush.bf16.msra.mxu0 %v5236
    %5870 = vmatpush.bf16.msra.mxu0 %v5232
    %5871 = vmatpush.bf16.msra.mxu0 %v5228
    %5872 = vmatpush.bf16.msra.mxu0 %v5224
    %5873 = vmatpush.bf16.msra.mxu0 %v5220
    %5874 = vmatpush.bf16.msra.mxu0 %v5216
    %5875 = vmatpush.bf16.msra.mxu0 %v5212
    %5876 = vmatpush.bf16.msra.mxu0 %v5208
    %5877 = vmatmul.bf16.gmra.mxu0 %v4081
    %v5878 = vpop.f32.mrf.mxu0
    %v5879 = vadd.f32 %v5866, %v5878
    %v5880 = vpop.f32.mrf.mxu0
    %5881 = vdwg.mxu0
    %5882 = vmatpush.bf16.msra.mxu0 %v5268
    %5883 = vmatpush.bf16.msra.mxu0 %v5264
    %5884 = vmatpush.bf16.msra.mxu0 %v5260
    %5885 = vmatpush.bf16.msra.mxu0 %v5256
    %5886 = vmatpush.bf16.msra.mxu0 %v5252
    %5887 = vmatpush.bf16.msra.mxu0 %v5248
    %5888 = vmatpush.bf16.msra.mxu0 %v5244
    %5889 = vmatpush.bf16.msra.mxu0 %v5240
    %5890 = vmatmul.bf16.gmra.mxu0 %v4082
    %v5891 = vpop.f32.mrf.mxu0
    %v5892 = vadd.f32 %v5879, %v5891
    %v5893 = vpop.f32.mrf.mxu0
    %5894 = vdwg.mxu0
    %5895 = vmatpush.bf16.msra.mxu0 %v5300
    %5896 = vmatpush.bf16.msra.mxu0 %v5296
    %5897 = vmatpush.bf16.msra.mxu0 %v5292
    %5898 = vmatpush.bf16.msra.mxu0 %v5288
    %5899 = vmatpush.bf16.msra.mxu0 %v5284
    %5900 = vmatpush.bf16.msra.mxu0 %v5280
    %5901 = vmatpush.bf16.msra.mxu0 %v5276
    %5902 = vmatpush.bf16.msra.mxu0 %v5272
    %5903 = vmatmul.bf16.gmra.mxu0 %v4083
    %v5904 = vpop.f32.mrf.mxu0
    %v5905 = vadd.f32 %v5892, %v5904
    %v5906 = vpop.f32.mrf.mxu0
    %5907 = vdwg.mxu0
    %5908 = vmatpush.bf16.msra.mxu0 %v5332
    %5909 = vmatpush.bf16.msra.mxu0 %v5328
    %5910 = vmatpush.bf16.msra.mxu0 %v5324
    %5911 = vmatpush.bf16.msra.mxu0 %v5320
    %5912 = vmatpush.bf16.msra.mxu0 %v5316
    %5913 = vmatpush.bf16.msra.mxu0 %v5312
    %5914 = vmatpush.bf16.msra.mxu0 %v5308
    %5915 = vmatpush.bf16.msra.mxu0 %v5304
    %5916 = vmatmul.bf16.gmra.mxu0 %v4084
    %v5917 = vpop.f32.mrf.mxu0
    %v5918 = vadd.f32 %v5905, %v5917
    %v5919 = vpop.f32.mrf.mxu0
    %5920 = vdwg.mxu0
    %5921 = vmatpush.bf16.msra.mxu0 %v5364
    %5922 = vmatpush.bf16.msra.mxu0 %v5360
    %5923 = vmatpush.bf16.msra.mxu0 %v5356
    %5924 = vmatpush.bf16.msra.mxu0 %v5352
    %5925 = vmatpush.bf16.msra.mxu0 %v5348
    %5926 = vmatpush.bf16.msra.mxu0 %v5344
    %5927 = vmatpush.bf16.msra.mxu0 %v5340
    %5928 = vmatpush.bf16.msra.mxu0 %v5336
    %5929 = vmatmul.bf16.gmra.mxu0 %v4085
    %v5930 = vpop.f32.mrf.mxu0
    %v5931 = vadd.f32 %v5918, %v5930
    %v5932 = vpop.f32.mrf.mxu0
    %5933 = vdwg.mxu0
    %5934 = vmatpush.bf16.msra.mxu0 %v5141
    %5935 = vmatpush.bf16.msra.mxu0 %v5137
    %5936 = vmatpush.bf16.msra.mxu0 %v5133
    %5937 = vmatpush.bf16.msra.mxu0 %v5129
    %5938 = vmatpush.bf16.msra.mxu0 %v5125
    %5939 = vmatpush.bf16.msra.mxu0 %v5121
    %5940 = vmatpush.bf16.msra.mxu0 %v5117
    %5941 = vmatpush.bf16.msra.mxu0 %v5113
    %5942 = vmatmul.bf16.gmra.mxu0 %v4078
    %v5943 = vpop.f32.mrf.mxu0
    %v5944 = vadd.f32 0.0, %v5943
    %v5945 = vpop.f32.mrf.mxu0
    %5946 = vdwg.mxu0
    %5947 = vmatpush.bf16.msra.mxu0 %v5173
    %5948 = vmatpush.bf16.msra.mxu0 %v5169
    %5949 = vmatpush.bf16.msra.mxu0 %v5165
    %5950 = vmatpush.bf16.msra.mxu0 %v5161
    %5951 = vmatpush.bf16.msra.mxu0 %v5157
    %5952 = vmatpush.bf16.msra.mxu0 %v5153
    %5953 = vmatpush.bf16.msra.mxu0 %v5149
    %5954 = vmatpush.bf16.msra.mxu0 %v5145
    %5955 = vmatmul.bf16.gmra.mxu0 %v4079
    %v5956 = vpop.f32.mrf.mxu0
    %v5957 = vadd.f32 %v5944, %v5956
    %v5958 = vpop.f32.mrf.mxu0
    %5959 = vdwg.mxu0
    %5960 = vmatpush.bf16.msra.mxu0 %v5205
    %5961 = vmatpush.bf16.msra.mxu0 %v5201
    %5962 = vmatpush.bf16.msra.mxu0 %v5197
    %5963 = vmatpush.bf16.msra.mxu0 %v5193
    %5964 = vmatpush.bf16.msra.mxu0 %v5189
    %5965 = vmatpush.bf16.msra.mxu0 %v5185
    %5966 = vmatpush.bf16.msra.mxu0 %v5181
    %5967 = vmatpush.bf16.msra.mxu0 %v5177
    %5968 = vmatmul.bf16.gmra.mxu0 %v4080
    %v5969 = vpop.f32.mrf.mxu0
    %v5970 = vadd.f32 %v5957, %v5969
    %v5971 = vpop.f32.mrf.mxu0
    %5972 = vdwg.mxu0
    %5973 = vmatpush.bf16.msra.mxu0 %v5237
    %5974 = vmatpush.bf16.msra.mxu0 %v5233
    %5975 = vmatpush.bf16.msra.mxu0 %v5229
    %5976 = vmatpush.bf16.msra.mxu0 %v5225
    %5977 = vmatpush.bf16.msra.mxu0 %v5221
    %5978 = vmatpush.bf16.msra.mxu0 %v5217
    %5979 = vmatpush.bf16.msra.mxu0 %v5213
    %5980 = vmatpush.bf16.msra.mxu0 %v5209
    %5981 = vmatmul.bf16.gmra.mxu0 %v4081
    %v5982 = vpop.f32.mrf.mxu0
    %v5983 = vadd.f32 %v5970, %v5982
    %v5984 = vpop.f32.mrf.mxu0
    %5985 = vdwg.mxu0
    %5986 = vmatpush.bf16.msra.mxu0 %v5269
    %5987 = vmatpush.bf16.msra.mxu0 %v5265
    %5988 = vmatpush.bf16.msra.mxu0 %v5261
    %5989 = vmatpush.bf16.msra.mxu0 %v5257
    %5990 = vmatpush.bf16.msra.mxu0 %v5253
    %5991 = vmatpush.bf16.msra.mxu0 %v5249
    %5992 = vmatpush.bf16.msra.mxu0 %v5245
    %5993 = vmatpush.bf16.msra.mxu0 %v5241
    %5994 = vmatmul.bf16.gmra.mxu0 %v4082
    %v5995 = vpop.f32.mrf.mxu0
    %v5996 = vadd.f32 %v5983, %v5995
    %v5997 = vpop.f32.mrf.mxu0
    %5998 = vdwg.mxu0
    %5999 = vmatpush.bf16.msra.mxu0 %v5301
    %6000 = vmatpush.bf16.msra.mxu0 %v5297
    %6001 = vmatpush.bf16.msra.mxu0 %v5293
    %6002 = vmatpush.bf16.msra.mxu0 %v5289
    %6003 = vmatpush.bf16.msra.mxu0 %v5285
    %6004 = vmatpush.bf16.msra.mxu0 %v5281
    %6005 = vmatpush.bf16.msra.mxu0 %v5277
    %6006 = vmatpush.bf16.msra.mxu0 %v5273
    %6007 = vmatmul.bf16.gmra.mxu0 %v4083
    %v6008 = vpop.f32.mrf.mxu0
    %v6009 = vadd.f32 %v5996, %v6008
    %v6010 = vpop.f32.mrf.mxu0
    %6011 = vdwg.mxu0
    %6012 = vmatpush.bf16.msra.mxu0 %v5333
    %6013 = vmatpush.bf16.msra.mxu0 %v5329
    %6014 = vmatpush.bf16.msra.mxu0 %v5325
    %6015 = vmatpush.bf16.msra.mxu0 %v5321
    %6016 = vmatpush.bf16.msra.mxu0 %v5317
    %6017 = vmatpush.bf16.msra.mxu0 %v5313
    %6018 = vmatpush.bf16.msra.mxu0 %v5309
    %6019 = vmatpush.bf16.msra.mxu0 %v5305
    %6020 = vmatmul.bf16.gmra.mxu0 %v4084
    %v6021 = vpop.f32.mrf.mxu0
    %v6022 = vadd.f32 %v6009, %v6021
    %v6023 = vpop.f32.mrf.mxu0
    %6024 = vdwg.mxu0
    %6025 = vmatpush.bf16.msra.mxu0 %v5365
    %6026 = vmatpush.bf16.msra.mxu0 %v5361
    %6027 = vmatpush.bf16.msra.mxu0 %v5357
    %6028 = vmatpush.bf16.msra.mxu0 %v5353
    %6029 = vmatpush.bf16.msra.mxu0 %v5349
    %6030 = vmatpush.bf16.msra.mxu0 %v5345
    %6031 = vmatpush.bf16.msra.mxu0 %v5341
    %6032 = vmatpush.bf16.msra.mxu0 %v5337
    %6033 = vmatmul.bf16.gmra.mxu0 %v4085
    %v6034 = vpop.f32.mrf.mxu0
    %v6035 = vadd.f32 %v6022, %v6034
    %v6036 = vpop.f32.mrf.mxu0
    %6037 = vdwg.mxu0
    %v6038 = vld [vmem:[#allocation6] sm:$0xff]
    %v6039 = vld [vmem:[#allocation6 + $0x8] sm:$0xff]
    %v6040 = vld [vmem:[#allocation6 + $0x10] sm:$0xff]
    %v6041 = vld [vmem:[#allocation6 + $0x18] sm:$0xff]
    %v6042 = vld [vmem:[#allocation6 + $0x20] sm:$0xff]
    %v6043 = vld [vmem:[#allocation6 + $0x28] sm:$0xff]
    %v6044 = vld [vmem:[#allocation6 + $0x30] sm:$0xff]
    %v6045 = vld [vmem:[#allocation6 + $0x38] sm:$0xff]
    %v6046 = vld [vmem:[#allocation6 + $0x40] sm:$0xff]
    %v6047 = vld [vmem:[#allocation6 + $0x48] sm:$0xff]
    %v6048 = vld [vmem:[#allocation6 + $0x50] sm:$0xff]
    %v6049 = vld [vmem:[#allocation6 + $0x58] sm:$0xff]
    %v6050 = vld [vmem:[#allocation6 + $0x60] sm:$0xff]
    %v6051 = vld [vmem:[#allocation6 + $0x68] sm:$0xff]
    %v6052 = vld [vmem:[#allocation6 + $0x70] sm:$0xff]
    %v6053 = vld [vmem:[#allocation6 + $0x78] sm:$0xff]
    %v6054 = vld [vmem:[#allocation6 + $0x80] sm:$0xff]
    %v6055 = vld [vmem:[#allocation6 + $0x88] sm:$0xff]
    %v6056 = vld [vmem:[#allocation6 + $0x90] sm:$0xff]
    %v6057 = vld [vmem:[#allocation6 + $0x98] sm:$0xff]
    %v6058 = vld [vmem:[#allocation6 + $0xa0] sm:$0xff]
    %v6059 = vld [vmem:[#allocation6 + $0xa8] sm:$0xff]
    %v6060 = vld [vmem:[#allocation6 + $0xb0] sm:$0xff]
    %v6061 = vld [vmem:[#allocation6 + $0xb8] sm:$0xff]
    %v6062 = vld [vmem:[#allocation6 + $0xc0] sm:$0xff]
    %v6063 = vld [vmem:[#allocation6 + $0xc8] sm:$0xff]
    %v6064 = vld [vmem:[#allocation6 + $0xd0] sm:$0xff]
    %v6065 = vld [vmem:[#allocation6 + $0xd8] sm:$0xff]
    %v6066 = vld [vmem:[#allocation6 + $0xe0] sm:$0xff]
    %v6067 = vld [vmem:[#allocation6 + $0xe8] sm:$0xff]
    %v6068 = vld [vmem:[#allocation6 + $0xf0] sm:$0xff]
    %v6069 = vld [vmem:[#allocation6 + $0xf8] sm:$0xff]
    %v6070 = vld [vmem:[#allocation6 + $0x100] sm:$0xff]
    %v6071 = vld [vmem:[#allocation6 + $0x108] sm:$0xff]
    %v6072 = vld [vmem:[#allocation6 + $0x110] sm:$0xff]
    %v6073 = vld [vmem:[#allocation6 + $0x118] sm:$0xff]
    %v6074 = vld [vmem:[#allocation6 + $0x120] sm:$0xff]
    %v6075 = vld [vmem:[#allocation6 + $0x128] sm:$0xff]
    %v6076 = vld [vmem:[#allocation6 + $0x130] sm:$0xff]
    %v6077 = vld [vmem:[#allocation6 + $0x138] sm:$0xff]
    %v6078 = vld [vmem:[#allocation6 + $0x140] sm:$0xff]
    %v6079 = vld [vmem:[#allocation6 + $0x148] sm:$0xff]
    %v6080 = vld [vmem:[#allocation6 + $0x150] sm:$0xff]
    %v6081 = vld [vmem:[#allocation6 + $0x158] sm:$0xff]
    %v6082 = vld [vmem:[#allocation6 + $0x160] sm:$0xff]
    %v6083 = vld [vmem:[#allocation6 + $0x168] sm:$0xff]
    %v6084 = vld [vmem:[#allocation6 + $0x170] sm:$0xff]
    %v6085 = vld [vmem:[#allocation6 + $0x178] sm:$0xff]
    %v6086 = vld [vmem:[#allocation6 + $0x180] sm:$0xff]
    %v6087 = vld [vmem:[#allocation6 + $0x188] sm:$0xff]
    %v6088 = vld [vmem:[#allocation6 + $0x190] sm:$0xff]
    %v6089 = vld [vmem:[#allocation6 + $0x198] sm:$0xff]
    %v6090 = vld [vmem:[#allocation6 + $0x1a0] sm:$0xff]
    %v6091 = vld [vmem:[#allocation6 + $0x1a8] sm:$0xff]
    %v6092 = vld [vmem:[#allocation6 + $0x1b0] sm:$0xff]
    %v6093 = vld [vmem:[#allocation6 + $0x1b8] sm:$0xff]
    %v6094 = vld [vmem:[#allocation6 + $0x1c0] sm:$0xff]
    %v6095 = vld [vmem:[#allocation6 + $0x1c8] sm:$0xff]
    %v6096 = vld [vmem:[#allocation6 + $0x1d0] sm:$0xff]
    %v6097 = vld [vmem:[#allocation6 + $0x1d8] sm:$0xff]
    %v6098 = vld [vmem:[#allocation6 + $0x1e0] sm:$0xff]
    %v6099 = vld [vmem:[#allocation6 + $0x1e8] sm:$0xff]
    %v6100 = vld [vmem:[#allocation6 + $0x1f0] sm:$0xff]
    %v6101 = vld [vmem:[#allocation6 + $0x1f8] sm:$0xff]
    %v6102 = vld [vmem:[#allocation6 + $0x200] sm:$0xff]
    %v6103 = vld [vmem:[#allocation6 + $0x208] sm:$0xff]
    %v6104 = vld [vmem:[#allocation6 + $0x210] sm:$0xff]
    %v6105 = vld [vmem:[#allocation6 + $0x218] sm:$0xff]
    %v6106 = vld [vmem:[#allocation6 + $0x220] sm:$0xff]
    %v6107 = vld [vmem:[#allocation6 + $0x228] sm:$0xff]
    %v6108 = vld [vmem:[#allocation6 + $0x230] sm:$0xff]
    %v6109 = vld [vmem:[#allocation6 + $0x238] sm:$0xff]
    %v6110 = vld [vmem:[#allocation6 + $0x240] sm:$0xff]
    %v6111 = vld [vmem:[#allocation6 + $0x248] sm:$0xff]
    %v6112 = vld [vmem:[#allocation6 + $0x250] sm:$0xff]
    %v6113 = vld [vmem:[#allocation6 + $0x258] sm:$0xff]
    %v6114 = vld [vmem:[#allocation6 + $0x260] sm:$0xff]
    %v6115 = vld [vmem:[#allocation6 + $0x268] sm:$0xff]
    %v6116 = vld [vmem:[#allocation6 + $0x270] sm:$0xff]
    %v6117 = vld [vmem:[#allocation6 + $0x278] sm:$0xff]
    %v6118 = vld [vmem:[#allocation6 + $0x280] sm:$0xff]
    %v6119 = vld [vmem:[#allocation6 + $0x288] sm:$0xff]
    %v6120 = vld [vmem:[#allocation6 + $0x290] sm:$0xff]
    %v6121 = vld [vmem:[#allocation6 + $0x298] sm:$0xff]
    %v6122 = vld [vmem:[#allocation6 + $0x2a0] sm:$0xff]
    %v6123 = vld [vmem:[#allocation6 + $0x2a8] sm:$0xff]
    %v6124 = vld [vmem:[#allocation6 + $0x2b0] sm:$0xff]
    %v6125 = vld [vmem:[#allocation6 + $0x2b8] sm:$0xff]
    %v6126 = vld [vmem:[#allocation6 + $0x2c0] sm:$0xff]
    %v6127 = vld [vmem:[#allocation6 + $0x2c8] sm:$0xff]
    %v6128 = vld [vmem:[#allocation6 + $0x2d0] sm:$0xff]
    %v6129 = vld [vmem:[#allocation6 + $0x2d8] sm:$0xff]
    %v6130 = vld [vmem:[#allocation6 + $0x2e0] sm:$0xff]
    %v6131 = vld [vmem:[#allocation6 + $0x2e8] sm:$0xff]
    %v6132 = vld [vmem:[#allocation6 + $0x2f0] sm:$0xff]
    %v6133 = vld [vmem:[#allocation6 + $0x2f8] sm:$0xff]
    %v6134 = vld [vmem:[#allocation6 + $0x300] sm:$0xff]
    %v6135 = vld [vmem:[#allocation6 + $0x308] sm:$0xff]
    %v6136 = vld [vmem:[#allocation6 + $0x310] sm:$0xff]
    %v6137 = vld [vmem:[#allocation6 + $0x318] sm:$0xff]
    %v6138 = vld [vmem:[#allocation6 + $0x320] sm:$0xff]
    %v6139 = vld [vmem:[#allocation6 + $0x328] sm:$0xff]
    %v6140 = vld [vmem:[#allocation6 + $0x330] sm:$0xff]
    %v6141 = vld [vmem:[#allocation6 + $0x338] sm:$0xff]
    %v6142 = vld [vmem:[#allocation6 + $0x340] sm:$0xff]
    %v6143 = vld [vmem:[#allocation6 + $0x348] sm:$0xff]
    %v6144 = vld [vmem:[#allocation6 + $0x350] sm:$0xff]
    %v6145 = vld [vmem:[#allocation6 + $0x358] sm:$0xff]
    %v6146 = vld [vmem:[#allocation6 + $0x360] sm:$0xff]
    %v6147 = vld [vmem:[#allocation6 + $0x368] sm:$0xff]
    %v6148 = vld [vmem:[#allocation6 + $0x370] sm:$0xff]
    %v6149 = vld [vmem:[#allocation6 + $0x378] sm:$0xff]
    %v6150 = vld [vmem:[#allocation6 + $0x380] sm:$0xff]
    %v6151 = vld [vmem:[#allocation6 + $0x388] sm:$0xff]
    %v6152 = vld [vmem:[#allocation6 + $0x390] sm:$0xff]
    %v6153 = vld [vmem:[#allocation6 + $0x398] sm:$0xff]
    %v6154 = vld [vmem:[#allocation6 + $0x3a0] sm:$0xff]
    %v6155 = vld [vmem:[#allocation6 + $0x3a8] sm:$0xff]
    %v6156 = vld [vmem:[#allocation6 + $0x3b0] sm:$0xff]
    %v6157 = vld [vmem:[#allocation6 + $0x3b8] sm:$0xff]
    %v6158 = vld [vmem:[#allocation6 + $0x3c0] sm:$0xff]
    %v6159 = vld [vmem:[#allocation6 + $0x3c8] sm:$0xff]
    %v6160 = vld [vmem:[#allocation6 + $0x3d0] sm:$0xff]
    %v6161 = vld [vmem:[#allocation6 + $0x3d8] sm:$0xff]
    %v6162 = vld [vmem:[#allocation6 + $0x3e0] sm:$0xff]
    %v6163 = vld [vmem:[#allocation6 + $0x3e8] sm:$0xff]
    %v6164 = vld [vmem:[#allocation6 + $0x3f0] sm:$0xff]
    %v6165 = vld [vmem:[#allocation6 + $0x3f8] sm:$0xff]
    %v6166 = vld [vmem:[#allocation6 + $0x400] sm:$0xff]
    %v6167 = vld [vmem:[#allocation6 + $0x408] sm:$0xff]
    %v6168 = vld [vmem:[#allocation6 + $0x410] sm:$0xff]
    %v6169 = vld [vmem:[#allocation6 + $0x418] sm:$0xff]
    %v6170 = vld [vmem:[#allocation6 + $0x420] sm:$0xff]
    %v6171 = vld [vmem:[#allocation6 + $0x428] sm:$0xff]
    %v6172 = vld [vmem:[#allocation6 + $0x430] sm:$0xff]
    %v6173 = vld [vmem:[#allocation6 + $0x438] sm:$0xff]
    %v6174 = vld [vmem:[#allocation6 + $0x440] sm:$0xff]
    %v6175 = vld [vmem:[#allocation6 + $0x448] sm:$0xff]
    %v6176 = vld [vmem:[#allocation6 + $0x450] sm:$0xff]
    %v6177 = vld [vmem:[#allocation6 + $0x458] sm:$0xff]
    %v6178 = vld [vmem:[#allocation6 + $0x460] sm:$0xff]
    %v6179 = vld [vmem:[#allocation6 + $0x468] sm:$0xff]
    %v6180 = vld [vmem:[#allocation6 + $0x470] sm:$0xff]
    %v6181 = vld [vmem:[#allocation6 + $0x478] sm:$0xff]
    %v6182 = vld [vmem:[#allocation6 + $0x480] sm:$0xff]
    %v6183 = vld [vmem:[#allocation6 + $0x488] sm:$0xff]
    %v6184 = vld [vmem:[#allocation6 + $0x490] sm:$0xff]
    %v6185 = vld [vmem:[#allocation6 + $0x498] sm:$0xff]
    %v6186 = vld [vmem:[#allocation6 + $0x4a0] sm:$0xff]
    %v6187 = vld [vmem:[#allocation6 + $0x4a8] sm:$0xff]
    %v6188 = vld [vmem:[#allocation6 + $0x4b0] sm:$0xff]
    %v6189 = vld [vmem:[#allocation6 + $0x4b8] sm:$0xff]
    %v6190 = vld [vmem:[#allocation6 + $0x4c0] sm:$0xff]
    %v6191 = vld [vmem:[#allocation6 + $0x4c8] sm:$0xff]
    %v6192 = vld [vmem:[#allocation6 + $0x4d0] sm:$0xff]
    %v6193 = vld [vmem:[#allocation6 + $0x4d8] sm:$0xff]
    %v6194 = vld [vmem:[#allocation6 + $0x4e0] sm:$0xff]
    %v6195 = vld [vmem:[#allocation6 + $0x4e8] sm:$0xff]
    %v6196 = vld [vmem:[#allocation6 + $0x4f0] sm:$0xff]
    %v6197 = vld [vmem:[#allocation6 + $0x4f8] sm:$0xff]
    %v6198 = vld [vmem:[#allocation6 + $0x500] sm:$0xff]
    %v6199 = vld [vmem:[#allocation6 + $0x508] sm:$0xff]
    %v6200 = vld [vmem:[#allocation6 + $0x510] sm:$0xff]
    %v6201 = vld [vmem:[#allocation6 + $0x518] sm:$0xff]
    %v6202 = vld [vmem:[#allocation6 + $0x520] sm:$0xff]
    %v6203 = vld [vmem:[#allocation6 + $0x528] sm:$0xff]
    %v6204 = vld [vmem:[#allocation6 + $0x530] sm:$0xff]
    %v6205 = vld [vmem:[#allocation6 + $0x538] sm:$0xff]
    %v6206 = vld [vmem:[#allocation6 + $0x540] sm:$0xff]
    %v6207 = vld [vmem:[#allocation6 + $0x548] sm:$0xff]
    %v6208 = vld [vmem:[#allocation6 + $0x550] sm:$0xff]
    %v6209 = vld [vmem:[#allocation6 + $0x558] sm:$0xff]
    %v6210 = vld [vmem:[#allocation6 + $0x560] sm:$0xff]
    %v6211 = vld [vmem:[#allocation6 + $0x568] sm:$0xff]
    %v6212 = vld [vmem:[#allocation6 + $0x570] sm:$0xff]
    %v6213 = vld [vmem:[#allocation6 + $0x578] sm:$0xff]
    %v6214 = vld [vmem:[#allocation6 + $0x580] sm:$0xff]
    %v6215 = vld [vmem:[#allocation6 + $0x588] sm:$0xff]
    %v6216 = vld [vmem:[#allocation6 + $0x590] sm:$0xff]
    %v6217 = vld [vmem:[#allocation6 + $0x598] sm:$0xff]
    %v6218 = vld [vmem:[#allocation6 + $0x5a0] sm:$0xff]
    %v6219 = vld [vmem:[#allocation6 + $0x5a8] sm:$0xff]
    %v6220 = vld [vmem:[#allocation6 + $0x5b0] sm:$0xff]
    %v6221 = vld [vmem:[#allocation6 + $0x5b8] sm:$0xff]
    %v6222 = vld [vmem:[#allocation6 + $0x5c0] sm:$0xff]
    %v6223 = vld [vmem:[#allocation6 + $0x5c8] sm:$0xff]
    %v6224 = vld [vmem:[#allocation6 + $0x5d0] sm:$0xff]
    %v6225 = vld [vmem:[#allocation6 + $0x5d8] sm:$0xff]
    %v6226 = vld [vmem:[#allocation6 + $0x5e0] sm:$0xff]
    %v6227 = vld [vmem:[#allocation6 + $0x5e8] sm:$0xff]
    %v6228 = vld [vmem:[#allocation6 + $0x5f0] sm:$0xff]
    %v6229 = vld [vmem:[#allocation6 + $0x5f8] sm:$0xff]
    %v6230 = vld [vmem:[#allocation6 + $0x600] sm:$0xff]
    %v6231 = vld [vmem:[#allocation6 + $0x608] sm:$0xff]
    %v6232 = vld [vmem:[#allocation6 + $0x610] sm:$0xff]
    %v6233 = vld [vmem:[#allocation6 + $0x618] sm:$0xff]
    %v6234 = vld [vmem:[#allocation6 + $0x620] sm:$0xff]
    %v6235 = vld [vmem:[#allocation6 + $0x628] sm:$0xff]
    %v6236 = vld [vmem:[#allocation6 + $0x630] sm:$0xff]
    %v6237 = vld [vmem:[#allocation6 + $0x638] sm:$0xff]
    %v6238 = vld [vmem:[#allocation6 + $0x640] sm:$0xff]
    %v6239 = vld [vmem:[#allocation6 + $0x648] sm:$0xff]
    %v6240 = vld [vmem:[#allocation6 + $0x650] sm:$0xff]
    %v6241 = vld [vmem:[#allocation6 + $0x658] sm:$0xff]
    %v6242 = vld [vmem:[#allocation6 + $0x660] sm:$0xff]
    %v6243 = vld [vmem:[#allocation6 + $0x668] sm:$0xff]
    %v6244 = vld [vmem:[#allocation6 + $0x670] sm:$0xff]
    %v6245 = vld [vmem:[#allocation6 + $0x678] sm:$0xff]
    %v6246 = vld [vmem:[#allocation6 + $0x680] sm:$0xff]
    %v6247 = vld [vmem:[#allocation6 + $0x688] sm:$0xff]
    %v6248 = vld [vmem:[#allocation6 + $0x690] sm:$0xff]
    %v6249 = vld [vmem:[#allocation6 + $0x698] sm:$0xff]
    %v6250 = vld [vmem:[#allocation6 + $0x6a0] sm:$0xff]
    %v6251 = vld [vmem:[#allocation6 + $0x6a8] sm:$0xff]
    %v6252 = vld [vmem:[#allocation6 + $0x6b0] sm:$0xff]
    %v6253 = vld [vmem:[#allocation6 + $0x6b8] sm:$0xff]
    %v6254 = vld [vmem:[#allocation6 + $0x6c0] sm:$0xff]
    %v6255 = vld [vmem:[#allocation6 + $0x6c8] sm:$0xff]
    %v6256 = vld [vmem:[#allocation6 + $0x6d0] sm:$0xff]
    %v6257 = vld [vmem:[#allocation6 + $0x6d8] sm:$0xff]
    %v6258 = vld [vmem:[#allocation6 + $0x6e0] sm:$0xff]
    %v6259 = vld [vmem:[#allocation6 + $0x6e8] sm:$0xff]
    %v6260 = vld [vmem:[#allocation6 + $0x6f0] sm:$0xff]
    %v6261 = vld [vmem:[#allocation6 + $0x6f8] sm:$0xff]
    %v6262 = vld [vmem:[#allocation6 + $0x700] sm:$0xff]
    %v6263 = vld [vmem:[#allocation6 + $0x708] sm:$0xff]
    %v6264 = vld [vmem:[#allocation6 + $0x710] sm:$0xff]
    %v6265 = vld [vmem:[#allocation6 + $0x718] sm:$0xff]
    %v6266 = vld [vmem:[#allocation6 + $0x720] sm:$0xff]
    %v6267 = vld [vmem:[#allocation6 + $0x728] sm:$0xff]
    %v6268 = vld [vmem:[#allocation6 + $0x730] sm:$0xff]
    %v6269 = vld [vmem:[#allocation6 + $0x738] sm:$0xff]
    %v6270 = vld [vmem:[#allocation6 + $0x740] sm:$0xff]
    %v6271 = vld [vmem:[#allocation6 + $0x748] sm:$0xff]
    %v6272 = vld [vmem:[#allocation6 + $0x750] sm:$0xff]
    %v6273 = vld [vmem:[#allocation6 + $0x758] sm:$0xff]
    %v6274 = vld [vmem:[#allocation6 + $0x760] sm:$0xff]
    %v6275 = vld [vmem:[#allocation6 + $0x768] sm:$0xff]
    %v6276 = vld [vmem:[#allocation6 + $0x770] sm:$0xff]
    %v6277 = vld [vmem:[#allocation6 + $0x778] sm:$0xff]
    %v6278 = vld [vmem:[#allocation6 + $0x780] sm:$0xff]
    %v6279 = vld [vmem:[#allocation6 + $0x788] sm:$0xff]
    %v6280 = vld [vmem:[#allocation6 + $0x790] sm:$0xff]
    %v6281 = vld [vmem:[#allocation6 + $0x798] sm:$0xff]
    %v6282 = vld [vmem:[#allocation6 + $0x7a0] sm:$0xff]
    %v6283 = vld [vmem:[#allocation6 + $0x7a8] sm:$0xff]
    %v6284 = vld [vmem:[#allocation6 + $0x7b0] sm:$0xff]
    %v6285 = vld [vmem:[#allocation6 + $0x7b8] sm:$0xff]
    %v6286 = vld [vmem:[#allocation6 + $0x7c0] sm:$0xff]
    %v6287 = vld [vmem:[#allocation6 + $0x7c8] sm:$0xff]
    %v6288 = vld [vmem:[#allocation6 + $0x7d0] sm:$0xff]
    %v6289 = vld [vmem:[#allocation6 + $0x7d8] sm:$0xff]
    %v6290 = vld [vmem:[#allocation6 + $0x7e0] sm:$0xff]
    %v6291 = vld [vmem:[#allocation6 + $0x7e8] sm:$0xff]
    %v6292 = vld [vmem:[#allocation6 + $0x7f0] sm:$0xff]
    %v6293 = vld [vmem:[#allocation6 + $0x7f8] sm:$0xff]
    %6294 = vmatpush.msra.mxu0 %v6098
    %6295 = vmatpush.msra.mxu0 %v6094
    %6296 = vmatpush.msra.mxu0 %v6090
    %6297 = vmatpush.msra.mxu0 %v6086
    %6298 = vmatpush.msra.mxu0 %v6082
    %6299 = vmatpush.msra.mxu0 %v6078
    %6300 = vmatpush.msra.mxu0 %v6074
    %6301 = vmatpush.msra.mxu0 %v6070
    %6302 = vmatpush.msra.mxu0 %v6066
    %6303 = vmatpush.msra.mxu0 %v6062
    %6304 = vmatpush.msra.mxu0 %v6058
    %6305 = vmatpush.msra.mxu0 %v6054
    %6306 = vmatpush.msra.mxu0 %v6050
    %6307 = vmatpush.msra.mxu0 %v6046
    %6308 = vmatpush.msra.mxu0 %v6042
    %6309 = vmatpush.msra.mxu0 %v6038
    %6310 = vmatmul.f32.gmra.mxu0 %v5723
    %v6311 = vpop.f32.mrf.mxu0
    %v6312 = vadd.f32 0.0, %v6311
    %6313 = vdwg.mxu0
    %6314 = vmatpush.msra.mxu0 %v6162
    %6315 = vmatpush.msra.mxu0 %v6158
    %6316 = vmatpush.msra.mxu0 %v6154
    %6317 = vmatpush.msra.mxu0 %v6150
    %6318 = vmatpush.msra.mxu0 %v6146
    %6319 = vmatpush.msra.mxu0 %v6142
    %6320 = vmatpush.msra.mxu0 %v6138
    %6321 = vmatpush.msra.mxu0 %v6134
    %6322 = vmatpush.msra.mxu0 %v6130
    %6323 = vmatpush.msra.mxu0 %v6126
    %6324 = vmatpush.msra.mxu0 %v6122
    %6325 = vmatpush.msra.mxu0 %v6118
    %6326 = vmatpush.msra.mxu0 %v6114
    %6327 = vmatpush.msra.mxu0 %v6110
    %6328 = vmatpush.msra.mxu0 %v6106
    %6329 = vmatpush.msra.mxu0 %v6102
    %6330 = vmatmul.f32.gmra.mxu0 %v5827
    %v6331 = vpop.f32.mrf.mxu0
    %v6332 = vadd.f32 %v6312, %v6331
    %6333 = vdwg.mxu0
    %6334 = vmatpush.msra.mxu0 %v6226
    %6335 = vmatpush.msra.mxu0 %v6222
    %6336 = vmatpush.msra.mxu0 %v6218
    %6337 = vmatpush.msra.mxu0 %v6214
    %6338 = vmatpush.msra.mxu0 %v6210
    %6339 = vmatpush.msra.mxu0 %v6206
    %6340 = vmatpush.msra.mxu0 %v6202
    %6341 = vmatpush.msra.mxu0 %v6198
    %6342 = vmatpush.msra.mxu0 %v6194
    %6343 = vmatpush.msra.mxu0 %v6190
    %6344 = vmatpush.msra.mxu0 %v6186
    %6345 = vmatpush.msra.mxu0 %v6182
    %6346 = vmatpush.msra.mxu0 %v6178
    %6347 = vmatpush.msra.mxu0 %v6174
    %6348 = vmatpush.msra.mxu0 %v6170
    %6349 = vmatpush.msra.mxu0 %v6166
    %6350 = vmatmul.f32.gmra.mxu0 %v5931
    %v6351 = vpop.f32.mrf.mxu0
    %v6352 = vadd.f32 %v6332, %v6351
    %6353 = vdwg.mxu0
    %6354 = vmatpush.msra.mxu0 %v6290
    %6355 = vmatpush.msra.mxu0 %v6286
    %6356 = vmatpush.msra.mxu0 %v6282
    %6357 = vmatpush.msra.mxu0 %v6278
    %6358 = vmatpush.msra.mxu0 %v6274
    %6359 = vmatpush.msra.mxu0 %v6270
    %6360 = vmatpush.msra.mxu0 %v6266
    %6361 = vmatpush.msra.mxu0 %v6262
    %6362 = vmatpush.msra.mxu0 %v6258
    %6363 = vmatpush.msra.mxu0 %v6254
    %6364 = vmatpush.msra.mxu0 %v6250
    %6365 = vmatpush.msra.mxu0 %v6246
    %6366 = vmatpush.msra.mxu0 %v6242
    %6367 = vmatpush.msra.mxu0 %v6238
    %6368 = vmatpush.msra.mxu0 %v6234
    %6369 = vmatpush.msra.mxu0 %v6230
    %6370 = vmatmul.f32.gmra.mxu0 %v6035
    %v6371 = vpop.f32.mrf.mxu0
    %v6372 = vadd.f32 %v6352, %v6371
    %6373 = vdwg.mxu0
    %6374 = vmatpush.msra.mxu0 %v6099
    %6375 = vmatpush.msra.mxu0 %v6095
    %6376 = vmatpush.msra.mxu0 %v6091
    %6377 = vmatpush.msra.mxu0 %v6087
    %6378 = vmatpush.msra.mxu0 %v6083
    %6379 = vmatpush.msra.mxu0 %v6079
    %6380 = vmatpush.msra.mxu0 %v6075
    %6381 = vmatpush.msra.mxu0 %v6071
    %6382 = vmatpush.msra.mxu0 %v6067
    %6383 = vmatpush.msra.mxu0 %v6063
    %6384 = vmatpush.msra.mxu0 %v6059
    %6385 = vmatpush.msra.mxu0 %v6055
    %6386 = vmatpush.msra.mxu0 %v6051
    %6387 = vmatpush.msra.mxu0 %v6047
    %6388 = vmatpush.msra.mxu0 %v6043
    %6389 = vmatpush.msra.mxu0 %v6039
    %6390 = vmatmul.f32.gmra.mxu0 %v5723
    %v6391 = vpop.f32.mrf.mxu0
    %v6392 = vadd.f32 0.0, %v6391
    %6393 = vdwg.mxu0
    %6394 = vmatpush.msra.mxu0 %v6163
    %6395 = vmatpush.msra.mxu0 %v6159
    %6396 = vmatpush.msra.mxu0 %v6155
    %6397 = vmatpush.msra.mxu0 %v6151
    %6398 = vmatpush.msra.mxu0 %v6147
    %6399 = vmatpush.msra.mxu0 %v6143
    %6400 = vmatpush.msra.mxu0 %v6139
    %6401 = vmatpush.msra.mxu0 %v6135
    %6402 = vmatpush.msra.mxu0 %v6131
    %6403 = vmatpush.msra.mxu0 %v6127
    %6404 = vmatpush.msra.mxu0 %v6123
    %6405 = vmatpush.msra.mxu0 %v6119
    %6406 = vmatpush.msra.mxu0 %v6115
    %6407 = vmatpush.msra.mxu0 %v6111
    %6408 = vmatpush.msra.mxu0 %v6107
    %6409 = vmatpush.msra.mxu0 %v6103
    %6410 = vmatmul.f32.gmra.mxu0 %v5827
    %v6411 = vpop.f32.mrf.mxu0
    %v6412 = vadd.f32 %v6392, %v6411
    %6413 = vdwg.mxu0
    %6414 = vmatpush.msra.mxu0 %v6227
    %6415 = vmatpush.msra.mxu0 %v6223
    %6416 = vmatpush.msra.mxu0 %v6219
    %6417 = vmatpush.msra.mxu0 %v6215
    %6418 = vmatpush.msra.mxu0 %v6211
    %6419 = vmatpush.msra.mxu0 %v6207
    %6420 = vmatpush.msra.mxu0 %v6203
    %6421 = vmatpush.msra.mxu0 %v6199
    %6422 = vmatpush.msra.mxu0 %v6195
    %6423 = vmatpush.msra.mxu0 %v6191
    %6424 = vmatpush.msra.mxu0 %v6187
    %6425 = vmatpush.msra.mxu0 %v6183
    %6426 = vmatpush.msra.mxu0 %v6179
    %6427 = vmatpush.msra.mxu0 %v6175
    %6428 = vmatpush.msra.mxu0 %v6171
    %6429 = vmatpush.msra.mxu0 %v6167
    %6430 = vmatmul.f32.gmra.mxu0 %v5931
    %v6431 = vpop.f32.mrf.mxu0
    %v6432 = vadd.f32 %v6412, %v6431
    %6433 = vdwg.mxu0
    %6434 = vmatpush.msra.mxu0 %v6291
    %6435 = vmatpush.msra.mxu0 %v6287
    %6436 = vmatpush.msra.mxu0 %v6283
    %6437 = vmatpush.msra.mxu0 %v6279
    %6438 = vmatpush.msra.mxu0 %v6275
    %6439 = vmatpush.msra.mxu0 %v6271
    %6440 = vmatpush.msra.mxu0 %v6267
    %6441 = vmatpush.msra.mxu0 %v6263
    %6442 = vmatpush.msra.mxu0 %v6259
    %6443 = vmatpush.msra.mxu0 %v6255
    %6444 = vmatpush.msra.mxu0 %v6251
    %6445 = vmatpush.msra.mxu0 %v6247
    %6446 = vmatpush.msra.mxu0 %v6243
    %6447 = vmatpush.msra.mxu0 %v6239
    %6448 = vmatpush.msra.mxu0 %v6235
    %6449 = vmatpush.msra.mxu0 %v6231
    %6450 = vmatmul.f32.gmra.mxu0 %v6035
    %v6451 = vpop.f32.mrf.mxu0
    %v6452 = vadd.f32 %v6432, %v6451
    %6453 = vdwg.mxu0
    %6454 = vmatpush.msra.mxu0 %v6100
    %6455 = vmatpush.msra.mxu0 %v6096
    %6456 = vmatpush.msra.mxu0 %v6092
    %6457 = vmatpush.msra.mxu0 %v6088
    %6458 = vmatpush.msra.mxu0 %v6084
    %6459 = vmatpush.msra.mxu0 %v6080
    %6460 = vmatpush.msra.mxu0 %v6076
    %6461 = vmatpush.msra.mxu0 %v6072
    %6462 = vmatpush.msra.mxu0 %v6068
    %6463 = vmatpush.msra.mxu0 %v6064
    %6464 = vmatpush.msra.mxu0 %v6060
    %6465 = vmatpush.msra.mxu0 %v6056
    %6466 = vmatpush.msra.mxu0 %v6052
    %6467 = vmatpush.msra.mxu0 %v6048
    %6468 = vmatpush.msra.mxu0 %v6044
    %6469 = vmatpush.msra.mxu0 %v6040
    %6470 = vmatmul.f32.gmra.mxu0 %v5723
    %v6471 = vpop.f32.mrf.mxu0
    %v6472 = vadd.f32 0.0, %v6471
    %6473 = vdwg.mxu0
    %6474 = vmatpush.msra.mxu0 %v6164
    %6475 = vmatpush.msra.mxu0 %v6160
    %6476 = vmatpush.msra.mxu0 %v6156
    %6477 = vmatpush.msra.mxu0 %v6152
    %6478 = vmatpush.msra.mxu0 %v6148
    %6479 = vmatpush.msra.mxu0 %v6144
    %6480 = vmatpush.msra.mxu0 %v6140
    %6481 = vmatpush.msra.mxu0 %v6136
    %6482 = vmatpush.msra.mxu0 %v6132
    %6483 = vmatpush.msra.mxu0 %v6128
    %6484 = vmatpush.msra.mxu0 %v6124
    %6485 = vmatpush.msra.mxu0 %v6120
    %6486 = vmatpush.msra.mxu0 %v6116
    %6487 = vmatpush.msra.mxu0 %v6112
    %6488 = vmatpush.msra.mxu0 %v6108
    %6489 = vmatpush.msra.mxu0 %v6104
    %6490 = vmatmul.f32.gmra.mxu0 %v5827
    %v6491 = vpop.f32.mrf.mxu0
    %v6492 = vadd.f32 %v6472, %v6491
    %6493 = vdwg.mxu0
    %6494 = vmatpush.msra.mxu0 %v6228
    %6495 = vmatpush.msra.mxu0 %v6224
    %6496 = vmatpush.msra.mxu0 %v6220
    %6497 = vmatpush.msra.mxu0 %v6216
    %6498 = vmatpush.msra.mxu0 %v6212
    %6499 = vmatpush.msra.mxu0 %v6208
    %6500 = vmatpush.msra.mxu0 %v6204
    %6501 = vmatpush.msra.mxu0 %v6200
    %6502 = vmatpush.msra.mxu0 %v6196
    %6503 = vmatpush.msra.mxu0 %v6192
    %6504 = vmatpush.msra.mxu0 %v6188
    %6505 = vmatpush.msra.mxu0 %v6184
    %6506 = vmatpush.msra.mxu0 %v6180
    %6507 = vmatpush.msra.mxu0 %v6176
    %6508 = vmatpush.msra.mxu0 %v6172
    %6509 = vmatpush.msra.mxu0 %v6168
    %6510 = vmatmul.f32.gmra.mxu0 %v5931
    %v6511 = vpop.f32.mrf.mxu0
    %v6512 = vadd.f32 %v6492, %v6511
    %6513 = vdwg.mxu0
    %6514 = vmatpush.msra.mxu0 %v6292
    %6515 = vmatpush.msra.mxu0 %v6288
    %6516 = vmatpush.msra.mxu0 %v6284
    %6517 = vmatpush.msra.mxu0 %v6280
    %6518 = vmatpush.msra.mxu0 %v6276
    %6519 = vmatpush.msra.mxu0 %v6272
    %6520 = vmatpush.msra.mxu0 %v6268
    %6521 = vmatpush.msra.mxu0 %v6264
    %6522 = vmatpush.msra.mxu0 %v6260
    %6523 = vmatpush.msra.mxu0 %v6256
    %6524 = vmatpush.msra.mxu0 %v6252
    %6525 = vmatpush.msra.mxu0 %v6248
    %6526 = vmatpush.msra.mxu0 %v6244
    %6527 = vmatpush.msra.mxu0 %v6240
    %6528 = vmatpush.msra.mxu0 %v6236
    %6529 = vmatpush.msra.mxu0 %v6232
    %6530 = vmatmul.f32.gmra.mxu0 %v6035
    %v6531 = vpop.f32.mrf.mxu0
    %v6532 = vadd.f32 %v6512, %v6531
    %6533 = vdwg.mxu0
    %6534 = vmatpush.msra.mxu0 %v6101
    %6535 = vmatpush.msra.mxu0 %v6097
    %6536 = vmatpush.msra.mxu0 %v6093
    %6537 = vmatpush.msra.mxu0 %v6089
    %6538 = vmatpush.msra.mxu0 %v6085
    %6539 = vmatpush.msra.mxu0 %v6081
    %6540 = vmatpush.msra.mxu0 %v6077
    %6541 = vmatpush.msra.mxu0 %v6073
    %6542 = vmatpush.msra.mxu0 %v6069
    %6543 = vmatpush.msra.mxu0 %v6065
    %6544 = vmatpush.msra.mxu0 %v6061
    %6545 = vmatpush.msra.mxu0 %v6057
    %6546 = vmatpush.msra.mxu0 %v6053
    %6547 = vmatpush.msra.mxu0 %v6049
    %6548 = vmatpush.msra.mxu0 %v6045
    %6549 = vmatpush.msra.mxu0 %v6041
    %6550 = vmatmul.f32.gmra.mxu0 %v5723
    %v6551 = vpop.f32.mrf.mxu0
    %v6552 = vadd.f32 0.0, %v6551
    %6553 = vdwg.mxu0
    %6554 = vmatpush.msra.mxu0 %v6165
    %6555 = vmatpush.msra.mxu0 %v6161
    %6556 = vmatpush.msra.mxu0 %v6157
    %6557 = vmatpush.msra.mxu0 %v6153
    %6558 = vmatpush.msra.mxu0 %v6149
    %6559 = vmatpush.msra.mxu0 %v6145
    %6560 = vmatpush.msra.mxu0 %v6141
    %6561 = vmatpush.msra.mxu0 %v6137
    %6562 = vmatpush.msra.mxu0 %v6133
    %6563 = vmatpush.msra.mxu0 %v6129
    %6564 = vmatpush.msra.mxu0 %v6125
    %6565 = vmatpush.msra.mxu0 %v6121
    %6566 = vmatpush.msra.mxu0 %v6117
    %6567 = vmatpush.msra.mxu0 %v6113
    %6568 = vmatpush.msra.mxu0 %v6109
    %6569 = vmatpush.msra.mxu0 %v6105
    %6570 = vmatmul.f32.gmra.mxu0 %v5827
    %v6571 = vpop.f32.mrf.mxu0
    %v6572 = vadd.f32 %v6552, %v6571
    %6573 = vdwg.mxu0
    %6574 = vmatpush.msra.mxu0 %v6229
    %6575 = vmatpush.msra.mxu0 %v6225
    %6576 = vmatpush.msra.mxu0 %v6221
    %6577 = vmatpush.msra.mxu0 %v6217
    %6578 = vmatpush.msra.mxu0 %v6213
    %6579 = vmatpush.msra.mxu0 %v6209
    %6580 = vmatpush.msra.mxu0 %v6205
    %6581 = vmatpush.msra.mxu0 %v6201
    %6582 = vmatpush.msra.mxu0 %v6197
    %6583 = vmatpush.msra.mxu0 %v6193
    %6584 = vmatpush.msra.mxu0 %v6189
    %6585 = vmatpush.msra.mxu0 %v6185
    %6586 = vmatpush.msra.mxu0 %v6181
    %6587 = vmatpush.msra.mxu0 %v6177
    %6588 = vmatpush.msra.mxu0 %v6173
    %6589 = vmatpush.msra.mxu0 %v6169
    %6590 = vmatmul.f32.gmra.mxu0 %v5931
    %v6591 = vpop.f32.mrf.mxu0
    %v6592 = vadd.f32 %v6572, %v6591
    %6593 = vdwg.mxu0
    %6594 = vmatpush.msra.mxu0 %v6293
    %6595 = vmatpush.msra.mxu0 %v6289
    %6596 = vmatpush.msra.mxu0 %v6285
    %6597 = vmatpush.msra.mxu0 %v6281
    %6598 = vmatpush.msra.mxu0 %v6277
    %6599 = vmatpush.msra.mxu0 %v6273
    %6600 = vmatpush.msra.mxu0 %v6269
    %6601 = vmatpush.msra.mxu0 %v6265
    %6602 = vmatpush.msra.mxu0 %v6261
    %6603 = vmatpush.msra.mxu0 %v6257
    %6604 = vmatpush.msra.mxu0 %v6253
    %6605 = vmatpush.msra.mxu0 %v6249
    %6606 = vmatpush.msra.mxu0 %v6245
    %6607 = vmatpush.msra.mxu0 %v6241
    %6608 = vmatpush.msra.mxu0 %v6237
    %6609 = vmatpush.msra.mxu0 %v6233
    %6610 = vmatmul.f32.gmra.mxu0 %v6035
    %v6611 = vpop.f32.mrf.mxu0
    %v6612 = vadd.f32 %v6592, %v6611
    %6613 = vdwg.mxu0
    %v6614 = vmul.f32 %v5723, %v5723
    %v6615 = vmul.f32 %v5827, %v5827
    %v6616 = vmul.f32 %v5931, %v5931
    %v6617 = vmul.f32 %v6035, %v6035
    %6618 = vmatpush.msra.mxu0 %v6098
    %6619 = vmatpush.msra.mxu0 %v6094
    %6620 = vmatpush.msra.mxu0 %v6090
    %6621 = vmatpush.msra.mxu0 %v6086
    %6622 = vmatpush.msra.mxu0 %v6082
    %6623 = vmatpush.msra.mxu0 %v6078
    %6624 = vmatpush.msra.mxu0 %v6074
    %6625 = vmatpush.msra.mxu0 %v6070
    %6626 = vmatpush.msra.mxu0 %v6066
    %6627 = vmatpush.msra.mxu0 %v6062
    %6628 = vmatpush.msra.mxu0 %v6058
    %6629 = vmatpush.msra.mxu0 %v6054
    %6630 = vmatpush.msra.mxu0 %v6050
    %6631 = vmatpush.msra.mxu0 %v6046
    %6632 = vmatpush.msra.mxu0 %v6042
    %6633 = vmatpush.msra.mxu0 %v6038
    %6634 = vmatmul.f32.gmra.mxu0 %v6614
    %v6635 = vpop.f32.mrf.mxu0
    %v6636 = vadd.f32 0.0, %v6635
    %6637 = vdwg.mxu0
    %6638 = vmatpush.msra.mxu0 %v6162
    %6639 = vmatpush.msra.mxu0 %v6158
    %6640 = vmatpush.msra.mxu0 %v6154
    %6641 = vmatpush.msra.mxu0 %v6150
    %6642 = vmatpush.msra.mxu0 %v6146
    %6643 = vmatpush.msra.mxu0 %v6142
    %6644 = vmatpush.msra.mxu0 %v6138
    %6645 = vmatpush.msra.mxu0 %v6134
    %6646 = vmatpush.msra.mxu0 %v6130
    %6647 = vmatpush.msra.mxu0 %v6126
    %6648 = vmatpush.msra.mxu0 %v6122
    %6649 = vmatpush.msra.mxu0 %v6118
    %6650 = vmatpush.msra.mxu0 %v6114
    %6651 = vmatpush.msra.mxu0 %v6110
    %6652 = vmatpush.msra.mxu0 %v6106
    %6653 = vmatpush.msra.mxu0 %v6102
    %6654 = vmatmul.f32.gmra.mxu0 %v6615
    %v6655 = vpop.f32.mrf.mxu0
    %v6656 = vadd.f32 %v6636, %v6655
    %6657 = vdwg.mxu0
    %6658 = vmatpush.msra.mxu0 %v6226
    %6659 = vmatpush.msra.mxu0 %v6222
    %6660 = vmatpush.msra.mxu0 %v6218
    %6661 = vmatpush.msra.mxu0 %v6214
    %6662 = vmatpush.msra.mxu0 %v6210
    %6663 = vmatpush.msra.mxu0 %v6206
    %6664 = vmatpush.msra.mxu0 %v6202
    %6665 = vmatpush.msra.mxu0 %v6198
    %6666 = vmatpush.msra.mxu0 %v6194
    %6667 = vmatpush.msra.mxu0 %v6190
    %6668 = vmatpush.msra.mxu0 %v6186
    %6669 = vmatpush.msra.mxu0 %v6182
    %6670 = vmatpush.msra.mxu0 %v6178
    %6671 = vmatpush.msra.mxu0 %v6174
    %6672 = vmatpush.msra.mxu0 %v6170
    %6673 = vmatpush.msra.mxu0 %v6166
    %6674 = vmatmul.f32.gmra.mxu0 %v6616
    %v6675 = vpop.f32.mrf.mxu0
    %v6676 = vadd.f32 %v6656, %v6675
    %6677 = vdwg.mxu0
    %6678 = vmatpush.msra.mxu0 %v6290
    %6679 = vmatpush.msra.mxu0 %v6286
    %6680 = vmatpush.msra.mxu0 %v6282
    %6681 = vmatpush.msra.mxu0 %v6278
    %6682 = vmatpush.msra.mxu0 %v6274
    %6683 = vmatpush.msra.mxu0 %v6270
    %6684 = vmatpush.msra.mxu0 %v6266
    %6685 = vmatpush.msra.mxu0 %v6262
    %6686 = vmatpush.msra.mxu0 %v6258
    %6687 = vmatpush.msra.mxu0 %v6254
    %6688 = vmatpush.msra.mxu0 %v6250
    %6689 = vmatpush.msra.mxu0 %v6246
    %6690 = vmatpush.msra.mxu0 %v6242
    %6691 = vmatpush.msra.mxu0 %v6238
    %6692 = vmatpush.msra.mxu0 %v6234
    %6693 = vmatpush.msra.mxu0 %v6230
    %6694 = vmatmul.f32.gmra.mxu0 %v6617
    %v6695 = vpop.f32.mrf.mxu0
    %v6696 = vadd.f32 %v6676, %v6695
    %6697 = vdwg.mxu0
    %6698 = vmatpush.msra.mxu0 %v6099
    %6699 = vmatpush.msra.mxu0 %v6095
    %6700 = vmatpush.msra.mxu0 %v6091
    %6701 = vmatpush.msra.mxu0 %v6087
    %6702 = vmatpush.msra.mxu0 %v6083
    %6703 = vmatpush.msra.mxu0 %v6079
    %6704 = vmatpush.msra.mxu0 %v6075
    %6705 = vmatpush.msra.mxu0 %v6071
    %6706 = vmatpush.msra.mxu0 %v6067
    %6707 = vmatpush.msra.mxu0 %v6063
    %6708 = vmatpush.msra.mxu0 %v6059
    %6709 = vmatpush.msra.mxu0 %v6055
    %6710 = vmatpush.msra.mxu0 %v6051
    %6711 = vmatpush.msra.mxu0 %v6047
    %6712 = vmatpush.msra.mxu0 %v6043
    %6713 = vmatpush.msra.mxu0 %v6039
    %6714 = vmatmul.f32.gmra.mxu0 %v6614
    %v6715 = vpop.f32.mrf.mxu0
    %v6716 = vadd.f32 0.0, %v6715
    %6717 = vdwg.mxu0
    %6718 = vmatpush.msra.mxu0 %v6163
    %6719 = vmatpush.msra.mxu0 %v6159
    %6720 = vmatpush.msra.mxu0 %v6155
    %6721 = vmatpush.msra.mxu0 %v6151
    %6722 = vmatpush.msra.mxu0 %v6147
    %6723 = vmatpush.msra.mxu0 %v6143
    %6724 = vmatpush.msra.mxu0 %v6139
    %6725 = vmatpush.msra.mxu0 %v6135
    %6726 = vmatpush.msra.mxu0 %v6131
    %6727 = vmatpush.msra.mxu0 %v6127
    %6728 = vmatpush.msra.mxu0 %v6123
    %6729 = vmatpush.msra.mxu0 %v6119
    %6730 = vmatpush.msra.mxu0 %v6115
    %6731 = vmatpush.msra.mxu0 %v6111
    %6732 = vmatpush.msra.mxu0 %v6107
    %6733 = vmatpush.msra.mxu0 %v6103
    %6734 = vmatmul.f32.gmra.mxu0 %v6615
    %v6735 = vpop.f32.mrf.mxu0
    %v6736 = vadd.f32 %v6716, %v6735
    %6737 = vdwg.mxu0
    %6738 = vmatpush.msra.mxu0 %v6227
    %6739 = vmatpush.msra.mxu0 %v6223
    %6740 = vmatpush.msra.mxu0 %v6219
    %6741 = vmatpush.msra.mxu0 %v6215
    %6742 = vmatpush.msra.mxu0 %v6211
    %6743 = vmatpush.msra.mxu0 %v6207
    %6744 = vmatpush.msra.mxu0 %v6203
    %6745 = vmatpush.msra.mxu0 %v6199
    %6746 = vmatpush.msra.mxu0 %v6195
    %6747 = vmatpush.msra.mxu0 %v6191
    %6748 = vmatpush.msra.mxu0 %v6187
    %6749 = vmatpush.msra.mxu0 %v6183
    %6750 = vmatpush.msra.mxu0 %v6179
    %6751 = vmatpush.msra.mxu0 %v6175
    %6752 = vmatpush.msra.mxu0 %v6171
    %6753 = vmatpush.msra.mxu0 %v6167
    %6754 = vmatmul.f32.gmra.mxu0 %v6616
    %v6755 = vpop.f32.mrf.mxu0
    %v6756 = vadd.f32 %v6736, %v6755
    %6757 = vdwg.mxu0
    %6758 = vmatpush.msra.mxu0 %v6291
    %6759 = vmatpush.msra.mxu0 %v6287
    %6760 = vmatpush.msra.mxu0 %v6283
    %6761 = vmatpush.msra.mxu0 %v6279
    %6762 = vmatpush.msra.mxu0 %v6275
    %6763 = vmatpush.msra.mxu0 %v6271
    %6764 = vmatpush.msra.mxu0 %v6267
    %6765 = vmatpush.msra.mxu0 %v6263
    %6766 = vmatpush.msra.mxu0 %v6259
    %6767 = vmatpush.msra.mxu0 %v6255
    %6768 = vmatpush.msra.mxu0 %v6251
    %6769 = vmatpush.msra.mxu0 %v6247
    %6770 = vmatpush.msra.mxu0 %v6243
    %6771 = vmatpush.msra.mxu0 %v6239
    %6772 = vmatpush.msra.mxu0 %v6235
    %6773 = vmatpush.msra.mxu0 %v6231
    %6774 = vmatmul.f32.gmra.mxu0 %v6617
    %v6775 = vpop.f32.mrf.mxu0
    %v6776 = vadd.f32 %v6756, %v6775
    %6777 = vdwg.mxu0
    %6778 = vmatpush.msra.mxu0 %v6100
    %6779 = vmatpush.msra.mxu0 %v6096
    %6780 = vmatpush.msra.mxu0 %v6092
    %6781 = vmatpush.msra.mxu0 %v6088
    %6782 = vmatpush.msra.mxu0 %v6084
    %6783 = vmatpush.msra.mxu0 %v6080
    %6784 = vmatpush.msra.mxu0 %v6076
    %6785 = vmatpush.msra.mxu0 %v6072
    %6786 = vmatpush.msra.mxu0 %v6068
    %6787 = vmatpush.msra.mxu0 %v6064
    %6788 = vmatpush.msra.mxu0 %v6060
    %6789 = vmatpush.msra.mxu0 %v6056
    %6790 = vmatpush.msra.mxu0 %v6052
    %6791 = vmatpush.msra.mxu0 %v6048
    %6792 = vmatpush.msra.mxu0 %v6044
    %6793 = vmatpush.msra.mxu0 %v6040
    %6794 = vmatmul.f32.gmra.mxu0 %v6614
    %v6795 = vpop.f32.mrf.mxu0
    %v6796 = vadd.f32 0.0, %v6795
    %6797 = vdwg.mxu0
    %6798 = vmatpush.msra.mxu0 %v6164
    %6799 = vmatpush.msra.mxu0 %v6160
    %6800 = vmatpush.msra.mxu0 %v6156
    %6801 = vmatpush.msra.mxu0 %v6152
    %6802 = vmatpush.msra.mxu0 %v6148
    %6803 = vmatpush.msra.mxu0 %v6144
    %6804 = vmatpush.msra.mxu0 %v6140
    %6805 = vmatpush.msra.mxu0 %v6136
    %6806 = vmatpush.msra.mxu0 %v6132
    %6807 = vmatpush.msra.mxu0 %v6128
    %6808 = vmatpush.msra.mxu0 %v6124
    %6809 = vmatpush.msra.mxu0 %v6120
    %6810 = vmatpush.msra.mxu0 %v6116
    %6811 = vmatpush.msra.mxu0 %v6112
    %6812 = vmatpush.msra.mxu0 %v6108
    %6813 = vmatpush.msra.mxu0 %v6104
    %6814 = vmatmul.f32.gmra.mxu0 %v6615
    %v6815 = vpop.f32.mrf.mxu0
    %v6816 = vadd.f32 %v6796, %v6815
    %6817 = vdwg.mxu0
    %6818 = vmatpush.msra.mxu0 %v6228
    %6819 = vmatpush.msra.mxu0 %v6224
    %6820 = vmatpush.msra.mxu0 %v6220
    %6821 = vmatpush.msra.mxu0 %v6216
    %6822 = vmatpush.msra.mxu0 %v6212
    %6823 = vmatpush.msra.mxu0 %v6208
    %6824 = vmatpush.msra.mxu0 %v6204
    %6825 = vmatpush.msra.mxu0 %v6200
    %6826 = vmatpush.msra.mxu0 %v6196
    %6827 = vmatpush.msra.mxu0 %v6192
    %6828 = vmatpush.msra.mxu0 %v6188
    %6829 = vmatpush.msra.mxu0 %v6184
    %6830 = vmatpush.msra.mxu0 %v6180
    %6831 = vmatpush.msra.mxu0 %v6176
    %6832 = vmatpush.msra.mxu0 %v6172
    %6833 = vmatpush.msra.mxu0 %v6168
    %6834 = vmatmul.f32.gmra.mxu0 %v6616
    %v6835 = vpop.f32.mrf.mxu0
    %v6836 = vadd.f32 %v6816, %v6835
    %6837 = vdwg.mxu0
    %6838 = vmatpush.msra.mxu0 %v6292
    %6839 = vmatpush.msra.mxu0 %v6288
    %6840 = vmatpush.msra.mxu0 %v6284
    %6841 = vmatpush.msra.mxu0 %v6280
    %6842 = vmatpush.msra.mxu0 %v6276
    %6843 = vmatpush.msra.mxu0 %v6272
    %6844 = vmatpush.msra.mxu0 %v6268
    %6845 = vmatpush.msra.mxu0 %v6264
    %6846 = vmatpush.msra.mxu0 %v6260
    %6847 = vmatpush.msra.mxu0 %v6256
    %6848 = vmatpush.msra.mxu0 %v6252
    %6849 = vmatpush.msra.mxu0 %v6248
    %6850 = vmatpush.msra.mxu0 %v6244
    %6851 = vmatpush.msra.mxu0 %v6240
    %6852 = vmatpush.msra.mxu0 %v6236
    %6853 = vmatpush.msra.mxu0 %v6232
    %6854 = vmatmul.f32.gmra.mxu0 %v6617
    %v6855 = vpop.f32.mrf.mxu0
    %v6856 = vadd.f32 %v6836, %v6855
    %6857 = vdwg.mxu0
    %6858 = vmatpush.msra.mxu0 %v6101
    %6859 = vmatpush.msra.mxu0 %v6097
    %6860 = vmatpush.msra.mxu0 %v6093
    %6861 = vmatpush.msra.mxu0 %v6089
    %6862 = vmatpush.msra.mxu0 %v6085
    %6863 = vmatpush.msra.mxu0 %v6081
    %6864 = vmatpush.msra.mxu0 %v6077
    %6865 = vmatpush.msra.mxu0 %v6073
    %6866 = vmatpush.msra.mxu0 %v6069
    %6867 = vmatpush.msra.mxu0 %v6065
    %6868 = vmatpush.msra.mxu0 %v6061
    %6869 = vmatpush.msra.mxu0 %v6057
    %6870 = vmatpush.msra.mxu0 %v6053
    %6871 = vmatpush.msra.mxu0 %v6049
    %6872 = vmatpush.msra.mxu0 %v6045
    %6873 = vmatpush.msra.mxu0 %v6041
    %6874 = vmatmul.f32.gmra.mxu0 %v6614
    %v6875 = vpop.f32.mrf.mxu0
    %v6876 = vadd.f32 0.0, %v6875
    %6877 = vdwg.mxu0
    %6878 = vmatpush.msra.mxu0 %v6165
    %6879 = vmatpush.msra.mxu0 %v6161
    %6880 = vmatpush.msra.mxu0 %v6157
    %6881 = vmatpush.msra.mxu0 %v6153
    %6882 = vmatpush.msra.mxu0 %v6149
    %6883 = vmatpush.msra.mxu0 %v6145
    %6884 = vmatpush.msra.mxu0 %v6141
    %6885 = vmatpush.msra.mxu0 %v6137
    %6886 = vmatpush.msra.mxu0 %v6133
    %6887 = vmatpush.msra.mxu0 %v6129
    %6888 = vmatpush.msra.mxu0 %v6125
    %6889 = vmatpush.msra.mxu0 %v6121
    %6890 = vmatpush.msra.mxu0 %v6117
    %6891 = vmatpush.msra.mxu0 %v6113
    %6892 = vmatpush.msra.mxu0 %v6109
    %6893 = vmatpush.msra.mxu0 %v6105
    %6894 = vmatmul.f32.gmra.mxu0 %v6615
    %v6895 = vpop.f32.mrf.mxu0
    %v6896 = vadd.f32 %v6876, %v6895
    %6897 = vdwg.mxu0
    %6898 = vmatpush.msra.mxu0 %v6229
    %6899 = vmatpush.msra.mxu0 %v6225
    %6900 = vmatpush.msra.mxu0 %v6221
    %6901 = vmatpush.msra.mxu0 %v6217
    %6902 = vmatpush.msra.mxu0 %v6213
    %6903 = vmatpush.msra.mxu0 %v6209
    %6904 = vmatpush.msra.mxu0 %v6205
    %6905 = vmatpush.msra.mxu0 %v6201
    %6906 = vmatpush.msra.mxu0 %v6197
    %6907 = vmatpush.msra.mxu0 %v6193
    %6908 = vmatpush.msra.mxu0 %v6189
    %6909 = vmatpush.msra.mxu0 %v6185
    %6910 = vmatpush.msra.mxu0 %v6181
    %6911 = vmatpush.msra.mxu0 %v6177
    %6912 = vmatpush.msra.mxu0 %v6173
    %6913 = vmatpush.msra.mxu0 %v6169
    %6914 = vmatmul.f32.gmra.mxu0 %v6616
    %v6915 = vpop.f32.mrf.mxu0
    %v6916 = vadd.f32 %v6896, %v6915
    %6917 = vdwg.mxu0
    %6918 = vmatpush.msra.mxu0 %v6293
    %6919 = vmatpush.msra.mxu0 %v6289
    %6920 = vmatpush.msra.mxu0 %v6285
    %6921 = vmatpush.msra.mxu0 %v6281
    %6922 = vmatpush.msra.mxu0 %v6277
    %6923 = vmatpush.msra.mxu0 %v6273
    %6924 = vmatpush.msra.mxu0 %v6269
    %6925 = vmatpush.msra.mxu0 %v6265
    %6926 = vmatpush.msra.mxu0 %v6261
    %6927 = vmatpush.msra.mxu0 %v6257
    %6928 = vmatpush.msra.mxu0 %v6253
    %6929 = vmatpush.msra.mxu0 %v6249
    %6930 = vmatpush.msra.mxu0 %v6245
    %6931 = vmatpush.msra.mxu0 %v6241
    %6932 = vmatpush.msra.mxu0 %v6237
    %6933 = vmatpush.msra.mxu0 %v6233
    %6934 = vmatmul.f32.gmra.mxu0 %v6617
    %v6935 = vpop.f32.mrf.mxu0
    %v6936 = vadd.f32 %v6916, %v6935
    %6937 = vdwg.mxu0
    %v6938 = vmul.f32 %v6372, %v6372
    %v6939 = vmul.f32 %v6452, %v6452
    %v6940 = vmul.f32 %v6532, %v6532
    %v6941 = vmul.f32 %v6612, %v6612
    %v6942 = vsub.f32 %v6696, %v6938
    %v6943 = vsub.f32 %v6776, %v6939
    %v6944 = vsub.f32 %v6856, %v6940
    %v6945 = vsub.f32 %v6936, %v6941
    %v6946 = vsub.f32 %v5723, %v6372
    %v6947 = vsub.f32 %v5827, %v6452
    %v6948 = vsub.f32 %v5931, %v6532
    %v6949 = vsub.f32 %v6035, %v6612
    %v6950 = vadd.f32 %v6942, 1e-05
    %v6951 = vadd.f32 %v6943, 1e-05
    %v6952 = vadd.f32 %v6944, 1e-05
    %v6953 = vadd.f32 %v6945, 1e-05
    %v6954 = vrsqrt.pop %v6950
    %v6955 = vmul.f32 %v6954, %v6950
    %v6956 = vmul.f32 %v6955, %v6954
    %v6957 = vmul.f32 0.5, %v6956
    %v6958 = vsub.f32 1.5, %v6957
    %v6959 = vmul.f32 %v6954, %v6958
    %vm6960 = vweird.f32 %v6950
    %vm6961 = vweird.f32 %v6954
    %vm6962 = vmor %vm6960, %vm6961
    %v6963 = vsel %vm6962, %v6954, %v6959
    %v6964 = vrsqrt.pop %v6951
    %v6965 = vmul.f32 %v6964, %v6951
    %v6966 = vmul.f32 %v6965, %v6964
    %v6967 = vmul.f32 0.5, %v6966
    %v6968 = vsub.f32 1.5, %v6967
    %v6969 = vmul.f32 %v6964, %v6968
    %vm6970 = vweird.f32 %v6951
    %vm6971 = vweird.f32 %v6964
    %vm6972 = vmor %vm6970, %vm6971
    %v6973 = vsel %vm6972, %v6964, %v6969
    %v6974 = vrsqrt.pop %v6952
    %v6975 = vmul.f32 %v6974, %v6952
    %v6976 = vmul.f32 %v6975, %v6974
    %v6977 = vmul.f32 0.5, %v6976
    %v6978 = vsub.f32 1.5, %v6977
    %v6979 = vmul.f32 %v6974, %v6978
    %vm6980 = vweird.f32 %v6952
    %vm6981 = vweird.f32 %v6974
    %vm6982 = vmor %vm6980, %vm6981
    %v6983 = vsel %vm6982, %v6974, %v6979
    %v6984 = vrsqrt.pop %v6953
    %v6985 = vmul.f32 %v6984, %v6953
    %v6986 = vmul.f32 %v6985, %v6984
    %v6987 = vmul.f32 0.5, %v6986
    %v6988 = vsub.f32 1.5, %v6987
    %v6989 = vmul.f32 %v6984, %v6988
    %vm6990 = vweird.f32 %v6953
    %vm6991 = vweird.f32 %v6984
    %vm6992 = vmor %vm6990, %vm6991
    %v6993 = vsel %vm6992, %v6984, %v6989
    %v6994 = vmul.f32 %v6946, %v6963
    %v6995 = vmul.f32 %v6947, %v6973
    %v6996 = vmul.f32 %v6948, %v6983
    %v6997 = vmul.f32 %v6949, %v6993
    %vm6998 = vcmp.ge.f32.partialorder %v6994, 0.0
    %vm6999 = vcmp.ge.f32.partialorder %v6995, 0.0
    %vm7000 = vcmp.ge.f32.partialorder %v6996, 0.0
    %vm7001 = vcmp.ge.f32.partialorder %v6997, 0.0
    %v7002 = vmul.f32 %v6994, 0.2
    %v7003 = vmul.f32 %v6995, 0.2
    %v7004 = vmul.f32 %v6996, 0.2
    %v7005 = vmul.f32 %v6997, 0.2
    %v7006 = vsel %vm6998, %v6994, %v7002
    %v7007 = vsel %vm6999, %v6995, %v7003
    %v7008 = vsel %vm7000, %v6996, %v7004
    %v7009 = vsel %vm7001, %v6997, %v7005
    %v7010 = vpack.c.bf16 %v7006, %v7006
    %v7011 = vpack.c.bf16 %v7007, %v7007
    %v7012 = vpack.c.bf16 %v7008, %v7008
    %v7013 = vpack.c.bf16 %v7009, %v7009
    %v7014 = vld [vmem:[#allocation7] sm:$0xff]
    %v7015 = vld [vmem:[#allocation7 + $0x8] sm:$0xff]
    %v7016 = vld [vmem:[#allocation7 + $0x10] sm:$0xff]
    %v7017 = vld [vmem:[#allocation7 + $0x18] sm:$0xff]
    %v7018 = vld [vmem:[#allocation7 + $0x20] sm:$0xff]
    %v7019 = vld [vmem:[#allocation7 + $0x28] sm:$0xff]
    %v7020 = vld [vmem:[#allocation7 + $0x30] sm:$0xff]
    %v7021 = vld [vmem:[#allocation7 + $0x38] sm:$0xff]
    %v7022 = vld [vmem:[#allocation7 + $0x40] sm:$0xff]
    %v7023 = vld [vmem:[#allocation7 + $0x48] sm:$0xff]
    %v7024 = vld [vmem:[#allocation7 + $0x50] sm:$0xff]
    %v7025 = vld [vmem:[#allocation7 + $0x58] sm:$0xff]
    %v7026 = vld [vmem:[#allocation7 + $0x60] sm:$0xff]
    %v7027 = vld [vmem:[#allocation7 + $0x68] sm:$0xff]
    %v7028 = vld [vmem:[#allocation7 + $0x70] sm:$0xff]
    %v7029 = vld [vmem:[#allocation7 + $0x78] sm:$0xff]
    %v7030 = vld [vmem:[#allocation7 + $0x80] sm:$0xff]
    %v7031 = vld [vmem:[#allocation7 + $0x88] sm:$0xff]
    %v7032 = vld [vmem:[#allocation7 + $0x90] sm:$0xff]
    %v7033 = vld [vmem:[#allocation7 + $0x98] sm:$0xff]
    %v7034 = vld [vmem:[#allocation7 + $0xa0] sm:$0xff]
    %v7035 = vld [vmem:[#allocation7 + $0xa8] sm:$0xff]
    %v7036 = vld [vmem:[#allocation7 + $0xb0] sm:$0xff]
    %v7037 = vld [vmem:[#allocation7 + $0xb8] sm:$0xff]
    %v7038 = vld [vmem:[#allocation7 + $0xc0] sm:$0xff]
    %v7039 = vld [vmem:[#allocation7 + $0xc8] sm:$0xff]
    %v7040 = vld [vmem:[#allocation7 + $0xd0] sm:$0xff]
    %v7041 = vld [vmem:[#allocation7 + $0xd8] sm:$0xff]
    %v7042 = vld [vmem:[#allocation7 + $0xe0] sm:$0xff]
    %v7043 = vld [vmem:[#allocation7 + $0xe8] sm:$0xff]
    %v7044 = vld [vmem:[#allocation7 + $0xf0] sm:$0xff]
    %v7045 = vld [vmem:[#allocation7 + $0xf8] sm:$0xff]
    %v7046 = vld [vmem:[#allocation7 + $0x100] sm:$0xff]
    %v7047 = vld [vmem:[#allocation7 + $0x108] sm:$0xff]
    %v7048 = vld [vmem:[#allocation7 + $0x110] sm:$0xff]
    %v7049 = vld [vmem:[#allocation7 + $0x118] sm:$0xff]
    %v7050 = vld [vmem:[#allocation7 + $0x120] sm:$0xff]
    %v7051 = vld [vmem:[#allocation7 + $0x128] sm:$0xff]
    %v7052 = vld [vmem:[#allocation7 + $0x130] sm:$0xff]
    %v7053 = vld [vmem:[#allocation7 + $0x138] sm:$0xff]
    %v7054 = vld [vmem:[#allocation7 + $0x140] sm:$0xff]
    %v7055 = vld [vmem:[#allocation7 + $0x148] sm:$0xff]
    %v7056 = vld [vmem:[#allocation7 + $0x150] sm:$0xff]
    %v7057 = vld [vmem:[#allocation7 + $0x158] sm:$0xff]
    %v7058 = vld [vmem:[#allocation7 + $0x160] sm:$0xff]
    %v7059 = vld [vmem:[#allocation7 + $0x168] sm:$0xff]
    %v7060 = vld [vmem:[#allocation7 + $0x170] sm:$0xff]
    %v7061 = vld [vmem:[#allocation7 + $0x178] sm:$0xff]
    %v7062 = vld [vmem:[#allocation7 + $0x180] sm:$0xff]
    %v7063 = vld [vmem:[#allocation7 + $0x188] sm:$0xff]
    %v7064 = vld [vmem:[#allocation7 + $0x190] sm:$0xff]
    %v7065 = vld [vmem:[#allocation7 + $0x198] sm:$0xff]
    %v7066 = vld [vmem:[#allocation7 + $0x1a0] sm:$0xff]
    %v7067 = vld [vmem:[#allocation7 + $0x1a8] sm:$0xff]
    %v7068 = vld [vmem:[#allocation7 + $0x1b0] sm:$0xff]
    %v7069 = vld [vmem:[#allocation7 + $0x1b8] sm:$0xff]
    %v7070 = vld [vmem:[#allocation7 + $0x1c0] sm:$0xff]
    %v7071 = vld [vmem:[#allocation7 + $0x1c8] sm:$0xff]
    %v7072 = vld [vmem:[#allocation7 + $0x1d0] sm:$0xff]
    %v7073 = vld [vmem:[#allocation7 + $0x1d8] sm:$0xff]
    %v7074 = vld [vmem:[#allocation7 + $0x1e0] sm:$0xff]
    %v7075 = vld [vmem:[#allocation7 + $0x1e8] sm:$0xff]
    %v7076 = vld [vmem:[#allocation7 + $0x1f0] sm:$0xff]
    %v7077 = vld [vmem:[#allocation7 + $0x1f8] sm:$0xff]
    %v7142 = vunpack.c.l.b16 %v7014
    %v7143 = vunpack.c.h.b16 %v7014
    %v7144 = vunpack.c.l.b16 %v7015
    %v7145 = vunpack.c.h.b16 %v7015
    %v7146 = vunpack.c.l.b16 %v7016
    %v7147 = vunpack.c.h.b16 %v7016
    %v7148 = vunpack.c.l.b16 %v7017
    %v7149 = vunpack.c.h.b16 %v7017
    %v7150 = vunpack.c.l.b16 %v7018
    %v7151 = vunpack.c.h.b16 %v7018
    %v7152 = vunpack.c.l.b16 %v7019
    %v7153 = vunpack.c.h.b16 %v7019
    %v7154 = vunpack.c.l.b16 %v7020
    %v7155 = vunpack.c.h.b16 %v7020
    %v7156 = vunpack.c.l.b16 %v7021
    %v7157 = vunpack.c.h.b16 %v7021
    %v7158 = vunpack.c.l.b16 %v7022
    %v7159 = vunpack.c.h.b16 %v7022
    %v7160 = vunpack.c.l.b16 %v7023
    %v7161 = vunpack.c.h.b16 %v7023
    %v7162 = vunpack.c.l.b16 %v7024
    %v7163 = vunpack.c.h.b16 %v7024
    %v7164 = vunpack.c.l.b16 %v7025
    %v7165 = vunpack.c.h.b16 %v7025
    %v7166 = vunpack.c.l.b16 %v7026
    %v7167 = vunpack.c.h.b16 %v7026
    %v7168 = vunpack.c.l.b16 %v7027
    %v7169 = vunpack.c.h.b16 %v7027
    %v7170 = vunpack.c.l.b16 %v7028
    %v7171 = vunpack.c.h.b16 %v7028
    %v7172 = vunpack.c.l.b16 %v7029
    %v7173 = vunpack.c.h.b16 %v7029
    %v7174 = vunpack.c.l.b16 %v7030
    %v7175 = vunpack.c.h.b16 %v7030
    %v7176 = vunpack.c.l.b16 %v7031
    %v7177 = vunpack.c.h.b16 %v7031
    %v7178 = vunpack.c.l.b16 %v7032
    %v7179 = vunpack.c.h.b16 %v7032
    %v7180 = vunpack.c.l.b16 %v7033
    %v7181 = vunpack.c.h.b16 %v7033
    %v7182 = vunpack.c.l.b16 %v7034
    %v7183 = vunpack.c.h.b16 %v7034
    %v7184 = vunpack.c.l.b16 %v7035
    %v7185 = vunpack.c.h.b16 %v7035
    %v7186 = vunpack.c.l.b16 %v7036
    %v7187 = vunpack.c.h.b16 %v7036
    %v7188 = vunpack.c.l.b16 %v7037
    %v7189 = vunpack.c.h.b16 %v7037
    %v7190 = vunpack.c.l.b16 %v7038
    %v7191 = vunpack.c.h.b16 %v7038
    %v7192 = vunpack.c.l.b16 %v7039
    %v7193 = vunpack.c.h.b16 %v7039
    %v7194 = vunpack.c.l.b16 %v7040
    %v7195 = vunpack.c.h.b16 %v7040
    %v7196 = vunpack.c.l.b16 %v7041
    %v7197 = vunpack.c.h.b16 %v7041
    %v7198 = vunpack.c.l.b16 %v7042
    %v7199 = vunpack.c.h.b16 %v7042
    %v7200 = vunpack.c.l.b16 %v7043
    %v7201 = vunpack.c.h.b16 %v7043
    %v7202 = vunpack.c.l.b16 %v7044
    %v7203 = vunpack.c.h.b16 %v7044
    %v7204 = vunpack.c.l.b16 %v7045
    %v7205 = vunpack.c.h.b16 %v7045
    %v7206 = vunpack.c.l.b16 %v7046
    %v7207 = vunpack.c.h.b16 %v7046
    %v7208 = vunpack.c.l.b16 %v7047
    %v7209 = vunpack.c.h.b16 %v7047
    %v7210 = vunpack.c.l.b16 %v7048
    %v7211 = vunpack.c.h.b16 %v7048
    %v7212 = vunpack.c.l.b16 %v7049
    %v7213 = vunpack.c.h.b16 %v7049
    %v7214 = vunpack.c.l.b16 %v7050
    %v7215 = vunpack.c.h.b16 %v7050
    %v7216 = vunpack.c.l.b16 %v7051
    %v7217 = vunpack.c.h.b16 %v7051
    %v7218 = vunpack.c.l.b16 %v7052
    %v7219 = vunpack.c.h.b16 %v7052
    %v7220 = vunpack.c.l.b16 %v7053
    %v7221 = vunpack.c.h.b16 %v7053
    %v7222 = vunpack.c.l.b16 %v7054
    %v7223 = vunpack.c.h.b16 %v7054
    %v7224 = vunpack.c.l.b16 %v7055
    %v7225 = vunpack.c.h.b16 %v7055
    %v7226 = vunpack.c.l.b16 %v7056
    %v7227 = vunpack.c.h.b16 %v7056
    %v7228 = vunpack.c.l.b16 %v7057
    %v7229 = vunpack.c.h.b16 %v7057
    %v7230 = vunpack.c.l.b16 %v7058
    %v7231 = vunpack.c.h.b16 %v7058
    %v7232 = vunpack.c.l.b16 %v7059
    %v7233 = vunpack.c.h.b16 %v7059
    %v7234 = vunpack.c.l.b16 %v7060
    %v7235 = vunpack.c.h.b16 %v7060
    %v7236 = vunpack.c.l.b16 %v7061
    %v7237 = vunpack.c.h.b16 %v7061
    %v7238 = vunpack.c.l.b16 %v7062
    %v7239 = vunpack.c.h.b16 %v7062
    %v7240 = vunpack.c.l.b16 %v7063
    %v7241 = vunpack.c.h.b16 %v7063
    %v7242 = vunpack.c.l.b16 %v7064
    %v7243 = vunpack.c.h.b16 %v7064
    %v7244 = vunpack.c.l.b16 %v7065
    %v7245 = vunpack.c.h.b16 %v7065
    %v7246 = vunpack.c.l.b16 %v7066
    %v7247 = vunpack.c.h.b16 %v7066
    %v7248 = vunpack.c.l.b16 %v7067
    %v7249 = vunpack.c.h.b16 %v7067
    %v7250 = vunpack.c.l.b16 %v7068
    %v7251 = vunpack.c.h.b16 %v7068
    %v7252 = vunpack.c.l.b16 %v7069
    %v7253 = vunpack.c.h.b16 %v7069
    %v7254 = vunpack.c.l.b16 %v7070
    %v7255 = vunpack.c.h.b16 %v7070
    %v7256 = vunpack.c.l.b16 %v7071
    %v7257 = vunpack.c.h.b16 %v7071
    %v7258 = vunpack.c.l.b16 %v7072
    %v7259 = vunpack.c.h.b16 %v7072
    %v7260 = vunpack.c.l.b16 %v7073
    %v7261 = vunpack.c.h.b16 %v7073
    %v7262 = vunpack.c.l.b16 %v7074
    %v7263 = vunpack.c.h.b16 %v7074
    %v7264 = vunpack.c.l.b16 %v7075
    %v7265 = vunpack.c.h.b16 %v7075
    %v7266 = vunpack.c.l.b16 %v7076
    %v7267 = vunpack.c.h.b16 %v7076
    %v7268 = vunpack.c.l.b16 %v7077
    %v7269 = vunpack.c.h.b16 %v7077
    %v7270 = vpack.c.b16 %v7144, %v7142
    %v7271 = vpack.c.b16 %v7145, %v7143
    %v7272 = vpack.c.b16 %v7148, %v7146
    %v7273 = vpack.c.b16 %v7149, %v7147
    %v7274 = vpack.c.b16 %v7152, %v7150
    %v7275 = vpack.c.b16 %v7153, %v7151
    %v7276 = vpack.c.b16 %v7156, %v7154
    %v7277 = vpack.c.b16 %v7157, %v7155
    %v7278 = vpack.c.b16 %v7160, %v7158
    %v7279 = vpack.c.b16 %v7161, %v7159
    %v7280 = vpack.c.b16 %v7164, %v7162
    %v7281 = vpack.c.b16 %v7165, %v7163
    %v7282 = vpack.c.b16 %v7168, %v7166
    %v7283 = vpack.c.b16 %v7169, %v7167
    %v7284 = vpack.c.b16 %v7172, %v7170
    %v7285 = vpack.c.b16 %v7173, %v7171
    %v7286 = vpack.c.b16 %v7176, %v7174
    %v7287 = vpack.c.b16 %v7177, %v7175
    %v7288 = vpack.c.b16 %v7180, %v7178
    %v7289 = vpack.c.b16 %v7181, %v7179
    %v7290 = vpack.c.b16 %v7184, %v7182
    %v7291 = vpack.c.b16 %v7185, %v7183
    %v7292 = vpack.c.b16 %v7188, %v7186
    %v7293 = vpack.c.b16 %v7189, %v7187
    %v7294 = vpack.c.b16 %v7192, %v7190
    %v7295 = vpack.c.b16 %v7193, %v7191
    %v7296 = vpack.c.b16 %v7196, %v7194
    %v7297 = vpack.c.b16 %v7197, %v7195
    %v7298 = vpack.c.b16 %v7200, %v7198
    %v7299 = vpack.c.b16 %v7201, %v7199
    %v7300 = vpack.c.b16 %v7204, %v7202
    %v7301 = vpack.c.b16 %v7205, %v7203
    %v7302 = vpack.c.b16 %v7208, %v7206
    %v7303 = vpack.c.b16 %v7209, %v7207
    %v7304 = vpack.c.b16 %v7212, %v7210
    %v7305 = vpack.c.b16 %v7213, %v7211
    %v7306 = vpack.c.b16 %v7216, %v7214
    %v7307 = vpack.c.b16 %v7217, %v7215
    %v7308 = vpack.c.b16 %v7220, %v7218
    %v7309 = vpack.c.b16 %v7221, %v7219
    %v7310 = vpack.c.b16 %v7224, %v7222
    %v7311 = vpack.c.b16 %v7225, %v7223
    %v7312 = vpack.c.b16 %v7228, %v7226
    %v7313 = vpack.c.b16 %v7229, %v7227
    %v7314 = vpack.c.b16 %v7232, %v7230
    %v7315 = vpack.c.b16 %v7233, %v7231
    %v7316 = vpack.c.b16 %v7236, %v7234
    %v7317 = vpack.c.b16 %v7237, %v7235
    %v7318 = vpack.c.b16 %v7240, %v7238
    %v7319 = vpack.c.b16 %v7241, %v7239
    %v7320 = vpack.c.b16 %v7244, %v7242
    %v7321 = vpack.c.b16 %v7245, %v7243
    %v7322 = vpack.c.b16 %v7248, %v7246
    %v7323 = vpack.c.b16 %v7249, %v7247
    %v7324 = vpack.c.b16 %v7252, %v7250
    %v7325 = vpack.c.b16 %v7253, %v7251
    %v7326 = vpack.c.b16 %v7256, %v7254
    %v7327 = vpack.c.b16 %v7257, %v7255
    %v7328 = vpack.c.b16 %v7260, %v7258
    %v7329 = vpack.c.b16 %v7261, %v7259
    %v7330 = vpack.c.b16 %v7264, %v7262
    %v7331 = vpack.c.b16 %v7265, %v7263
    %v7332 = vpack.c.b16 %v7268, %v7266
    %v7333 = vpack.c.b16 %v7269, %v7267
    %7398 = vmatpush.bf16.msra.mxu0 %v7284
    %7399 = vmatpush.bf16.msra.mxu0 %v7282
    %7400 = vmatpush.bf16.msra.mxu0 %v7280
    %7401 = vmatpush.bf16.msra.mxu0 %v7278
    %7402 = vmatpush.bf16.msra.mxu0 %v7276
    %7403 = vmatpush.bf16.msra.mxu0 %v7274
    %7404 = vmatpush.bf16.msra.mxu0 %v7272
    %7405 = vmatpush.bf16.msra.mxu0 %v7270
    %7406 = vmatmul.bf16.gmra.mxu0 %v7010
    %v7407 = vpop.f32.mrf.mxu0
    %v7408 = vadd.f32 0.0, %v7407
    %v7409 = vpop.f32.mrf.mxu0
    %7410 = vdwg.mxu0
    %7411 = vmatpush.bf16.msra.mxu0 %v7300
    %7412 = vmatpush.bf16.msra.mxu0 %v7298
    %7413 = vmatpush.bf16.msra.mxu0 %v7296
    %7414 = vmatpush.bf16.msra.mxu0 %v7294
    %7415 = vmatpush.bf16.msra.mxu0 %v7292
    %7416 = vmatpush.bf16.msra.mxu0 %v7290
    %7417 = vmatpush.bf16.msra.mxu0 %v7288
    %7418 = vmatpush.bf16.msra.mxu0 %v7286
    %7419 = vmatmul.bf16.gmra.mxu0 %v7011
    %v7420 = vpop.f32.mrf.mxu0
    %v7421 = vadd.f32 %v7408, %v7420
    %v7422 = vpop.f32.mrf.mxu0
    %7423 = vdwg.mxu0
    %7424 = vmatpush.bf16.msra.mxu0 %v7316
    %7425 = vmatpush.bf16.msra.mxu0 %v7314
    %7426 = vmatpush.bf16.msra.mxu0 %v7312
    %7427 = vmatpush.bf16.msra.mxu0 %v7310
    %7428 = vmatpush.bf16.msra.mxu0 %v7308
    %7429 = vmatpush.bf16.msra.mxu0 %v7306
    %7430 = vmatpush.bf16.msra.mxu0 %v7304
    %7431 = vmatpush.bf16.msra.mxu0 %v7302
    %7432 = vmatmul.bf16.gmra.mxu0 %v7012
    %v7433 = vpop.f32.mrf.mxu0
    %v7434 = vadd.f32 %v7421, %v7433
    %v7435 = vpop.f32.mrf.mxu0
    %7436 = vdwg.mxu0
    %7437 = vmatpush.bf16.msra.mxu0 %v7332
    %7438 = vmatpush.bf16.msra.mxu0 %v7330
    %7439 = vmatpush.bf16.msra.mxu0 %v7328
    %7440 = vmatpush.bf16.msra.mxu0 %v7326
    %7441 = vmatpush.bf16.msra.mxu0 %v7324
    %7442 = vmatpush.bf16.msra.mxu0 %v7322
    %7443 = vmatpush.bf16.msra.mxu0 %v7320
    %7444 = vmatpush.bf16.msra.mxu0 %v7318
    %7445 = vmatmul.bf16.gmra.mxu0 %v7013
    %v7446 = vpop.f32.mrf.mxu0
    %v7447 = vadd.f32 %v7434, %v7446
    %v7448 = vpop.f32.mrf.mxu0
    %7449 = vdwg.mxu0
    %7450 = vmatpush.bf16.msra.mxu0 %v7285
    %7451 = vmatpush.bf16.msra.mxu0 %v7283
    %7452 = vmatpush.bf16.msra.mxu0 %v7281
    %7453 = vmatpush.bf16.msra.mxu0 %v7279
    %7454 = vmatpush.bf16.msra.mxu0 %v7277
    %7455 = vmatpush.bf16.msra.mxu0 %v7275
    %7456 = vmatpush.bf16.msra.mxu0 %v7273
    %7457 = vmatpush.bf16.msra.mxu0 %v7271
    %7458 = vmatmul.bf16.gmra.mxu0 %v7010
    %v7459 = vpop.f32.mrf.mxu0
    %v7460 = vadd.f32 0.0, %v7459
    %v7461 = vpop.f32.mrf.mxu0
    %7462 = vdwg.mxu0
    %7463 = vmatpush.bf16.msra.mxu0 %v7301
    %7464 = vmatpush.bf16.msra.mxu0 %v7299
    %7465 = vmatpush.bf16.msra.mxu0 %v7297
    %7466 = vmatpush.bf16.msra.mxu0 %v7295
    %7467 = vmatpush.bf16.msra.mxu0 %v7293
    %7468 = vmatpush.bf16.msra.mxu0 %v7291
    %7469 = vmatpush.bf16.msra.mxu0 %v7289
    %7470 = vmatpush.bf16.msra.mxu0 %v7287
    %7471 = vmatmul.bf16.gmra.mxu0 %v7011
    %v7472 = vpop.f32.mrf.mxu0
    %v7473 = vadd.f32 %v7460, %v7472
    %v7474 = vpop.f32.mrf.mxu0
    %7475 = vdwg.mxu0
    %7476 = vmatpush.bf16.msra.mxu0 %v7317
    %7477 = vmatpush.bf16.msra.mxu0 %v7315
    %7478 = vmatpush.bf16.msra.mxu0 %v7313
    %7479 = vmatpush.bf16.msra.mxu0 %v7311
    %7480 = vmatpush.bf16.msra.mxu0 %v7309
    %7481 = vmatpush.bf16.msra.mxu0 %v7307
    %7482 = vmatpush.bf16.msra.mxu0 %v7305
    %7483 = vmatpush.bf16.msra.mxu0 %v7303
    %7484 = vmatmul.bf16.gmra.mxu0 %v7012
    %v7485 = vpop.f32.mrf.mxu0
    %v7486 = vadd.f32 %v7473, %v7485
    %v7487 = vpop.f32.mrf.mxu0
    %7488 = vdwg.mxu0
    %7489 = vmatpush.bf16.msra.mxu0 %v7333
    %7490 = vmatpush.bf16.msra.mxu0 %v7331
    %7491 = vmatpush.bf16.msra.mxu0 %v7329
    %7492 = vmatpush.bf16.msra.mxu0 %v7327
    %7493 = vmatpush.bf16.msra.mxu0 %v7325
    %7494 = vmatpush.bf16.msra.mxu0 %v7323
    %7495 = vmatpush.bf16.msra.mxu0 %v7321
    %7496 = vmatpush.bf16.msra.mxu0 %v7319
    %7497 = vmatmul.bf16.gmra.mxu0 %v7013
    %v7498 = vpop.f32.mrf.mxu0
    %v7499 = vadd.f32 %v7486, %v7498
    %v7500 = vpop.f32.mrf.mxu0
    %7501 = vdwg.mxu0
    %v7502 = vld [vmem:[#allocation9] sm:$0xff]
    %v7503 = vld [vmem:[#allocation9 + $0x8] sm:$0xff]
    %v7504 = vld [vmem:[#allocation9 + $0x10] sm:$0xff]
    %v7505 = vld [vmem:[#allocation9 + $0x18] sm:$0xff]
    %v7506 = vld [vmem:[#allocation9 + $0x20] sm:$0xff]
    %v7507 = vld [vmem:[#allocation9 + $0x28] sm:$0xff]
    %v7508 = vld [vmem:[#allocation9 + $0x30] sm:$0xff]
    %v7509 = vld [vmem:[#allocation9 + $0x38] sm:$0xff]
    %v7510 = vld [vmem:[#allocation9 + $0x40] sm:$0xff]
    %v7511 = vld [vmem:[#allocation9 + $0x48] sm:$0xff]
    %v7512 = vld [vmem:[#allocation9 + $0x50] sm:$0xff]
    %v7513 = vld [vmem:[#allocation9 + $0x58] sm:$0xff]
    %v7514 = vld [vmem:[#allocation9 + $0x60] sm:$0xff]
    %v7515 = vld [vmem:[#allocation9 + $0x68] sm:$0xff]
    %v7516 = vld [vmem:[#allocation9 + $0x70] sm:$0xff]
    %v7517 = vld [vmem:[#allocation9 + $0x78] sm:$0xff]
    %v7518 = vld [vmem:[#allocation9 + $0x80] sm:$0xff]
    %v7519 = vld [vmem:[#allocation9 + $0x88] sm:$0xff]
    %v7520 = vld [vmem:[#allocation9 + $0x90] sm:$0xff]
    %v7521 = vld [vmem:[#allocation9 + $0x98] sm:$0xff]
    %v7522 = vld [vmem:[#allocation9 + $0xa0] sm:$0xff]
    %v7523 = vld [vmem:[#allocation9 + $0xa8] sm:$0xff]
    %v7524 = vld [vmem:[#allocation9 + $0xb0] sm:$0xff]
    %v7525 = vld [vmem:[#allocation9 + $0xb8] sm:$0xff]
    %v7526 = vld [vmem:[#allocation9 + $0xc0] sm:$0xff]
    %v7527 = vld [vmem:[#allocation9 + $0xc8] sm:$0xff]
    %v7528 = vld [vmem:[#allocation9 + $0xd0] sm:$0xff]
    %v7529 = vld [vmem:[#allocation9 + $0xd8] sm:$0xff]
    %v7530 = vld [vmem:[#allocation9 + $0xe0] sm:$0xff]
    %v7531 = vld [vmem:[#allocation9 + $0xe8] sm:$0xff]
    %v7532 = vld [vmem:[#allocation9 + $0xf0] sm:$0xff]
    %v7533 = vld [vmem:[#allocation9 + $0xf8] sm:$0xff]
    %v7534 = vld [vmem:[#allocation9 + $0x100] sm:$0xff]
    %v7535 = vld [vmem:[#allocation9 + $0x108] sm:$0xff]
    %v7536 = vld [vmem:[#allocation9 + $0x110] sm:$0xff]
    %v7537 = vld [vmem:[#allocation9 + $0x118] sm:$0xff]
    %v7538 = vld [vmem:[#allocation9 + $0x120] sm:$0xff]
    %v7539 = vld [vmem:[#allocation9 + $0x128] sm:$0xff]
    %v7540 = vld [vmem:[#allocation9 + $0x130] sm:$0xff]
    %v7541 = vld [vmem:[#allocation9 + $0x138] sm:$0xff]
    %v7542 = vld [vmem:[#allocation9 + $0x140] sm:$0xff]
    %v7543 = vld [vmem:[#allocation9 + $0x148] sm:$0xff]
    %v7544 = vld [vmem:[#allocation9 + $0x150] sm:$0xff]
    %v7545 = vld [vmem:[#allocation9 + $0x158] sm:$0xff]
    %v7546 = vld [vmem:[#allocation9 + $0x160] sm:$0xff]
    %v7547 = vld [vmem:[#allocation9 + $0x168] sm:$0xff]
    %v7548 = vld [vmem:[#allocation9 + $0x170] sm:$0xff]
    %v7549 = vld [vmem:[#allocation9 + $0x178] sm:$0xff]
    %v7550 = vld [vmem:[#allocation9 + $0x180] sm:$0xff]
    %v7551 = vld [vmem:[#allocation9 + $0x188] sm:$0xff]
    %v7552 = vld [vmem:[#allocation9 + $0x190] sm:$0xff]
    %v7553 = vld [vmem:[#allocation9 + $0x198] sm:$0xff]
    %v7554 = vld [vmem:[#allocation9 + $0x1a0] sm:$0xff]
    %v7555 = vld [vmem:[#allocation9 + $0x1a8] sm:$0xff]
    %v7556 = vld [vmem:[#allocation9 + $0x1b0] sm:$0xff]
    %v7557 = vld [vmem:[#allocation9 + $0x1b8] sm:$0xff]
    %v7558 = vld [vmem:[#allocation9 + $0x1c0] sm:$0xff]
    %v7559 = vld [vmem:[#allocation9 + $0x1c8] sm:$0xff]
    %v7560 = vld [vmem:[#allocation9 + $0x1d0] sm:$0xff]
    %v7561 = vld [vmem:[#allocation9 + $0x1d8] sm:$0xff]
    %v7562 = vld [vmem:[#allocation9 + $0x1e0] sm:$0xff]
    %v7563 = vld [vmem:[#allocation9 + $0x1e8] sm:$0xff]
    %v7564 = vld [vmem:[#allocation9 + $0x1f0] sm:$0xff]
    %v7565 = vld [vmem:[#allocation9 + $0x1f8] sm:$0xff]
    %7566 = vmatpush.msra.mxu0 %v7532
    %7567 = vmatpush.msra.mxu0 %v7530
    %7568 = vmatpush.msra.mxu0 %v7528
    %7569 = vmatpush.msra.mxu0 %v7526
    %7570 = vmatpush.msra.mxu0 %v7524
    %7571 = vmatpush.msra.mxu0 %v7522
    %7572 = vmatpush.msra.mxu0 %v7520
    %7573 = vmatpush.msra.mxu0 %v7518
    %7574 = vmatpush.msra.mxu0 %v7516
    %7575 = vmatpush.msra.mxu0 %v7514
    %7576 = vmatpush.msra.mxu0 %v7512
    %7577 = vmatpush.msra.mxu0 %v7510
    %7578 = vmatpush.msra.mxu0 %v7508
    %7579 = vmatpush.msra.mxu0 %v7506
    %7580 = vmatpush.msra.mxu0 %v7504
    %7581 = vmatpush.msra.mxu0 %v7502
    %7582 = vmatmul.f32.gmra.mxu0 %v7447
    %v7583 = vpop.f32.mrf.mxu0
    %v7584 = vadd.f32 0.0, %v7583
    %7585 = vdwg.mxu0
    %7586 = vmatpush.msra.mxu0 %v7564
    %7587 = vmatpush.msra.mxu0 %v7562
    %7588 = vmatpush.msra.mxu0 %v7560
    %7589 = vmatpush.msra.mxu0 %v7558
    %7590 = vmatpush.msra.mxu0 %v7556
    %7591 = vmatpush.msra.mxu0 %v7554
    %7592 = vmatpush.msra.mxu0 %v7552
    %7593 = vmatpush.msra.mxu0 %v7550
    %7594 = vmatpush.msra.mxu0 %v7548
    %7595 = vmatpush.msra.mxu0 %v7546
    %7596 = vmatpush.msra.mxu0 %v7544
    %7597 = vmatpush.msra.mxu0 %v7542
    %7598 = vmatpush.msra.mxu0 %v7540
    %7599 = vmatpush.msra.mxu0 %v7538
    %7600 = vmatpush.msra.mxu0 %v7536
    %7601 = vmatpush.msra.mxu0 %v7534
    %7602 = vmatmul.f32.gmra.mxu0 %v7499
    %v7603 = vpop.f32.mrf.mxu0
    %v7604 = vadd.f32 %v7584, %v7603
    %7605 = vdwg.mxu0
    %7606 = vmatpush.msra.mxu0 %v7533
    %7607 = vmatpush.msra.mxu0 %v7531
    %7608 = vmatpush.msra.mxu0 %v7529
    %7609 = vmatpush.msra.mxu0 %v7527
    %7610 = vmatpush.msra.mxu0 %v7525
    %7611 = vmatpush.msra.mxu0 %v7523
    %7612 = vmatpush.msra.mxu0 %v7521
    %7613 = vmatpush.msra.mxu0 %v7519
    %7614 = vmatpush.msra.mxu0 %v7517
    %7615 = vmatpush.msra.mxu0 %v7515
    %7616 = vmatpush.msra.mxu0 %v7513
    %7617 = vmatpush.msra.mxu0 %v7511
    %7618 = vmatpush.msra.mxu0 %v7509
    %7619 = vmatpush.msra.mxu0 %v7507
    %7620 = vmatpush.msra.mxu0 %v7505
    %7621 = vmatpush.msra.mxu0 %v7503
    %7622 = vmatmul.f32.gmra.mxu0 %v7447
    %v7623 = vpop.f32.mrf.mxu0
    %v7624 = vadd.f32 0.0, %v7623
    %7625 = vdwg.mxu0
    %7626 = vmatpush.msra.mxu0 %v7565
    %7627 = vmatpush.msra.mxu0 %v7563
    %7628 = vmatpush.msra.mxu0 %v7561
    %7629 = vmatpush.msra.mxu0 %v7559
    %7630 = vmatpush.msra.mxu0 %v7557
    %7631 = vmatpush.msra.mxu0 %v7555
    %7632 = vmatpush.msra.mxu0 %v7553
    %7633 = vmatpush.msra.mxu0 %v7551
    %7634 = vmatpush.msra.mxu0 %v7549
    %7635 = vmatpush.msra.mxu0 %v7547
    %7636 = vmatpush.msra.mxu0 %v7545
    %7637 = vmatpush.msra.mxu0 %v7543
    %7638 = vmatpush.msra.mxu0 %v7541
    %7639 = vmatpush.msra.mxu0 %v7539
    %7640 = vmatpush.msra.mxu0 %v7537
    %7641 = vmatpush.msra.mxu0 %v7535
    %7642 = vmatmul.f32.gmra.mxu0 %v7499
    %v7643 = vpop.f32.mrf.mxu0
    %v7644 = vadd.f32 %v7624, %v7643
    %7645 = vdwg.mxu0
    %v7646 = vmul.f32 %v7447, %v7447
    %v7647 = vmul.f32 %v7499, %v7499
    %7648 = vmatpush.msra.mxu0 %v7532
    %7649 = vmatpush.msra.mxu0 %v7530
    %7650 = vmatpush.msra.mxu0 %v7528
    %7651 = vmatpush.msra.mxu0 %v7526
    %7652 = vmatpush.msra.mxu0 %v7524
    %7653 = vmatpush.msra.mxu0 %v7522
    %7654 = vmatpush.msra.mxu0 %v7520
    %7655 = vmatpush.msra.mxu0 %v7518
    %7656 = vmatpush.msra.mxu0 %v7516
    %7657 = vmatpush.msra.mxu0 %v7514
    %7658 = vmatpush.msra.mxu0 %v7512
    %7659 = vmatpush.msra.mxu0 %v7510
    %7660 = vmatpush.msra.mxu0 %v7508
    %7661 = vmatpush.msra.mxu0 %v7506
    %7662 = vmatpush.msra.mxu0 %v7504
    %7663 = vmatpush.msra.mxu0 %v7502
    %7664 = vmatmul.f32.gmra.mxu0 %v7646
    %v7665 = vpop.f32.mrf.mxu0
    %v7666 = vadd.f32 0.0, %v7665
    %7667 = vdwg.mxu0
    %7668 = vmatpush.msra.mxu0 %v7564
    %7669 = vmatpush.msra.mxu0 %v7562
    %7670 = vmatpush.msra.mxu0 %v7560
    %7671 = vmatpush.msra.mxu0 %v7558
    %7672 = vmatpush.msra.mxu0 %v7556
    %7673 = vmatpush.msra.mxu0 %v7554
    %7674 = vmatpush.msra.mxu0 %v7552
    %7675 = vmatpush.msra.mxu0 %v7550
    %7676 = vmatpush.msra.mxu0 %v7548
    %7677 = vmatpush.msra.mxu0 %v7546
    %7678 = vmatpush.msra.mxu0 %v7544
    %7679 = vmatpush.msra.mxu0 %v7542
    %7680 = vmatpush.msra.mxu0 %v7540
    %7681 = vmatpush.msra.mxu0 %v7538
    %7682 = vmatpush.msra.mxu0 %v7536
    %7683 = vmatpush.msra.mxu0 %v7534
    %7684 = vmatmul.f32.gmra.mxu0 %v7647
    %v7685 = vpop.f32.mrf.mxu0
    %v7686 = vadd.f32 %v7666, %v7685
    %7687 = vdwg.mxu0
    %7688 = vmatpush.msra.mxu0 %v7533
    %7689 = vmatpush.msra.mxu0 %v7531
    %7690 = vmatpush.msra.mxu0 %v7529
    %7691 = vmatpush.msra.mxu0 %v7527
    %7692 = vmatpush.msra.mxu0 %v7525
    %7693 = vmatpush.msra.mxu0 %v7523
    %7694 = vmatpush.msra.mxu0 %v7521
    %7695 = vmatpush.msra.mxu0 %v7519
    %7696 = vmatpush.msra.mxu0 %v7517
    %7697 = vmatpush.msra.mxu0 %v7515
    %7698 = vmatpush.msra.mxu0 %v7513
    %7699 = vmatpush.msra.mxu0 %v7511
    %7700 = vmatpush.msra.mxu0 %v7509
    %7701 = vmatpush.msra.mxu0 %v7507
    %7702 = vmatpush.msra.mxu0 %v7505
    %7703 = vmatpush.msra.mxu0 %v7503
    %7704 = vmatmul.f32.gmra.mxu0 %v7646
    %v7705 = vpop.f32.mrf.mxu0
    %v7706 = vadd.f32 0.0, %v7705
    %7707 = vdwg.mxu0
    %7708 = vmatpush.msra.mxu0 %v7565
    %7709 = vmatpush.msra.mxu0 %v7563
    %7710 = vmatpush.msra.mxu0 %v7561
    %7711 = vmatpush.msra.mxu0 %v7559
    %7712 = vmatpush.msra.mxu0 %v7557
    %7713 = vmatpush.msra.mxu0 %v7555
    %7714 = vmatpush.msra.mxu0 %v7553
    %7715 = vmatpush.msra.mxu0 %v7551
    %7716 = vmatpush.msra.mxu0 %v7549
    %7717 = vmatpush.msra.mxu0 %v7547
    %7718 = vmatpush.msra.mxu0 %v7545
    %7719 = vmatpush.msra.mxu0 %v7543
    %7720 = vmatpush.msra.mxu0 %v7541
    %7721 = vmatpush.msra.mxu0 %v7539
    %7722 = vmatpush.msra.mxu0 %v7537
    %7723 = vmatpush.msra.mxu0 %v7535
    %7724 = vmatmul.f32.gmra.mxu0 %v7647
    %v7725 = vpop.f32.mrf.mxu0
    %v7726 = vadd.f32 %v7706, %v7725
    %7727 = vdwg.mxu0
    %v7728 = vmul.f32 %v7604, %v7604
    %v7729 = vmul.f32 %v7644, %v7644
    %v7730 = vsub.f32 %v7686, %v7728
    %v7731 = vsub.f32 %v7726, %v7729
    %v7732 = vsub.f32 %v7447, %v7604
    %v7733 = vsub.f32 %v7499, %v7644
    %v7734 = vadd.f32 %v7730, 1e-05
    %v7735 = vadd.f32 %v7731, 1e-05
    %v7736 = vrsqrt.pop %v7734
    %v7737 = vmul.f32 %v7736, %v7734
    %v7738 = vmul.f32 %v7737, %v7736
    %v7739 = vmul.f32 0.5, %v7738
    %v7740 = vsub.f32 1.5, %v7739
    %v7741 = vmul.f32 %v7736, %v7740
    %vm7742 = vweird.f32 %v7734
    %vm7743 = vweird.f32 %v7736
    %vm7744 = vmor %vm7742, %vm7743
    %v7745 = vsel %vm7744, %v7736, %v7741
    %v7746 = vrsqrt.pop %v7735
    %v7747 = vmul.f32 %v7746, %v7735
    %v7748 = vmul.f32 %v7747, %v7746
    %v7749 = vmul.f32 0.5, %v7748
    %v7750 = vsub.f32 1.5, %v7749
    %v7751 = vmul.f32 %v7746, %v7750
    %vm7752 = vweird.f32 %v7735
    %vm7753 = vweird.f32 %v7746
    %vm7754 = vmor %vm7752, %vm7753
    %v7755 = vsel %vm7754, %v7746, %v7751
    %v7756 = vmul.f32 %v7732, %v7745
    %v7757 = vmul.f32 %v7733, %v7755
    %vm7758 = vcmp.ge.f32.partialorder %v7756, 0.0
    %vm7759 = vcmp.ge.f32.partialorder %v7757, 0.0
    %v7760 = vmul.f32 %v7756, 0.2
    %v7761 = vmul.f32 %v7757, 0.2
    %v7762 = vsel %vm7758, %v7756, %v7760
    %v7763 = vsel %vm7759, %v7757, %v7761
    %v7764 = vld [vmem:[#allocation10] sm:$0x3]
    %v7766 = vperm.slane %v7764, 0
    %v7767 = vperm.slane %v7764, 1
    %v7770 = vmul.f32 %v7762, %v7766
    %v7771 = vmul.f32 %v7763, %v7767
    %v7772 = vadd.f32 %v7770, %v7771
    %7773 = vadd.xlane.f32.xlu0 %v7772
    %v7774 = vpop.xlane.xlu0 %7773
    %v7775 = vxor.u32 %v7774, 2147483648
    %v7776 = vmul.f32 %v7775, 1.442695
    %v7777 = vpow.pop %v7776
    %v7778 = vadd.f32 %v7777, 1.0
    %v7779 = vrcp.pop %v7778
    %v7780 = vmul.f32 %v7778, %v7779
    %v7781 = vsub.f32 1.0, %v7780
    %v7782 = vmul.f32 %v7779, %v7781
    %v7783 = vadd.f32 %v7779, %v7782
    %vm7784 = vweird.f32 %v7778
    %vm7785 = vweird.f32 %v7779
    %vm7786 = vmor %vm7784, %vm7785
    %v7787 = vsel %vm7786, %v7779, %v7783
    %v7788 = vand.u32 2147483647, %v7778
    %vm7789 = vcmp.eq.f32.partialorder %v7788, 8.507059e+37
    %v7790 = vand.u32 %v7778, 2147483648
    %v7791 = vor.u32 1.1754944e-38, %v7790
    %v7792 = vsel %vm7789, %v7791, %v7787
    %v7793 = vmul.f32 1.0, %v7792
    %vm7794 = vcmask 7168
    %7795 = vst.msk [vmem:[%s7] sm:$0xff] %vm7794, %v7793
    // Predicated region
    $region54: #{make_dis_forward.1} parent=1 // pred_check
      _
    $region55: #{make_dis_forward.1} parent=1 // pred_check_branch
      %7797 = sbr.rel (0) target = $region57
    $region56: #{make_dis_forward.1} parent=1 // pred_region
      _
    $region57: #{make_dis_forward.1} parent=1 // pred_fallthru
      _
    // Predicated region
    $region58: #{make_dis_forward.1} parent=1 // pred_check
      _
    $region59: #{make_dis_forward.1} parent=1 // pred_check_branch
      %7799 = sbr.rel (0) target = $region61
    $region60: #{make_dis_forward.1} parent=1 // pred_region
      _
    $region61: #{make_dis_forward.1} parent=1 // pred_fallthru
      _
    %7800 = vsyncpa [#allocation3], 1
    %7801 = vsyncpa [#allocation5], 1
    %7802 = vsyncpa [#allocation8], 1
    %7803 = vsyncpa [#allocation11], 1

</llo_original>
